<compile_context>
chip_gen: v6e
topology: v6e:2x2x1
jax: 0.10.0
libtpu: 0.0.40
codegen_flags: <defaults>
</compile_context>

<pallas_src>
import numpy as np
import jax
import jax.numpy as jnp
from jax.experimental import pallas as pl
from jax.experimental.pallas import tpu as pltpu

LANES = 128          # channel padding width (lane dimension)
LRELU_SLOPE = 0.2


# ---------------------------------------------------------------------------
# Fused Pallas kernel
# ---------------------------------------------------------------------------
def _discriminator_kernel(img_ref,
                          w1_ref, s1_ref, p1_ref,
                          w2_ref, s2_ref, p2_ref,
                          w3_ref, s3_ref, p3_ref,
                          w4_ref, s4_ref, p4_ref,
                          wd_ref, bd_ref,
                          o_ref):
    def conv_block(act, w_ref, s_ref, p_ref):
        # act:   (M_in, 128) bf16   -- rows ordered (n, h, w), lanes = channels
        # w_ref: (128, 9*128) bf16  -- packed conv weight, [cin, tap*128 + cout]
        # s_ref: (9, M_out, M_in) bf16 -- 0/1 tap-selection (stride-2/pad-1 gather)
        # p_ref: (3, 128) f32       -- rows: conv bias, BN scale, BN shift
        m_out = s_ref.shape[1]
        # One MXU matmul produces all 9 tap contributions at once.
        t = jnp.dot(act, w_ref[...], preferred_element_type=jnp.float32)
        t = t.astype(jnp.bfloat16)                       # (M_in, 9*128)
        z = jnp.zeros((m_out, LANES), jnp.float32)
        for kk in range(9):                              # static unroll (9 taps)
            z = z + jnp.dot(s_ref[kk], t[:, kk * LANES:(kk + 1) * LANES],
                            preferred_element_type=jnp.float32)
        z = z + p_ref[0:1, :]                            # conv bias
        z = jnp.where(z > 0.0, z, LRELU_SLOPE * z)       # LeakyReLU(0.2)
        # TODO(synk): Dropout2d(0.25) is identity in eval mode (no RNG in fwd).
        z = z * p_ref[1:2, :] + p_ref[2:3, :]            # eval-mode BatchNorm affine
        return z.astype(jnp.bfloat16)

    a = img_ref[...]                                     # (N*H*W, 128) bf16
    a = conv_block(a, w1_ref, s1_ref, p1_ref)            # (128, 128)
    a = conv_block(a, w2_ref, s2_ref, p2_ref)            # (32, 128)
    a = conv_block(a, w3_ref, s3_ref, p3_ref)            # (8, 128)
    a = conv_block(a, w4_ref, s4_ref, p4_ref)            # (8, 128)  (rows padded)
    y = jnp.dot(a, wd_ref[...], preferred_element_type=jnp.float32) + bd_ref[...]
    o_ref[...] = 1.0 / (1.0 + jnp.exp(-y))               # Sigmoid (exp on EUP)


def _full_spec(shape):
    # Whole-array block (no grid): block_shape == full array dims, so the
    # (8,128) divisibility constraint does not apply.
    return pl.BlockSpec(shape, lambda: tuple(0 for _ in shape))


def discriminator_pallas(img_flat, packed):
    ops = [img_flat]
    for w, s, p in packed["conv"]:
        ops += [w, s, p]
    ops += [packed["wd"], packed["bd"]]
    m_out = packed["conv"][-1][1].shape[1]               # padded final row count
    return pl.pallas_call(
        _discriminator_kernel,
        out_shape=jax.ShapeDtypeStruct((m_out, LANES), jnp.float32),
        in_specs=[_full_spec(a.shape) for a in ops],
        out_specs=_full_spec((m_out, LANES)),
        compiler_params=pltpu.CompilerParams(vmem_limit_bytes=32 * 1024 * 1024),
    )(*ops)


# ---------------------------------------------------------------------------
# One-time host-side packing (hoisted out of the jitted forward)
# ---------------------------------------------------------------------------
def _round_up(x, m):
    return ((x + m - 1) // m) * m


def _selection_matrices(n, h, w, m_in_rows):
    """0/1 matrices implementing the 3x3 / stride-2 / pad-1 im2col gather."""
    oh, ow = h // 2, w // 2
    m_out = n * oh * ow
    m_out_pad = max(8, _round_up(m_out, 8))              # sublane-pad rows
    s = np.zeros((9, m_out_pad, m_in_rows), np.float32)
    for bi in range(n):
        for r in range(oh):
            for c in range(ow):
                mo = (bi * oh + r) * ow + c
                for di in range(3):
                    for dj in range(3):
                        ih, iw = 2 * r + di - 1, 2 * c + dj - 1
                        if 0 <= ih < h and 0 <= iw < w:
                            s[di * 3 + dj, mo, (bi * h + ih) * w + iw] = 1.0
    return s, m_out_pad, oh


def _pack_conv_weight(w):
    """(cout, cin, 3, 3) OIHW -> (128, 9*128), layout [cin_pad, tap*128 + cout_pad]."""
    w = np.asarray(w, np.float32)
    cout, cin = w.shape[:2]
    wf = np.zeros((LANES, 9, LANES), np.float32)
    for di in range(3):
        for dj in range(3):
            wf[:cin, di * 3 + dj, :cout] = w[:, :, di, dj].T    # (cin, cout)
    return wf.reshape(LANES, 9 * LANES)


def pack_params(conv_params, lin_w, lin_b, n, img_size):
    packed_conv = []
    h = img_size
    m_in = n * h * h
    for p in conv_params:
        s_np, m_out_pad, oh = _selection_matrices(n, h, h, m_in)
        wf = _pack_conv_weight(p["w"])
        cout = p["w"].shape[0]
        epi = np.zeros((3, LANES), np.float32)
        epi[0, :cout] = np.asarray(p["b"])                # bias   (0 in padding)
        epi[1, :] = 1.0
        epi[1, :cout] = np.asarray(p["scale"])            # scale  (1 in padding)
        epi[2, :cout] = np.asarray(p["shift"])            # shift  (0 in padding)
        packed_conv.append((jnp.asarray(wf, jnp.bfloat16),
                            jnp.asarray(s_np, jnp.bfloat16),
                            jnp.asarray(epi, jnp.float32)))
        h = oh
        m_in = m_out_pad
    assert h == 1, "demo assumes img_size // 2**4 == 1 (matches PyTorch flatten)"
    wd = np.zeros((LANES, LANES), np.float32)
    wd[:lin_w.shape[1], 0] = np.asarray(lin_w)[0, :]      # dense output lane-padded to 128
    bd = np.zeros((1, LANES), np.float32)
    bd[0, 0] = float(lin_b[0])
    return dict(conv=packed_conv,
                wd=jnp.asarray(wd, jnp.bfloat16),
                bd=jnp.asarray(bd, jnp.float32))


# ---------------------------------------------------------------------------
# Forward (jitted) + synthetic params + pure-JAX reference
# ---------------------------------------------------------------------------
@jax.jit
def discriminator_forward(img_nchw, packed):
    n, c, h, w = img_nchw.shape
    x = jnp.transpose(img_nchw, (0, 2, 3, 1)).astype(jnp.float32)   # NCHW -> NHWC
    x = x.reshape(n * h * w, c)
    x = jnp.pad(x, ((0, 0), (0, LANES - c))).astype(jnp.bfloat16)   # lane-pad channels
    out = discriminator_pallas(x, packed)
    return out[:n, :1]


def init_params(key, channels, img_size):
    """Deterministic synthetic parameters matching the PyTorch module shapes."""
    layer_dims = [(channels, 16, False), (16, 32, True), (32, 64, True), (64, 128, True)]
    conv_params = []
    eps = 1e-5
    for cin, cout, bn in layer_dims:
        key, kw, kb, kg, kbt, km, kv = jax.random.split(key, 7)
        w = 0.1 * jax.random.normal(kw, (cout, cin, 3, 3), jnp.float32)   # OIHW
        b = 0.05 * jax.random.normal(kb, (cout,), jnp.float32)
        if bn:
            gamma = 1.0 + 0.2 * jax.random.normal(kg, (cout,), jnp.float32)
            beta = 0.1 * jax.random.normal(kbt, (cout,), jnp.float32)
            running_mean = 0.05 * jax.random.normal(km, (cout,), jnp.float32)
            running_var = 1.0 + 0.1 * jnp.abs(jax.random.normal(kv, (cout,), jnp.float32))
            scale = gamma / jnp.sqrt(running_var + eps)
            shift = beta - running_mean * scale
        else:
            scale = jnp.ones((cout,), jnp.float32)
            shift = jnp.zeros((cout,), jnp.float32)
        conv_params.append(dict(w=w, b=b, scale=scale, shift=shift))
    ds = img_size // 2 ** 4
    key, kl = jax.random.split(key)
    lin_w = 0.1 * jax.random.normal(kl, (1, 128 * ds * ds), jnp.float32)
    lin_b = jnp.zeros((1,), jnp.float32)
    return conv_params, lin_w, lin_b


def reference_forward(img_nchw, conv_params, lin_w, lin_b):
    """Pure-JAX f32 reference of the PyTorch forward (eval mode)."""
    x = jnp.transpose(img_nchw, (0, 2, 3, 1)).astype(jnp.float32)
    for p in conv_params:
        k = jnp.transpose(p["w"], (2, 3, 1, 0))           # OIHW -> HWIO
        x = jax.lax.conv_general_dilated(
            x, k, window_strides=(2, 2), padding=((1, 1), (1, 1)),
            dimension_numbers=("NHWC", "HWIO", "NHWC"),
            precision=jax.lax.Precision.HIGHEST)
        x = x + p["b"]
        x = jnp.where(x > 0.0, x, LRELU_SLOPE * x)
        x = x * p["scale"] + p["shift"]
    n = x.shape[0]
    flat = jnp.transpose(x, (0, 3, 1, 2)).reshape(n, -1)  # C,H,W flatten (PyTorch .view)
    logit = flat @ lin_w.T + lin_b
    return jax.nn.sigmoid(logit)


# ---------------------------------------------------------------------------
if __name__ == "__main__":
    batch, channels, img_size = 2, 4, 16    # img_size // 2**4 == 1

    key = jax.random.PRNGKey(0)
    key, k_img = jax.random.split(key)
    img = jax.random.normal(k_img, (batch, channels, img_size, img_size), jnp.float32)

    conv_params, lin_w, lin_b = init_params(key, channels, img_size)
    packed = pack_params(conv_params, lin_w, lin_b, batch, img_size)

    validity = discriminator_forward(img, packed)
    validity = jax.block_until_ready(validity)

    assert validity.shape == (batch, 1), validity.shape
    assert bool(jnp.all(jnp.isfinite(validity)))
    assert bool(jnp.all((validity >= 0.0) & (validity <= 1.0)))

    ref = reference_forward(img, conv_params, lin_w, lin_b)
    assert bool(jnp.allclose(validity, ref, atol=5e-2)), (validity, ref)
    print("KERNEL_OK")
</pallas_src>

<mosaic_0001>
module attributes {stable_mosaic.version = 11 : i64} {
  func.func @_discriminator_kernel(%arg0: memref<512x128xbf16, #tpu.memory_space<vmem>>, %arg1: memref<128x1152xbf16, #tpu.memory_space<vmem>>, %arg2: memref<9x128x512xbf16, #tpu.memory_space<vmem>>, %arg3: memref<3x128xf32, #tpu.memory_space<vmem>>, %arg4: memref<128x1152xbf16, #tpu.memory_space<vmem>>, %arg5: memref<9x32x128xbf16, #tpu.memory_space<vmem>>, %arg6: memref<3x128xf32, #tpu.memory_space<vmem>>, %arg7: memref<128x1152xbf16, #tpu.memory_space<vmem>>, %arg8: memref<9x8x32xbf16, #tpu.memory_space<vmem>>, %arg9: memref<3x128xf32, #tpu.memory_space<vmem>>, %arg10: memref<128x1152xbf16, #tpu.memory_space<vmem>>, %arg11: memref<9x8x8xbf16, #tpu.memory_space<vmem>>, %arg12: memref<3x128xf32, #tpu.memory_space<vmem>>, %arg13: memref<128x128xbf16, #tpu.memory_space<vmem>>, %arg14: memref<1x128xf32, #tpu.memory_space<vmem>>, %arg15: memref<8x128xf32, #tpu.memory_space<vmem>>) attributes {dimension_semantics = [], scalar_prefetch = 0 : i64, scratch_operands = 0 : i64, tpu.core_type = #tpu.core_type<tc>} {
    %c0 = arith.constant 0 : index
    %c0_0 = arith.constant 0 : index
    %0 = vector.load %arg0[%c0, %c0_0] : memref<512x128xbf16, #tpu.memory_space<vmem>>, vector<512x128xbf16>
    %c0_1 = arith.constant 0 : index
    %c0_2 = arith.constant 0 : index
    %1 = vector.load %arg1[%c0_1, %c0_2] : memref<128x1152xbf16, #tpu.memory_space<vmem>>, vector<128x1152xbf16>
    %cst = arith.constant dense<0.000000e+00> : vector<512x1152xf32>
    %2 = tpu.matmul %0, %1, %cst {dimension_numbers = #tpu.dot_dimension_numbers<[1], [0], [0], [1], [0, 0, 1, 1], [], []>} : vector<512x128xbf16>, vector<128x1152xbf16>, vector<512x1152xf32> -> vector<512x1152xf32>
    %3 = arith.truncf %2 : vector<512x1152xf32> to vector<512x1152xbf16>
    %cst_3 = arith.constant 0.000000e+00 : f32
    %4 = vector.broadcast %cst_3 : f32 to vector<128x128xf32>
    %c0_4 = arith.constant 0 : index
    %c0_5 = arith.constant 0 : index
    %c0_6 = arith.constant 0 : index
    %5 = vector.load %arg2[%c0_4, %c0_5, %c0_6] : memref<9x128x512xbf16, #tpu.memory_space<vmem>>, vector<1x128x512xbf16>
    %6 = vector.shape_cast %5 : vector<1x128x512xbf16> to vector<128x512xbf16>
    %7 = vector.extract_strided_slice %3 {offsets = [0, 0], sizes = [512, 128], strides = [1, 1]} : vector<512x1152xbf16> to vector<512x128xbf16>
    %cst_7 = arith.constant dense<0.000000e+00> : vector<128x128xf32>
    %8 = tpu.matmul %6, %7, %cst_7 {dimension_numbers = #tpu.dot_dimension_numbers<[1], [0], [0], [1], [0, 0, 1, 1], [], []>} : vector<128x512xbf16>, vector<512x128xbf16>, vector<128x128xf32> -> vector<128x128xf32>
    %9 = arith.addf %4, %8 : vector<128x128xf32>
    %c1 = arith.constant 1 : index
    %c0_8 = arith.constant 0 : index
    %c0_9 = arith.constant 0 : index
    %10 = vector.load %arg2[%c1, %c0_8, %c0_9] : memref<9x128x512xbf16, #tpu.memory_space<vmem>>, vector<1x128x512xbf16>
    %11 = vector.shape_cast %10 : vector<1x128x512xbf16> to vector<128x512xbf16>
    %12 = vector.extract_strided_slice %3 {offsets = [0, 128], sizes = [512, 128], strides = [1, 1]} : vector<512x1152xbf16> to vector<512x128xbf16>
    %cst_10 = arith.constant dense<0.000000e+00> : vector<128x128xf32>
    %13 = tpu.matmul %11, %12, %cst_10 {dimension_numbers = #tpu.dot_dimension_numbers<[1], [0], [0], [1], [0, 0, 1, 1], [], []>} : vector<128x512xbf16>, vector<512x128xbf16>, vector<128x128xf32> -> vector<128x128xf32>
    %14 = arith.addf %9, %13 : vector<128x128xf32>
    %c2 = arith.constant 2 : index
    %c0_11 = arith.constant 0 : index
    %c0_12 = arith.constant 0 : index
    %15 = vector.load %arg2[%c2, %c0_11, %c0_12] : memref<9x128x512xbf16, #tpu.memory_space<vmem>>, vector<1x128x512xbf16>
    %16 = vector.shape_cast %15 : vector<1x128x512xbf16> to vector<128x512xbf16>
    %17 = vector.extract_strided_slice %3 {offsets = [0, 256], sizes = [512, 128], strides = [1, 1]} : vector<512x1152xbf16> to vector<512x128xbf16>
    %cst_13 = arith.constant dense<0.000000e+00> : vector<128x128xf32>
    %18 = tpu.matmul %16, %17, %cst_13 {dimension_numbers = #tpu.dot_dimension_numbers<[1], [0], [0], [1], [0, 0, 1, 1], [], []>} : vector<128x512xbf16>, vector<512x128xbf16>, vector<128x128xf32> -> vector<128x128xf32>
    %19 = arith.addf %14, %18 : vector<128x128xf32>
    %c3 = arith.constant 3 : index
    %c0_14 = arith.constant 0 : index
    %c0_15 = arith.constant 0 : index
    %20 = vector.load %arg2[%c3, %c0_14, %c0_15] : memref<9x128x512xbf16, #tpu.memory_space<vmem>>, vector<1x128x512xbf16>
    %21 = vector.shape_cast %20 : vector<1x128x512xbf16> to vector<128x512xbf16>
    %22 = vector.extract_strided_slice %3 {offsets = [0, 384], sizes = [512, 128], strides = [1, 1]} : vector<512x1152xbf16> to vector<512x128xbf16>
    %cst_16 = arith.constant dense<0.000000e+00> : vector<128x128xf32>
    %23 = tpu.matmul %21, %22, %cst_16 {dimension_numbers = #tpu.dot_dimension_numbers<[1], [0], [0], [1], [0, 0, 1, 1], [], []>} : vector<128x512xbf16>, vector<512x128xbf16>, vector<128x128xf32> -> vector<128x128xf32>
    %24 = arith.addf %19, %23 : vector<128x128xf32>
    %c4 = arith.constant 4 : index
    %c0_17 = arith.constant 0 : index
    %c0_18 = arith.constant 0 : index
    %25 = vector.load %arg2[%c4, %c0_17, %c0_18] : memref<9x128x512xbf16, #tpu.memory_space<vmem>>, vector<1x128x512xbf16>
    %26 = vector.shape_cast %25 : vector<1x128x512xbf16> to vector<128x512xbf16>
    %27 = vector.extract_strided_slice %3 {offsets = [0, 512], sizes = [512, 128], strides = [1, 1]} : vector<512x1152xbf16> to vector<512x128xbf16>
    %cst_19 = arith.constant dense<0.000000e+00> : vector<128x128xf32>
    %28 = tpu.matmul %26, %27, %cst_19 {dimension_numbers = #tpu.dot_dimension_numbers<[1], [0], [0], [1], [0, 0, 1, 1], [], []>} : vector<128x512xbf16>, vector<512x128xbf16>, vector<128x128xf32> -> vector<128x128xf32>
    %29 = arith.addf %24, %28 : vector<128x128xf32>
    %c5 = arith.constant 5 : index
    %c0_20 = arith.constant 0 : index
    %c0_21 = arith.constant 0 : index
    %30 = vector.load %arg2[%c5, %c0_20, %c0_21] : memref<9x128x512xbf16, #tpu.memory_space<vmem>>, vector<1x128x512xbf16>
    %31 = vector.shape_cast %30 : vector<1x128x512xbf16> to vector<128x512xbf16>
    %32 = vector.extract_strided_slice %3 {offsets = [0, 640], sizes = [512, 128], strides = [1, 1]} : vector<512x1152xbf16> to vector<512x128xbf16>
    %cst_22 = arith.constant dense<0.000000e+00> : vector<128x128xf32>
    %33 = tpu.matmul %31, %32, %cst_22 {dimension_numbers = #tpu.dot_dimension_numbers<[1], [0], [0], [1], [0, 0, 1, 1], [], []>} : vector<128x512xbf16>, vector<512x128xbf16>, vector<128x128xf32> -> vector<128x128xf32>
    %34 = arith.addf %29, %33 : vector<128x128xf32>
    %c6 = arith.constant 6 : index
    %c0_23 = arith.constant 0 : index
    %c0_24 = arith.constant 0 : index
    %35 = vector.load %arg2[%c6, %c0_23, %c0_24] : memref<9x128x512xbf16, #tpu.memory_space<vmem>>, vector<1x128x512xbf16>
    %36 = vector.shape_cast %35 : vector<1x128x512xbf16> to vector<128x512xbf16>
    %37 = vector.extract_strided_slice %3 {offsets = [0, 768], sizes = [512, 128], strides = [1, 1]} : vector<512x1152xbf16> to vector<512x128xbf16>
    %cst_25 = arith.constant dense<0.000000e+00> : vector<128x128xf32>
    %38 = tpu.matmul %36, %37, %cst_25 {dimension_numbers = #tpu.dot_dimension_numbers<[1], [0], [0], [1], [0, 0, 1, 1], [], []>} : vector<128x512xbf16>, vector<512x128xbf16>, vector<128x128xf32> -> vector<128x128xf32>
    %39 = arith.addf %34, %38 : vector<128x128xf32>
    %c7 = arith.constant 7 : index
    %c0_26 = arith.constant 0 : index
    %c0_27 = arith.constant 0 : index
    %40 = vector.load %arg2[%c7, %c0_26, %c0_27] : memref<9x128x512xbf16, #tpu.memory_space<vmem>>, vector<1x128x512xbf16>
    %41 = vector.shape_cast %40 : vector<1x128x512xbf16> to vector<128x512xbf16>
    %42 = vector.extract_strided_slice %3 {offsets = [0, 896], sizes = [512, 128], strides = [1, 1]} : vector<512x1152xbf16> to vector<512x128xbf16>
    %cst_28 = arith.constant dense<0.000000e+00> : vector<128x128xf32>
    %43 = tpu.matmul %41, %42, %cst_28 {dimension_numbers = #tpu.dot_dimension_numbers<[1], [0], [0], [1], [0, 0, 1, 1], [], []>} : vector<128x512xbf16>, vector<512x128xbf16>, vector<128x128xf32> -> vector<128x128xf32>
    %44 = arith.addf %39, %43 : vector<128x128xf32>
    %c8 = arith.constant 8 : index
    %c0_29 = arith.constant 0 : index
    %c0_30 = arith.constant 0 : index
    %45 = vector.load %arg2[%c8, %c0_29, %c0_30] : memref<9x128x512xbf16, #tpu.memory_space<vmem>>, vector<1x128x512xbf16>
    %46 = vector.shape_cast %45 : vector<1x128x512xbf16> to vector<128x512xbf16>
    %47 = vector.extract_strided_slice %3 {offsets = [0, 1024], sizes = [512, 128], strides = [1, 1]} : vector<512x1152xbf16> to vector<512x128xbf16>
    %cst_31 = arith.constant dense<0.000000e+00> : vector<128x128xf32>
    %48 = tpu.matmul %46, %47, %cst_31 {dimension_numbers = #tpu.dot_dimension_numbers<[1], [0], [0], [1], [0, 0, 1, 1], [], []>} : vector<128x512xbf16>, vector<512x128xbf16>, vector<128x128xf32> -> vector<128x128xf32>
    %49 = arith.addf %44, %48 : vector<128x128xf32>
    %c0_32 = arith.constant 0 : index
    %c0_33 = arith.constant 0 : index
    %50 = vector.load %arg3[%c0_32, %c0_33] : memref<3x128xf32, #tpu.memory_space<vmem>>, vector<1x128xf32>
    %51 = vector.broadcast %50 : vector<1x128xf32> to vector<128x128xf32>
    %52 = arith.addf %49, %51 : vector<128x128xf32>
    %cst_34 = arith.constant 0.000000e+00 : f32
    %53 = vector.broadcast %cst_34 : f32 to vector<128x128xf32>
    %54 = arith.cmpf ogt, %52, %53 : vector<128x128xf32>
    %cst_35 = arith.constant 2.000000e-01 : f32
    %55 = vector.broadcast %cst_35 : f32 to vector<128x128xf32>
    %56 = arith.mulf %55, %52 : vector<128x128xf32>
    %57 = arith.select %54, %52, %56 : vector<128x128xi1>, vector<128x128xf32>
    %c1_36 = arith.constant 1 : index
    %c0_37 = arith.constant 0 : index
    %58 = vector.load %arg3[%c1_36, %c0_37] : memref<3x128xf32, #tpu.memory_space<vmem>>, vector<1x128xf32>
    %59 = vector.broadcast %58 : vector<1x128xf32> to vector<128x128xf32>
    %60 = arith.mulf %57, %59 : vector<128x128xf32>
    %c2_38 = arith.constant 2 : index
    %c0_39 = arith.constant 0 : index
    %61 = vector.load %arg3[%c2_38, %c0_39] : memref<3x128xf32, #tpu.memory_space<vmem>>, vector<1x128xf32>
    %62 = vector.broadcast %61 : vector<1x128xf32> to vector<128x128xf32>
    %63 = arith.addf %60, %62 : vector<128x128xf32>
    %64 = arith.truncf %63 : vector<128x128xf32> to vector<128x128xbf16>
    %c0_40 = arith.constant 0 : index
    %c0_41 = arith.constant 0 : index
    %65 = vector.load %arg4[%c0_40, %c0_41] : memref<128x1152xbf16, #tpu.memory_space<vmem>>, vector<128x1152xbf16>
    %cst_42 = arith.constant dense<0.000000e+00> : vector<128x1152xf32>
    %66 = tpu.matmul %64, %65, %cst_42 {dimension_numbers = #tpu.dot_dimension_numbers<[1], [0], [0], [1], [0, 0, 1, 1], [], []>} : vector<128x128xbf16>, vector<128x1152xbf16>, vector<128x1152xf32> -> vector<128x1152xf32>
    %67 = arith.truncf %66 : vector<128x1152xf32> to vector<128x1152xbf16>
    %cst_43 = arith.constant 0.000000e+00 : f32
    %68 = vector.broadcast %cst_43 : f32 to vector<32x128xf32>
    %c0_44 = arith.constant 0 : index
    %c0_45 = arith.constant 0 : index
    %c0_46 = arith.constant 0 : index
    %69 = vector.load %arg5[%c0_44, %c0_45, %c0_46] : memref<9x32x128xbf16, #tpu.memory_space<vmem>>, vector<1x32x128xbf16>
    %70 = vector.shape_cast %69 : vector<1x32x128xbf16> to vector<32x128xbf16>
    %71 = vector.extract_strided_slice %67 {offsets = [0, 0], sizes = [128, 128], strides = [1, 1]} : vector<128x1152xbf16> to vector<128x128xbf16>
    %cst_47 = arith.constant dense<0.000000e+00> : vector<32x128xf32>
    %72 = tpu.matmul %70, %71, %cst_47 {dimension_numbers = #tpu.dot_dimension_numbers<[1], [0], [0], [1], [0, 0, 1, 1], [], []>} : vector<32x128xbf16>, vector<128x128xbf16>, vector<32x128xf32> -> vector<32x128xf32>
    %73 = arith.addf %68, %72 : vector<32x128xf32>
    %c1_48 = arith.constant 1 : index
    %c0_49 = arith.constant 0 : index
    %c0_50 = arith.constant 0 : index
    %74 = vector.load %arg5[%c1_48, %c0_49, %c0_50] : memref<9x32x128xbf16, #tpu.memory_space<vmem>>, vector<1x32x128xbf16>
    %75 = vector.shape_cast %74 : vector<1x32x128xbf16> to vector<32x128xbf16>
    %76 = vector.extract_strided_slice %67 {offsets = [0, 128], sizes = [128, 128], strides = [1, 1]} : vector<128x1152xbf16> to vector<128x128xbf16>
    %cst_51 = arith.constant dense<0.000000e+00> : vector<32x128xf32>
    %77 = tpu.matmul %75, %76, %cst_51 {dimension_numbers = #tpu.dot_dimension_numbers<[1], [0], [0], [1], [0, 0, 1, 1], [], []>} : vector<32x128xbf16>, vector<128x128xbf16>, vector<32x128xf32> -> vector<32x128xf32>
    %78 = arith.addf %73, %77 : vector<32x128xf32>
    %c2_52 = arith.constant 2 : index
    %c0_53 = arith.constant 0 : index
    %c0_54 = arith.constant 0 : index
    %79 = vector.load %arg5[%c2_52, %c0_53, %c0_54] : memref<9x32x128xbf16, #tpu.memory_space<vmem>>, vector<1x32x128xbf16>
    %80 = vector.shape_cast %79 : vector<1x32x128xbf16> to vector<32x128xbf16>
    %81 = vector.extract_strided_slice %67 {offsets = [0, 256], sizes = [128, 128], strides = [1, 1]} : vector<128x1152xbf16> to vector<128x128xbf16>
    %cst_55 = arith.constant dense<0.000000e+00> : vector<32x128xf32>
    %82 = tpu.matmul %80, %81, %cst_55 {dimension_numbers = #tpu.dot_dimension_numbers<[1], [0], [0], [1], [0, 0, 1, 1], [], []>} : vector<32x128xbf16>, vector<128x128xbf16>, vector<32x128xf32> -> vector<32x128xf32>
    %83 = arith.addf %78, %82 : vector<32x128xf32>
    %c3_56 = arith.constant 3 : index
    %c0_57 = arith.constant 0 : index
    %c0_58 = arith.constant 0 : index
    %84 = vector.load %arg5[%c3_56, %c0_57, %c0_58] : memref<9x32x128xbf16, #tpu.memory_space<vmem>>, vector<1x32x128xbf16>
    %85 = vector.shape_cast %84 : vector<1x32x128xbf16> to vector<32x128xbf16>
    %86 = vector.extract_strided_slice %67 {offsets = [0, 384], sizes = [128, 128], strides = [1, 1]} : vector<128x1152xbf16> to vector<128x128xbf16>
    %cst_59 = arith.constant dense<0.000000e+00> : vector<32x128xf32>
    %87 = tpu.matmul %85, %86, %cst_59 {dimension_numbers = #tpu.dot_dimension_numbers<[1], [0], [0], [1], [0, 0, 1, 1], [], []>} : vector<32x128xbf16>, vector<128x128xbf16>, vector<32x128xf32> -> vector<32x128xf32>
    %88 = arith.addf %83, %87 : vector<32x128xf32>
    %c4_60 = arith.constant 4 : index
    %c0_61 = arith.constant 0 : index
    %c0_62 = arith.constant 0 : index
    %89 = vector.load %arg5[%c4_60, %c0_61, %c0_62] : memref<9x32x128xbf16, #tpu.memory_space<vmem>>, vector<1x32x128xbf16>
    %90 = vector.shape_cast %89 : vector<1x32x128xbf16> to vector<32x128xbf16>
    %91 = vector.extract_strided_slice %67 {offsets = [0, 512], sizes = [128, 128], strides = [1, 1]} : vector<128x1152xbf16> to vector<128x128xbf16>
    %cst_63 = arith.constant dense<0.000000e+00> : vector<32x128xf32>
    %92 = tpu.matmul %90, %91, %cst_63 {dimension_numbers = #tpu.dot_dimension_numbers<[1], [0], [0], [1], [0, 0, 1, 1], [], []>} : vector<32x128xbf16>, vector<128x128xbf16>, vector<32x128xf32> -> vector<32x128xf32>
    %93 = arith.addf %88, %92 : vector<32x128xf32>
    %c5_64 = arith.constant 5 : index
    %c0_65 = arith.constant 0 : index
    %c0_66 = arith.constant 0 : index
    %94 = vector.load %arg5[%c5_64, %c0_65, %c0_66] : memref<9x32x128xbf16, #tpu.memory_space<vmem>>, vector<1x32x128xbf16>
    %95 = vector.shape_cast %94 : vector<1x32x128xbf16> to vector<32x128xbf16>
    %96 = vector.extract_strided_slice %67 {offsets = [0, 640], sizes = [128, 128], strides = [1, 1]} : vector<128x1152xbf16> to vector<128x128xbf16>
    %cst_67 = arith.constant dense<0.000000e+00> : vector<32x128xf32>
    %97 = tpu.matmul %95, %96, %cst_67 {dimension_numbers = #tpu.dot_dimension_numbers<[1], [0], [0], [1], [0, 0, 1, 1], [], []>} : vector<32x128xbf16>, vector<128x128xbf16>, vector<32x128xf32> -> vector<32x128xf32>
    %98 = arith.addf %93, %97 : vector<32x128xf32>
    %c6_68 = arith.constant 6 : index
    %c0_69 = arith.constant 0 : index
    %c0_70 = arith.constant 0 : index
    %99 = vector.load %arg5[%c6_68, %c0_69, %c0_70] : memref<9x32x128xbf16, #tpu.memory_space<vmem>>, vector<1x32x128xbf16>
    %100 = vector.shape_cast %99 : vector<1x32x128xbf16> to vector<32x128xbf16>
    %101 = vector.extract_strided_slice %67 {offsets = [0, 768], sizes = [128, 128], strides = [1, 1]} : vector<128x1152xbf16> to vector<128x128xbf16>
    %cst_71 = arith.constant dense<0.000000e+00> : vector<32x128xf32>
    %102 = tpu.matmul %100, %101, %cst_71 {dimension_numbers = #tpu.dot_dimension_numbers<[1], [0], [0], [1], [0, 0, 1, 1], [], []>} : vector<32x128xbf16>, vector<128x128xbf16>, vector<32x128xf32> -> vector<32x128xf32>
    %103 = arith.addf %98, %102 : vector<32x128xf32>
    %c7_72 = arith.constant 7 : index
    %c0_73 = arith.constant 0 : index
    %c0_74 = arith.constant 0 : index
    %104 = vector.load %arg5[%c7_72, %c0_73, %c0_74] : memref<9x32x128xbf16, #tpu.memory_space<vmem>>, vector<1x32x128xbf16>
    %105 = vector.shape_cast %104 : vector<1x32x128xbf16> to vector<32x128xbf16>
    %106 = vector.extract_strided_slice %67 {offsets = [0, 896], sizes = [128, 128], strides = [1, 1]} : vector<128x1152xbf16> to vector<128x128xbf16>
    %cst_75 = arith.constant dense<0.000000e+00> : vector<32x128xf32>
    %107 = tpu.matmul %105, %106, %cst_75 {dimension_numbers = #tpu.dot_dimension_numbers<[1], [0], [0], [1], [0, 0, 1, 1], [], []>} : vector<32x128xbf16>, vector<128x128xbf16>, vector<32x128xf32> -> vector<32x128xf32>
    %108 = arith.addf %103, %107 : vector<32x128xf32>
    %c8_76 = arith.constant 8 : index
    %c0_77 = arith.constant 0 : index
    %c0_78 = arith.constant 0 : index
    %109 = vector.load %arg5[%c8_76, %c0_77, %c0_78] : memref<9x32x128xbf16, #tpu.memory_space<vmem>>, vector<1x32x128xbf16>
    %110 = vector.shape_cast %109 : vector<1x32x128xbf16> to vector<32x128xbf16>
    %111 = vector.extract_strided_slice %67 {offsets = [0, 1024], sizes = [128, 128], strides = [1, 1]} : vector<128x1152xbf16> to vector<128x128xbf16>
    %cst_79 = arith.constant dense<0.000000e+00> : vector<32x128xf32>
    %112 = tpu.matmul %110, %111, %cst_79 {dimension_numbers = #tpu.dot_dimension_numbers<[1], [0], [0], [1], [0, 0, 1, 1], [], []>} : vector<32x128xbf16>, vector<128x128xbf16>, vector<32x128xf32> -> vector<32x128xf32>
    %113 = arith.addf %108, %112 : vector<32x128xf32>
    %c0_80 = arith.constant 0 : index
    %c0_81 = arith.constant 0 : index
    %114 = vector.load %arg6[%c0_80, %c0_81] : memref<3x128xf32, #tpu.memory_space<vmem>>, vector<1x128xf32>
    %115 = vector.broadcast %114 : vector<1x128xf32> to vector<32x128xf32>
    %116 = arith.addf %113, %115 : vector<32x128xf32>
    %cst_82 = arith.constant 0.000000e+00 : f32
    %117 = vector.broadcast %cst_82 : f32 to vector<32x128xf32>
    %118 = arith.cmpf ogt, %116, %117 : vector<32x128xf32>
    %cst_83 = arith.constant 2.000000e-01 : f32
    %119 = vector.broadcast %cst_83 : f32 to vector<32x128xf32>
    %120 = arith.mulf %119, %116 : vector<32x128xf32>
    %121 = arith.select %118, %116, %120 : vector<32x128xi1>, vector<32x128xf32>
    %c1_84 = arith.constant 1 : index
    %c0_85 = arith.constant 0 : index
    %122 = vector.load %arg6[%c1_84, %c0_85] : memref<3x128xf32, #tpu.memory_space<vmem>>, vector<1x128xf32>
    %123 = vector.broadcast %122 : vector<1x128xf32> to vector<32x128xf32>
    %124 = arith.mulf %121, %123 : vector<32x128xf32>
    %c2_86 = arith.constant 2 : index
    %c0_87 = arith.constant 0 : index
    %125 = vector.load %arg6[%c2_86, %c0_87] : memref<3x128xf32, #tpu.memory_space<vmem>>, vector<1x128xf32>
    %126 = vector.broadcast %125 : vector<1x128xf32> to vector<32x128xf32>
    %127 = arith.addf %124, %126 : vector<32x128xf32>
    %128 = arith.truncf %127 : vector<32x128xf32> to vector<32x128xbf16>
    %c0_88 = arith.constant 0 : index
    %c0_89 = arith.constant 0 : index
    %129 = vector.load %arg7[%c0_88, %c0_89] : memref<128x1152xbf16, #tpu.memory_space<vmem>>, vector<128x1152xbf16>
    %cst_90 = arith.constant dense<0.000000e+00> : vector<32x1152xf32>
    %130 = tpu.matmul %128, %129, %cst_90 {dimension_numbers = #tpu.dot_dimension_numbers<[1], [0], [0], [1], [0, 0, 1, 1], [], []>} : vector<32x128xbf16>, vector<128x1152xbf16>, vector<32x1152xf32> -> vector<32x1152xf32>
    %131 = arith.truncf %130 : vector<32x1152xf32> to vector<32x1152xbf16>
    %cst_91 = arith.constant 0.000000e+00 : f32
    %132 = vector.broadcast %cst_91 : f32 to vector<8x128xf32>
    %c0_92 = arith.constant 0 : index
    %c0_93 = arith.constant 0 : index
    %c0_94 = arith.constant 0 : index
    %133 = vector.load %arg8[%c0_92, %c0_93, %c0_94] : memref<9x8x32xbf16, #tpu.memory_space<vmem>>, vector<1x8x32xbf16>
    %134 = vector.shape_cast %133 : vector<1x8x32xbf16> to vector<8x32xbf16>
    %135 = vector.extract_strided_slice %131 {offsets = [0, 0], sizes = [32, 128], strides = [1, 1]} : vector<32x1152xbf16> to vector<32x128xbf16>
    %cst_95 = arith.constant dense<0.000000e+00> : vector<8x128xf32>
    %136 = tpu.matmul %134, %135, %cst_95 {dimension_numbers = #tpu.dot_dimension_numbers<[1], [0], [0], [1], [0, 0, 1, 1], [], []>} : vector<8x32xbf16>, vector<32x128xbf16>, vector<8x128xf32> -> vector<8x128xf32>
    %137 = arith.addf %132, %136 : vector<8x128xf32>
    %c1_96 = arith.constant 1 : index
    %c0_97 = arith.constant 0 : index
    %c0_98 = arith.constant 0 : index
    %138 = vector.load %arg8[%c1_96, %c0_97, %c0_98] : memref<9x8x32xbf16, #tpu.memory_space<vmem>>, vector<1x8x32xbf16>
    %139 = vector.shape_cast %138 : vector<1x8x32xbf16> to vector<8x32xbf16>
    %140 = vector.extract_strided_slice %131 {offsets = [0, 128], sizes = [32, 128], strides = [1, 1]} : vector<32x1152xbf16> to vector<32x128xbf16>
    %cst_99 = arith.constant dense<0.000000e+00> : vector<8x128xf32>
    %141 = tpu.matmul %139, %140, %cst_99 {dimension_numbers = #tpu.dot_dimension_numbers<[1], [0], [0], [1], [0, 0, 1, 1], [], []>} : vector<8x32xbf16>, vector<32x128xbf16>, vector<8x128xf32> -> vector<8x128xf32>
    %142 = arith.addf %137, %141 : vector<8x128xf32>
    %c2_100 = arith.constant 2 : index
    %c0_101 = arith.constant 0 : index
    %c0_102 = arith.constant 0 : index
    %143 = vector.load %arg8[%c2_100, %c0_101, %c0_102] : memref<9x8x32xbf16, #tpu.memory_space<vmem>>, vector<1x8x32xbf16>
    %144 = vector.shape_cast %143 : vector<1x8x32xbf16> to vector<8x32xbf16>
    %145 = vector.extract_strided_slice %131 {offsets = [0, 256], sizes = [32, 128], strides = [1, 1]} : vector<32x1152xbf16> to vector<32x128xbf16>
    %cst_103 = arith.constant dense<0.000000e+00> : vector<8x128xf32>
    %146 = tpu.matmul %144, %145, %cst_103 {dimension_numbers = #tpu.dot_dimension_numbers<[1], [0], [0], [1], [0, 0, 1, 1], [], []>} : vector<8x32xbf16>, vector<32x128xbf16>, vector<8x128xf32> -> vector<8x128xf32>
    %147 = arith.addf %142, %146 : vector<8x128xf32>
    %c3_104 = arith.constant 3 : index
    %c0_105 = arith.constant 0 : index
    %c0_106 = arith.constant 0 : index
    %148 = vector.load %arg8[%c3_104, %c0_105, %c0_106] : memref<9x8x32xbf16, #tpu.memory_space<vmem>>, vector<1x8x32xbf16>
    %149 = vector.shape_cast %148 : vector<1x8x32xbf16> to vector<8x32xbf16>
    %150 = vector.extract_strided_slice %131 {offsets = [0, 384], sizes = [32, 128], strides = [1, 1]} : vector<32x1152xbf16> to vector<32x128xbf16>
    %cst_107 = arith.constant dense<0.000000e+00> : vector<8x128xf32>
    %151 = tpu.matmul %149, %150, %cst_107 {dimension_numbers = #tpu.dot_dimension_numbers<[1], [0], [0], [1], [0, 0, 1, 1], [], []>} : vector<8x32xbf16>, vector<32x128xbf16>, vector<8x128xf32> -> vector<8x128xf32>
    %152 = arith.addf %147, %151 : vector<8x128xf32>
    %c4_108 = arith.constant 4 : index
    %c0_109 = arith.constant 0 : index
    %c0_110 = arith.constant 0 : index
    %153 = vector.load %arg8[%c4_108, %c0_109, %c0_110] : memref<9x8x32xbf16, #tpu.memory_space<vmem>>, vector<1x8x32xbf16>
    %154 = vector.shape_cast %153 : vector<1x8x32xbf16> to vector<8x32xbf16>
    %155 = vector.extract_strided_slice %131 {offsets = [0, 512], sizes = [32, 128], strides = [1, 1]} : vector<32x1152xbf16> to vector<32x128xbf16>
    %cst_111 = arith.constant dense<0.000000e+00> : vector<8x128xf32>
    %156 = tpu.matmul %154, %155, %cst_111 {dimension_numbers = #tpu.dot_dimension_numbers<[1], [0], [0], [1], [0, 0, 1, 1], [], []>} : vector<8x32xbf16>, vector<32x128xbf16>, vector<8x128xf32> -> vector<8x128xf32>
    %157 = arith.addf %152, %156 : vector<8x128xf32>
    %c5_112 = arith.constant 5 : index
    %c0_113 = arith.constant 0 : index
    %c0_114 = arith.constant 0 : index
    %158 = vector.load %arg8[%c5_112, %c0_113, %c0_114] : memref<9x8x32xbf16, #tpu.memory_space<vmem>>, vector<1x8x32xbf16>
    %159 = vector.shape_cast %158 : vector<1x8x32xbf16> to vector<8x32xbf16>
    %160 = vector.extract_strided_slice %131 {offsets = [0, 640], sizes = [32, 128], strides = [1, 1]} : vector<32x1152xbf16> to vector<32x128xbf16>
    %cst_115 = arith.constant dense<0.000000e+00> : vector<8x128xf32>
    %161 = tpu.matmul %159, %160, %cst_115 {dimension_numbers = #tpu.dot_dimension_numbers<[1], [0], [0], [1], [0, 0, 1, 1], [], []>} : vector<8x32xbf16>, vector<32x128xbf16>, vector<8x128xf32> -> vector<8x128xf32>
    %162 = arith.addf %157, %161 : vector<8x128xf32>
    %c6_116 = arith.constant 6 : index
    %c0_117 = arith.constant 0 : index
    %c0_118 = arith.constant 0 : index
    %163 = vector.load %arg8[%c6_116, %c0_117, %c0_118] : memref<9x8x32xbf16, #tpu.memory_space<vmem>>, vector<1x8x32xbf16>
    %164 = vector.shape_cast %163 : vector<1x8x32xbf16> to vector<8x32xbf16>
    %165 = vector.extract_strided_slice %131 {offsets = [0, 768], sizes = [32, 128], strides = [1, 1]} : vector<32x1152xbf16> to vector<32x128xbf16>
    %cst_119 = arith.constant dense<0.000000e+00> : vector<8x128xf32>
    %166 = tpu.matmul %164, %165, %cst_119 {dimension_numbers = #tpu.dot_dimension_numbers<[1], [0], [0], [1], [0, 0, 1, 1], [], []>} : vector<8x32xbf16>, vector<32x128xbf16>, vector<8x128xf32> -> vector<8x128xf32>
    %167 = arith.addf %162, %166 : vector<8x128xf32>
    %c7_120 = arith.constant 7 : index
    %c0_121 = arith.constant 0 : index
    %c0_122 = arith.constant 0 : index
    %168 = vector.load %arg8[%c7_120, %c0_121, %c0_122] : memref<9x8x32xbf16, #tpu.memory_space<vmem>>, vector<1x8x32xbf16>
    %169 = vector.shape_cast %168 : vector<1x8x32xbf16> to vector<8x32xbf16>
    %170 = vector.extract_strided_slice %131 {offsets = [0, 896], sizes = [32, 128], strides = [1, 1]} : vector<32x1152xbf16> to vector<32x128xbf16>
    %cst_123 = arith.constant dense<0.000000e+00> : vector<8x128xf32>
    %171 = tpu.matmul %169, %170, %cst_123 {dimension_numbers = #tpu.dot_dimension_numbers<[1], [0], [0], [1], [0, 0, 1, 1], [], []>} : vector<8x32xbf16>, vector<32x128xbf16>, vector<8x128xf32> -> vector<8x128xf32>
    %172 = arith.addf %167, %171 : vector<8x128xf32>
    %c8_124 = arith.constant 8 : index
    %c0_125 = arith.constant 0 : index
    %c0_126 = arith.constant 0 : index
    %173 = vector.load %arg8[%c8_124, %c0_125, %c0_126] : memref<9x8x32xbf16, #tpu.memory_space<vmem>>, vector<1x8x32xbf16>
    %174 = vector.shape_cast %173 : vector<1x8x32xbf16> to vector<8x32xbf16>
    %175 = vector.extract_strided_slice %131 {offsets = [0, 1024], sizes = [32, 128], strides = [1, 1]} : vector<32x1152xbf16> to vector<32x128xbf16>
    %cst_127 = arith.constant dense<0.000000e+00> : vector<8x128xf32>
    %176 = tpu.matmul %174, %175, %cst_127 {dimension_numbers = #tpu.dot_dimension_numbers<[1], [0], [0], [1], [0, 0, 1, 1], [], []>} : vector<8x32xbf16>, vector<32x128xbf16>, vector<8x128xf32> -> vector<8x128xf32>
    %177 = arith.addf %172, %176 : vector<8x128xf32>
    %c0_128 = arith.constant 0 : index
    %c0_129 = arith.constant 0 : index
    %178 = vector.load %arg9[%c0_128, %c0_129] : memref<3x128xf32, #tpu.memory_space<vmem>>, vector<1x128xf32>
    %179 = vector.broadcast %178 : vector<1x128xf32> to vector<8x128xf32>
    %180 = arith.addf %177, %179 : vector<8x128xf32>
    %cst_130 = arith.constant 0.000000e+00 : f32
    %181 = vector.broadcast %cst_130 : f32 to vector<8x128xf32>
    %182 = arith.cmpf ogt, %180, %181 : vector<8x128xf32>
    %cst_131 = arith.constant 2.000000e-01 : f32
    %183 = vector.broadcast %cst_131 : f32 to vector<8x128xf32>
    %184 = arith.mulf %183, %180 : vector<8x128xf32>
    %185 = arith.select %182, %180, %184 : vector<8x128xi1>, vector<8x128xf32>
    %c1_132 = arith.constant 1 : index
    %c0_133 = arith.constant 0 : index
    %186 = vector.load %arg9[%c1_132, %c0_133] : memref<3x128xf32, #tpu.memory_space<vmem>>, vector<1x128xf32>
    %187 = vector.broadcast %186 : vector<1x128xf32> to vector<8x128xf32>
    %188 = arith.mulf %185, %187 : vector<8x128xf32>
    %c2_134 = arith.constant 2 : index
    %c0_135 = arith.constant 0 : index
    %189 = vector.load %arg9[%c2_134, %c0_135] : memref<3x128xf32, #tpu.memory_space<vmem>>, vector<1x128xf32>
    %190 = vector.broadcast %189 : vector<1x128xf32> to vector<8x128xf32>
    %191 = arith.addf %188, %190 : vector<8x128xf32>
    %192 = arith.truncf %191 : vector<8x128xf32> to vector<8x128xbf16>
    %c0_136 = arith.constant 0 : index
    %c0_137 = arith.constant 0 : index
    %193 = vector.load %arg10[%c0_136, %c0_137] : memref<128x1152xbf16, #tpu.memory_space<vmem>>, vector<128x1152xbf16>
    %cst_138 = arith.constant dense<0.000000e+00> : vector<8x1152xf32>
    %194 = tpu.matmul %192, %193, %cst_138 {dimension_numbers = #tpu.dot_dimension_numbers<[1], [0], [0], [1], [0, 0, 1, 1], [], []>} : vector<8x128xbf16>, vector<128x1152xbf16>, vector<8x1152xf32> -> vector<8x1152xf32>
    %195 = arith.truncf %194 : vector<8x1152xf32> to vector<8x1152xbf16>
    %cst_139 = arith.constant 0.000000e+00 : f32
    %196 = vector.broadcast %cst_139 : f32 to vector<8x128xf32>
    %c0_140 = arith.constant 0 : index
    %c0_141 = arith.constant 0 : index
    %c0_142 = arith.constant 0 : index
    %197 = vector.load %arg11[%c0_140, %c0_141, %c0_142] : memref<9x8x8xbf16, #tpu.memory_space<vmem>>, vector<1x8x8xbf16>
    %198 = vector.shape_cast %197 : vector<1x8x8xbf16> to vector<8x8xbf16>
    %199 = vector.extract_strided_slice %195 {offsets = [0, 0], sizes = [8, 128], strides = [1, 1]} : vector<8x1152xbf16> to vector<8x128xbf16>
    %cst_143 = arith.constant dense<0.000000e+00> : vector<8x128xf32>
    %200 = tpu.matmul %198, %199, %cst_143 {dimension_numbers = #tpu.dot_dimension_numbers<[1], [0], [0], [1], [0, 0, 1, 1], [], []>} : vector<8x8xbf16>, vector<8x128xbf16>, vector<8x128xf32> -> vector<8x128xf32>
    %201 = arith.addf %196, %200 : vector<8x128xf32>
    %c1_144 = arith.constant 1 : index
    %c0_145 = arith.constant 0 : index
    %c0_146 = arith.constant 0 : index
    %202 = vector.load %arg11[%c1_144, %c0_145, %c0_146] : memref<9x8x8xbf16, #tpu.memory_space<vmem>>, vector<1x8x8xbf16>
    %203 = vector.shape_cast %202 : vector<1x8x8xbf16> to vector<8x8xbf16>
    %204 = vector.extract_strided_slice %195 {offsets = [0, 128], sizes = [8, 128], strides = [1, 1]} : vector<8x1152xbf16> to vector<8x128xbf16>
    %cst_147 = arith.constant dense<0.000000e+00> : vector<8x128xf32>
    %205 = tpu.matmul %203, %204, %cst_147 {dimension_numbers = #tpu.dot_dimension_numbers<[1], [0], [0], [1], [0, 0, 1, 1], [], []>} : vector<8x8xbf16>, vector<8x128xbf16>, vector<8x128xf32> -> vector<8x128xf32>
    %206 = arith.addf %201, %205 : vector<8x128xf32>
    %c2_148 = arith.constant 2 : index
    %c0_149 = arith.constant 0 : index
    %c0_150 = arith.constant 0 : index
    %207 = vector.load %arg11[%c2_148, %c0_149, %c0_150] : memref<9x8x8xbf16, #tpu.memory_space<vmem>>, vector<1x8x8xbf16>
    %208 = vector.shape_cast %207 : vector<1x8x8xbf16> to vector<8x8xbf16>
    %209 = vector.extract_strided_slice %195 {offsets = [0, 256], sizes = [8, 128], strides = [1, 1]} : vector<8x1152xbf16> to vector<8x128xbf16>
    %cst_151 = arith.constant dense<0.000000e+00> : vector<8x128xf32>
    %210 = tpu.matmul %208, %209, %cst_151 {dimension_numbers = #tpu.dot_dimension_numbers<[1], [0], [0], [1], [0, 0, 1, 1], [], []>} : vector<8x8xbf16>, vector<8x128xbf16>, vector<8x128xf32> -> vector<8x128xf32>
    %211 = arith.addf %206, %210 : vector<8x128xf32>
    %c3_152 = arith.constant 3 : index
    %c0_153 = arith.constant 0 : index
    %c0_154 = arith.constant 0 : index
    %212 = vector.load %arg11[%c3_152, %c0_153, %c0_154] : memref<9x8x8xbf16, #tpu.memory_space<vmem>>, vector<1x8x8xbf16>
    %213 = vector.shape_cast %212 : vector<1x8x8xbf16> to vector<8x8xbf16>
    %214 = vector.extract_strided_slice %195 {offsets = [0, 384], sizes = [8, 128], strides = [1, 1]} : vector<8x1152xbf16> to vector<8x128xbf16>
    %cst_155 = arith.constant dense<0.000000e+00> : vector<8x128xf32>
    %215 = tpu.matmul %213, %214, %cst_155 {dimension_numbers = #tpu.dot_dimension_numbers<[1], [0], [0], [1], [0, 0, 1, 1], [], []>} : vector<8x8xbf16>, vector<8x128xbf16>, vector<8x128xf32> -> vector<8x128xf32>
    %216 = arith.addf %211, %215 : vector<8x128xf32>
    %c4_156 = arith.constant 4 : index
    %c0_157 = arith.constant 0 : index
    %c0_158 = arith.constant 0 : index
    %217 = vector.load %arg11[%c4_156, %c0_157, %c0_158] : memref<9x8x8xbf16, #tpu.memory_space<vmem>>, vector<1x8x8xbf16>
    %218 = vector.shape_cast %217 : vector<1x8x8xbf16> to vector<8x8xbf16>
    %219 = vector.extract_strided_slice %195 {offsets = [0, 512], sizes = [8, 128], strides = [1, 1]} : vector<8x1152xbf16> to vector<8x128xbf16>
    %cst_159 = arith.constant dense<0.000000e+00> : vector<8x128xf32>
    %220 = tpu.matmul %218, %219, %cst_159 {dimension_numbers = #tpu.dot_dimension_numbers<[1], [0], [0], [1], [0, 0, 1, 1], [], []>} : vector<8x8xbf16>, vector<8x128xbf16>, vector<8x128xf32> -> vector<8x128xf32>
    %221 = arith.addf %216, %220 : vector<8x128xf32>
    %c5_160 = arith.constant 5 : index
    %c0_161 = arith.constant 0 : index
    %c0_162 = arith.constant 0 : index
    %222 = vector.load %arg11[%c5_160, %c0_161, %c0_162] : memref<9x8x8xbf16, #tpu.memory_space<vmem>>, vector<1x8x8xbf16>
    %223 = vector.shape_cast %222 : vector<1x8x8xbf16> to vector<8x8xbf16>
    %224 = vector.extract_strided_slice %195 {offsets = [0, 640], sizes = [8, 128], strides = [1, 1]} : vector<8x1152xbf16> to vector<8x128xbf16>
    %cst_163 = arith.constant dense<0.000000e+00> : vector<8x128xf32>
    %225 = tpu.matmul %223, %224, %cst_163 {dimension_numbers = #tpu.dot_dimension_numbers<[1], [0], [0], [1], [0, 0, 1, 1], [], []>} : vector<8x8xbf16>, vector<8x128xbf16>, vector<8x128xf32> -> vector<8x128xf32>
    %226 = arith.addf %221, %225 : vector<8x128xf32>
    %c6_164 = arith.constant 6 : index
    %c0_165 = arith.constant 0 : index
    %c0_166 = arith.constant 0 : index
    %227 = vector.load %arg11[%c6_164, %c0_165, %c0_166] : memref<9x8x8xbf16, #tpu.memory_space<vmem>>, vector<1x8x8xbf16>
    %228 = vector.shape_cast %227 : vector<1x8x8xbf16> to vector<8x8xbf16>
    %229 = vector.extract_strided_slice %195 {offsets = [0, 768], sizes = [8, 128], strides = [1, 1]} : vector<8x1152xbf16> to vector<8x128xbf16>
    %cst_167 = arith.constant dense<0.000000e+00> : vector<8x128xf32>
    %230 = tpu.matmul %228, %229, %cst_167 {dimension_numbers = #tpu.dot_dimension_numbers<[1], [0], [0], [1], [0, 0, 1, 1], [], []>} : vector<8x8xbf16>, vector<8x128xbf16>, vector<8x128xf32> -> vector<8x128xf32>
    %231 = arith.addf %226, %230 : vector<8x128xf32>
    %c7_168 = arith.constant 7 : index
    %c0_169 = arith.constant 0 : index
    %c0_170 = arith.constant 0 : index
    %232 = vector.load %arg11[%c7_168, %c0_169, %c0_170] : memref<9x8x8xbf16, #tpu.memory_space<vmem>>, vector<1x8x8xbf16>
    %233 = vector.shape_cast %232 : vector<1x8x8xbf16> to vector<8x8xbf16>
    %234 = vector.extract_strided_slice %195 {offsets = [0, 896], sizes = [8, 128], strides = [1, 1]} : vector<8x1152xbf16> to vector<8x128xbf16>
    %cst_171 = arith.constant dense<0.000000e+00> : vector<8x128xf32>
    %235 = tpu.matmul %233, %234, %cst_171 {dimension_numbers = #tpu.dot_dimension_numbers<[1], [0], [0], [1], [0, 0, 1, 1], [], []>} : vector<8x8xbf16>, vector<8x128xbf16>, vector<8x128xf32> -> vector<8x128xf32>
    %236 = arith.addf %231, %235 : vector<8x128xf32>
    %c8_172 = arith.constant 8 : index
    %c0_173 = arith.constant 0 : index
    %c0_174 = arith.constant 0 : index
    %237 = vector.load %arg11[%c8_172, %c0_173, %c0_174] : memref<9x8x8xbf16, #tpu.memory_space<vmem>>, vector<1x8x8xbf16>
    %238 = vector.shape_cast %237 : vector<1x8x8xbf16> to vector<8x8xbf16>
    %239 = vector.extract_strided_slice %195 {offsets = [0, 1024], sizes = [8, 128], strides = [1, 1]} : vector<8x1152xbf16> to vector<8x128xbf16>
    %cst_175 = arith.constant dense<0.000000e+00> : vector<8x128xf32>
    %240 = tpu.matmul %238, %239, %cst_175 {dimension_numbers = #tpu.dot_dimension_numbers<[1], [0], [0], [1], [0, 0, 1, 1], [], []>} : vector<8x8xbf16>, vector<8x128xbf16>, vector<8x128xf32> -> vector<8x128xf32>
    %241 = arith.addf %236, %240 : vector<8x128xf32>
    %c0_176 = arith.constant 0 : index
    %c0_177 = arith.constant 0 : index
    %242 = vector.load %arg12[%c0_176, %c0_177] : memref<3x128xf32, #tpu.memory_space<vmem>>, vector<1x128xf32>
    %243 = vector.broadcast %242 : vector<1x128xf32> to vector<8x128xf32>
    %244 = arith.addf %241, %243 : vector<8x128xf32>
    %cst_178 = arith.constant 0.000000e+00 : f32
    %245 = vector.broadcast %cst_178 : f32 to vector<8x128xf32>
    %246 = arith.cmpf ogt, %244, %245 : vector<8x128xf32>
    %cst_179 = arith.constant 2.000000e-01 : f32
    %247 = vector.broadcast %cst_179 : f32 to vector<8x128xf32>
    %248 = arith.mulf %247, %244 : vector<8x128xf32>
    %249 = arith.select %246, %244, %248 : vector<8x128xi1>, vector<8x128xf32>
    %c1_180 = arith.constant 1 : index
    %c0_181 = arith.constant 0 : index
    %250 = vector.load %arg12[%c1_180, %c0_181] : memref<3x128xf32, #tpu.memory_space<vmem>>, vector<1x128xf32>
    %251 = vector.broadcast %250 : vector<1x128xf32> to vector<8x128xf32>
    %252 = arith.mulf %249, %251 : vector<8x128xf32>
    %c2_182 = arith.constant 2 : index
    %c0_183 = arith.constant 0 : index
    %253 = vector.load %arg12[%c2_182, %c0_183] : memref<3x128xf32, #tpu.memory_space<vmem>>, vector<1x128xf32>
    %254 = vector.broadcast %253 : vector<1x128xf32> to vector<8x128xf32>
    %255 = arith.addf %252, %254 : vector<8x128xf32>
    %256 = arith.truncf %255 : vector<8x128xf32> to vector<8x128xbf16>
    %c0_184 = arith.constant 0 : index
    %c0_185 = arith.constant 0 : index
    %257 = vector.load %arg13[%c0_184, %c0_185] : memref<128x128xbf16, #tpu.memory_space<vmem>>, vector<128x128xbf16>
    %cst_186 = arith.constant dense<0.000000e+00> : vector<8x128xf32>
    %258 = tpu.matmul %256, %257, %cst_186 {dimension_numbers = #tpu.dot_dimension_numbers<[1], [0], [0], [1], [0, 0, 1, 1], [], []>} : vector<8x128xbf16>, vector<128x128xbf16>, vector<8x128xf32> -> vector<8x128xf32>
    %c0_187 = arith.constant 0 : index
    %c0_188 = arith.constant 0 : index
    %259 = vector.load %arg14[%c0_187, %c0_188] : memref<1x128xf32, #tpu.memory_space<vmem>>, vector<1x128xf32>
    %260 = vector.broadcast %259 : vector<1x128xf32> to vector<8x128xf32>
    %261 = arith.addf %258, %260 : vector<8x128xf32>
    %cst_189 = arith.constant 0.000000e+00 : f32
    %262 = vector.broadcast %cst_189 : f32 to vector<8x128xf32>
    %263 = arith.subf %262, %261 : vector<8x128xf32>
    %264 = math.exp %263 : vector<8x128xf32>
    %cst_190 = arith.constant 1.000000e+00 : f32
    %265 = vector.broadcast %cst_190 : f32 to vector<8x128xf32>
    %266 = arith.addf %265, %264 : vector<8x128xf32>
    %cst_191 = arith.constant 1.000000e+00 : f32
    %267 = vector.broadcast %cst_191 : f32 to vector<8x128xf32>
    %268 = arith.divf %267, %266 : vector<8x128xf32>
    %c0_192 = arith.constant 0 : index
    %c0_193 = arith.constant 0 : index
    %269 = vector.load %arg15[%c0_192, %c0_193] : memref<8x128xf32, #tpu.memory_space<vmem>>, vector<8x128xf32>
    tpu.vector_store %arg15[%c0_192, %c0_193], %268 {strides = array<i32>} : memref<8x128xf32, #tpu.memory_space<vmem>>, vector<8x128xf32>,
    return
  }
}

</mosaic_0001>

<llo_original>
// kernel: discriminator_forward.1
$region0: #{discriminator_forward.1}
  #allocation0 [shape = 'u32[]', space=smem, size = 0x4, offset = 0x4, fixed_abs, tag = 'smem constant byte address 0x4 - core index']
  #allocation1 [shape = 'u32[144,128]{1,0:T(1,128)}', space=vmem, size = 0x12000, scoped, tag = 'internal scratch']
  %s0 = inlined_call_operand.vmem [shape: bf16[512,128], index: 0, kind: input, shape index: {}]
  %s1 = inlined_call_operand.hbm [shape: bf16[128,1152], index: 1, kind: input, shape index: {}]
  %s2 = inlined_call_operand.hbm [shape: bf16[9,128,512], index: 2, kind: input, shape index: {}]
  %s3 = inlined_call_operand.hbm [shape: f32[3,128], index: 3, kind: input, shape index: {}]
  %s4 = inlined_call_operand.hbm [shape: bf16[128,1152], index: 4, kind: input, shape index: {}]
  %s5 = inlined_call_operand.hbm [shape: bf16[9,32,128], index: 5, kind: input, shape index: {}]
  %s6 = inlined_call_operand.hbm [shape: f32[3,128], index: 6, kind: input, shape index: {}]
  %s7 = inlined_call_operand.hbm [shape: bf16[128,1152], index: 7, kind: input, shape index: {}]
  %s8 = inlined_call_operand.hbm [shape: bf16[9,8,32], index: 8, kind: input, shape index: {}]
  %s9 = inlined_call_operand.hbm [shape: f32[3,128], index: 9, kind: input, shape index: {}]
  %s10 = inlined_call_operand.hbm [shape: bf16[128,1152], index: 10, kind: input, shape index: {}]
  %s11 = inlined_call_operand.vmem [shape: bf16[9,8,8], index: 11, kind: input, shape index: {}]
  %s12 = inlined_call_operand.hbm [shape: f32[3,128], index: 12, kind: input, shape index: {}]
  %s13 = inlined_call_operand.hbm [shape: bf16[128,128], index: 13, kind: input, shape index: {}]
  %s14 = inlined_call_operand.hbm [shape: f32[1,128], index: 14, kind: input, shape index: {}]
  %s15 = inlined_call_operand.vmem [shape: f32[8,128], index: 15, kind: output, shape index: {}]
  %s16 = sld [smem:[#allocation0]]
  $region122: #{discriminator_forward.1} parent=0
    _
  %s18 = ssub.s32 1, %s16
  %s19 = scalar_select 0, %s18, %s16
  $region1: #{discriminator_forward.1} parent=0
    #allocation2 [shape = 'u8[294912]{0}', space=vmem, size = 0x48000, scoped, tag = 'input window, operand 1, single buffered']
    #allocation3 [shape = 's32[1]{0}', space=sflag, size = 0x4, scoped, tag = 'scoped memory for discriminator_forward.1']
    #allocation4 [shape = 'u8[1179648]{0}', space=vmem, size = 0x120000, scoped, tag = 'input window, operand 2, single buffered']
    #allocation5 [shape = 's32[1]{0}', space=sflag, size = 0x4, scoped, tag = 'scoped memory for discriminator_forward.1']
    #allocation6 [shape = 'u8[2048]{0}', space=vmem, size = 0x800, scoped, tag = 'input window, operand 3, single buffered']
    #allocation7 [shape = 'u8[294912]{0}', space=vmem, size = 0x48000, scoped, tag = 'input window, operand 4, single buffered']
    #allocation8 [shape = 's32[1]{0}', space=sflag, size = 0x4, scoped, tag = 'scoped memory for discriminator_forward.1']
    #allocation9 [shape = 'u8[73728]{0}', space=vmem, size = 0x12000, scoped, tag = 'input window, operand 5, single buffered']
    #allocation10 [shape = 'u8[2048]{0}', space=vmem, size = 0x800, scoped, tag = 'input window, operand 6, single buffered']
    #allocation11 [shape = 's32[1]{0}', space=sflag, size = 0x4, scoped, tag = 'scoped memory for discriminator_forward.1']
    #allocation12 [shape = 'u8[294912]{0}', space=vmem, size = 0x48000, scoped, tag = 'input window, operand 7, single buffered']
    #allocation13 [shape = 'u8[18432]{0}', space=vmem, size = 0x4800, scoped, tag = 'input window, operand 8, single buffered']
    #allocation14 [shape = 's32[1]{0}', space=sflag, size = 0x4, scoped, tag = 'scoped memory for discriminator_forward.1']
    #allocation15 [shape = 'u8[2048]{0}', space=vmem, size = 0x800, scoped, tag = 'input window, operand 9, single buffered']
    #allocation16 [shape = 'u8[294912]{0}', space=vmem, size = 0x48000, scoped, tag = 'input window, operand 10, single buffered']
    #allocation17 [shape = 's32[1]{0}', space=sflag, size = 0x4, scoped, tag = 'scoped memory for discriminator_forward.1']
    #allocation18 [shape = 'u8[2048]{0}', space=vmem, size = 0x800, scoped, tag = 'input window, operand 12, single buffered']
    #allocation19 [shape = 'u8[32768]{0}', space=vmem, size = 0x8000, scoped, tag = 'input window, operand 13, single buffered']
    #allocation20 [shape = 's32[1]{0}', space=sflag, size = 0x4, scoped, tag = 'scoped memory for discriminator_forward.1']
    #allocation21 [shape = 'u8[512]{0}', space=vmem, size = 0x400, scoped, tag = 'input window, operand 14, single buffered']
    %20 = vsyncpa [#allocation3], 0
    %21 = vsyncpa [#allocation5], 0
    %22 = vsyncpa [#allocation8], 0
    %23 = vsyncpa [#allocation11], 0
    %24 = vsyncpa [#allocation14], 0
    %25 = vsyncpa [#allocation17], 0
    %26 = vsyncpa [#allocation20], 0
    // Predicated region
    $region2: #{discriminator_forward.1} parent=1 // pred_check
      _
    $region3: #{discriminator_forward.1} parent=1 // pred_check_branch
      %28 = sbr.rel (0) target = $region5
    $region4: #{discriminator_forward.1} parent=1 // pred_region
      _
    $region5: #{discriminator_forward.1} parent=1 // pred_fallthru
      _
    // Predicated region
    $region6: #{discriminator_forward.1} parent=1 // pred_check
      _
    $region7: #{discriminator_forward.1} parent=1 // pred_check_branch
      %30 = sbr.rel (0) target = $region9
    $region8: #{discriminator_forward.1} parent=1 // pred_region
      %s32 = ssub.s32 9216, 9216
      %33 = vsyncadd [#allocation3], %s32
      %s34 = sshll.u32 [#allocation2], 4
      %s35 = int_to_ptr.vmem [resolvable:$true] %s34
      %40 = dma.hbm_to_vmem [thread:$0]  %s1, 9216, %s35, [#allocation3], 576, 576, 36
    $region9: #{discriminator_forward.1} parent=1 // pred_fallthru
      _
    // Predicated region
    $region10: #{discriminator_forward.1} parent=1 // pred_check
      _
    $region11: #{discriminator_forward.1} parent=1 // pred_check_branch
      %42 = sbr.rel (0) target = $region13
    $region12: #{discriminator_forward.1} parent=1 // pred_region
      %s44 = ssub.s32 36864, 36864
      %45 = vsyncadd [#allocation5], %s44
      %s46 = sshll.u32 [#allocation4], 4
      %s47 = int_to_ptr.vmem [resolvable:$true] %s46
      %52 = dma.hbm_to_vmem [thread:$0]  %s2, 36864, %s47, [#allocation5], 256, 256, 16
    $region13: #{discriminator_forward.1} parent=1 // pred_fallthru
      _
    // Predicated region
    $region14: #{discriminator_forward.1} parent=1 // pred_check
      _
    $region15: #{discriminator_forward.1} parent=1 // pred_check_branch
      %54 = sbr.rel (0) target = $region17
    $region16: #{discriminator_forward.1} parent=1 // pred_region
      %s56 = ssub.s32 64, 64
      %57 = vsyncadd [#allocation5], %s56
      %s59 = sshll.u32 [#allocation6], 4
      %s60 = int_to_ptr.vmem [resolvable:$true] %s59
      %62 = dma.hbm_to_vmem [thread:$0]  %s3, 64, %s60, [#allocation5]
    $region17: #{discriminator_forward.1} parent=1 // pred_fallthru
      _
    // Predicated region
    $region18: #{discriminator_forward.1} parent=1 // pred_check
      _
    $region19: #{discriminator_forward.1} parent=1 // pred_check_branch
      %64 = sbr.rel (0) target = $region21
    $region20: #{discriminator_forward.1} parent=1 // pred_region
      %s66 = ssub.s32 9216, 9216
      %67 = vsyncadd [#allocation8], %s66
      %s68 = sshll.u32 [#allocation7], 4
      %s69 = int_to_ptr.vmem [resolvable:$true] %s68
      %74 = dma.hbm_to_vmem [thread:$0]  %s4, 9216, %s69, [#allocation8], 576, 576, 36
    $region21: #{discriminator_forward.1} parent=1 // pred_fallthru
      _
    // Predicated region
    $region22: #{discriminator_forward.1} parent=1 // pred_check
      _
    $region23: #{discriminator_forward.1} parent=1 // pred_check_branch
      %76 = sbr.rel (0) target = $region25
    $region24: #{discriminator_forward.1} parent=1 // pred_region
      %s78 = ssub.s32 2304, 2304
      %79 = vsyncadd [#allocation8], %s78
      %s80 = sshll.u32 [#allocation9], 4
      %s81 = int_to_ptr.vmem [resolvable:$true] %s80
      %86 = dma.hbm_to_vmem [thread:$0]  %s5, 2304, %s81, [#allocation8], 64, 64, 4
    $region25: #{discriminator_forward.1} parent=1 // pred_fallthru
      _
    // Predicated region
    $region26: #{discriminator_forward.1} parent=1 // pred_check
      _
    $region27: #{discriminator_forward.1} parent=1 // pred_check_branch
      %88 = sbr.rel (0) target = $region29
    $region28: #{discriminator_forward.1} parent=1 // pred_region
      %s90 = ssub.s32 64, 64
      %91 = vsyncadd [#allocation11], %s90
      %s93 = sshll.u32 [#allocation10], 4
      %s94 = int_to_ptr.vmem [resolvable:$true] %s93
      %96 = dma.hbm_to_vmem [thread:$0]  %s6, 64, %s94, [#allocation11]
    $region29: #{discriminator_forward.1} parent=1 // pred_fallthru
      _
    // Predicated region
    $region30: #{discriminator_forward.1} parent=1 // pred_check
      _
    $region31: #{discriminator_forward.1} parent=1 // pred_check_branch
      %98 = sbr.rel (0) target = $region33
    $region32: #{discriminator_forward.1} parent=1 // pred_region
      %s100 = ssub.s32 9216, 9216
      %101 = vsyncadd [#allocation11], %s100
      %s102 = sshll.u32 [#allocation12], 4
      %s103 = int_to_ptr.vmem [resolvable:$true] %s102
      %108 = dma.hbm_to_vmem [thread:$0]  %s7, 9216, %s103, [#allocation11], 576, 576, 36
    $region33: #{discriminator_forward.1} parent=1 // pred_fallthru
      _
    // Predicated region
    $region34: #{discriminator_forward.1} parent=1 // pred_check
      _
    $region35: #{discriminator_forward.1} parent=1 // pred_check_branch
      %110 = sbr.rel (0) target = $region37
    $region36: #{discriminator_forward.1} parent=1 // pred_region
      %s112 = ssub.s32 576, 576
      %113 = vsyncadd [#allocation14], %s112
      %s114 = sshll.u32 [#allocation13], 4
      %s115 = int_to_ptr.vmem [resolvable:$true] %s114
      %120 = dma.hbm_to_vmem [thread:$0]  %s8, 576, %s115, [#allocation14], 64, 64, 4
    $region37: #{discriminator_forward.1} parent=1 // pred_fallthru
      _
    // Predicated region
    $region38: #{discriminator_forward.1} parent=1 // pred_check
      _
    $region39: #{discriminator_forward.1} parent=1 // pred_check_branch
      %122 = sbr.rel (0) target = $region41
    $region40: #{discriminator_forward.1} parent=1 // pred_region
      %s124 = ssub.s32 64, 64
      %125 = vsyncadd [#allocation14], %s124
      %s127 = sshll.u32 [#allocation15], 4
      %s128 = int_to_ptr.vmem [resolvable:$true] %s127
      %130 = dma.hbm_to_vmem [thread:$0]  %s9, 64, %s128, [#allocation14]
    $region41: #{discriminator_forward.1} parent=1 // pred_fallthru
      _
    // Predicated region
    $region42: #{discriminator_forward.1} parent=1 // pred_check
      _
    $region43: #{discriminator_forward.1} parent=1 // pred_check_branch
      %132 = sbr.rel (0) target = $region45
    $region44: #{discriminator_forward.1} parent=1 // pred_region
      %s134 = ssub.s32 9216, 9216
      %135 = vsyncadd [#allocation17], %s134
      %s136 = sshll.u32 [#allocation16], 4
      %s137 = int_to_ptr.vmem [resolvable:$true] %s136
      %142 = dma.hbm_to_vmem [thread:$0]  %s10, 9216, %s137, [#allocation17], 576, 576, 36
    $region45: #{discriminator_forward.1} parent=1 // pred_fallthru
      _
    // Predicated region
    $region46: #{discriminator_forward.1} parent=1 // pred_check
      _
    $region47: #{discriminator_forward.1} parent=1 // pred_check_branch
      %144 = sbr.rel (0) target = $region49
    $region48: #{discriminator_forward.1} parent=1 // pred_region
      _
    $region49: #{discriminator_forward.1} parent=1 // pred_fallthru
      _
    // Predicated region
    $region50: #{discriminator_forward.1} parent=1 // pred_check
      _
    $region51: #{discriminator_forward.1} parent=1 // pred_check_branch
      %146 = sbr.rel (0) target = $region53
    $region52: #{discriminator_forward.1} parent=1 // pred_region
      %s148 = ssub.s32 64, 64
      %149 = vsyncadd [#allocation17], %s148
      %s151 = sshll.u32 [#allocation18], 4
      %s152 = int_to_ptr.vmem [resolvable:$true] %s151
      %154 = dma.hbm_to_vmem [thread:$0]  %s12, 64, %s152, [#allocation17]
    $region53: #{discriminator_forward.1} parent=1 // pred_fallthru
      _
    // Predicated region
    $region54: #{discriminator_forward.1} parent=1 // pred_check
      _
    $region55: #{discriminator_forward.1} parent=1 // pred_check_branch
      %156 = sbr.rel (0) target = $region57
    $region56: #{discriminator_forward.1} parent=1 // pred_region
      %s158 = ssub.s32 1024, 1024
      %159 = vsyncadd [#allocation20], %s158
      %s160 = sshll.u32 [#allocation19], 4
      %s161 = int_to_ptr.vmem [resolvable:$true] %s160
      %166 = dma.hbm_to_vmem [thread:$0]  %s13, 1024, %s161, [#allocation20], 64, 64, 4
    $region57: #{discriminator_forward.1} parent=1 // pred_fallthru
      _
    // Predicated region
    $region58: #{discriminator_forward.1} parent=1 // pred_check
      _
    $region59: #{discriminator_forward.1} parent=1 // pred_check_branch
      %168 = sbr.rel (0) target = $region61
    $region60: #{discriminator_forward.1} parent=1 // pred_region
      %s170 = ssub.s32 16, 16
      %171 = vsyncadd [#allocation20], %s170
      %s173 = sshll.u32 [#allocation21], 4
      %s174 = int_to_ptr.vmem [resolvable:$true] %s173
      %176 = dma.hbm_to_vmem [thread:$0]  %s14, 16, %s174, [#allocation20]
    $region61: #{discriminator_forward.1} parent=1 // pred_fallthru
      _
    // Predicated region
    $region62: #{discriminator_forward.1} parent=1 // pred_check
      _
    $region63: #{discriminator_forward.1} parent=1 // pred_check_branch
      %178 = sbr.rel (0) target = $region65
    $region64: #{discriminator_forward.1} parent=1 // pred_region
      %179 = dma.done [#allocation3], 9216
    $region65: #{discriminator_forward.1} parent=1 // pred_fallthru
      _
    // Predicated region
    $region66: #{discriminator_forward.1} parent=1 // pred_check
      _
    $region67: #{discriminator_forward.1} parent=1 // pred_check_branch
      %181 = sbr.rel (0) target = $region69
    $region68: #{discriminator_forward.1} parent=1 // pred_region
      %182 = dma.done [#allocation5], 36864
    $region69: #{discriminator_forward.1} parent=1 // pred_fallthru
      _
    // Predicated region
    $region70: #{discriminator_forward.1} parent=1 // pred_check
      _
    $region71: #{discriminator_forward.1} parent=1 // pred_check_branch
      %184 = sbr.rel (0) target = $region73
    $region72: #{discriminator_forward.1} parent=1 // pred_region
      %185 = dma.done [#allocation5], 64
    $region73: #{discriminator_forward.1} parent=1 // pred_fallthru
      _
    // Predicated region
    $region74: #{discriminator_forward.1} parent=1 // pred_check
      _
    $region75: #{discriminator_forward.1} parent=1 // pred_check_branch
      %187 = sbr.rel (0) target = $region77
    $region76: #{discriminator_forward.1} parent=1 // pred_region
      %188 = dma.done [#allocation8], 9216
    $region77: #{discriminator_forward.1} parent=1 // pred_fallthru
      _
    // Predicated region
    $region78: #{discriminator_forward.1} parent=1 // pred_check
      _
    $region79: #{discriminator_forward.1} parent=1 // pred_check_branch
      %190 = sbr.rel (0) target = $region81
    $region80: #{discriminator_forward.1} parent=1 // pred_region
      %191 = dma.done [#allocation8], 2304
    $region81: #{discriminator_forward.1} parent=1 // pred_fallthru
      _
    // Predicated region
    $region82: #{discriminator_forward.1} parent=1 // pred_check
      _
    $region83: #{discriminator_forward.1} parent=1 // pred_check_branch
      %193 = sbr.rel (0) target = $region85
    $region84: #{discriminator_forward.1} parent=1 // pred_region
      %194 = dma.done [#allocation11], 64
    $region85: #{discriminator_forward.1} parent=1 // pred_fallthru
      _
    // Predicated region
    $region86: #{discriminator_forward.1} parent=1 // pred_check
      _
    $region87: #{discriminator_forward.1} parent=1 // pred_check_branch
      %196 = sbr.rel (0) target = $region89
    $region88: #{discriminator_forward.1} parent=1 // pred_region
      %197 = dma.done [#allocation11], 9216
    $region89: #{discriminator_forward.1} parent=1 // pred_fallthru
      _
    // Predicated region
    $region90: #{discriminator_forward.1} parent=1 // pred_check
      _
    $region91: #{discriminator_forward.1} parent=1 // pred_check_branch
      %199 = sbr.rel (0) target = $region93
    $region92: #{discriminator_forward.1} parent=1 // pred_region
      %200 = dma.done [#allocation14], 576
    $region93: #{discriminator_forward.1} parent=1 // pred_fallthru
      _
    // Predicated region
    $region94: #{discriminator_forward.1} parent=1 // pred_check
      _
    $region95: #{discriminator_forward.1} parent=1 // pred_check_branch
      %202 = sbr.rel (0) target = $region97
    $region96: #{discriminator_forward.1} parent=1 // pred_region
      %203 = dma.done [#allocation14], 64
    $region97: #{discriminator_forward.1} parent=1 // pred_fallthru
      _
    // Predicated region
    $region98: #{discriminator_forward.1} parent=1 // pred_check
      _
    $region99: #{discriminator_forward.1} parent=1 // pred_check_branch
      %205 = sbr.rel (0) target = $region101
    $region100: #{discriminator_forward.1} parent=1 // pred_region
      %206 = dma.done [#allocation17], 9216
    $region101: #{discriminator_forward.1} parent=1 // pred_fallthru
      _
    // Predicated region
    $region102: #{discriminator_forward.1} parent=1 // pred_check
      _
    $region103: #{discriminator_forward.1} parent=1 // pred_check_branch
      %208 = sbr.rel (0) target = $region105
    $region104: #{discriminator_forward.1} parent=1 // pred_region
      %209 = dma.done [#allocation17], 64
    $region105: #{discriminator_forward.1} parent=1 // pred_fallthru
      _
    // Predicated region
    $region106: #{discriminator_forward.1} parent=1 // pred_check
      _
    $region107: #{discriminator_forward.1} parent=1 // pred_check_branch
      %211 = sbr.rel (0) target = $region109
    $region108: #{discriminator_forward.1} parent=1 // pred_region
      %212 = dma.done [#allocation20], 1024
    $region109: #{discriminator_forward.1} parent=1 // pred_fallthru
      _
    // Predicated region
    $region110: #{discriminator_forward.1} parent=1 // pred_check
      _
    $region111: #{discriminator_forward.1} parent=1 // pred_check_branch
      %214 = sbr.rel (0) target = $region113
    $region112: #{discriminator_forward.1} parent=1 // pred_region
      %215 = dma.done [#allocation20], 16
    $region113: #{discriminator_forward.1} parent=1 // pred_fallthru
      _
    %v217 = vld [vmem:[%s0] sm:$0xf]
    %v218 = vld [vmem:[%s0 + $0x4] sm:$0xf]
    %v219 = vld [vmem:[%s0 + $0x8] sm:$0xf]
    %v220 = vld [vmem:[%s0 + $0xc] sm:$0xf]
    %v221 = vld [vmem:[%s0 + $0x10] sm:$0xf]
    %v222 = vld [vmem:[%s0 + $0x14] sm:$0xf]
    %v223 = vld [vmem:[%s0 + $0x18] sm:$0xf]
    %v224 = vld [vmem:[%s0 + $0x1c] sm:$0xf]
    %v225 = vld [vmem:[%s0 + $0x20] sm:$0xf]
    %v226 = vld [vmem:[%s0 + $0x24] sm:$0xf]
    %v227 = vld [vmem:[%s0 + $0x28] sm:$0xf]
    %v228 = vld [vmem:[%s0 + $0x2c] sm:$0xf]
    %v229 = vld [vmem:[%s0 + $0x30] sm:$0xf]
    %v230 = vld [vmem:[%s0 + $0x34] sm:$0xf]
    %v231 = vld [vmem:[%s0 + $0x38] sm:$0xf]
    %v232 = vld [vmem:[%s0 + $0x3c] sm:$0xf]
    %v233 = vld [vmem:[%s0 + $0x40] sm:$0xf]
    %v234 = vld [vmem:[%s0 + $0x44] sm:$0xf]
    %v235 = vld [vmem:[%s0 + $0x48] sm:$0xf]
    %v236 = vld [vmem:[%s0 + $0x4c] sm:$0xf]
    %v237 = vld [vmem:[%s0 + $0x50] sm:$0xf]
    %v238 = vld [vmem:[%s0 + $0x54] sm:$0xf]
    %v239 = vld [vmem:[%s0 + $0x58] sm:$0xf]
    %v240 = vld [vmem:[%s0 + $0x5c] sm:$0xf]
    %v241 = vld [vmem:[%s0 + $0x60] sm:$0xf]
    %v242 = vld [vmem:[%s0 + $0x64] sm:$0xf]
    %v243 = vld [vmem:[%s0 + $0x68] sm:$0xf]
    %v244 = vld [vmem:[%s0 + $0x6c] sm:$0xf]
    %v245 = vld [vmem:[%s0 + $0x70] sm:$0xf]
    %v246 = vld [vmem:[%s0 + $0x74] sm:$0xf]
    %v247 = vld [vmem:[%s0 + $0x78] sm:$0xf]
    %v248 = vld [vmem:[%s0 + $0x7c] sm:$0xf]
    %v249 = vld [vmem:[%s0 + $0x80] sm:$0xf]
    %v250 = vld [vmem:[%s0 + $0x84] sm:$0xf]
    %v251 = vld [vmem:[%s0 + $0x88] sm:$0xf]
    %v252 = vld [vmem:[%s0 + $0x8c] sm:$0xf]
    %v253 = vld [vmem:[%s0 + $0x90] sm:$0xf]
    %v254 = vld [vmem:[%s0 + $0x94] sm:$0xf]
    %v255 = vld [vmem:[%s0 + $0x98] sm:$0xf]
    %v256 = vld [vmem:[%s0 + $0x9c] sm:$0xf]
    %v257 = vld [vmem:[%s0 + $0xa0] sm:$0xf]
    %v258 = vld [vmem:[%s0 + $0xa4] sm:$0xf]
    %v259 = vld [vmem:[%s0 + $0xa8] sm:$0xf]
    %v260 = vld [vmem:[%s0 + $0xac] sm:$0xf]
    %v261 = vld [vmem:[%s0 + $0xb0] sm:$0xf]
    %v262 = vld [vmem:[%s0 + $0xb4] sm:$0xf]
    %v263 = vld [vmem:[%s0 + $0xb8] sm:$0xf]
    %v264 = vld [vmem:[%s0 + $0xbc] sm:$0xf]
    %v265 = vld [vmem:[%s0 + $0xc0] sm:$0xf]
    %v266 = vld [vmem:[%s0 + $0xc4] sm:$0xf]
    %v267 = vld [vmem:[%s0 + $0xc8] sm:$0xf]
    %v268 = vld [vmem:[%s0 + $0xcc] sm:$0xf]
    %v269 = vld [vmem:[%s0 + $0xd0] sm:$0xf]
    %v270 = vld [vmem:[%s0 + $0xd4] sm:$0xf]
    %v271 = vld [vmem:[%s0 + $0xd8] sm:$0xf]
    %v272 = vld [vmem:[%s0 + $0xdc] sm:$0xf]
    %v273 = vld [vmem:[%s0 + $0xe0] sm:$0xf]
    %v274 = vld [vmem:[%s0 + $0xe4] sm:$0xf]
    %v275 = vld [vmem:[%s0 + $0xe8] sm:$0xf]
    %v276 = vld [vmem:[%s0 + $0xec] sm:$0xf]
    %v277 = vld [vmem:[%s0 + $0xf0] sm:$0xf]
    %v278 = vld [vmem:[%s0 + $0xf4] sm:$0xf]
    %v279 = vld [vmem:[%s0 + $0xf8] sm:$0xf]
    %v280 = vld [vmem:[%s0 + $0xfc] sm:$0xf]
    %v281 = vld [vmem:[#allocation2] sm:$0xff]
    %v282 = vld [vmem:[#allocation2 + $0x8] sm:$0xff]
    %v283 = vld [vmem:[#allocation2 + $0x10] sm:$0xff]
    %v284 = vld [vmem:[#allocation2 + $0x18] sm:$0xff]
    %v285 = vld [vmem:[#allocation2 + $0x20] sm:$0xf]
    %v286 = vld [vmem:[#allocation2 + $0x24] sm:$0xff]
    %v287 = vld [vmem:[#allocation2 + $0x2c] sm:$0xff]
    %v288 = vld [vmem:[#allocation2 + $0x34] sm:$0xff]
    %v289 = vld [vmem:[#allocation2 + $0x3c] sm:$0xff]
    %v290 = vld [vmem:[#allocation2 + $0x44] sm:$0xf]
    %v291 = vld [vmem:[#allocation2 + $0x48] sm:$0xff]
    %v292 = vld [vmem:[#allocation2 + $0x50] sm:$0xff]
    %v293 = vld [vmem:[#allocation2 + $0x58] sm:$0xff]
    %v294 = vld [vmem:[#allocation2 + $0x60] sm:$0xff]
    %v295 = vld [vmem:[#allocation2 + $0x68] sm:$0xf]
    %v296 = vld [vmem:[#allocation2 + $0x6c] sm:$0xff]
    %v297 = vld [vmem:[#allocation2 + $0x74] sm:$0xff]
    %v298 = vld [vmem:[#allocation2 + $0x7c] sm:$0xff]
    %v299 = vld [vmem:[#allocation2 + $0x84] sm:$0xff]
    %v300 = vld [vmem:[#allocation2 + $0x8c] sm:$0xf]
    %v301 = vld [vmem:[#allocation2 + $0x90] sm:$0xff]
    %v302 = vld [vmem:[#allocation2 + $0x98] sm:$0xff]
    %v303 = vld [vmem:[#allocation2 + $0xa0] sm:$0xff]
    %v304 = vld [vmem:[#allocation2 + $0xa8] sm:$0xff]
    %v305 = vld [vmem:[#allocation2 + $0xb0] sm:$0xf]
    %v306 = vld [vmem:[#allocation2 + $0xb4] sm:$0xff]
    %v307 = vld [vmem:[#allocation2 + $0xbc] sm:$0xff]
    %v308 = vld [vmem:[#allocation2 + $0xc4] sm:$0xff]
    %v309 = vld [vmem:[#allocation2 + $0xcc] sm:$0xff]
    %v310 = vld [vmem:[#allocation2 + $0xd4] sm:$0xf]
    %v311 = vld [vmem:[#allocation2 + $0xd8] sm:$0xff]
    %v312 = vld [vmem:[#allocation2 + $0xe0] sm:$0xff]
    %v313 = vld [vmem:[#allocation2 + $0xe8] sm:$0xff]
    %v314 = vld [vmem:[#allocation2 + $0xf0] sm:$0xff]
    %v315 = vld [vmem:[#allocation2 + $0xf8] sm:$0xf]
    %v316 = vld [vmem:[#allocation2 + $0xfc] sm:$0xff]
    %v317 = vld [vmem:[#allocation2 + $0x104] sm:$0xff]
    %v318 = vld [vmem:[#allocation2 + $0x10c] sm:$0xff]
    %v319 = vld [vmem:[#allocation2 + $0x114] sm:$0xff]
    %v320 = vld [vmem:[#allocation2 + $0x11c] sm:$0xf]
    %v321 = vld [vmem:[#allocation2 + $0x120] sm:$0xff]
    %v322 = vld [vmem:[#allocation2 + $0x128] sm:$0xff]
    %v323 = vld [vmem:[#allocation2 + $0x130] sm:$0xff]
    %v324 = vld [vmem:[#allocation2 + $0x138] sm:$0xff]
    %v325 = vld [vmem:[#allocation2 + $0x140] sm:$0xf]
    %v326 = vld [vmem:[#allocation2 + $0x144] sm:$0xff]
    %v327 = vld [vmem:[#allocation2 + $0x14c] sm:$0xff]
    %v328 = vld [vmem:[#allocation2 + $0x154] sm:$0xff]
    %v329 = vld [vmem:[#allocation2 + $0x15c] sm:$0xff]
    %v330 = vld [vmem:[#allocation2 + $0x164] sm:$0xf]
    %v331 = vld [vmem:[#allocation2 + $0x168] sm:$0xff]
    %v332 = vld [vmem:[#allocation2 + $0x170] sm:$0xff]
    %v333 = vld [vmem:[#allocation2 + $0x178] sm:$0xff]
    %v334 = vld [vmem:[#allocation2 + $0x180] sm:$0xff]
    %v335 = vld [vmem:[#allocation2 + $0x188] sm:$0xf]
    %v336 = vld [vmem:[#allocation2 + $0x18c] sm:$0xff]
    %v337 = vld [vmem:[#allocation2 + $0x194] sm:$0xff]
    %v338 = vld [vmem:[#allocation2 + $0x19c] sm:$0xff]
    %v339 = vld [vmem:[#allocation2 + $0x1a4] sm:$0xff]
    %v340 = vld [vmem:[#allocation2 + $0x1ac] sm:$0xf]
    %v341 = vld [vmem:[#allocation2 + $0x1b0] sm:$0xff]
    %v342 = vld [vmem:[#allocation2 + $0x1b8] sm:$0xff]
    %v343 = vld [vmem:[#allocation2 + $0x1c0] sm:$0xff]
    %v344 = vld [vmem:[#allocation2 + $0x1c8] sm:$0xff]
    %v345 = vld [vmem:[#allocation2 + $0x1d0] sm:$0xf]
    %v346 = vld [vmem:[#allocation2 + $0x1d4] sm:$0xff]
    %v347 = vld [vmem:[#allocation2 + $0x1dc] sm:$0xff]
    %v348 = vld [vmem:[#allocation2 + $0x1e4] sm:$0xff]
    %v349 = vld [vmem:[#allocation2 + $0x1ec] sm:$0xff]
    %v350 = vld [vmem:[#allocation2 + $0x1f4] sm:$0xf]
    %v351 = vld [vmem:[#allocation2 + $0x1f8] sm:$0xff]
    %v352 = vld [vmem:[#allocation2 + $0x200] sm:$0xff]
    %v353 = vld [vmem:[#allocation2 + $0x208] sm:$0xff]
    %v354 = vld [vmem:[#allocation2 + $0x210] sm:$0xff]
    %v355 = vld [vmem:[#allocation2 + $0x218] sm:$0xf]
    %v356 = vld [vmem:[#allocation2 + $0x21c] sm:$0xff]
    %v357 = vld [vmem:[#allocation2 + $0x224] sm:$0xff]
    %v358 = vld [vmem:[#allocation2 + $0x22c] sm:$0xff]
    %v359 = vld [vmem:[#allocation2 + $0x234] sm:$0xff]
    %v360 = vld [vmem:[#allocation2 + $0x23c] sm:$0xf]
    %v425 = vunpack.c.l.b16 %v217
    %v426 = vunpack.c.l.b16 %v218
    %v427 = vunpack.c.l.b16 %v219
    %v428 = vunpack.c.l.b16 %v220
    %v429 = vunpack.c.l.b16 %v221
    %v430 = vunpack.c.l.b16 %v222
    %v431 = vunpack.c.l.b16 %v223
    %v432 = vunpack.c.l.b16 %v224
    %v433 = vunpack.c.l.b16 %v225
    %v434 = vunpack.c.l.b16 %v226
    %v435 = vunpack.c.l.b16 %v227
    %v436 = vunpack.c.l.b16 %v228
    %v437 = vunpack.c.l.b16 %v229
    %v438 = vunpack.c.l.b16 %v230
    %v439 = vunpack.c.l.b16 %v231
    %v440 = vunpack.c.l.b16 %v232
    %v441 = vunpack.c.l.b16 %v233
    %v442 = vunpack.c.l.b16 %v234
    %v443 = vunpack.c.l.b16 %v235
    %v444 = vunpack.c.l.b16 %v236
    %v445 = vunpack.c.l.b16 %v237
    %v446 = vunpack.c.l.b16 %v238
    %v447 = vunpack.c.l.b16 %v239
    %v448 = vunpack.c.l.b16 %v240
    %v449 = vunpack.c.l.b16 %v241
    %v450 = vunpack.c.l.b16 %v242
    %v451 = vunpack.c.l.b16 %v243
    %v452 = vunpack.c.l.b16 %v244
    %v453 = vunpack.c.l.b16 %v245
    %v454 = vunpack.c.l.b16 %v246
    %v455 = vunpack.c.l.b16 %v247
    %v456 = vunpack.c.l.b16 %v248
    %v457 = vunpack.c.l.b16 %v249
    %v458 = vunpack.c.l.b16 %v250
    %v459 = vunpack.c.l.b16 %v251
    %v460 = vunpack.c.l.b16 %v252
    %v461 = vunpack.c.l.b16 %v253
    %v462 = vunpack.c.l.b16 %v254
    %v463 = vunpack.c.l.b16 %v255
    %v464 = vunpack.c.l.b16 %v256
    %v465 = vunpack.c.l.b16 %v257
    %v466 = vunpack.c.l.b16 %v258
    %v467 = vunpack.c.l.b16 %v259
    %v468 = vunpack.c.l.b16 %v260
    %v469 = vunpack.c.l.b16 %v261
    %v470 = vunpack.c.l.b16 %v262
    %v471 = vunpack.c.l.b16 %v263
    %v472 = vunpack.c.l.b16 %v264
    %v473 = vunpack.c.l.b16 %v265
    %v474 = vunpack.c.l.b16 %v266
    %v475 = vunpack.c.l.b16 %v267
    %v476 = vunpack.c.l.b16 %v268
    %v477 = vunpack.c.l.b16 %v269
    %v478 = vunpack.c.l.b16 %v270
    %v479 = vunpack.c.l.b16 %v271
    %v480 = vunpack.c.l.b16 %v272
    %v481 = vunpack.c.l.b16 %v273
    %v482 = vunpack.c.l.b16 %v274
    %v483 = vunpack.c.l.b16 %v275
    %v484 = vunpack.c.l.b16 %v276
    %v485 = vunpack.c.l.b16 %v277
    %v486 = vunpack.c.l.b16 %v278
    %v487 = vunpack.c.l.b16 %v279
    %v488 = vunpack.c.l.b16 %v280
    %v489 = vpack.c.b16 %v426, %v425
    %v490 = vpack.c.b16 %v428, %v427
    %v491 = vpack.c.b16 %v430, %v429
    %v492 = vpack.c.b16 %v432, %v431
    %v493 = vpack.c.b16 %v434, %v433
    %v494 = vpack.c.b16 %v436, %v435
    %v495 = vpack.c.b16 %v438, %v437
    %v496 = vpack.c.b16 %v440, %v439
    %v497 = vpack.c.b16 %v442, %v441
    %v498 = vpack.c.b16 %v444, %v443
    %v499 = vpack.c.b16 %v446, %v445
    %v500 = vpack.c.b16 %v448, %v447
    %v501 = vpack.c.b16 %v450, %v449
    %v502 = vpack.c.b16 %v452, %v451
    %v503 = vpack.c.b16 %v454, %v453
    %v504 = vpack.c.b16 %v456, %v455
    %v505 = vpack.c.b16 %v458, %v457
    %v506 = vpack.c.b16 %v460, %v459
    %v507 = vpack.c.b16 %v462, %v461
    %v508 = vpack.c.b16 %v464, %v463
    %v509 = vpack.c.b16 %v466, %v465
    %v510 = vpack.c.b16 %v468, %v467
    %v511 = vpack.c.b16 %v470, %v469
    %v512 = vpack.c.b16 %v472, %v471
    %v513 = vpack.c.b16 %v474, %v473
    %v514 = vpack.c.b16 %v476, %v475
    %v515 = vpack.c.b16 %v478, %v477
    %v516 = vpack.c.b16 %v480, %v479
    %v517 = vpack.c.b16 %v482, %v481
    %v518 = vpack.c.b16 %v484, %v483
    %v519 = vpack.c.b16 %v486, %v485
    %v520 = vpack.c.b16 %v488, %v487
    %v633 = vunpack.c.l.b16 %v281
    %v634 = vunpack.c.h.b16 %v281
    %v635 = vunpack.c.l.b16 %v282
    %v636 = vunpack.c.h.b16 %v282
    %v637 = vunpack.c.l.b16 %v283
    %v638 = vunpack.c.h.b16 %v283
    %v639 = vunpack.c.l.b16 %v284
    %v640 = vunpack.c.h.b16 %v284
    %v641 = vunpack.c.l.b16 %v285
    %v642 = vunpack.c.l.b16 %v286
    %v643 = vunpack.c.h.b16 %v286
    %v644 = vunpack.c.l.b16 %v287
    %v645 = vunpack.c.h.b16 %v287
    %v646 = vunpack.c.l.b16 %v288
    %v647 = vunpack.c.h.b16 %v288
    %v648 = vunpack.c.l.b16 %v289
    %v649 = vunpack.c.h.b16 %v289
    %v650 = vunpack.c.l.b16 %v290
    %v651 = vunpack.c.l.b16 %v291
    %v652 = vunpack.c.h.b16 %v291
    %v653 = vunpack.c.l.b16 %v292
    %v654 = vunpack.c.h.b16 %v292
    %v655 = vunpack.c.l.b16 %v293
    %v656 = vunpack.c.h.b16 %v293
    %v657 = vunpack.c.l.b16 %v294
    %v658 = vunpack.c.h.b16 %v294
    %v659 = vunpack.c.l.b16 %v295
    %v660 = vunpack.c.l.b16 %v296
    %v661 = vunpack.c.h.b16 %v296
    %v662 = vunpack.c.l.b16 %v297
    %v663 = vunpack.c.h.b16 %v297
    %v664 = vunpack.c.l.b16 %v298
    %v665 = vunpack.c.h.b16 %v298
    %v666 = vunpack.c.l.b16 %v299
    %v667 = vunpack.c.h.b16 %v299
    %v668 = vunpack.c.l.b16 %v300
    %v669 = vunpack.c.l.b16 %v301
    %v670 = vunpack.c.h.b16 %v301
    %v671 = vunpack.c.l.b16 %v302
    %v672 = vunpack.c.h.b16 %v302
    %v673 = vunpack.c.l.b16 %v303
    %v674 = vunpack.c.h.b16 %v303
    %v675 = vunpack.c.l.b16 %v304
    %v676 = vunpack.c.h.b16 %v304
    %v677 = vunpack.c.l.b16 %v305
    %v678 = vunpack.c.l.b16 %v306
    %v679 = vunpack.c.h.b16 %v306
    %v680 = vunpack.c.l.b16 %v307
    %v681 = vunpack.c.h.b16 %v307
    %v682 = vunpack.c.l.b16 %v308
    %v683 = vunpack.c.h.b16 %v308
    %v684 = vunpack.c.l.b16 %v309
    %v685 = vunpack.c.h.b16 %v309
    %v686 = vunpack.c.l.b16 %v310
    %v687 = vunpack.c.l.b16 %v311
    %v688 = vunpack.c.h.b16 %v311
    %v689 = vunpack.c.l.b16 %v312
    %v690 = vunpack.c.h.b16 %v312
    %v691 = vunpack.c.l.b16 %v313
    %v692 = vunpack.c.h.b16 %v313
    %v693 = vunpack.c.l.b16 %v314
    %v694 = vunpack.c.h.b16 %v314
    %v695 = vunpack.c.l.b16 %v315
    %v696 = vunpack.c.l.b16 %v316
    %v697 = vunpack.c.h.b16 %v316
    %v698 = vunpack.c.l.b16 %v317
    %v699 = vunpack.c.h.b16 %v317
    %v700 = vunpack.c.l.b16 %v318
    %v701 = vunpack.c.h.b16 %v318
    %v702 = vunpack.c.l.b16 %v319
    %v703 = vunpack.c.h.b16 %v319
    %v704 = vunpack.c.l.b16 %v320
    %v705 = vunpack.c.l.b16 %v321
    %v706 = vunpack.c.h.b16 %v321
    %v707 = vunpack.c.l.b16 %v322
    %v708 = vunpack.c.h.b16 %v322
    %v709 = vunpack.c.l.b16 %v323
    %v710 = vunpack.c.h.b16 %v323
    %v711 = vunpack.c.l.b16 %v324
    %v712 = vunpack.c.h.b16 %v324
    %v713 = vunpack.c.l.b16 %v325
    %v714 = vunpack.c.l.b16 %v326
    %v715 = vunpack.c.h.b16 %v326
    %v716 = vunpack.c.l.b16 %v327
    %v717 = vunpack.c.h.b16 %v327
    %v718 = vunpack.c.l.b16 %v328
    %v719 = vunpack.c.h.b16 %v328
    %v720 = vunpack.c.l.b16 %v329
    %v721 = vunpack.c.h.b16 %v329
    %v722 = vunpack.c.l.b16 %v330
    %v723 = vunpack.c.l.b16 %v331
    %v724 = vunpack.c.h.b16 %v331
    %v725 = vunpack.c.l.b16 %v332
    %v726 = vunpack.c.h.b16 %v332
    %v727 = vunpack.c.l.b16 %v333
    %v728 = vunpack.c.h.b16 %v333
    %v729 = vunpack.c.l.b16 %v334
    %v730 = vunpack.c.h.b16 %v334
    %v731 = vunpack.c.l.b16 %v335
    %v732 = vunpack.c.l.b16 %v336
    %v733 = vunpack.c.h.b16 %v336
    %v734 = vunpack.c.l.b16 %v337
    %v735 = vunpack.c.h.b16 %v337
    %v736 = vunpack.c.l.b16 %v338
    %v737 = vunpack.c.h.b16 %v338
    %v738 = vunpack.c.l.b16 %v339
    %v739 = vunpack.c.h.b16 %v339
    %v740 = vunpack.c.l.b16 %v340
    %v741 = vunpack.c.l.b16 %v341
    %v742 = vunpack.c.h.b16 %v341
    %v743 = vunpack.c.l.b16 %v342
    %v744 = vunpack.c.h.b16 %v342
    %v745 = vunpack.c.l.b16 %v343
    %v746 = vunpack.c.h.b16 %v343
    %v747 = vunpack.c.l.b16 %v344
    %v748 = vunpack.c.h.b16 %v344
    %v749 = vunpack.c.l.b16 %v345
    %v750 = vunpack.c.l.b16 %v346
    %v751 = vunpack.c.h.b16 %v346
    %v752 = vunpack.c.l.b16 %v347
    %v753 = vunpack.c.h.b16 %v347
    %v754 = vunpack.c.l.b16 %v348
    %v755 = vunpack.c.h.b16 %v348
    %v756 = vunpack.c.l.b16 %v349
    %v757 = vunpack.c.h.b16 %v349
    %v758 = vunpack.c.l.b16 %v350
    %v759 = vunpack.c.l.b16 %v351
    %v760 = vunpack.c.h.b16 %v351
    %v761 = vunpack.c.l.b16 %v352
    %v762 = vunpack.c.h.b16 %v352
    %v763 = vunpack.c.l.b16 %v353
    %v764 = vunpack.c.h.b16 %v353
    %v765 = vunpack.c.l.b16 %v354
    %v766 = vunpack.c.h.b16 %v354
    %v767 = vunpack.c.l.b16 %v355
    %v768 = vunpack.c.l.b16 %v356
    %v769 = vunpack.c.h.b16 %v356
    %v770 = vunpack.c.l.b16 %v357
    %v771 = vunpack.c.h.b16 %v357
    %v772 = vunpack.c.l.b16 %v358
    %v773 = vunpack.c.h.b16 %v358
    %v774 = vunpack.c.l.b16 %v359
    %v775 = vunpack.c.h.b16 %v359
    %v776 = vunpack.c.l.b16 %v360
    %v777 = vpack.c.b16 %v642, %v633
    %v778 = vpack.c.b16 %v643, %v634
    %v779 = vpack.c.b16 %v644, %v635
    %v780 = vpack.c.b16 %v645, %v636
    %v781 = vpack.c.b16 %v646, %v637
    %v782 = vpack.c.b16 %v647, %v638
    %v783 = vpack.c.b16 %v648, %v639
    %v784 = vpack.c.b16 %v649, %v640
    %v785 = vpack.c.b16 %v650, %v641
    %v786 = vpack.c.b16 %v660, %v651
    %v787 = vpack.c.b16 %v661, %v652
    %v788 = vpack.c.b16 %v662, %v653
    %v789 = vpack.c.b16 %v663, %v654
    %v790 = vpack.c.b16 %v664, %v655
    %v791 = vpack.c.b16 %v665, %v656
    %v792 = vpack.c.b16 %v666, %v657
    %v793 = vpack.c.b16 %v667, %v658
    %v794 = vpack.c.b16 %v668, %v659
    %v795 = vpack.c.b16 %v678, %v669
    %v796 = vpack.c.b16 %v679, %v670
    %v797 = vpack.c.b16 %v680, %v671
    %v798 = vpack.c.b16 %v681, %v672
    %v799 = vpack.c.b16 %v682, %v673
    %v800 = vpack.c.b16 %v683, %v674
    %v801 = vpack.c.b16 %v684, %v675
    %v802 = vpack.c.b16 %v685, %v676
    %v803 = vpack.c.b16 %v686, %v677
    %v804 = vpack.c.b16 %v696, %v687
    %v805 = vpack.c.b16 %v697, %v688
    %v806 = vpack.c.b16 %v698, %v689
    %v807 = vpack.c.b16 %v699, %v690
    %v808 = vpack.c.b16 %v700, %v691
    %v809 = vpack.c.b16 %v701, %v692
    %v810 = vpack.c.b16 %v702, %v693
    %v811 = vpack.c.b16 %v703, %v694
    %v812 = vpack.c.b16 %v704, %v695
    %v813 = vpack.c.b16 %v714, %v705
    %v814 = vpack.c.b16 %v715, %v706
    %v815 = vpack.c.b16 %v716, %v707
    %v816 = vpack.c.b16 %v717, %v708
    %v817 = vpack.c.b16 %v718, %v709
    %v818 = vpack.c.b16 %v719, %v710
    %v819 = vpack.c.b16 %v720, %v711
    %v820 = vpack.c.b16 %v721, %v712
    %v821 = vpack.c.b16 %v722, %v713
    %v822 = vpack.c.b16 %v732, %v723
    %v823 = vpack.c.b16 %v733, %v724
    %v824 = vpack.c.b16 %v734, %v725
    %v825 = vpack.c.b16 %v735, %v726
    %v826 = vpack.c.b16 %v736, %v727
    %v827 = vpack.c.b16 %v737, %v728
    %v828 = vpack.c.b16 %v738, %v729
    %v829 = vpack.c.b16 %v739, %v730
    %v830 = vpack.c.b16 %v740, %v731
    %v831 = vpack.c.b16 %v750, %v741
    %v832 = vpack.c.b16 %v751, %v742
    %v833 = vpack.c.b16 %v752, %v743
    %v834 = vpack.c.b16 %v753, %v744
    %v835 = vpack.c.b16 %v754, %v745
    %v836 = vpack.c.b16 %v755, %v746
    %v837 = vpack.c.b16 %v756, %v747
    %v838 = vpack.c.b16 %v757, %v748
    %v839 = vpack.c.b16 %v758, %v749
    %v840 = vpack.c.b16 %v768, %v759
    %v841 = vpack.c.b16 %v769, %v760
    %v842 = vpack.c.b16 %v770, %v761
    %v843 = vpack.c.b16 %v771, %v762
    %v844 = vpack.c.b16 %v772, %v763
    %v845 = vpack.c.b16 %v773, %v764
    %v846 = vpack.c.b16 %v774, %v765
    %v847 = vpack.c.b16 %v775, %v766
    %v848 = vpack.c.b16 %v776, %v767
    %921 = vmatprep.subr.bf16.mxu0 %v841
    %922 = vmatpush1.bf16.msra.mxu0 %v840
    %923 = vmatprep.subr.bf16.mxu0 %v832
    %924 = vmatpush1.bf16.msra.mxu0 %v831
    %925 = vmatprep.subr.bf16.mxu0 %v823
    %926 = vmatpush1.bf16.msra.mxu0 %v822
    %927 = vmatprep.subr.bf16.mxu0 %v814
    %928 = vmatpush1.bf16.msra.mxu0 %v813
    %929 = vmatprep.subr.bf16.mxu0 %v805
    %930 = vmatpush1.bf16.msra.mxu0 %v804
    %931 = vmatprep.subr.bf16.mxu0 %v796
    %932 = vmatpush1.bf16.msra.mxu0 %v795
    %933 = vmatprep.subr.bf16.mxu0 %v787
    %934 = vmatpush1.bf16.msra.mxu0 %v786
    %935 = vmatprep.subr.bf16.mxu0 %v778
    %936 = vmatpush1.bf16.msra.mxu0 %v777
    %937 = vmatprep.subr.bf16.mxu0 0
    %938 = vmatpush2.bf16.msra.mxu0 0
    %939 = vmatprep.subr.bf16.mxu0 0
    %940 = vmatpush2.bf16.msra.mxu0 0
    %941 = vmatprep.subr.bf16.mxu0 0
    %942 = vmatpush2.bf16.msra.mxu0 0
    %943 = vmatprep.subr.bf16.mxu0 0
    %944 = vmatpush2.bf16.msra.mxu0 0
    %945 = vmatprep.subr.bf16.mxu0 0
    %946 = vmatpush2.bf16.msra.mxu0 0
    %947 = vmatprep.subr.bf16.mxu0 0
    %948 = vmatpush2.bf16.msra.mxu0 0
    %949 = vmatprep.subr.bf16.mxu0 0
    %950 = vmatpush2.bf16.msra.mxu0 0
    %951 = vmatprep.subr.bf16.mxu0 0
    %952 = vmatpush2.bf16.msra.mxu0 0
    %953 = vmatprep.mubr.bf16.mxu0 0
    %954 = vmatmul.mubr.bf16.gmra.mxu0 %v489
    %v955 = vpop.f32.mrf.mxu0
    %v956 = vadd.f32 0.0, %v955
    %v957 = vpop.f32.mrf.mxu0
    %v958 = vadd.f32 0.0, %v957
    %v959 = vpop.f32.mrf.mxu0
    %v960 = vadd.f32 0.0, %v959
    %v961 = vpop.f32.mrf.mxu0
    %v962 = vadd.f32 0.0, %v961
    %963 = vmatprep.mubr.bf16.mxu0 0
    %964 = vmatmul.mubr.bf16.gmra.mxu0 %v490
    %v965 = vpop.f32.mrf.mxu0
    %v966 = vadd.f32 0.0, %v965
    %v967 = vpop.f32.mrf.mxu0
    %v968 = vadd.f32 0.0, %v967
    %v969 = vpop.f32.mrf.mxu0
    %v970 = vadd.f32 0.0, %v969
    %v971 = vpop.f32.mrf.mxu0
    %v972 = vadd.f32 0.0, %v971
    %973 = vmatprep.mubr.bf16.mxu0 0
    %974 = vmatmul.mubr.bf16.gmra.mxu0 %v491
    %v975 = vpop.f32.mrf.mxu0
    %v976 = vadd.f32 0.0, %v975
    %v977 = vpop.f32.mrf.mxu0
    %v978 = vadd.f32 0.0, %v977
    %v979 = vpop.f32.mrf.mxu0
    %v980 = vadd.f32 0.0, %v979
    %v981 = vpop.f32.mrf.mxu0
    %v982 = vadd.f32 0.0, %v981
    %983 = vmatprep.mubr.bf16.mxu0 0
    %984 = vmatmul.mubr.bf16.gmra.mxu0 %v492
    %v985 = vpop.f32.mrf.mxu0
    %v986 = vadd.f32 0.0, %v985
    %v987 = vpop.f32.mrf.mxu0
    %v988 = vadd.f32 0.0, %v987
    %v989 = vpop.f32.mrf.mxu0
    %v990 = vadd.f32 0.0, %v989
    %v991 = vpop.f32.mrf.mxu0
    %v992 = vadd.f32 0.0, %v991
    %993 = vmatprep.mubr.bf16.mxu0 0
    %994 = vmatmul.mubr.bf16.gmra.mxu0 %v493
    %v995 = vpop.f32.mrf.mxu0
    %v996 = vadd.f32 0.0, %v995
    %v997 = vpop.f32.mrf.mxu0
    %v998 = vadd.f32 0.0, %v997
    %v999 = vpop.f32.mrf.mxu0
    %v1000 = vadd.f32 0.0, %v999
    %v1001 = vpop.f32.mrf.mxu0
    %v1002 = vadd.f32 0.0, %v1001
    %1003 = vmatprep.mubr.bf16.mxu0 0
    %1004 = vmatmul.mubr.bf16.gmra.mxu0 %v494
    %v1005 = vpop.f32.mrf.mxu0
    %v1006 = vadd.f32 0.0, %v1005
    %v1007 = vpop.f32.mrf.mxu0
    %v1008 = vadd.f32 0.0, %v1007
    %v1009 = vpop.f32.mrf.mxu0
    %v1010 = vadd.f32 0.0, %v1009
    %v1011 = vpop.f32.mrf.mxu0
    %v1012 = vadd.f32 0.0, %v1011
    %1013 = vmatprep.mubr.bf16.mxu0 0
    %1014 = vmatmul.mubr.bf16.gmra.mxu0 %v495
    %v1015 = vpop.f32.mrf.mxu0
    %v1016 = vadd.f32 0.0, %v1015
    %v1017 = vpop.f32.mrf.mxu0
    %v1018 = vadd.f32 0.0, %v1017
    %v1019 = vpop.f32.mrf.mxu0
    %v1020 = vadd.f32 0.0, %v1019
    %v1021 = vpop.f32.mrf.mxu0
    %v1022 = vadd.f32 0.0, %v1021
    %1023 = vmatprep.mubr.bf16.mxu0 0
    %1024 = vmatmul.mubr.bf16.gmra.mxu0 %v496
    %v1025 = vpop.f32.mrf.mxu0
    %v1026 = vadd.f32 0.0, %v1025
    %v1027 = vpop.f32.mrf.mxu0
    %v1028 = vadd.f32 0.0, %v1027
    %v1029 = vpop.f32.mrf.mxu0
    %v1030 = vadd.f32 0.0, %v1029
    %v1031 = vpop.f32.mrf.mxu0
    %v1032 = vadd.f32 0.0, %v1031
    %1033 = vmatprep.mubr.bf16.mxu0 0
    %1034 = vmatmul.mubr.bf16.gmra.mxu0 %v497
    %v1035 = vpop.f32.mrf.mxu0
    %v1036 = vadd.f32 0.0, %v1035
    %v1037 = vpop.f32.mrf.mxu0
    %v1038 = vadd.f32 0.0, %v1037
    %v1039 = vpop.f32.mrf.mxu0
    %v1040 = vadd.f32 0.0, %v1039
    %v1041 = vpop.f32.mrf.mxu0
    %v1042 = vadd.f32 0.0, %v1041
    %1043 = vmatprep.mubr.bf16.mxu0 0
    %1044 = vmatmul.mubr.bf16.gmra.mxu0 %v498
    %v1045 = vpop.f32.mrf.mxu0
    %v1046 = vadd.f32 0.0, %v1045
    %v1047 = vpop.f32.mrf.mxu0
    %v1048 = vadd.f32 0.0, %v1047
    %v1049 = vpop.f32.mrf.mxu0
    %v1050 = vadd.f32 0.0, %v1049
    %v1051 = vpop.f32.mrf.mxu0
    %v1052 = vadd.f32 0.0, %v1051
    %1053 = vmatprep.mubr.bf16.mxu0 0
    %1054 = vmatmul.mubr.bf16.gmra.mxu0 %v499
    %v1055 = vpop.f32.mrf.mxu0
    %v1056 = vadd.f32 0.0, %v1055
    %v1057 = vpop.f32.mrf.mxu0
    %v1058 = vadd.f32 0.0, %v1057
    %v1059 = vpop.f32.mrf.mxu0
    %v1060 = vadd.f32 0.0, %v1059
    %v1061 = vpop.f32.mrf.mxu0
    %v1062 = vadd.f32 0.0, %v1061
    %1063 = vmatprep.mubr.bf16.mxu0 0
    %1064 = vmatmul.mubr.bf16.gmra.mxu0 %v500
    %v1065 = vpop.f32.mrf.mxu0
    %v1066 = vadd.f32 0.0, %v1065
    %v1067 = vpop.f32.mrf.mxu0
    %v1068 = vadd.f32 0.0, %v1067
    %v1069 = vpop.f32.mrf.mxu0
    %v1070 = vadd.f32 0.0, %v1069
    %v1071 = vpop.f32.mrf.mxu0
    %v1072 = vadd.f32 0.0, %v1071
    %1073 = vmatprep.mubr.bf16.mxu0 0
    %1074 = vmatmul.mubr.bf16.gmra.mxu0 %v501
    %v1075 = vpop.f32.mrf.mxu0
    %v1076 = vadd.f32 0.0, %v1075
    %v1077 = vpop.f32.mrf.mxu0
    %v1078 = vadd.f32 0.0, %v1077
    %v1079 = vpop.f32.mrf.mxu0
    %v1080 = vadd.f32 0.0, %v1079
    %v1081 = vpop.f32.mrf.mxu0
    %v1082 = vadd.f32 0.0, %v1081
    %1083 = vmatprep.mubr.bf16.mxu0 0
    %1084 = vmatmul.mubr.bf16.gmra.mxu0 %v502
    %v1085 = vpop.f32.mrf.mxu0
    %v1086 = vadd.f32 0.0, %v1085
    %v1087 = vpop.f32.mrf.mxu0
    %v1088 = vadd.f32 0.0, %v1087
    %v1089 = vpop.f32.mrf.mxu0
    %v1090 = vadd.f32 0.0, %v1089
    %v1091 = vpop.f32.mrf.mxu0
    %v1092 = vadd.f32 0.0, %v1091
    %1093 = vmatprep.mubr.bf16.mxu0 0
    %1094 = vmatmul.mubr.bf16.gmra.mxu0 %v503
    %v1095 = vpop.f32.mrf.mxu0
    %v1096 = vadd.f32 0.0, %v1095
    %v1097 = vpop.f32.mrf.mxu0
    %v1098 = vadd.f32 0.0, %v1097
    %v1099 = vpop.f32.mrf.mxu0
    %v1100 = vadd.f32 0.0, %v1099
    %v1101 = vpop.f32.mrf.mxu0
    %v1102 = vadd.f32 0.0, %v1101
    %1103 = vmatprep.mubr.bf16.mxu0 0
    %1104 = vmatmul.mubr.bf16.gmra.mxu0 %v504
    %v1105 = vpop.f32.mrf.mxu0
    %v1106 = vadd.f32 0.0, %v1105
    %v1107 = vpop.f32.mrf.mxu0
    %v1108 = vadd.f32 0.0, %v1107
    %v1109 = vpop.f32.mrf.mxu0
    %v1110 = vadd.f32 0.0, %v1109
    %v1111 = vpop.f32.mrf.mxu0
    %v1112 = vadd.f32 0.0, %v1111
    %1113 = vmatprep.mubr.bf16.mxu0 0
    %1114 = vmatmul.mubr.bf16.gmra.mxu0 %v505
    %v1115 = vpop.f32.mrf.mxu0
    %v1116 = vadd.f32 0.0, %v1115
    %v1117 = vpop.f32.mrf.mxu0
    %v1118 = vadd.f32 0.0, %v1117
    %v1119 = vpop.f32.mrf.mxu0
    %v1120 = vadd.f32 0.0, %v1119
    %v1121 = vpop.f32.mrf.mxu0
    %v1122 = vadd.f32 0.0, %v1121
    %1123 = vmatprep.mubr.bf16.mxu0 0
    %1124 = vmatmul.mubr.bf16.gmra.mxu0 %v506
    %v1125 = vpop.f32.mrf.mxu0
    %v1126 = vadd.f32 0.0, %v1125
    %v1127 = vpop.f32.mrf.mxu0
    %v1128 = vadd.f32 0.0, %v1127
    %v1129 = vpop.f32.mrf.mxu0
    %v1130 = vadd.f32 0.0, %v1129
    %v1131 = vpop.f32.mrf.mxu0
    %v1132 = vadd.f32 0.0, %v1131
    %1133 = vmatprep.mubr.bf16.mxu0 0
    %1134 = vmatmul.mubr.bf16.gmra.mxu0 %v507
    %v1135 = vpop.f32.mrf.mxu0
    %v1136 = vadd.f32 0.0, %v1135
    %v1137 = vpop.f32.mrf.mxu0
    %v1138 = vadd.f32 0.0, %v1137
    %v1139 = vpop.f32.mrf.mxu0
    %v1140 = vadd.f32 0.0, %v1139
    %v1141 = vpop.f32.mrf.mxu0
    %v1142 = vadd.f32 0.0, %v1141
    %1143 = vmatprep.mubr.bf16.mxu0 0
    %1144 = vmatmul.mubr.bf16.gmra.mxu0 %v508
    %v1145 = vpop.f32.mrf.mxu0
    %v1146 = vadd.f32 0.0, %v1145
    %v1147 = vpop.f32.mrf.mxu0
    %v1148 = vadd.f32 0.0, %v1147
    %v1149 = vpop.f32.mrf.mxu0
    %v1150 = vadd.f32 0.0, %v1149
    %v1151 = vpop.f32.mrf.mxu0
    %v1152 = vadd.f32 0.0, %v1151
    %1153 = vmatprep.mubr.bf16.mxu0 0
    %1154 = vmatmul.mubr.bf16.gmra.mxu0 %v509
    %v1155 = vpop.f32.mrf.mxu0
    %v1156 = vadd.f32 0.0, %v1155
    %v1157 = vpop.f32.mrf.mxu0
    %v1158 = vadd.f32 0.0, %v1157
    %v1159 = vpop.f32.mrf.mxu0
    %v1160 = vadd.f32 0.0, %v1159
    %v1161 = vpop.f32.mrf.mxu0
    %v1162 = vadd.f32 0.0, %v1161
    %1163 = vmatprep.mubr.bf16.mxu0 0
    %1164 = vmatmul.mubr.bf16.gmra.mxu0 %v510
    %v1165 = vpop.f32.mrf.mxu0
    %v1166 = vadd.f32 0.0, %v1165
    %v1167 = vpop.f32.mrf.mxu0
    %v1168 = vadd.f32 0.0, %v1167
    %v1169 = vpop.f32.mrf.mxu0
    %v1170 = vadd.f32 0.0, %v1169
    %v1171 = vpop.f32.mrf.mxu0
    %v1172 = vadd.f32 0.0, %v1171
    %1173 = vmatprep.mubr.bf16.mxu0 0
    %1174 = vmatmul.mubr.bf16.gmra.mxu0 %v511
    %v1175 = vpop.f32.mrf.mxu0
    %v1176 = vadd.f32 0.0, %v1175
    %v1177 = vpop.f32.mrf.mxu0
    %v1178 = vadd.f32 0.0, %v1177
    %v1179 = vpop.f32.mrf.mxu0
    %v1180 = vadd.f32 0.0, %v1179
    %v1181 = vpop.f32.mrf.mxu0
    %v1182 = vadd.f32 0.0, %v1181
    %1183 = vmatprep.mubr.bf16.mxu0 0
    %1184 = vmatmul.mubr.bf16.gmra.mxu0 %v512
    %v1185 = vpop.f32.mrf.mxu0
    %v1186 = vadd.f32 0.0, %v1185
    %v1187 = vpop.f32.mrf.mxu0
    %v1188 = vadd.f32 0.0, %v1187
    %v1189 = vpop.f32.mrf.mxu0
    %v1190 = vadd.f32 0.0, %v1189
    %v1191 = vpop.f32.mrf.mxu0
    %v1192 = vadd.f32 0.0, %v1191
    %1193 = vmatprep.mubr.bf16.mxu0 0
    %1194 = vmatmul.mubr.bf16.gmra.mxu0 %v513
    %v1195 = vpop.f32.mrf.mxu0
    %v1196 = vadd.f32 0.0, %v1195
    %v1197 = vpop.f32.mrf.mxu0
    %v1198 = vadd.f32 0.0, %v1197
    %v1199 = vpop.f32.mrf.mxu0
    %v1200 = vadd.f32 0.0, %v1199
    %v1201 = vpop.f32.mrf.mxu0
    %v1202 = vadd.f32 0.0, %v1201
    %1203 = vmatprep.mubr.bf16.mxu0 0
    %1204 = vmatmul.mubr.bf16.gmra.mxu0 %v514
    %v1205 = vpop.f32.mrf.mxu0
    %v1206 = vadd.f32 0.0, %v1205
    %v1207 = vpop.f32.mrf.mxu0
    %v1208 = vadd.f32 0.0, %v1207
    %v1209 = vpop.f32.mrf.mxu0
    %v1210 = vadd.f32 0.0, %v1209
    %v1211 = vpop.f32.mrf.mxu0
    %v1212 = vadd.f32 0.0, %v1211
    %1213 = vmatprep.mubr.bf16.mxu0 0
    %1214 = vmatmul.mubr.bf16.gmra.mxu0 %v515
    %v1215 = vpop.f32.mrf.mxu0
    %v1216 = vadd.f32 0.0, %v1215
    %v1217 = vpop.f32.mrf.mxu0
    %v1218 = vadd.f32 0.0, %v1217
    %v1219 = vpop.f32.mrf.mxu0
    %v1220 = vadd.f32 0.0, %v1219
    %v1221 = vpop.f32.mrf.mxu0
    %v1222 = vadd.f32 0.0, %v1221
    %1223 = vmatprep.mubr.bf16.mxu0 0
    %1224 = vmatmul.mubr.bf16.gmra.mxu0 %v516
    %v1225 = vpop.f32.mrf.mxu0
    %v1226 = vadd.f32 0.0, %v1225
    %v1227 = vpop.f32.mrf.mxu0
    %v1228 = vadd.f32 0.0, %v1227
    %v1229 = vpop.f32.mrf.mxu0
    %v1230 = vadd.f32 0.0, %v1229
    %v1231 = vpop.f32.mrf.mxu0
    %v1232 = vadd.f32 0.0, %v1231
    %1233 = vmatprep.mubr.bf16.mxu0 0
    %1234 = vmatmul.mubr.bf16.gmra.mxu0 %v517
    %v1235 = vpop.f32.mrf.mxu0
    %v1236 = vadd.f32 0.0, %v1235
    %v1237 = vpop.f32.mrf.mxu0
    %v1238 = vadd.f32 0.0, %v1237
    %v1239 = vpop.f32.mrf.mxu0
    %v1240 = vadd.f32 0.0, %v1239
    %v1241 = vpop.f32.mrf.mxu0
    %v1242 = vadd.f32 0.0, %v1241
    %1243 = vmatprep.mubr.bf16.mxu0 0
    %1244 = vmatmul.mubr.bf16.gmra.mxu0 %v518
    %v1245 = vpop.f32.mrf.mxu0
    %v1246 = vadd.f32 0.0, %v1245
    %v1247 = vpop.f32.mrf.mxu0
    %v1248 = vadd.f32 0.0, %v1247
    %v1249 = vpop.f32.mrf.mxu0
    %v1250 = vadd.f32 0.0, %v1249
    %v1251 = vpop.f32.mrf.mxu0
    %v1252 = vadd.f32 0.0, %v1251
    %1253 = vmatprep.mubr.bf16.mxu0 0
    %1254 = vmatmul.mubr.bf16.gmra.mxu0 %v519
    %v1255 = vpop.f32.mrf.mxu0
    %v1256 = vadd.f32 0.0, %v1255
    %v1257 = vpop.f32.mrf.mxu0
    %v1258 = vadd.f32 0.0, %v1257
    %v1259 = vpop.f32.mrf.mxu0
    %v1260 = vadd.f32 0.0, %v1259
    %v1261 = vpop.f32.mrf.mxu0
    %v1262 = vadd.f32 0.0, %v1261
    %1263 = vmatprep.mubr.bf16.mxu0 0
    %1264 = vmatmul.mubr.bf16.gmra.mxu0 %v520
    %v1265 = vpop.f32.mrf.mxu0
    %v1266 = vadd.f32 0.0, %v1265
    %v1267 = vpop.f32.mrf.mxu0
    %v1268 = vadd.f32 0.0, %v1267
    %v1269 = vpop.f32.mrf.mxu0
    %v1270 = vadd.f32 0.0, %v1269
    %v1271 = vpop.f32.mrf.mxu0
    %v1272 = vadd.f32 0.0, %v1271
    %1273 = vdwg.mxu0
    %1274 = vmatprep.subr.bf16.mxu0 %v843
    %1275 = vmatpush1.bf16.msra.mxu0 %v842
    %1276 = vmatprep.subr.bf16.mxu0 %v834
    %1277 = vmatpush1.bf16.msra.mxu0 %v833
    %1278 = vmatprep.subr.bf16.mxu0 %v825
    %1279 = vmatpush1.bf16.msra.mxu0 %v824
    %1280 = vmatprep.subr.bf16.mxu0 %v816
    %1281 = vmatpush1.bf16.msra.mxu0 %v815
    %1282 = vmatprep.subr.bf16.mxu0 %v807
    %1283 = vmatpush1.bf16.msra.mxu0 %v806
    %1284 = vmatprep.subr.bf16.mxu0 %v798
    %1285 = vmatpush1.bf16.msra.mxu0 %v797
    %1286 = vmatprep.subr.bf16.mxu0 %v789
    %1287 = vmatpush1.bf16.msra.mxu0 %v788
    %1288 = vmatprep.subr.bf16.mxu0 %v780
    %1289 = vmatpush1.bf16.msra.mxu0 %v779
    %1290 = vmatprep.subr.bf16.mxu0 0
    %1291 = vmatpush2.bf16.msra.mxu0 0
    %1292 = vmatprep.subr.bf16.mxu0 0
    %1293 = vmatpush2.bf16.msra.mxu0 0
    %1294 = vmatprep.subr.bf16.mxu0 0
    %1295 = vmatpush2.bf16.msra.mxu0 0
    %1296 = vmatprep.subr.bf16.mxu0 0
    %1297 = vmatpush2.bf16.msra.mxu0 0
    %1298 = vmatprep.subr.bf16.mxu0 0
    %1299 = vmatpush2.bf16.msra.mxu0 0
    %1300 = vmatprep.subr.bf16.mxu0 0
    %1301 = vmatpush2.bf16.msra.mxu0 0
    %1302 = vmatprep.subr.bf16.mxu0 0
    %1303 = vmatpush2.bf16.msra.mxu0 0
    %1304 = vmatprep.subr.bf16.mxu0 0
    %1305 = vmatpush2.bf16.msra.mxu0 0
    %1306 = vmatprep.mubr.bf16.mxu0 0
    %1307 = vmatmul.mubr.bf16.gmra.mxu0 %v489
    %v1308 = vpop.f32.mrf.mxu0
    %v1309 = vadd.f32 0.0, %v1308
    %v1310 = vpop.f32.mrf.mxu0
    %v1311 = vadd.f32 0.0, %v1310
    %v1312 = vpop.f32.mrf.mxu0
    %v1313 = vadd.f32 0.0, %v1312
    %v1314 = vpop.f32.mrf.mxu0
    %v1315 = vadd.f32 0.0, %v1314
    %1316 = vmatprep.mubr.bf16.mxu0 0
    %1317 = vmatmul.mubr.bf16.gmra.mxu0 %v490
    %v1318 = vpop.f32.mrf.mxu0
    %v1319 = vadd.f32 0.0, %v1318
    %v1320 = vpop.f32.mrf.mxu0
    %v1321 = vadd.f32 0.0, %v1320
    %v1322 = vpop.f32.mrf.mxu0
    %v1323 = vadd.f32 0.0, %v1322
    %v1324 = vpop.f32.mrf.mxu0
    %v1325 = vadd.f32 0.0, %v1324
    %1326 = vmatprep.mubr.bf16.mxu0 0
    %1327 = vmatmul.mubr.bf16.gmra.mxu0 %v491
    %v1328 = vpop.f32.mrf.mxu0
    %v1329 = vadd.f32 0.0, %v1328
    %v1330 = vpop.f32.mrf.mxu0
    %v1331 = vadd.f32 0.0, %v1330
    %v1332 = vpop.f32.mrf.mxu0
    %v1333 = vadd.f32 0.0, %v1332
    %v1334 = vpop.f32.mrf.mxu0
    %v1335 = vadd.f32 0.0, %v1334
    %1336 = vmatprep.mubr.bf16.mxu0 0
    %1337 = vmatmul.mubr.bf16.gmra.mxu0 %v492
    %v1338 = vpop.f32.mrf.mxu0
    %v1339 = vadd.f32 0.0, %v1338
    %v1340 = vpop.f32.mrf.mxu0
    %v1341 = vadd.f32 0.0, %v1340
    %v1342 = vpop.f32.mrf.mxu0
    %v1343 = vadd.f32 0.0, %v1342
    %v1344 = vpop.f32.mrf.mxu0
    %v1345 = vadd.f32 0.0, %v1344
    %1346 = vmatprep.mubr.bf16.mxu0 0
    %1347 = vmatmul.mubr.bf16.gmra.mxu0 %v493
    %v1348 = vpop.f32.mrf.mxu0
    %v1349 = vadd.f32 0.0, %v1348
    %v1350 = vpop.f32.mrf.mxu0
    %v1351 = vadd.f32 0.0, %v1350
    %v1352 = vpop.f32.mrf.mxu0
    %v1353 = vadd.f32 0.0, %v1352
    %v1354 = vpop.f32.mrf.mxu0
    %v1355 = vadd.f32 0.0, %v1354
    %1356 = vmatprep.mubr.bf16.mxu0 0
    %1357 = vmatmul.mubr.bf16.gmra.mxu0 %v494
    %v1358 = vpop.f32.mrf.mxu0
    %v1359 = vadd.f32 0.0, %v1358
    %v1360 = vpop.f32.mrf.mxu0
    %v1361 = vadd.f32 0.0, %v1360
    %v1362 = vpop.f32.mrf.mxu0
    %v1363 = vadd.f32 0.0, %v1362
    %v1364 = vpop.f32.mrf.mxu0
    %v1365 = vadd.f32 0.0, %v1364
    %1366 = vmatprep.mubr.bf16.mxu0 0
    %1367 = vmatmul.mubr.bf16.gmra.mxu0 %v495
    %v1368 = vpop.f32.mrf.mxu0
    %v1369 = vadd.f32 0.0, %v1368
    %v1370 = vpop.f32.mrf.mxu0
    %v1371 = vadd.f32 0.0, %v1370
    %v1372 = vpop.f32.mrf.mxu0
    %v1373 = vadd.f32 0.0, %v1372
    %v1374 = vpop.f32.mrf.mxu0
    %v1375 = vadd.f32 0.0, %v1374
    %1376 = vmatprep.mubr.bf16.mxu0 0
    %1377 = vmatmul.mubr.bf16.gmra.mxu0 %v496
    %v1378 = vpop.f32.mrf.mxu0
    %v1379 = vadd.f32 0.0, %v1378
    %v1380 = vpop.f32.mrf.mxu0
    %v1381 = vadd.f32 0.0, %v1380
    %v1382 = vpop.f32.mrf.mxu0
    %v1383 = vadd.f32 0.0, %v1382
    %v1384 = vpop.f32.mrf.mxu0
    %v1385 = vadd.f32 0.0, %v1384
    %1386 = vmatprep.mubr.bf16.mxu0 0
    %1387 = vmatmul.mubr.bf16.gmra.mxu0 %v497
    %v1388 = vpop.f32.mrf.mxu0
    %v1389 = vadd.f32 0.0, %v1388
    %v1390 = vpop.f32.mrf.mxu0
    %v1391 = vadd.f32 0.0, %v1390
    %v1392 = vpop.f32.mrf.mxu0
    %v1393 = vadd.f32 0.0, %v1392
    %v1394 = vpop.f32.mrf.mxu0
    %v1395 = vadd.f32 0.0, %v1394
    %1396 = vmatprep.mubr.bf16.mxu0 0
    %1397 = vmatmul.mubr.bf16.gmra.mxu0 %v498
    %v1398 = vpop.f32.mrf.mxu0
    %v1399 = vadd.f32 0.0, %v1398
    %v1400 = vpop.f32.mrf.mxu0
    %v1401 = vadd.f32 0.0, %v1400
    %v1402 = vpop.f32.mrf.mxu0
    %v1403 = vadd.f32 0.0, %v1402
    %v1404 = vpop.f32.mrf.mxu0
    %v1405 = vadd.f32 0.0, %v1404
    %1406 = vmatprep.mubr.bf16.mxu0 0
    %1407 = vmatmul.mubr.bf16.gmra.mxu0 %v499
    %v1408 = vpop.f32.mrf.mxu0
    %v1409 = vadd.f32 0.0, %v1408
    %v1410 = vpop.f32.mrf.mxu0
    %v1411 = vadd.f32 0.0, %v1410
    %v1412 = vpop.f32.mrf.mxu0
    %v1413 = vadd.f32 0.0, %v1412
    %v1414 = vpop.f32.mrf.mxu0
    %v1415 = vadd.f32 0.0, %v1414
    %1416 = vmatprep.mubr.bf16.mxu0 0
    %1417 = vmatmul.mubr.bf16.gmra.mxu0 %v500
    %v1418 = vpop.f32.mrf.mxu0
    %v1419 = vadd.f32 0.0, %v1418
    %v1420 = vpop.f32.mrf.mxu0
    %v1421 = vadd.f32 0.0, %v1420
    %v1422 = vpop.f32.mrf.mxu0
    %v1423 = vadd.f32 0.0, %v1422
    %v1424 = vpop.f32.mrf.mxu0
    %v1425 = vadd.f32 0.0, %v1424
    %1426 = vmatprep.mubr.bf16.mxu0 0
    %1427 = vmatmul.mubr.bf16.gmra.mxu0 %v501
    %v1428 = vpop.f32.mrf.mxu0
    %v1429 = vadd.f32 0.0, %v1428
    %v1430 = vpop.f32.mrf.mxu0
    %v1431 = vadd.f32 0.0, %v1430
    %v1432 = vpop.f32.mrf.mxu0
    %v1433 = vadd.f32 0.0, %v1432
    %v1434 = vpop.f32.mrf.mxu0
    %v1435 = vadd.f32 0.0, %v1434
    %1436 = vmatprep.mubr.bf16.mxu0 0
    %1437 = vmatmul.mubr.bf16.gmra.mxu0 %v502
    %v1438 = vpop.f32.mrf.mxu0
    %v1439 = vadd.f32 0.0, %v1438
    %v1440 = vpop.f32.mrf.mxu0
    %v1441 = vadd.f32 0.0, %v1440
    %v1442 = vpop.f32.mrf.mxu0
    %v1443 = vadd.f32 0.0, %v1442
    %v1444 = vpop.f32.mrf.mxu0
    %v1445 = vadd.f32 0.0, %v1444
    %1446 = vmatprep.mubr.bf16.mxu0 0
    %1447 = vmatmul.mubr.bf16.gmra.mxu0 %v503
    %v1448 = vpop.f32.mrf.mxu0
    %v1449 = vadd.f32 0.0, %v1448
    %v1450 = vpop.f32.mrf.mxu0
    %v1451 = vadd.f32 0.0, %v1450
    %v1452 = vpop.f32.mrf.mxu0
    %v1453 = vadd.f32 0.0, %v1452
    %v1454 = vpop.f32.mrf.mxu0
    %v1455 = vadd.f32 0.0, %v1454
    %1456 = vmatprep.mubr.bf16.mxu0 0
    %1457 = vmatmul.mubr.bf16.gmra.mxu0 %v504
    %v1458 = vpop.f32.mrf.mxu0
    %v1459 = vadd.f32 0.0, %v1458
    %v1460 = vpop.f32.mrf.mxu0
    %v1461 = vadd.f32 0.0, %v1460
    %v1462 = vpop.f32.mrf.mxu0
    %v1463 = vadd.f32 0.0, %v1462
    %v1464 = vpop.f32.mrf.mxu0
    %v1465 = vadd.f32 0.0, %v1464
    %1466 = vmatprep.mubr.bf16.mxu0 0
    %1467 = vmatmul.mubr.bf16.gmra.mxu0 %v505
    %v1468 = vpop.f32.mrf.mxu0
    %v1469 = vadd.f32 0.0, %v1468
    %v1470 = vpop.f32.mrf.mxu0
    %v1471 = vadd.f32 0.0, %v1470
    %v1472 = vpop.f32.mrf.mxu0
    %v1473 = vadd.f32 0.0, %v1472
    %v1474 = vpop.f32.mrf.mxu0
    %v1475 = vadd.f32 0.0, %v1474
    %1476 = vmatprep.mubr.bf16.mxu0 0
    %1477 = vmatmul.mubr.bf16.gmra.mxu0 %v506
    %v1478 = vpop.f32.mrf.mxu0
    %v1479 = vadd.f32 0.0, %v1478
    %v1480 = vpop.f32.mrf.mxu0
    %v1481 = vadd.f32 0.0, %v1480
    %v1482 = vpop.f32.mrf.mxu0
    %v1483 = vadd.f32 0.0, %v1482
    %v1484 = vpop.f32.mrf.mxu0
    %v1485 = vadd.f32 0.0, %v1484
    %1486 = vmatprep.mubr.bf16.mxu0 0
    %1487 = vmatmul.mubr.bf16.gmra.mxu0 %v507
    %v1488 = vpop.f32.mrf.mxu0
    %v1489 = vadd.f32 0.0, %v1488
    %v1490 = vpop.f32.mrf.mxu0
    %v1491 = vadd.f32 0.0, %v1490
    %v1492 = vpop.f32.mrf.mxu0
    %v1493 = vadd.f32 0.0, %v1492
    %v1494 = vpop.f32.mrf.mxu0
    %v1495 = vadd.f32 0.0, %v1494
    %1496 = vmatprep.mubr.bf16.mxu0 0
    %1497 = vmatmul.mubr.bf16.gmra.mxu0 %v508
    %v1498 = vpop.f32.mrf.mxu0
    %v1499 = vadd.f32 0.0, %v1498
    %v1500 = vpop.f32.mrf.mxu0
    %v1501 = vadd.f32 0.0, %v1500
    %v1502 = vpop.f32.mrf.mxu0
    %v1503 = vadd.f32 0.0, %v1502
    %v1504 = vpop.f32.mrf.mxu0
    %v1505 = vadd.f32 0.0, %v1504
    %1506 = vmatprep.mubr.bf16.mxu0 0
    %1507 = vmatmul.mubr.bf16.gmra.mxu0 %v509
    %v1508 = vpop.f32.mrf.mxu0
    %v1509 = vadd.f32 0.0, %v1508
    %v1510 = vpop.f32.mrf.mxu0
    %v1511 = vadd.f32 0.0, %v1510
    %v1512 = vpop.f32.mrf.mxu0
    %v1513 = vadd.f32 0.0, %v1512
    %v1514 = vpop.f32.mrf.mxu0
    %v1515 = vadd.f32 0.0, %v1514
    %1516 = vmatprep.mubr.bf16.mxu0 0
    %1517 = vmatmul.mubr.bf16.gmra.mxu0 %v510
    %v1518 = vpop.f32.mrf.mxu0
    %v1519 = vadd.f32 0.0, %v1518
    %v1520 = vpop.f32.mrf.mxu0
    %v1521 = vadd.f32 0.0, %v1520
    %v1522 = vpop.f32.mrf.mxu0
    %v1523 = vadd.f32 0.0, %v1522
    %v1524 = vpop.f32.mrf.mxu0
    %v1525 = vadd.f32 0.0, %v1524
    %1526 = vmatprep.mubr.bf16.mxu0 0
    %1527 = vmatmul.mubr.bf16.gmra.mxu0 %v511
    %v1528 = vpop.f32.mrf.mxu0
    %v1529 = vadd.f32 0.0, %v1528
    %v1530 = vpop.f32.mrf.mxu0
    %v1531 = vadd.f32 0.0, %v1530
    %v1532 = vpop.f32.mrf.mxu0
    %v1533 = vadd.f32 0.0, %v1532
    %v1534 = vpop.f32.mrf.mxu0
    %v1535 = vadd.f32 0.0, %v1534
    %1536 = vmatprep.mubr.bf16.mxu0 0
    %1537 = vmatmul.mubr.bf16.gmra.mxu0 %v512
    %v1538 = vpop.f32.mrf.mxu0
    %v1539 = vadd.f32 0.0, %v1538
    %v1540 = vpop.f32.mrf.mxu0
    %v1541 = vadd.f32 0.0, %v1540
    %v1542 = vpop.f32.mrf.mxu0
    %v1543 = vadd.f32 0.0, %v1542
    %v1544 = vpop.f32.mrf.mxu0
    %v1545 = vadd.f32 0.0, %v1544
    %1546 = vmatprep.mubr.bf16.mxu0 0
    %1547 = vmatmul.mubr.bf16.gmra.mxu0 %v513
    %v1548 = vpop.f32.mrf.mxu0
    %v1549 = vadd.f32 0.0, %v1548
    %v1550 = vpop.f32.mrf.mxu0
    %v1551 = vadd.f32 0.0, %v1550
    %v1552 = vpop.f32.mrf.mxu0
    %v1553 = vadd.f32 0.0, %v1552
    %v1554 = vpop.f32.mrf.mxu0
    %v1555 = vadd.f32 0.0, %v1554
    %1556 = vmatprep.mubr.bf16.mxu0 0
    %1557 = vmatmul.mubr.bf16.gmra.mxu0 %v514
    %v1558 = vpop.f32.mrf.mxu0
    %v1559 = vadd.f32 0.0, %v1558
    %v1560 = vpop.f32.mrf.mxu0
    %v1561 = vadd.f32 0.0, %v1560
    %v1562 = vpop.f32.mrf.mxu0
    %v1563 = vadd.f32 0.0, %v1562
    %v1564 = vpop.f32.mrf.mxu0
    %v1565 = vadd.f32 0.0, %v1564
    %1566 = vmatprep.mubr.bf16.mxu0 0
    %1567 = vmatmul.mubr.bf16.gmra.mxu0 %v515
    %v1568 = vpop.f32.mrf.mxu0
    %v1569 = vadd.f32 0.0, %v1568
    %v1570 = vpop.f32.mrf.mxu0
    %v1571 = vadd.f32 0.0, %v1570
    %v1572 = vpop.f32.mrf.mxu0
    %v1573 = vadd.f32 0.0, %v1572
    %v1574 = vpop.f32.mrf.mxu0
    %v1575 = vadd.f32 0.0, %v1574
    %1576 = vmatprep.mubr.bf16.mxu0 0
    %1577 = vmatmul.mubr.bf16.gmra.mxu0 %v516
    %v1578 = vpop.f32.mrf.mxu0
    %v1579 = vadd.f32 0.0, %v1578
    %v1580 = vpop.f32.mrf.mxu0
    %v1581 = vadd.f32 0.0, %v1580
    %v1582 = vpop.f32.mrf.mxu0
    %v1583 = vadd.f32 0.0, %v1582
    %v1584 = vpop.f32.mrf.mxu0
    %v1585 = vadd.f32 0.0, %v1584
    %1586 = vmatprep.mubr.bf16.mxu0 0
    %1587 = vmatmul.mubr.bf16.gmra.mxu0 %v517
    %v1588 = vpop.f32.mrf.mxu0
    %v1589 = vadd.f32 0.0, %v1588
    %v1590 = vpop.f32.mrf.mxu0
    %v1591 = vadd.f32 0.0, %v1590
    %v1592 = vpop.f32.mrf.mxu0
    %v1593 = vadd.f32 0.0, %v1592
    %v1594 = vpop.f32.mrf.mxu0
    %v1595 = vadd.f32 0.0, %v1594
    %1596 = vmatprep.mubr.bf16.mxu0 0
    %1597 = vmatmul.mubr.bf16.gmra.mxu0 %v518
    %v1598 = vpop.f32.mrf.mxu0
    %v1599 = vadd.f32 0.0, %v1598
    %v1600 = vpop.f32.mrf.mxu0
    %v1601 = vadd.f32 0.0, %v1600
    %v1602 = vpop.f32.mrf.mxu0
    %v1603 = vadd.f32 0.0, %v1602
    %v1604 = vpop.f32.mrf.mxu0
    %v1605 = vadd.f32 0.0, %v1604
    %1606 = vmatprep.mubr.bf16.mxu0 0
    %1607 = vmatmul.mubr.bf16.gmra.mxu0 %v519
    %v1608 = vpop.f32.mrf.mxu0
    %v1609 = vadd.f32 0.0, %v1608
    %v1610 = vpop.f32.mrf.mxu0
    %v1611 = vadd.f32 0.0, %v1610
    %v1612 = vpop.f32.mrf.mxu0
    %v1613 = vadd.f32 0.0, %v1612
    %v1614 = vpop.f32.mrf.mxu0
    %v1615 = vadd.f32 0.0, %v1614
    %1616 = vmatprep.mubr.bf16.mxu0 0
    %1617 = vmatmul.mubr.bf16.gmra.mxu0 %v520
    %v1618 = vpop.f32.mrf.mxu0
    %v1619 = vadd.f32 0.0, %v1618
    %v1620 = vpop.f32.mrf.mxu0
    %v1621 = vadd.f32 0.0, %v1620
    %v1622 = vpop.f32.mrf.mxu0
    %v1623 = vadd.f32 0.0, %v1622
    %v1624 = vpop.f32.mrf.mxu0
    %v1625 = vadd.f32 0.0, %v1624
    %1626 = vdwg.mxu0
    %1627 = vmatprep.subr.bf16.mxu0 %v845
    %1628 = vmatpush1.bf16.msra.mxu0 %v844
    %1629 = vmatprep.subr.bf16.mxu0 %v836
    %1630 = vmatpush1.bf16.msra.mxu0 %v835
    %1631 = vmatprep.subr.bf16.mxu0 %v827
    %1632 = vmatpush1.bf16.msra.mxu0 %v826
    %1633 = vmatprep.subr.bf16.mxu0 %v818
    %1634 = vmatpush1.bf16.msra.mxu0 %v817
    %1635 = vmatprep.subr.bf16.mxu0 %v809
    %1636 = vmatpush1.bf16.msra.mxu0 %v808
    %1637 = vmatprep.subr.bf16.mxu0 %v800
    %1638 = vmatpush1.bf16.msra.mxu0 %v799
    %1639 = vmatprep.subr.bf16.mxu0 %v791
    %1640 = vmatpush1.bf16.msra.mxu0 %v790
    %1641 = vmatprep.subr.bf16.mxu0 %v782
    %1642 = vmatpush1.bf16.msra.mxu0 %v781
    %1643 = vmatprep.subr.bf16.mxu0 0
    %1644 = vmatpush2.bf16.msra.mxu0 0
    %1645 = vmatprep.subr.bf16.mxu0 0
    %1646 = vmatpush2.bf16.msra.mxu0 0
    %1647 = vmatprep.subr.bf16.mxu0 0
    %1648 = vmatpush2.bf16.msra.mxu0 0
    %1649 = vmatprep.subr.bf16.mxu0 0
    %1650 = vmatpush2.bf16.msra.mxu0 0
    %1651 = vmatprep.subr.bf16.mxu0 0
    %1652 = vmatpush2.bf16.msra.mxu0 0
    %1653 = vmatprep.subr.bf16.mxu0 0
    %1654 = vmatpush2.bf16.msra.mxu0 0
    %1655 = vmatprep.subr.bf16.mxu0 0
    %1656 = vmatpush2.bf16.msra.mxu0 0
    %1657 = vmatprep.subr.bf16.mxu0 0
    %1658 = vmatpush2.bf16.msra.mxu0 0
    %1659 = vmatprep.mubr.bf16.mxu0 0
    %1660 = vmatmul.mubr.bf16.gmra.mxu0 %v489
    %v1661 = vpop.f32.mrf.mxu0
    %v1662 = vadd.f32 0.0, %v1661
    %v1663 = vpop.f32.mrf.mxu0
    %v1664 = vadd.f32 0.0, %v1663
    %v1665 = vpop.f32.mrf.mxu0
    %v1666 = vadd.f32 0.0, %v1665
    %v1667 = vpop.f32.mrf.mxu0
    %v1668 = vadd.f32 0.0, %v1667
    %1669 = vmatprep.mubr.bf16.mxu0 0
    %1670 = vmatmul.mubr.bf16.gmra.mxu0 %v490
    %v1671 = vpop.f32.mrf.mxu0
    %v1672 = vadd.f32 0.0, %v1671
    %v1673 = vpop.f32.mrf.mxu0
    %v1674 = vadd.f32 0.0, %v1673
    %v1675 = vpop.f32.mrf.mxu0
    %v1676 = vadd.f32 0.0, %v1675
    %v1677 = vpop.f32.mrf.mxu0
    %v1678 = vadd.f32 0.0, %v1677
    %1679 = vmatprep.mubr.bf16.mxu0 0
    %1680 = vmatmul.mubr.bf16.gmra.mxu0 %v491
    %v1681 = vpop.f32.mrf.mxu0
    %v1682 = vadd.f32 0.0, %v1681
    %v1683 = vpop.f32.mrf.mxu0
    %v1684 = vadd.f32 0.0, %v1683
    %v1685 = vpop.f32.mrf.mxu0
    %v1686 = vadd.f32 0.0, %v1685
    %v1687 = vpop.f32.mrf.mxu0
    %v1688 = vadd.f32 0.0, %v1687
    %1689 = vmatprep.mubr.bf16.mxu0 0
    %1690 = vmatmul.mubr.bf16.gmra.mxu0 %v492
    %v1691 = vpop.f32.mrf.mxu0
    %v1692 = vadd.f32 0.0, %v1691
    %v1693 = vpop.f32.mrf.mxu0
    %v1694 = vadd.f32 0.0, %v1693
    %v1695 = vpop.f32.mrf.mxu0
    %v1696 = vadd.f32 0.0, %v1695
    %v1697 = vpop.f32.mrf.mxu0
    %v1698 = vadd.f32 0.0, %v1697
    %1699 = vmatprep.mubr.bf16.mxu0 0
    %1700 = vmatmul.mubr.bf16.gmra.mxu0 %v493
    %v1701 = vpop.f32.mrf.mxu0
    %v1702 = vadd.f32 0.0, %v1701
    %v1703 = vpop.f32.mrf.mxu0
    %v1704 = vadd.f32 0.0, %v1703
    %v1705 = vpop.f32.mrf.mxu0
    %v1706 = vadd.f32 0.0, %v1705
    %v1707 = vpop.f32.mrf.mxu0
    %v1708 = vadd.f32 0.0, %v1707
    %1709 = vmatprep.mubr.bf16.mxu0 0
    %1710 = vmatmul.mubr.bf16.gmra.mxu0 %v494
    %v1711 = vpop.f32.mrf.mxu0
    %v1712 = vadd.f32 0.0, %v1711
    %v1713 = vpop.f32.mrf.mxu0
    %v1714 = vadd.f32 0.0, %v1713
    %v1715 = vpop.f32.mrf.mxu0
    %v1716 = vadd.f32 0.0, %v1715
    %v1717 = vpop.f32.mrf.mxu0
    %v1718 = vadd.f32 0.0, %v1717
    %1719 = vmatprep.mubr.bf16.mxu0 0
    %1720 = vmatmul.mubr.bf16.gmra.mxu0 %v495
    %v1721 = vpop.f32.mrf.mxu0
    %v1722 = vadd.f32 0.0, %v1721
    %v1723 = vpop.f32.mrf.mxu0
    %v1724 = vadd.f32 0.0, %v1723
    %v1725 = vpop.f32.mrf.mxu0
    %v1726 = vadd.f32 0.0, %v1725
    %v1727 = vpop.f32.mrf.mxu0
    %v1728 = vadd.f32 0.0, %v1727
    %1729 = vmatprep.mubr.bf16.mxu0 0
    %1730 = vmatmul.mubr.bf16.gmra.mxu0 %v496
    %v1731 = vpop.f32.mrf.mxu0
    %v1732 = vadd.f32 0.0, %v1731
    %v1733 = vpop.f32.mrf.mxu0
    %v1734 = vadd.f32 0.0, %v1733
    %v1735 = vpop.f32.mrf.mxu0
    %v1736 = vadd.f32 0.0, %v1735
    %v1737 = vpop.f32.mrf.mxu0
    %v1738 = vadd.f32 0.0, %v1737
    %1739 = vmatprep.mubr.bf16.mxu0 0
    %1740 = vmatmul.mubr.bf16.gmra.mxu0 %v497
    %v1741 = vpop.f32.mrf.mxu0
    %v1742 = vadd.f32 0.0, %v1741
    %v1743 = vpop.f32.mrf.mxu0
    %v1744 = vadd.f32 0.0, %v1743
    %v1745 = vpop.f32.mrf.mxu0
    %v1746 = vadd.f32 0.0, %v1745
    %v1747 = vpop.f32.mrf.mxu0
    %v1748 = vadd.f32 0.0, %v1747
    %1749 = vmatprep.mubr.bf16.mxu0 0
    %1750 = vmatmul.mubr.bf16.gmra.mxu0 %v498
    %v1751 = vpop.f32.mrf.mxu0
    %v1752 = vadd.f32 0.0, %v1751
    %v1753 = vpop.f32.mrf.mxu0
    %v1754 = vadd.f32 0.0, %v1753
    %v1755 = vpop.f32.mrf.mxu0
    %v1756 = vadd.f32 0.0, %v1755
    %v1757 = vpop.f32.mrf.mxu0
    %v1758 = vadd.f32 0.0, %v1757
    %1759 = vmatprep.mubr.bf16.mxu0 0
    %1760 = vmatmul.mubr.bf16.gmra.mxu0 %v499
    %v1761 = vpop.f32.mrf.mxu0
    %v1762 = vadd.f32 0.0, %v1761
    %v1763 = vpop.f32.mrf.mxu0
    %v1764 = vadd.f32 0.0, %v1763
    %v1765 = vpop.f32.mrf.mxu0
    %v1766 = vadd.f32 0.0, %v1765
    %v1767 = vpop.f32.mrf.mxu0
    %v1768 = vadd.f32 0.0, %v1767
    %1769 = vmatprep.mubr.bf16.mxu0 0
    %1770 = vmatmul.mubr.bf16.gmra.mxu0 %v500
    %v1771 = vpop.f32.mrf.mxu0
    %v1772 = vadd.f32 0.0, %v1771
    %v1773 = vpop.f32.mrf.mxu0
    %v1774 = vadd.f32 0.0, %v1773
    %v1775 = vpop.f32.mrf.mxu0
    %v1776 = vadd.f32 0.0, %v1775
    %v1777 = vpop.f32.mrf.mxu0
    %v1778 = vadd.f32 0.0, %v1777
    %1779 = vmatprep.mubr.bf16.mxu0 0
    %1780 = vmatmul.mubr.bf16.gmra.mxu0 %v501
    %v1781 = vpop.f32.mrf.mxu0
    %v1782 = vadd.f32 0.0, %v1781
    %v1783 = vpop.f32.mrf.mxu0
    %v1784 = vadd.f32 0.0, %v1783
    %v1785 = vpop.f32.mrf.mxu0
    %v1786 = vadd.f32 0.0, %v1785
    %v1787 = vpop.f32.mrf.mxu0
    %v1788 = vadd.f32 0.0, %v1787
    %1789 = vmatprep.mubr.bf16.mxu0 0
    %1790 = vmatmul.mubr.bf16.gmra.mxu0 %v502
    %v1791 = vpop.f32.mrf.mxu0
    %v1792 = vadd.f32 0.0, %v1791
    %v1793 = vpop.f32.mrf.mxu0
    %v1794 = vadd.f32 0.0, %v1793
    %v1795 = vpop.f32.mrf.mxu0
    %v1796 = vadd.f32 0.0, %v1795
    %v1797 = vpop.f32.mrf.mxu0
    %v1798 = vadd.f32 0.0, %v1797
    %1799 = vmatprep.mubr.bf16.mxu0 0
    %1800 = vmatmul.mubr.bf16.gmra.mxu0 %v503
    %v1801 = vpop.f32.mrf.mxu0
    %v1802 = vadd.f32 0.0, %v1801
    %v1803 = vpop.f32.mrf.mxu0
    %v1804 = vadd.f32 0.0, %v1803
    %v1805 = vpop.f32.mrf.mxu0
    %v1806 = vadd.f32 0.0, %v1805
    %v1807 = vpop.f32.mrf.mxu0
    %v1808 = vadd.f32 0.0, %v1807
    %1809 = vmatprep.mubr.bf16.mxu0 0
    %1810 = vmatmul.mubr.bf16.gmra.mxu0 %v504
    %v1811 = vpop.f32.mrf.mxu0
    %v1812 = vadd.f32 0.0, %v1811
    %v1813 = vpop.f32.mrf.mxu0
    %v1814 = vadd.f32 0.0, %v1813
    %v1815 = vpop.f32.mrf.mxu0
    %v1816 = vadd.f32 0.0, %v1815
    %v1817 = vpop.f32.mrf.mxu0
    %v1818 = vadd.f32 0.0, %v1817
    %1819 = vmatprep.mubr.bf16.mxu0 0
    %1820 = vmatmul.mubr.bf16.gmra.mxu0 %v505
    %v1821 = vpop.f32.mrf.mxu0
    %v1822 = vadd.f32 0.0, %v1821
    %v1823 = vpop.f32.mrf.mxu0
    %v1824 = vadd.f32 0.0, %v1823
    %v1825 = vpop.f32.mrf.mxu0
    %v1826 = vadd.f32 0.0, %v1825
    %v1827 = vpop.f32.mrf.mxu0
    %v1828 = vadd.f32 0.0, %v1827
    %1829 = vmatprep.mubr.bf16.mxu0 0
    %1830 = vmatmul.mubr.bf16.gmra.mxu0 %v506
    %v1831 = vpop.f32.mrf.mxu0
    %v1832 = vadd.f32 0.0, %v1831
    %v1833 = vpop.f32.mrf.mxu0
    %v1834 = vadd.f32 0.0, %v1833
    %v1835 = vpop.f32.mrf.mxu0
    %v1836 = vadd.f32 0.0, %v1835
    %v1837 = vpop.f32.mrf.mxu0
    %v1838 = vadd.f32 0.0, %v1837
    %1839 = vmatprep.mubr.bf16.mxu0 0
    %1840 = vmatmul.mubr.bf16.gmra.mxu0 %v507
    %v1841 = vpop.f32.mrf.mxu0
    %v1842 = vadd.f32 0.0, %v1841
    %v1843 = vpop.f32.mrf.mxu0
    %v1844 = vadd.f32 0.0, %v1843
    %v1845 = vpop.f32.mrf.mxu0
    %v1846 = vadd.f32 0.0, %v1845
    %v1847 = vpop.f32.mrf.mxu0
    %v1848 = vadd.f32 0.0, %v1847
    %1849 = vmatprep.mubr.bf16.mxu0 0
    %1850 = vmatmul.mubr.bf16.gmra.mxu0 %v508
    %v1851 = vpop.f32.mrf.mxu0
    %v1852 = vadd.f32 0.0, %v1851
    %v1853 = vpop.f32.mrf.mxu0
    %v1854 = vadd.f32 0.0, %v1853
    %v1855 = vpop.f32.mrf.mxu0
    %v1856 = vadd.f32 0.0, %v1855
    %v1857 = vpop.f32.mrf.mxu0
    %v1858 = vadd.f32 0.0, %v1857
    %1859 = vmatprep.mubr.bf16.mxu0 0
    %1860 = vmatmul.mubr.bf16.gmra.mxu0 %v509
    %v1861 = vpop.f32.mrf.mxu0
    %v1862 = vadd.f32 0.0, %v1861
    %v1863 = vpop.f32.mrf.mxu0
    %v1864 = vadd.f32 0.0, %v1863
    %v1865 = vpop.f32.mrf.mxu0
    %v1866 = vadd.f32 0.0, %v1865
    %v1867 = vpop.f32.mrf.mxu0
    %v1868 = vadd.f32 0.0, %v1867
    %1869 = vmatprep.mubr.bf16.mxu0 0
    %1870 = vmatmul.mubr.bf16.gmra.mxu0 %v510
    %v1871 = vpop.f32.mrf.mxu0
    %v1872 = vadd.f32 0.0, %v1871
    %v1873 = vpop.f32.mrf.mxu0
    %v1874 = vadd.f32 0.0, %v1873
    %v1875 = vpop.f32.mrf.mxu0
    %v1876 = vadd.f32 0.0, %v1875
    %v1877 = vpop.f32.mrf.mxu0
    %v1878 = vadd.f32 0.0, %v1877
    %1879 = vmatprep.mubr.bf16.mxu0 0
    %1880 = vmatmul.mubr.bf16.gmra.mxu0 %v511
    %v1881 = vpop.f32.mrf.mxu0
    %v1882 = vadd.f32 0.0, %v1881
    %v1883 = vpop.f32.mrf.mxu0
    %v1884 = vadd.f32 0.0, %v1883
    %v1885 = vpop.f32.mrf.mxu0
    %v1886 = vadd.f32 0.0, %v1885
    %v1887 = vpop.f32.mrf.mxu0
    %v1888 = vadd.f32 0.0, %v1887
    %1889 = vmatprep.mubr.bf16.mxu0 0
    %1890 = vmatmul.mubr.bf16.gmra.mxu0 %v512
    %v1891 = vpop.f32.mrf.mxu0
    %v1892 = vadd.f32 0.0, %v1891
    %v1893 = vpop.f32.mrf.mxu0
    %v1894 = vadd.f32 0.0, %v1893
    %v1895 = vpop.f32.mrf.mxu0
    %v1896 = vadd.f32 0.0, %v1895
    %v1897 = vpop.f32.mrf.mxu0
    %v1898 = vadd.f32 0.0, %v1897
    %1899 = vmatprep.mubr.bf16.mxu0 0
    %1900 = vmatmul.mubr.bf16.gmra.mxu0 %v513
    %v1901 = vpop.f32.mrf.mxu0
    %v1902 = vadd.f32 0.0, %v1901
    %v1903 = vpop.f32.mrf.mxu0
    %v1904 = vadd.f32 0.0, %v1903
    %v1905 = vpop.f32.mrf.mxu0
    %v1906 = vadd.f32 0.0, %v1905
    %v1907 = vpop.f32.mrf.mxu0
    %v1908 = vadd.f32 0.0, %v1907
    %1909 = vmatprep.mubr.bf16.mxu0 0
    %1910 = vmatmul.mubr.bf16.gmra.mxu0 %v514
    %v1911 = vpop.f32.mrf.mxu0
    %v1912 = vadd.f32 0.0, %v1911
    %v1913 = vpop.f32.mrf.mxu0
    %v1914 = vadd.f32 0.0, %v1913
    %v1915 = vpop.f32.mrf.mxu0
    %v1916 = vadd.f32 0.0, %v1915
    %v1917 = vpop.f32.mrf.mxu0
    %v1918 = vadd.f32 0.0, %v1917
    %1919 = vmatprep.mubr.bf16.mxu0 0
    %1920 = vmatmul.mubr.bf16.gmra.mxu0 %v515
    %v1921 = vpop.f32.mrf.mxu0
    %v1922 = vadd.f32 0.0, %v1921
    %v1923 = vpop.f32.mrf.mxu0
    %v1924 = vadd.f32 0.0, %v1923
    %v1925 = vpop.f32.mrf.mxu0
    %v1926 = vadd.f32 0.0, %v1925
    %v1927 = vpop.f32.mrf.mxu0
    %v1928 = vadd.f32 0.0, %v1927
    %1929 = vmatprep.mubr.bf16.mxu0 0
    %1930 = vmatmul.mubr.bf16.gmra.mxu0 %v516
    %v1931 = vpop.f32.mrf.mxu0
    %v1932 = vadd.f32 0.0, %v1931
    %v1933 = vpop.f32.mrf.mxu0
    %v1934 = vadd.f32 0.0, %v1933
    %v1935 = vpop.f32.mrf.mxu0
    %v1936 = vadd.f32 0.0, %v1935
    %v1937 = vpop.f32.mrf.mxu0
    %v1938 = vadd.f32 0.0, %v1937
    %1939 = vmatprep.mubr.bf16.mxu0 0
    %1940 = vmatmul.mubr.bf16.gmra.mxu0 %v517
    %v1941 = vpop.f32.mrf.mxu0
    %v1942 = vadd.f32 0.0, %v1941
    %v1943 = vpop.f32.mrf.mxu0
    %v1944 = vadd.f32 0.0, %v1943
    %v1945 = vpop.f32.mrf.mxu0
    %v1946 = vadd.f32 0.0, %v1945
    %v1947 = vpop.f32.mrf.mxu0
    %v1948 = vadd.f32 0.0, %v1947
    %1949 = vmatprep.mubr.bf16.mxu0 0
    %1950 = vmatmul.mubr.bf16.gmra.mxu0 %v518
    %v1951 = vpop.f32.mrf.mxu0
    %v1952 = vadd.f32 0.0, %v1951
    %v1953 = vpop.f32.mrf.mxu0
    %v1954 = vadd.f32 0.0, %v1953
    %v1955 = vpop.f32.mrf.mxu0
    %v1956 = vadd.f32 0.0, %v1955
    %v1957 = vpop.f32.mrf.mxu0
    %v1958 = vadd.f32 0.0, %v1957
    %1959 = vmatprep.mubr.bf16.mxu0 0
    %1960 = vmatmul.mubr.bf16.gmra.mxu0 %v519
    %v1961 = vpop.f32.mrf.mxu0
    %v1962 = vadd.f32 0.0, %v1961
    %v1963 = vpop.f32.mrf.mxu0
    %v1964 = vadd.f32 0.0, %v1963
    %v1965 = vpop.f32.mrf.mxu0
    %v1966 = vadd.f32 0.0, %v1965
    %v1967 = vpop.f32.mrf.mxu0
    %v1968 = vadd.f32 0.0, %v1967
    %1969 = vmatprep.mubr.bf16.mxu0 0
    %1970 = vmatmul.mubr.bf16.gmra.mxu0 %v520
    %v1971 = vpop.f32.mrf.mxu0
    %v1972 = vadd.f32 0.0, %v1971
    %v1973 = vpop.f32.mrf.mxu0
    %v1974 = vadd.f32 0.0, %v1973
    %v1975 = vpop.f32.mrf.mxu0
    %v1976 = vadd.f32 0.0, %v1975
    %v1977 = vpop.f32.mrf.mxu0
    %v1978 = vadd.f32 0.0, %v1977
    %1979 = vdwg.mxu0
    %1980 = vmatprep.subr.bf16.mxu0 %v847
    %1981 = vmatpush1.bf16.msra.mxu0 %v846
    %1982 = vmatprep.subr.bf16.mxu0 %v838
    %1983 = vmatpush1.bf16.msra.mxu0 %v837
    %1984 = vmatprep.subr.bf16.mxu0 %v829
    %1985 = vmatpush1.bf16.msra.mxu0 %v828
    %1986 = vmatprep.subr.bf16.mxu0 %v820
    %1987 = vmatpush1.bf16.msra.mxu0 %v819
    %1988 = vmatprep.subr.bf16.mxu0 %v811
    %1989 = vmatpush1.bf16.msra.mxu0 %v810
    %1990 = vmatprep.subr.bf16.mxu0 %v802
    %1991 = vmatpush1.bf16.msra.mxu0 %v801
    %1992 = vmatprep.subr.bf16.mxu0 %v793
    %1993 = vmatpush1.bf16.msra.mxu0 %v792
    %1994 = vmatprep.subr.bf16.mxu0 %v784
    %1995 = vmatpush1.bf16.msra.mxu0 %v783
    %1996 = vmatprep.subr.bf16.mxu0 0
    %1997 = vmatpush2.bf16.msra.mxu0 0
    %1998 = vmatprep.subr.bf16.mxu0 0
    %1999 = vmatpush2.bf16.msra.mxu0 0
    %2000 = vmatprep.subr.bf16.mxu0 0
    %2001 = vmatpush2.bf16.msra.mxu0 0
    %2002 = vmatprep.subr.bf16.mxu0 0
    %2003 = vmatpush2.bf16.msra.mxu0 0
    %2004 = vmatprep.subr.bf16.mxu0 0
    %2005 = vmatpush2.bf16.msra.mxu0 0
    %2006 = vmatprep.subr.bf16.mxu0 0
    %2007 = vmatpush2.bf16.msra.mxu0 0
    %2008 = vmatprep.subr.bf16.mxu0 0
    %2009 = vmatpush2.bf16.msra.mxu0 0
    %2010 = vmatprep.subr.bf16.mxu0 0
    %2011 = vmatpush2.bf16.msra.mxu0 0
    %2012 = vmatprep.mubr.bf16.mxu0 0
    %2013 = vmatmul.mubr.bf16.gmra.mxu0 %v489
    %v2014 = vpop.f32.mrf.mxu0
    %v2015 = vadd.f32 0.0, %v2014
    %v2016 = vpop.f32.mrf.mxu0
    %v2017 = vadd.f32 0.0, %v2016
    %v2018 = vpop.f32.mrf.mxu0
    %v2019 = vadd.f32 0.0, %v2018
    %v2020 = vpop.f32.mrf.mxu0
    %v2021 = vadd.f32 0.0, %v2020
    %2022 = vmatprep.mubr.bf16.mxu0 0
    %2023 = vmatmul.mubr.bf16.gmra.mxu0 %v490
    %v2024 = vpop.f32.mrf.mxu0
    %v2025 = vadd.f32 0.0, %v2024
    %v2026 = vpop.f32.mrf.mxu0
    %v2027 = vadd.f32 0.0, %v2026
    %v2028 = vpop.f32.mrf.mxu0
    %v2029 = vadd.f32 0.0, %v2028
    %v2030 = vpop.f32.mrf.mxu0
    %v2031 = vadd.f32 0.0, %v2030
    %2032 = vmatprep.mubr.bf16.mxu0 0
    %2033 = vmatmul.mubr.bf16.gmra.mxu0 %v491
    %v2034 = vpop.f32.mrf.mxu0
    %v2035 = vadd.f32 0.0, %v2034
    %v2036 = vpop.f32.mrf.mxu0
    %v2037 = vadd.f32 0.0, %v2036
    %v2038 = vpop.f32.mrf.mxu0
    %v2039 = vadd.f32 0.0, %v2038
    %v2040 = vpop.f32.mrf.mxu0
    %v2041 = vadd.f32 0.0, %v2040
    %2042 = vmatprep.mubr.bf16.mxu0 0
    %2043 = vmatmul.mubr.bf16.gmra.mxu0 %v492
    %v2044 = vpop.f32.mrf.mxu0
    %v2045 = vadd.f32 0.0, %v2044
    %v2046 = vpop.f32.mrf.mxu0
    %v2047 = vadd.f32 0.0, %v2046
    %v2048 = vpop.f32.mrf.mxu0
    %v2049 = vadd.f32 0.0, %v2048
    %v2050 = vpop.f32.mrf.mxu0
    %v2051 = vadd.f32 0.0, %v2050
    %2052 = vmatprep.mubr.bf16.mxu0 0
    %2053 = vmatmul.mubr.bf16.gmra.mxu0 %v493
    %v2054 = vpop.f32.mrf.mxu0
    %v2055 = vadd.f32 0.0, %v2054
    %v2056 = vpop.f32.mrf.mxu0
    %v2057 = vadd.f32 0.0, %v2056
    %v2058 = vpop.f32.mrf.mxu0
    %v2059 = vadd.f32 0.0, %v2058
    %v2060 = vpop.f32.mrf.mxu0
    %v2061 = vadd.f32 0.0, %v2060
    %2062 = vmatprep.mubr.bf16.mxu0 0
    %2063 = vmatmul.mubr.bf16.gmra.mxu0 %v494
    %v2064 = vpop.f32.mrf.mxu0
    %v2065 = vadd.f32 0.0, %v2064
    %v2066 = vpop.f32.mrf.mxu0
    %v2067 = vadd.f32 0.0, %v2066
    %v2068 = vpop.f32.mrf.mxu0
    %v2069 = vadd.f32 0.0, %v2068
    %v2070 = vpop.f32.mrf.mxu0
    %v2071 = vadd.f32 0.0, %v2070
    %2072 = vmatprep.mubr.bf16.mxu0 0
    %2073 = vmatmul.mubr.bf16.gmra.mxu0 %v495
    %v2074 = vpop.f32.mrf.mxu0
    %v2075 = vadd.f32 0.0, %v2074
    %v2076 = vpop.f32.mrf.mxu0
    %v2077 = vadd.f32 0.0, %v2076
    %v2078 = vpop.f32.mrf.mxu0
    %v2079 = vadd.f32 0.0, %v2078
    %v2080 = vpop.f32.mrf.mxu0
    %v2081 = vadd.f32 0.0, %v2080
    %2082 = vmatprep.mubr.bf16.mxu0 0
    %2083 = vmatmul.mubr.bf16.gmra.mxu0 %v496
    %v2084 = vpop.f32.mrf.mxu0
    %v2085 = vadd.f32 0.0, %v2084
    %v2086 = vpop.f32.mrf.mxu0
    %v2087 = vadd.f32 0.0, %v2086
    %v2088 = vpop.f32.mrf.mxu0
    %v2089 = vadd.f32 0.0, %v2088
    %v2090 = vpop.f32.mrf.mxu0
    %v2091 = vadd.f32 0.0, %v2090
    %2092 = vmatprep.mubr.bf16.mxu0 0
    %2093 = vmatmul.mubr.bf16.gmra.mxu0 %v497
    %v2094 = vpop.f32.mrf.mxu0
    %v2095 = vadd.f32 0.0, %v2094
    %v2096 = vpop.f32.mrf.mxu0
    %v2097 = vadd.f32 0.0, %v2096
    %v2098 = vpop.f32.mrf.mxu0
    %v2099 = vadd.f32 0.0, %v2098
    %v2100 = vpop.f32.mrf.mxu0
    %v2101 = vadd.f32 0.0, %v2100
    %2102 = vmatprep.mubr.bf16.mxu0 0
    %2103 = vmatmul.mubr.bf16.gmra.mxu0 %v498
    %v2104 = vpop.f32.mrf.mxu0
    %v2105 = vadd.f32 0.0, %v2104
    %v2106 = vpop.f32.mrf.mxu0
    %v2107 = vadd.f32 0.0, %v2106
    %v2108 = vpop.f32.mrf.mxu0
    %v2109 = vadd.f32 0.0, %v2108
    %v2110 = vpop.f32.mrf.mxu0
    %v2111 = vadd.f32 0.0, %v2110
    %2112 = vmatprep.mubr.bf16.mxu0 0
    %2113 = vmatmul.mubr.bf16.gmra.mxu0 %v499
    %v2114 = vpop.f32.mrf.mxu0
    %v2115 = vadd.f32 0.0, %v2114
    %v2116 = vpop.f32.mrf.mxu0
    %v2117 = vadd.f32 0.0, %v2116
    %v2118 = vpop.f32.mrf.mxu0
    %v2119 = vadd.f32 0.0, %v2118
    %v2120 = vpop.f32.mrf.mxu0
    %v2121 = vadd.f32 0.0, %v2120
    %2122 = vmatprep.mubr.bf16.mxu0 0
    %2123 = vmatmul.mubr.bf16.gmra.mxu0 %v500
    %v2124 = vpop.f32.mrf.mxu0
    %v2125 = vadd.f32 0.0, %v2124
    %v2126 = vpop.f32.mrf.mxu0
    %v2127 = vadd.f32 0.0, %v2126
    %v2128 = vpop.f32.mrf.mxu0
    %v2129 = vadd.f32 0.0, %v2128
    %v2130 = vpop.f32.mrf.mxu0
    %v2131 = vadd.f32 0.0, %v2130
    %2132 = vmatprep.mubr.bf16.mxu0 0
    %2133 = vmatmul.mubr.bf16.gmra.mxu0 %v501
    %v2134 = vpop.f32.mrf.mxu0
    %v2135 = vadd.f32 0.0, %v2134
    %v2136 = vpop.f32.mrf.mxu0
    %v2137 = vadd.f32 0.0, %v2136
    %v2138 = vpop.f32.mrf.mxu0
    %v2139 = vadd.f32 0.0, %v2138
    %v2140 = vpop.f32.mrf.mxu0
    %v2141 = vadd.f32 0.0, %v2140
    %2142 = vmatprep.mubr.bf16.mxu0 0
    %2143 = vmatmul.mubr.bf16.gmra.mxu0 %v502
    %v2144 = vpop.f32.mrf.mxu0
    %v2145 = vadd.f32 0.0, %v2144
    %v2146 = vpop.f32.mrf.mxu0
    %v2147 = vadd.f32 0.0, %v2146
    %v2148 = vpop.f32.mrf.mxu0
    %v2149 = vadd.f32 0.0, %v2148
    %v2150 = vpop.f32.mrf.mxu0
    %v2151 = vadd.f32 0.0, %v2150
    %2152 = vmatprep.mubr.bf16.mxu0 0
    %2153 = vmatmul.mubr.bf16.gmra.mxu0 %v503
    %v2154 = vpop.f32.mrf.mxu0
    %v2155 = vadd.f32 0.0, %v2154
    %v2156 = vpop.f32.mrf.mxu0
    %v2157 = vadd.f32 0.0, %v2156
    %v2158 = vpop.f32.mrf.mxu0
    %v2159 = vadd.f32 0.0, %v2158
    %v2160 = vpop.f32.mrf.mxu0
    %v2161 = vadd.f32 0.0, %v2160
    %2162 = vmatprep.mubr.bf16.mxu0 0
    %2163 = vmatmul.mubr.bf16.gmra.mxu0 %v504
    %v2164 = vpop.f32.mrf.mxu0
    %v2165 = vadd.f32 0.0, %v2164
    %v2166 = vpop.f32.mrf.mxu0
    %v2167 = vadd.f32 0.0, %v2166
    %v2168 = vpop.f32.mrf.mxu0
    %v2169 = vadd.f32 0.0, %v2168
    %v2170 = vpop.f32.mrf.mxu0
    %v2171 = vadd.f32 0.0, %v2170
    %2172 = vmatprep.mubr.bf16.mxu0 0
    %2173 = vmatmul.mubr.bf16.gmra.mxu0 %v505
    %v2174 = vpop.f32.mrf.mxu0
    %v2175 = vadd.f32 0.0, %v2174
    %v2176 = vpop.f32.mrf.mxu0
    %v2177 = vadd.f32 0.0, %v2176
    %v2178 = vpop.f32.mrf.mxu0
    %v2179 = vadd.f32 0.0, %v2178
    %v2180 = vpop.f32.mrf.mxu0
    %v2181 = vadd.f32 0.0, %v2180
    %2182 = vmatprep.mubr.bf16.mxu0 0
    %2183 = vmatmul.mubr.bf16.gmra.mxu0 %v506
    %v2184 = vpop.f32.mrf.mxu0
    %v2185 = vadd.f32 0.0, %v2184
    %v2186 = vpop.f32.mrf.mxu0
    %v2187 = vadd.f32 0.0, %v2186
    %v2188 = vpop.f32.mrf.mxu0
    %v2189 = vadd.f32 0.0, %v2188
    %v2190 = vpop.f32.mrf.mxu0
    %v2191 = vadd.f32 0.0, %v2190
    %2192 = vmatprep.mubr.bf16.mxu0 0
    %2193 = vmatmul.mubr.bf16.gmra.mxu0 %v507
    %v2194 = vpop.f32.mrf.mxu0
    %v2195 = vadd.f32 0.0, %v2194
    %v2196 = vpop.f32.mrf.mxu0
    %v2197 = vadd.f32 0.0, %v2196
    %v2198 = vpop.f32.mrf.mxu0
    %v2199 = vadd.f32 0.0, %v2198
    %v2200 = vpop.f32.mrf.mxu0
    %v2201 = vadd.f32 0.0, %v2200
    %2202 = vmatprep.mubr.bf16.mxu0 0
    %2203 = vmatmul.mubr.bf16.gmra.mxu0 %v508
    %v2204 = vpop.f32.mrf.mxu0
    %v2205 = vadd.f32 0.0, %v2204
    %v2206 = vpop.f32.mrf.mxu0
    %v2207 = vadd.f32 0.0, %v2206
    %v2208 = vpop.f32.mrf.mxu0
    %v2209 = vadd.f32 0.0, %v2208
    %v2210 = vpop.f32.mrf.mxu0
    %v2211 = vadd.f32 0.0, %v2210
    %2212 = vmatprep.mubr.bf16.mxu0 0
    %2213 = vmatmul.mubr.bf16.gmra.mxu0 %v509
    %v2214 = vpop.f32.mrf.mxu0
    %v2215 = vadd.f32 0.0, %v2214
    %v2216 = vpop.f32.mrf.mxu0
    %v2217 = vadd.f32 0.0, %v2216
    %v2218 = vpop.f32.mrf.mxu0
    %v2219 = vadd.f32 0.0, %v2218
    %v2220 = vpop.f32.mrf.mxu0
    %v2221 = vadd.f32 0.0, %v2220
    %2222 = vmatprep.mubr.bf16.mxu0 0
    %2223 = vmatmul.mubr.bf16.gmra.mxu0 %v510
    %v2224 = vpop.f32.mrf.mxu0
    %v2225 = vadd.f32 0.0, %v2224
    %v2226 = vpop.f32.mrf.mxu0
    %v2227 = vadd.f32 0.0, %v2226
    %v2228 = vpop.f32.mrf.mxu0
    %v2229 = vadd.f32 0.0, %v2228
    %v2230 = vpop.f32.mrf.mxu0
    %v2231 = vadd.f32 0.0, %v2230
    %2232 = vmatprep.mubr.bf16.mxu0 0
    %2233 = vmatmul.mubr.bf16.gmra.mxu0 %v511
    %v2234 = vpop.f32.mrf.mxu0
    %v2235 = vadd.f32 0.0, %v2234
    %v2236 = vpop.f32.mrf.mxu0
    %v2237 = vadd.f32 0.0, %v2236
    %v2238 = vpop.f32.mrf.mxu0
    %v2239 = vadd.f32 0.0, %v2238
    %v2240 = vpop.f32.mrf.mxu0
    %v2241 = vadd.f32 0.0, %v2240
    %2242 = vmatprep.mubr.bf16.mxu0 0
    %2243 = vmatmul.mubr.bf16.gmra.mxu0 %v512
    %v2244 = vpop.f32.mrf.mxu0
    %v2245 = vadd.f32 0.0, %v2244
    %v2246 = vpop.f32.mrf.mxu0
    %v2247 = vadd.f32 0.0, %v2246
    %v2248 = vpop.f32.mrf.mxu0
    %v2249 = vadd.f32 0.0, %v2248
    %v2250 = vpop.f32.mrf.mxu0
    %v2251 = vadd.f32 0.0, %v2250
    %2252 = vmatprep.mubr.bf16.mxu0 0
    %2253 = vmatmul.mubr.bf16.gmra.mxu0 %v513
    %v2254 = vpop.f32.mrf.mxu0
    %v2255 = vadd.f32 0.0, %v2254
    %v2256 = vpop.f32.mrf.mxu0
    %v2257 = vadd.f32 0.0, %v2256
    %v2258 = vpop.f32.mrf.mxu0
    %v2259 = vadd.f32 0.0, %v2258
    %v2260 = vpop.f32.mrf.mxu0
    %v2261 = vadd.f32 0.0, %v2260
    %2262 = vmatprep.mubr.bf16.mxu0 0
    %2263 = vmatmul.mubr.bf16.gmra.mxu0 %v514
    %v2264 = vpop.f32.mrf.mxu0
    %v2265 = vadd.f32 0.0, %v2264
    %v2266 = vpop.f32.mrf.mxu0
    %v2267 = vadd.f32 0.0, %v2266
    %v2268 = vpop.f32.mrf.mxu0
    %v2269 = vadd.f32 0.0, %v2268
    %v2270 = vpop.f32.mrf.mxu0
    %v2271 = vadd.f32 0.0, %v2270
    %2272 = vmatprep.mubr.bf16.mxu0 0
    %2273 = vmatmul.mubr.bf16.gmra.mxu0 %v515
    %v2274 = vpop.f32.mrf.mxu0
    %v2275 = vadd.f32 0.0, %v2274
    %v2276 = vpop.f32.mrf.mxu0
    %v2277 = vadd.f32 0.0, %v2276
    %v2278 = vpop.f32.mrf.mxu0
    %v2279 = vadd.f32 0.0, %v2278
    %v2280 = vpop.f32.mrf.mxu0
    %v2281 = vadd.f32 0.0, %v2280
    %2282 = vmatprep.mubr.bf16.mxu0 0
    %2283 = vmatmul.mubr.bf16.gmra.mxu0 %v516
    %v2284 = vpop.f32.mrf.mxu0
    %v2285 = vadd.f32 0.0, %v2284
    %v2286 = vpop.f32.mrf.mxu0
    %v2287 = vadd.f32 0.0, %v2286
    %v2288 = vpop.f32.mrf.mxu0
    %v2289 = vadd.f32 0.0, %v2288
    %v2290 = vpop.f32.mrf.mxu0
    %v2291 = vadd.f32 0.0, %v2290
    %2292 = vmatprep.mubr.bf16.mxu0 0
    %2293 = vmatmul.mubr.bf16.gmra.mxu0 %v517
    %v2294 = vpop.f32.mrf.mxu0
    %v2295 = vadd.f32 0.0, %v2294
    %v2296 = vpop.f32.mrf.mxu0
    %v2297 = vadd.f32 0.0, %v2296
    %v2298 = vpop.f32.mrf.mxu0
    %v2299 = vadd.f32 0.0, %v2298
    %v2300 = vpop.f32.mrf.mxu0
    %v2301 = vadd.f32 0.0, %v2300
    %2302 = vmatprep.mubr.bf16.mxu0 0
    %2303 = vmatmul.mubr.bf16.gmra.mxu0 %v518
    %v2304 = vpop.f32.mrf.mxu0
    %v2305 = vadd.f32 0.0, %v2304
    %v2306 = vpop.f32.mrf.mxu0
    %v2307 = vadd.f32 0.0, %v2306
    %v2308 = vpop.f32.mrf.mxu0
    %v2309 = vadd.f32 0.0, %v2308
    %v2310 = vpop.f32.mrf.mxu0
    %v2311 = vadd.f32 0.0, %v2310
    %2312 = vmatprep.mubr.bf16.mxu0 0
    %2313 = vmatmul.mubr.bf16.gmra.mxu0 %v519
    %v2314 = vpop.f32.mrf.mxu0
    %v2315 = vadd.f32 0.0, %v2314
    %v2316 = vpop.f32.mrf.mxu0
    %v2317 = vadd.f32 0.0, %v2316
    %v2318 = vpop.f32.mrf.mxu0
    %v2319 = vadd.f32 0.0, %v2318
    %v2320 = vpop.f32.mrf.mxu0
    %v2321 = vadd.f32 0.0, %v2320
    %2322 = vmatprep.mubr.bf16.mxu0 0
    %2323 = vmatmul.mubr.bf16.gmra.mxu0 %v520
    %v2324 = vpop.f32.mrf.mxu0
    %v2325 = vadd.f32 0.0, %v2324
    %v2326 = vpop.f32.mrf.mxu0
    %v2327 = vadd.f32 0.0, %v2326
    %v2328 = vpop.f32.mrf.mxu0
    %v2329 = vadd.f32 0.0, %v2328
    %v2330 = vpop.f32.mrf.mxu0
    %v2331 = vadd.f32 0.0, %v2330
    %2332 = vdwg.mxu0
    %2333 = vmatprep.subr.bf16.mxu0 0
    %2334 = vmatpush1.bf16.msra.mxu0 %v848
    %2335 = vmatprep.subr.bf16.mxu0 0
    %2336 = vmatpush1.bf16.msra.mxu0 %v839
    %2337 = vmatprep.subr.bf16.mxu0 0
    %2338 = vmatpush1.bf16.msra.mxu0 %v830
    %2339 = vmatprep.subr.bf16.mxu0 0
    %2340 = vmatpush1.bf16.msra.mxu0 %v821
    %2341 = vmatprep.subr.bf16.mxu0 0
    %2342 = vmatpush1.bf16.msra.mxu0 %v812
    %2343 = vmatprep.subr.bf16.mxu0 0
    %2344 = vmatpush1.bf16.msra.mxu0 %v803
    %2345 = vmatprep.subr.bf16.mxu0 0
    %2346 = vmatpush1.bf16.msra.mxu0 %v794
    %2347 = vmatprep.subr.bf16.mxu0 0
    %2348 = vmatpush1.bf16.msra.mxu0 %v785
    %2349 = vmatprep.subr.bf16.mxu0 0
    %2350 = vmatpush2.bf16.msra.mxu0 0
    %2351 = vmatprep.subr.bf16.mxu0 0
    %2352 = vmatpush2.bf16.msra.mxu0 0
    %2353 = vmatprep.subr.bf16.mxu0 0
    %2354 = vmatpush2.bf16.msra.mxu0 0
    %2355 = vmatprep.subr.bf16.mxu0 0
    %2356 = vmatpush2.bf16.msra.mxu0 0
    %2357 = vmatprep.subr.bf16.mxu0 0
    %2358 = vmatpush2.bf16.msra.mxu0 0
    %2359 = vmatprep.subr.bf16.mxu0 0
    %2360 = vmatpush2.bf16.msra.mxu0 0
    %2361 = vmatprep.subr.bf16.mxu0 0
    %2362 = vmatpush2.bf16.msra.mxu0 0
    %2363 = vmatprep.subr.bf16.mxu0 0
    %2364 = vmatpush2.bf16.msra.mxu0 0
    %2365 = vmatprep.mubr.bf16.mxu0 0
    %2366 = vmatmul.mubr.bf16.gmra.mxu0 %v489
    %v2367 = vpop.f32.mrf.mxu0
    %v2368 = vadd.f32 0.0, %v2367
    %v2369 = vpop.f32.mrf.mxu0
    %v2370 = vpop.f32.mrf.mxu0
    %v2371 = vadd.f32 0.0, %v2370
    %v2372 = vpop.f32.mrf.mxu0
    %2373 = vmatprep.mubr.bf16.mxu0 0
    %2374 = vmatmul.mubr.bf16.gmra.mxu0 %v490
    %v2375 = vpop.f32.mrf.mxu0
    %v2376 = vadd.f32 0.0, %v2375
    %v2377 = vpop.f32.mrf.mxu0
    %v2378 = vpop.f32.mrf.mxu0
    %v2379 = vadd.f32 0.0, %v2378
    %v2380 = vpop.f32.mrf.mxu0
    %2381 = vmatprep.mubr.bf16.mxu0 0
    %2382 = vmatmul.mubr.bf16.gmra.mxu0 %v491
    %v2383 = vpop.f32.mrf.mxu0
    %v2384 = vadd.f32 0.0, %v2383
    %v2385 = vpop.f32.mrf.mxu0
    %v2386 = vpop.f32.mrf.mxu0
    %v2387 = vadd.f32 0.0, %v2386
    %v2388 = vpop.f32.mrf.mxu0
    %2389 = vmatprep.mubr.bf16.mxu0 0
    %2390 = vmatmul.mubr.bf16.gmra.mxu0 %v492
    %v2391 = vpop.f32.mrf.mxu0
    %v2392 = vadd.f32 0.0, %v2391
    %v2393 = vpop.f32.mrf.mxu0
    %v2394 = vpop.f32.mrf.mxu0
    %v2395 = vadd.f32 0.0, %v2394
    %v2396 = vpop.f32.mrf.mxu0
    %2397 = vmatprep.mubr.bf16.mxu0 0
    %2398 = vmatmul.mubr.bf16.gmra.mxu0 %v493
    %v2399 = vpop.f32.mrf.mxu0
    %v2400 = vadd.f32 0.0, %v2399
    %v2401 = vpop.f32.mrf.mxu0
    %v2402 = vpop.f32.mrf.mxu0
    %v2403 = vadd.f32 0.0, %v2402
    %v2404 = vpop.f32.mrf.mxu0
    %2405 = vmatprep.mubr.bf16.mxu0 0
    %2406 = vmatmul.mubr.bf16.gmra.mxu0 %v494
    %v2407 = vpop.f32.mrf.mxu0
    %v2408 = vadd.f32 0.0, %v2407
    %v2409 = vpop.f32.mrf.mxu0
    %v2410 = vpop.f32.mrf.mxu0
    %v2411 = vadd.f32 0.0, %v2410
    %v2412 = vpop.f32.mrf.mxu0
    %2413 = vmatprep.mubr.bf16.mxu0 0
    %2414 = vmatmul.mubr.bf16.gmra.mxu0 %v495
    %v2415 = vpop.f32.mrf.mxu0
    %v2416 = vadd.f32 0.0, %v2415
    %v2417 = vpop.f32.mrf.mxu0
    %v2418 = vpop.f32.mrf.mxu0
    %v2419 = vadd.f32 0.0, %v2418
    %v2420 = vpop.f32.mrf.mxu0
    %2421 = vmatprep.mubr.bf16.mxu0 0
    %2422 = vmatmul.mubr.bf16.gmra.mxu0 %v496
    %v2423 = vpop.f32.mrf.mxu0
    %v2424 = vadd.f32 0.0, %v2423
    %v2425 = vpop.f32.mrf.mxu0
    %v2426 = vpop.f32.mrf.mxu0
    %v2427 = vadd.f32 0.0, %v2426
    %v2428 = vpop.f32.mrf.mxu0
    %2429 = vmatprep.mubr.bf16.mxu0 0
    %2430 = vmatmul.mubr.bf16.gmra.mxu0 %v497
    %v2431 = vpop.f32.mrf.mxu0
    %v2432 = vadd.f32 0.0, %v2431
    %v2433 = vpop.f32.mrf.mxu0
    %v2434 = vpop.f32.mrf.mxu0
    %v2435 = vadd.f32 0.0, %v2434
    %v2436 = vpop.f32.mrf.mxu0
    %2437 = vmatprep.mubr.bf16.mxu0 0
    %2438 = vmatmul.mubr.bf16.gmra.mxu0 %v498
    %v2439 = vpop.f32.mrf.mxu0
    %v2440 = vadd.f32 0.0, %v2439
    %v2441 = vpop.f32.mrf.mxu0
    %v2442 = vpop.f32.mrf.mxu0
    %v2443 = vadd.f32 0.0, %v2442
    %v2444 = vpop.f32.mrf.mxu0
    %2445 = vmatprep.mubr.bf16.mxu0 0
    %2446 = vmatmul.mubr.bf16.gmra.mxu0 %v499
    %v2447 = vpop.f32.mrf.mxu0
    %v2448 = vadd.f32 0.0, %v2447
    %v2449 = vpop.f32.mrf.mxu0
    %v2450 = vpop.f32.mrf.mxu0
    %v2451 = vadd.f32 0.0, %v2450
    %v2452 = vpop.f32.mrf.mxu0
    %2453 = vmatprep.mubr.bf16.mxu0 0
    %2454 = vmatmul.mubr.bf16.gmra.mxu0 %v500
    %v2455 = vpop.f32.mrf.mxu0
    %v2456 = vadd.f32 0.0, %v2455
    %v2457 = vpop.f32.mrf.mxu0
    %v2458 = vpop.f32.mrf.mxu0
    %v2459 = vadd.f32 0.0, %v2458
    %v2460 = vpop.f32.mrf.mxu0
    %2461 = vmatprep.mubr.bf16.mxu0 0
    %2462 = vmatmul.mubr.bf16.gmra.mxu0 %v501
    %v2463 = vpop.f32.mrf.mxu0
    %v2464 = vadd.f32 0.0, %v2463
    %v2465 = vpop.f32.mrf.mxu0
    %v2466 = vpop.f32.mrf.mxu0
    %v2467 = vadd.f32 0.0, %v2466
    %v2468 = vpop.f32.mrf.mxu0
    %2469 = vmatprep.mubr.bf16.mxu0 0
    %2470 = vmatmul.mubr.bf16.gmra.mxu0 %v502
    %v2471 = vpop.f32.mrf.mxu0
    %v2472 = vadd.f32 0.0, %v2471
    %v2473 = vpop.f32.mrf.mxu0
    %v2474 = vpop.f32.mrf.mxu0
    %v2475 = vadd.f32 0.0, %v2474
    %v2476 = vpop.f32.mrf.mxu0
    %2477 = vmatprep.mubr.bf16.mxu0 0
    %2478 = vmatmul.mubr.bf16.gmra.mxu0 %v503
    %v2479 = vpop.f32.mrf.mxu0
    %v2480 = vadd.f32 0.0, %v2479
    %v2481 = vpop.f32.mrf.mxu0
    %v2482 = vpop.f32.mrf.mxu0
    %v2483 = vadd.f32 0.0, %v2482
    %v2484 = vpop.f32.mrf.mxu0
    %2485 = vmatprep.mubr.bf16.mxu0 0
    %2486 = vmatmul.mubr.bf16.gmra.mxu0 %v504
    %v2487 = vpop.f32.mrf.mxu0
    %v2488 = vadd.f32 0.0, %v2487
    %v2489 = vpop.f32.mrf.mxu0
    %v2490 = vpop.f32.mrf.mxu0
    %v2491 = vadd.f32 0.0, %v2490
    %v2492 = vpop.f32.mrf.mxu0
    %2493 = vmatprep.mubr.bf16.mxu0 0
    %2494 = vmatmul.mubr.bf16.gmra.mxu0 %v505
    %v2495 = vpop.f32.mrf.mxu0
    %v2496 = vadd.f32 0.0, %v2495
    %v2497 = vpop.f32.mrf.mxu0
    %v2498 = vpop.f32.mrf.mxu0
    %v2499 = vadd.f32 0.0, %v2498
    %v2500 = vpop.f32.mrf.mxu0
    %2501 = vmatprep.mubr.bf16.mxu0 0
    %2502 = vmatmul.mubr.bf16.gmra.mxu0 %v506
    %v2503 = vpop.f32.mrf.mxu0
    %v2504 = vadd.f32 0.0, %v2503
    %v2505 = vpop.f32.mrf.mxu0
    %v2506 = vpop.f32.mrf.mxu0
    %v2507 = vadd.f32 0.0, %v2506
    %v2508 = vpop.f32.mrf.mxu0
    %2509 = vmatprep.mubr.bf16.mxu0 0
    %2510 = vmatmul.mubr.bf16.gmra.mxu0 %v507
    %v2511 = vpop.f32.mrf.mxu0
    %v2512 = vadd.f32 0.0, %v2511
    %v2513 = vpop.f32.mrf.mxu0
    %v2514 = vpop.f32.mrf.mxu0
    %v2515 = vadd.f32 0.0, %v2514
    %v2516 = vpop.f32.mrf.mxu0
    %2517 = vmatprep.mubr.bf16.mxu0 0
    %2518 = vmatmul.mubr.bf16.gmra.mxu0 %v508
    %v2519 = vpop.f32.mrf.mxu0
    %v2520 = vadd.f32 0.0, %v2519
    %v2521 = vpop.f32.mrf.mxu0
    %v2522 = vpop.f32.mrf.mxu0
    %v2523 = vadd.f32 0.0, %v2522
    %v2524 = vpop.f32.mrf.mxu0
    %2525 = vmatprep.mubr.bf16.mxu0 0
    %2526 = vmatmul.mubr.bf16.gmra.mxu0 %v509
    %v2527 = vpop.f32.mrf.mxu0
    %v2528 = vadd.f32 0.0, %v2527
    %v2529 = vpop.f32.mrf.mxu0
    %v2530 = vpop.f32.mrf.mxu0
    %v2531 = vadd.f32 0.0, %v2530
    %v2532 = vpop.f32.mrf.mxu0
    %2533 = vmatprep.mubr.bf16.mxu0 0
    %2534 = vmatmul.mubr.bf16.gmra.mxu0 %v510
    %v2535 = vpop.f32.mrf.mxu0
    %v2536 = vadd.f32 0.0, %v2535
    %v2537 = vpop.f32.mrf.mxu0
    %v2538 = vpop.f32.mrf.mxu0
    %v2539 = vadd.f32 0.0, %v2538
    %v2540 = vpop.f32.mrf.mxu0
    %2541 = vmatprep.mubr.bf16.mxu0 0
    %2542 = vmatmul.mubr.bf16.gmra.mxu0 %v511
    %v2543 = vpop.f32.mrf.mxu0
    %v2544 = vadd.f32 0.0, %v2543
    %v2545 = vpop.f32.mrf.mxu0
    %v2546 = vpop.f32.mrf.mxu0
    %v2547 = vadd.f32 0.0, %v2546
    %v2548 = vpop.f32.mrf.mxu0
    %2549 = vmatprep.mubr.bf16.mxu0 0
    %2550 = vmatmul.mubr.bf16.gmra.mxu0 %v512
    %v2551 = vpop.f32.mrf.mxu0
    %v2552 = vadd.f32 0.0, %v2551
    %v2553 = vpop.f32.mrf.mxu0
    %v2554 = vpop.f32.mrf.mxu0
    %v2555 = vadd.f32 0.0, %v2554
    %v2556 = vpop.f32.mrf.mxu0
    %2557 = vmatprep.mubr.bf16.mxu0 0
    %2558 = vmatmul.mubr.bf16.gmra.mxu0 %v513
    %v2559 = vpop.f32.mrf.mxu0
    %v2560 = vadd.f32 0.0, %v2559
    %v2561 = vpop.f32.mrf.mxu0
    %v2562 = vpop.f32.mrf.mxu0
    %v2563 = vadd.f32 0.0, %v2562
    %v2564 = vpop.f32.mrf.mxu0
    %2565 = vmatprep.mubr.bf16.mxu0 0
    %2566 = vmatmul.mubr.bf16.gmra.mxu0 %v514
    %v2567 = vpop.f32.mrf.mxu0
    %v2568 = vadd.f32 0.0, %v2567
    %v2569 = vpop.f32.mrf.mxu0
    %v2570 = vpop.f32.mrf.mxu0
    %v2571 = vadd.f32 0.0, %v2570
    %v2572 = vpop.f32.mrf.mxu0
    %2573 = vmatprep.mubr.bf16.mxu0 0
    %2574 = vmatmul.mubr.bf16.gmra.mxu0 %v515
    %v2575 = vpop.f32.mrf.mxu0
    %v2576 = vadd.f32 0.0, %v2575
    %v2577 = vpop.f32.mrf.mxu0
    %v2578 = vpop.f32.mrf.mxu0
    %v2579 = vadd.f32 0.0, %v2578
    %v2580 = vpop.f32.mrf.mxu0
    %2581 = vmatprep.mubr.bf16.mxu0 0
    %2582 = vmatmul.mubr.bf16.gmra.mxu0 %v516
    %v2583 = vpop.f32.mrf.mxu0
    %v2584 = vadd.f32 0.0, %v2583
    %v2585 = vpop.f32.mrf.mxu0
    %v2586 = vpop.f32.mrf.mxu0
    %v2587 = vadd.f32 0.0, %v2586
    %v2588 = vpop.f32.mrf.mxu0
    %2589 = vmatprep.mubr.bf16.mxu0 0
    %2590 = vmatmul.mubr.bf16.gmra.mxu0 %v517
    %v2591 = vpop.f32.mrf.mxu0
    %v2592 = vadd.f32 0.0, %v2591
    %v2593 = vpop.f32.mrf.mxu0
    %v2594 = vpop.f32.mrf.mxu0
    %v2595 = vadd.f32 0.0, %v2594
    %v2596 = vpop.f32.mrf.mxu0
    %2597 = vmatprep.mubr.bf16.mxu0 0
    %2598 = vmatmul.mubr.bf16.gmra.mxu0 %v518
    %v2599 = vpop.f32.mrf.mxu0
    %v2600 = vadd.f32 0.0, %v2599
    %v2601 = vpop.f32.mrf.mxu0
    %v2602 = vpop.f32.mrf.mxu0
    %v2603 = vadd.f32 0.0, %v2602
    %v2604 = vpop.f32.mrf.mxu0
    %2605 = vmatprep.mubr.bf16.mxu0 0
    %2606 = vmatmul.mubr.bf16.gmra.mxu0 %v519
    %v2607 = vpop.f32.mrf.mxu0
    %v2608 = vadd.f32 0.0, %v2607
    %v2609 = vpop.f32.mrf.mxu0
    %v2610 = vpop.f32.mrf.mxu0
    %v2611 = vadd.f32 0.0, %v2610
    %v2612 = vpop.f32.mrf.mxu0
    %2613 = vmatprep.mubr.bf16.mxu0 0
    %2614 = vmatmul.mubr.bf16.gmra.mxu0 %v520
    %v2615 = vpop.f32.mrf.mxu0
    %v2616 = vadd.f32 0.0, %v2615
    %v2617 = vpop.f32.mrf.mxu0
    %v2618 = vpop.f32.mrf.mxu0
    %v2619 = vadd.f32 0.0, %v2618
    %v2620 = vpop.f32.mrf.mxu0
    %2621 = vdwg.mxu0
    %v2622 = vpack.c.bf16 %v960, %v956
    %v2623 = vpack.c.bf16 %v962, %v958
    %v2624 = vpack.c.bf16 %v1313, %v1309
    %v2625 = vpack.c.bf16 %v1315, %v1311
    %v2626 = vpack.c.bf16 %v1666, %v1662
    %v2627 = vpack.c.bf16 %v1668, %v1664
    %v2628 = vpack.c.bf16 %v2019, %v2015
    %v2629 = vpack.c.bf16 %v2021, %v2017
    %v2630 = vpack.c.bf16 %v2371, %v2368
    %v2631 = vpack.c.bf16 %v970, %v966
    %v2632 = vpack.c.bf16 %v972, %v968
    %v2633 = vpack.c.bf16 %v1323, %v1319
    %v2634 = vpack.c.bf16 %v1325, %v1321
    %v2635 = vpack.c.bf16 %v1676, %v1672
    %v2636 = vpack.c.bf16 %v1678, %v1674
    %v2637 = vpack.c.bf16 %v2029, %v2025
    %v2638 = vpack.c.bf16 %v2031, %v2027
    %v2639 = vpack.c.bf16 %v2379, %v2376
    %v2640 = vpack.c.bf16 %v980, %v976
    %v2641 = vpack.c.bf16 %v982, %v978
    %v2642 = vpack.c.bf16 %v1333, %v1329
    %v2643 = vpack.c.bf16 %v1335, %v1331
    %v2644 = vpack.c.bf16 %v1686, %v1682
    %v2645 = vpack.c.bf16 %v1688, %v1684
    %v2646 = vpack.c.bf16 %v2039, %v2035
    %v2647 = vpack.c.bf16 %v2041, %v2037
    %v2648 = vpack.c.bf16 %v2387, %v2384
    %v2649 = vpack.c.bf16 %v990, %v986
    %v2650 = vpack.c.bf16 %v992, %v988
    %v2651 = vpack.c.bf16 %v1343, %v1339
    %v2652 = vpack.c.bf16 %v1345, %v1341
    %v2653 = vpack.c.bf16 %v1696, %v1692
    %v2654 = vpack.c.bf16 %v1698, %v1694
    %v2655 = vpack.c.bf16 %v2049, %v2045
    %v2656 = vpack.c.bf16 %v2051, %v2047
    %v2657 = vpack.c.bf16 %v2395, %v2392
    %v2658 = vpack.c.bf16 %v1000, %v996
    %v2659 = vpack.c.bf16 %v1002, %v998
    %v2660 = vpack.c.bf16 %v1353, %v1349
    %v2661 = vpack.c.bf16 %v1355, %v1351
    %v2662 = vpack.c.bf16 %v1706, %v1702
    %v2663 = vpack.c.bf16 %v1708, %v1704
    %v2664 = vpack.c.bf16 %v2059, %v2055
    %v2665 = vpack.c.bf16 %v2061, %v2057
    %v2666 = vpack.c.bf16 %v2403, %v2400
    %v2667 = vpack.c.bf16 %v1010, %v1006
    %v2668 = vpack.c.bf16 %v1012, %v1008
    %v2669 = vpack.c.bf16 %v1363, %v1359
    %v2670 = vpack.c.bf16 %v1365, %v1361
    %v2671 = vpack.c.bf16 %v1716, %v1712
    %v2672 = vpack.c.bf16 %v1718, %v1714
    %v2673 = vpack.c.bf16 %v2069, %v2065
    %v2674 = vpack.c.bf16 %v2071, %v2067
    %v2675 = vpack.c.bf16 %v2411, %v2408
    %v2676 = vpack.c.bf16 %v1020, %v1016
    %v2677 = vpack.c.bf16 %v1022, %v1018
    %v2678 = vpack.c.bf16 %v1373, %v1369
    %v2679 = vpack.c.bf16 %v1375, %v1371
    %v2680 = vpack.c.bf16 %v1726, %v1722
    %v2681 = vpack.c.bf16 %v1728, %v1724
    %v2682 = vpack.c.bf16 %v2079, %v2075
    %v2683 = vpack.c.bf16 %v2081, %v2077
    %v2684 = vpack.c.bf16 %v2419, %v2416
    %v2685 = vpack.c.bf16 %v1030, %v1026
    %v2686 = vpack.c.bf16 %v1032, %v1028
    %v2687 = vpack.c.bf16 %v1383, %v1379
    %v2688 = vpack.c.bf16 %v1385, %v1381
    %v2689 = vpack.c.bf16 %v1736, %v1732
    %v2690 = vpack.c.bf16 %v1738, %v1734
    %v2691 = vpack.c.bf16 %v2089, %v2085
    %v2692 = vpack.c.bf16 %v2091, %v2087
    %v2693 = vpack.c.bf16 %v2427, %v2424
    %v2694 = vpack.c.bf16 %v1040, %v1036
    %v2695 = vpack.c.bf16 %v1042, %v1038
    %v2696 = vpack.c.bf16 %v1393, %v1389
    %v2697 = vpack.c.bf16 %v1395, %v1391
    %v2698 = vpack.c.bf16 %v1746, %v1742
    %v2699 = vpack.c.bf16 %v1748, %v1744
    %v2700 = vpack.c.bf16 %v2099, %v2095
    %v2701 = vpack.c.bf16 %v2101, %v2097
    %v2702 = vpack.c.bf16 %v2435, %v2432
    %v2703 = vpack.c.bf16 %v1050, %v1046
    %v2704 = vpack.c.bf16 %v1052, %v1048
    %v2705 = vpack.c.bf16 %v1403, %v1399
    %v2706 = vpack.c.bf16 %v1405, %v1401
    %v2707 = vpack.c.bf16 %v1756, %v1752
    %v2708 = vpack.c.bf16 %v1758, %v1754
    %v2709 = vpack.c.bf16 %v2109, %v2105
    %v2710 = vpack.c.bf16 %v2111, %v2107
    %v2711 = vpack.c.bf16 %v2443, %v2440
    %v2712 = vpack.c.bf16 %v1060, %v1056
    %v2713 = vpack.c.bf16 %v1062, %v1058
    %v2714 = vpack.c.bf16 %v1413, %v1409
    %v2715 = vpack.c.bf16 %v1415, %v1411
    %v2716 = vpack.c.bf16 %v1766, %v1762
    %v2717 = vpack.c.bf16 %v1768, %v1764
    %v2718 = vpack.c.bf16 %v2119, %v2115
    %v2719 = vpack.c.bf16 %v2121, %v2117
    %v2720 = vpack.c.bf16 %v2451, %v2448
    %v2721 = vpack.c.bf16 %v1070, %v1066
    %v2722 = vpack.c.bf16 %v1072, %v1068
    %v2723 = vpack.c.bf16 %v1423, %v1419
    %v2724 = vpack.c.bf16 %v1425, %v1421
    %v2725 = vpack.c.bf16 %v1776, %v1772
    %v2726 = vpack.c.bf16 %v1778, %v1774
    %v2727 = vpack.c.bf16 %v2129, %v2125
    %v2728 = vpack.c.bf16 %v2131, %v2127
    %v2729 = vpack.c.bf16 %v2459, %v2456
    %v2730 = vpack.c.bf16 %v1080, %v1076
    %v2731 = vpack.c.bf16 %v1082, %v1078
    %v2732 = vpack.c.bf16 %v1433, %v1429
    %v2733 = vpack.c.bf16 %v1435, %v1431
    %v2734 = vpack.c.bf16 %v1786, %v1782
    %v2735 = vpack.c.bf16 %v1788, %v1784
    %v2736 = vpack.c.bf16 %v2139, %v2135
    %v2737 = vpack.c.bf16 %v2141, %v2137
    %v2738 = vpack.c.bf16 %v2467, %v2464
    %v2739 = vpack.c.bf16 %v1090, %v1086
    %v2740 = vpack.c.bf16 %v1092, %v1088
    %v2741 = vpack.c.bf16 %v1443, %v1439
    %v2742 = vpack.c.bf16 %v1445, %v1441
    %v2743 = vpack.c.bf16 %v1796, %v1792
    %v2744 = vpack.c.bf16 %v1798, %v1794
    %v2745 = vpack.c.bf16 %v2149, %v2145
    %v2746 = vpack.c.bf16 %v2151, %v2147
    %v2747 = vpack.c.bf16 %v2475, %v2472
    %v2748 = vpack.c.bf16 %v1100, %v1096
    %v2749 = vpack.c.bf16 %v1102, %v1098
    %v2750 = vpack.c.bf16 %v1453, %v1449
    %v2751 = vpack.c.bf16 %v1455, %v1451
    %v2752 = vpack.c.bf16 %v1806, %v1802
    %v2753 = vpack.c.bf16 %v1808, %v1804
    %v2754 = vpack.c.bf16 %v2159, %v2155
    %v2755 = vpack.c.bf16 %v2161, %v2157
    %v2756 = vpack.c.bf16 %v2483, %v2480
    %v2757 = vpack.c.bf16 %v1110, %v1106
    %v2758 = vpack.c.bf16 %v1112, %v1108
    %v2759 = vpack.c.bf16 %v1463, %v1459
    %v2760 = vpack.c.bf16 %v1465, %v1461
    %v2761 = vpack.c.bf16 %v1816, %v1812
    %v2762 = vpack.c.bf16 %v1818, %v1814
    %v2763 = vpack.c.bf16 %v2169, %v2165
    %v2764 = vpack.c.bf16 %v2171, %v2167
    %v2765 = vpack.c.bf16 %v2491, %v2488
    %v2766 = vpack.c.bf16 %v1120, %v1116
    %v2767 = vpack.c.bf16 %v1122, %v1118
    %v2768 = vpack.c.bf16 %v1473, %v1469
    %v2769 = vpack.c.bf16 %v1475, %v1471
    %v2770 = vpack.c.bf16 %v1826, %v1822
    %v2771 = vpack.c.bf16 %v1828, %v1824
    %v2772 = vpack.c.bf16 %v2179, %v2175
    %v2773 = vpack.c.bf16 %v2181, %v2177
    %v2774 = vpack.c.bf16 %v2499, %v2496
    %v2775 = vpack.c.bf16 %v1130, %v1126
    %v2776 = vpack.c.bf16 %v1132, %v1128
    %v2777 = vpack.c.bf16 %v1483, %v1479
    %v2778 = vpack.c.bf16 %v1485, %v1481
    %v2779 = vpack.c.bf16 %v1836, %v1832
    %v2780 = vpack.c.bf16 %v1838, %v1834
    %v2781 = vpack.c.bf16 %v2189, %v2185
    %v2782 = vpack.c.bf16 %v2191, %v2187
    %v2783 = vpack.c.bf16 %v2507, %v2504
    %v2784 = vpack.c.bf16 %v1140, %v1136
    %v2785 = vpack.c.bf16 %v1142, %v1138
    %v2786 = vpack.c.bf16 %v1493, %v1489
    %v2787 = vpack.c.bf16 %v1495, %v1491
    %v2788 = vpack.c.bf16 %v1846, %v1842
    %v2789 = vpack.c.bf16 %v1848, %v1844
    %v2790 = vpack.c.bf16 %v2199, %v2195
    %v2791 = vpack.c.bf16 %v2201, %v2197
    %v2792 = vpack.c.bf16 %v2515, %v2512
    %v2793 = vpack.c.bf16 %v1150, %v1146
    %v2794 = vpack.c.bf16 %v1152, %v1148
    %v2795 = vpack.c.bf16 %v1503, %v1499
    %v2796 = vpack.c.bf16 %v1505, %v1501
    %v2797 = vpack.c.bf16 %v1856, %v1852
    %v2798 = vpack.c.bf16 %v1858, %v1854
    %v2799 = vpack.c.bf16 %v2209, %v2205
    %v2800 = vpack.c.bf16 %v2211, %v2207
    %v2801 = vpack.c.bf16 %v2523, %v2520
    %v2802 = vpack.c.bf16 %v1160, %v1156
    %v2803 = vpack.c.bf16 %v1162, %v1158
    %v2804 = vpack.c.bf16 %v1513, %v1509
    %v2805 = vpack.c.bf16 %v1515, %v1511
    %v2806 = vpack.c.bf16 %v1866, %v1862
    %v2807 = vpack.c.bf16 %v1868, %v1864
    %v2808 = vpack.c.bf16 %v2219, %v2215
    %v2809 = vpack.c.bf16 %v2221, %v2217
    %v2810 = vpack.c.bf16 %v2531, %v2528
    %v2811 = vpack.c.bf16 %v1170, %v1166
    %v2812 = vpack.c.bf16 %v1172, %v1168
    %v2813 = vpack.c.bf16 %v1523, %v1519
    %v2814 = vpack.c.bf16 %v1525, %v1521
    %v2815 = vpack.c.bf16 %v1876, %v1872
    %v2816 = vpack.c.bf16 %v1878, %v1874
    %v2817 = vpack.c.bf16 %v2229, %v2225
    %v2818 = vpack.c.bf16 %v2231, %v2227
    %v2819 = vpack.c.bf16 %v2539, %v2536
    %v2820 = vpack.c.bf16 %v1180, %v1176
    %v2821 = vpack.c.bf16 %v1182, %v1178
    %v2822 = vpack.c.bf16 %v1533, %v1529
    %v2823 = vpack.c.bf16 %v1535, %v1531
    %v2824 = vpack.c.bf16 %v1886, %v1882
    %v2825 = vpack.c.bf16 %v1888, %v1884
    %v2826 = vpack.c.bf16 %v2239, %v2235
    %v2827 = vpack.c.bf16 %v2241, %v2237
    %v2828 = vpack.c.bf16 %v2547, %v2544
    %v2829 = vpack.c.bf16 %v1190, %v1186
    %v2830 = vpack.c.bf16 %v1192, %v1188
    %v2831 = vpack.c.bf16 %v1543, %v1539
    %v2832 = vpack.c.bf16 %v1545, %v1541
    %v2833 = vpack.c.bf16 %v1896, %v1892
    %v2834 = vpack.c.bf16 %v1898, %v1894
    %v2835 = vpack.c.bf16 %v2249, %v2245
    %v2836 = vpack.c.bf16 %v2251, %v2247
    %v2837 = vpack.c.bf16 %v2555, %v2552
    %v2838 = vpack.c.bf16 %v1200, %v1196
    %v2839 = vpack.c.bf16 %v1202, %v1198
    %v2840 = vpack.c.bf16 %v1553, %v1549
    %v2841 = vpack.c.bf16 %v1555, %v1551
    %v2842 = vpack.c.bf16 %v1906, %v1902
    %v2843 = vpack.c.bf16 %v1908, %v1904
    %v2844 = vpack.c.bf16 %v2259, %v2255
    %v2845 = vpack.c.bf16 %v2261, %v2257
    %v2846 = vpack.c.bf16 %v2563, %v2560
    %v2847 = vpack.c.bf16 %v1210, %v1206
    %v2848 = vpack.c.bf16 %v1212, %v1208
    %v2849 = vpack.c.bf16 %v1563, %v1559
    %v2850 = vpack.c.bf16 %v1565, %v1561
    %v2851 = vpack.c.bf16 %v1916, %v1912
    %v2852 = vpack.c.bf16 %v1918, %v1914
    %v2853 = vpack.c.bf16 %v2269, %v2265
    %v2854 = vpack.c.bf16 %v2271, %v2267
    %v2855 = vpack.c.bf16 %v2571, %v2568
    %v2856 = vpack.c.bf16 %v1220, %v1216
    %v2857 = vpack.c.bf16 %v1222, %v1218
    %v2858 = vpack.c.bf16 %v1573, %v1569
    %v2859 = vpack.c.bf16 %v1575, %v1571
    %v2860 = vpack.c.bf16 %v1926, %v1922
    %v2861 = vpack.c.bf16 %v1928, %v1924
    %v2862 = vpack.c.bf16 %v2279, %v2275
    %v2863 = vpack.c.bf16 %v2281, %v2277
    %v2864 = vpack.c.bf16 %v2579, %v2576
    %v2865 = vpack.c.bf16 %v1230, %v1226
    %v2866 = vpack.c.bf16 %v1232, %v1228
    %v2867 = vpack.c.bf16 %v1583, %v1579
    %v2868 = vpack.c.bf16 %v1585, %v1581
    %v2869 = vpack.c.bf16 %v1936, %v1932
    %v2870 = vpack.c.bf16 %v1938, %v1934
    %v2871 = vpack.c.bf16 %v2289, %v2285
    %v2872 = vpack.c.bf16 %v2291, %v2287
    %v2873 = vpack.c.bf16 %v2587, %v2584
    %v2874 = vpack.c.bf16 %v1240, %v1236
    %v2875 = vpack.c.bf16 %v1242, %v1238
    %v2876 = vpack.c.bf16 %v1593, %v1589
    %v2877 = vpack.c.bf16 %v1595, %v1591
    %v2878 = vpack.c.bf16 %v1946, %v1942
    %v2879 = vpack.c.bf16 %v1948, %v1944
    %v2880 = vpack.c.bf16 %v2299, %v2295
    %v2881 = vpack.c.bf16 %v2301, %v2297
    %v2882 = vpack.c.bf16 %v2595, %v2592
    %v2883 = vpack.c.bf16 %v1250, %v1246
    %v2884 = vpack.c.bf16 %v1252, %v1248
    %v2885 = vpack.c.bf16 %v1603, %v1599
    %v2886 = vpack.c.bf16 %v1605, %v1601
    %v2887 = vpack.c.bf16 %v1956, %v1952
    %v2888 = vpack.c.bf16 %v1958, %v1954
    %v2889 = vpack.c.bf16 %v2309, %v2305
    %v2890 = vpack.c.bf16 %v2311, %v2307
    %v2891 = vpack.c.bf16 %v2603, %v2600
    %v2892 = vpack.c.bf16 %v1260, %v1256
    %v2893 = vpack.c.bf16 %v1262, %v1258
    %v2894 = vpack.c.bf16 %v1613, %v1609
    %v2895 = vpack.c.bf16 %v1615, %v1611
    %v2896 = vpack.c.bf16 %v1966, %v1962
    %v2897 = vpack.c.bf16 %v1968, %v1964
    %v2898 = vpack.c.bf16 %v2319, %v2315
    %v2899 = vpack.c.bf16 %v2321, %v2317
    %v2900 = vpack.c.bf16 %v2611, %v2608
    %v2901 = vpack.c.bf16 %v1270, %v1266
    %v2902 = vpack.c.bf16 %v1272, %v1268
    %v2903 = vpack.c.bf16 %v1623, %v1619
    %v2904 = vpack.c.bf16 %v1625, %v1621
    %v2905 = vpack.c.bf16 %v1976, %v1972
    %v2906 = vpack.c.bf16 %v1978, %v1974
    %v2907 = vpack.c.bf16 %v2329, %v2325
    %v2908 = vpack.c.bf16 %v2331, %v2327
    %v2909 = vpack.c.bf16 %v2619, %v2616
    %v2910 = vld [vmem:[#allocation4] sm:$0xff]
    %v2911 = vld [vmem:[#allocation4 + $0x8] sm:$0xff]
    %v2912 = vld [vmem:[#allocation4 + $0x10] sm:$0xff]
    %v2913 = vld [vmem:[#allocation4 + $0x18] sm:$0xff]
    %v2914 = vld [vmem:[#allocation4 + $0x20] sm:$0xff]
    %v2915 = vld [vmem:[#allocation4 + $0x28] sm:$0xff]
    %v2916 = vld [vmem:[#allocation4 + $0x30] sm:$0xff]
    %v2917 = vld [vmem:[#allocation4 + $0x38] sm:$0xff]
    %v2918 = vld [vmem:[#allocation4 + $0x40] sm:$0xff]
    %v2919 = vld [vmem:[#allocation4 + $0x48] sm:$0xff]
    %v2920 = vld [vmem:[#allocation4 + $0x50] sm:$0xff]
    %v2921 = vld [vmem:[#allocation4 + $0x58] sm:$0xff]
    %v2922 = vld [vmem:[#allocation4 + $0x60] sm:$0xff]
    %v2923 = vld [vmem:[#allocation4 + $0x68] sm:$0xff]
    %v2924 = vld [vmem:[#allocation4 + $0x70] sm:$0xff]
    %v2925 = vld [vmem:[#allocation4 + $0x78] sm:$0xff]
    %v2926 = vld [vmem:[#allocation4 + $0x80] sm:$0xff]
    %v2927 = vld [vmem:[#allocation4 + $0x88] sm:$0xff]
    %v2928 = vld [vmem:[#allocation4 + $0x90] sm:$0xff]
    %v2929 = vld [vmem:[#allocation4 + $0x98] sm:$0xff]
    %v2930 = vld [vmem:[#allocation4 + $0xa0] sm:$0xff]
    %v2931 = vld [vmem:[#allocation4 + $0xa8] sm:$0xff]
    %v2932 = vld [vmem:[#allocation4 + $0xb0] sm:$0xff]
    %v2933 = vld [vmem:[#allocation4 + $0xb8] sm:$0xff]
    %v2934 = vld [vmem:[#allocation4 + $0xc0] sm:$0xff]
    %v2935 = vld [vmem:[#allocation4 + $0xc8] sm:$0xff]
    %v2936 = vld [vmem:[#allocation4 + $0xd0] sm:$0xff]
    %v2937 = vld [vmem:[#allocation4 + $0xd8] sm:$0xff]
    %v2938 = vld [vmem:[#allocation4 + $0xe0] sm:$0xff]
    %v2939 = vld [vmem:[#allocation4 + $0xe8] sm:$0xff]
    %v2940 = vld [vmem:[#allocation4 + $0xf0] sm:$0xff]
    %v2941 = vld [vmem:[#allocation4 + $0xf8] sm:$0xff]
    %s2942 = scalar_lea.vmem [#allocation4], 256
    %v2943 = vld [vmem:[%s2942] sm:$0xff]
    %v2944 = vld [vmem:[%s2942 + $0x8] sm:$0xff]
    %v2945 = vld [vmem:[%s2942 + $0x10] sm:$0xff]
    %v2946 = vld [vmem:[%s2942 + $0x18] sm:$0xff]
    %v2947 = vld [vmem:[%s2942 + $0x20] sm:$0xff]
    %v2948 = vld [vmem:[%s2942 + $0x28] sm:$0xff]
    %v2949 = vld [vmem:[%s2942 + $0x30] sm:$0xff]
    %v2950 = vld [vmem:[%s2942 + $0x38] sm:$0xff]
    %v2951 = vld [vmem:[%s2942 + $0x40] sm:$0xff]
    %v2952 = vld [vmem:[%s2942 + $0x48] sm:$0xff]
    %v2953 = vld [vmem:[%s2942 + $0x50] sm:$0xff]
    %v2954 = vld [vmem:[%s2942 + $0x58] sm:$0xff]
    %v2955 = vld [vmem:[%s2942 + $0x60] sm:$0xff]
    %v2956 = vld [vmem:[%s2942 + $0x68] sm:$0xff]
    %v2957 = vld [vmem:[%s2942 + $0x70] sm:$0xff]
    %v2958 = vld [vmem:[%s2942 + $0x78] sm:$0xff]
    %v2959 = vld [vmem:[%s2942 + $0x80] sm:$0xff]
    %v2960 = vld [vmem:[%s2942 + $0x88] sm:$0xff]
    %v2961 = vld [vmem:[%s2942 + $0x90] sm:$0xff]
    %v2962 = vld [vmem:[%s2942 + $0x98] sm:$0xff]
    %v2963 = vld [vmem:[%s2942 + $0xa0] sm:$0xff]
    %v2964 = vld [vmem:[%s2942 + $0xa8] sm:$0xff]
    %v2965 = vld [vmem:[%s2942 + $0xb0] sm:$0xff]
    %v2966 = vld [vmem:[%s2942 + $0xb8] sm:$0xff]
    %v2967 = vld [vmem:[%s2942 + $0xc0] sm:$0xff]
    %v2968 = vld [vmem:[%s2942 + $0xc8] sm:$0xff]
    %v2969 = vld [vmem:[%s2942 + $0xd0] sm:$0xff]
    %v2970 = vld [vmem:[%s2942 + $0xd8] sm:$0xff]
    %v2971 = vld [vmem:[%s2942 + $0xe0] sm:$0xff]
    %v2972 = vld [vmem:[%s2942 + $0xe8] sm:$0xff]
    %v2973 = vld [vmem:[%s2942 + $0xf0] sm:$0xff]
    %v2974 = vld [vmem:[%s2942 + $0xf8] sm:$0xff]
    %v3007 = vunpack.c.l.b16 %v2943
    %v3008 = vunpack.c.h.b16 %v2943
    %v3009 = vunpack.c.l.b16 %v2944
    %v3010 = vunpack.c.h.b16 %v2944
    %v3011 = vunpack.c.l.b16 %v2945
    %v3012 = vunpack.c.h.b16 %v2945
    %v3013 = vunpack.c.l.b16 %v2946
    %v3014 = vunpack.c.h.b16 %v2946
    %v3015 = vunpack.c.l.b16 %v2947
    %v3016 = vunpack.c.h.b16 %v2947
    %v3017 = vunpack.c.l.b16 %v2948
    %v3018 = vunpack.c.h.b16 %v2948
    %v3019 = vunpack.c.l.b16 %v2949
    %v3020 = vunpack.c.h.b16 %v2949
    %v3021 = vunpack.c.l.b16 %v2950
    %v3022 = vunpack.c.h.b16 %v2950
    %v3023 = vunpack.c.l.b16 %v2951
    %v3024 = vunpack.c.h.b16 %v2951
    %v3025 = vunpack.c.l.b16 %v2952
    %v3026 = vunpack.c.h.b16 %v2952
    %v3027 = vunpack.c.l.b16 %v2953
    %v3028 = vunpack.c.h.b16 %v2953
    %v3029 = vunpack.c.l.b16 %v2954
    %v3030 = vunpack.c.h.b16 %v2954
    %v3031 = vunpack.c.l.b16 %v2955
    %v3032 = vunpack.c.h.b16 %v2955
    %v3033 = vunpack.c.l.b16 %v2956
    %v3034 = vunpack.c.h.b16 %v2956
    %v3035 = vunpack.c.l.b16 %v2957
    %v3036 = vunpack.c.h.b16 %v2957
    %v3037 = vunpack.c.l.b16 %v2958
    %v3038 = vunpack.c.h.b16 %v2958
    %v3039 = vunpack.c.l.b16 %v2959
    %v3040 = vunpack.c.h.b16 %v2959
    %v3041 = vunpack.c.l.b16 %v2960
    %v3042 = vunpack.c.h.b16 %v2960
    %v3043 = vunpack.c.l.b16 %v2961
    %v3044 = vunpack.c.h.b16 %v2961
    %v3045 = vunpack.c.l.b16 %v2962
    %v3046 = vunpack.c.h.b16 %v2962
    %v3047 = vunpack.c.l.b16 %v2963
    %v3048 = vunpack.c.h.b16 %v2963
    %v3049 = vunpack.c.l.b16 %v2964
    %v3050 = vunpack.c.h.b16 %v2964
    %v3051 = vunpack.c.l.b16 %v2965
    %v3052 = vunpack.c.h.b16 %v2965
    %v3053 = vunpack.c.l.b16 %v2966
    %v3054 = vunpack.c.h.b16 %v2966
    %v3055 = vunpack.c.l.b16 %v2967
    %v3056 = vunpack.c.h.b16 %v2967
    %v3057 = vunpack.c.l.b16 %v2968
    %v3058 = vunpack.c.h.b16 %v2968
    %v3059 = vunpack.c.l.b16 %v2969
    %v3060 = vunpack.c.h.b16 %v2969
    %v3061 = vunpack.c.l.b16 %v2970
    %v3062 = vunpack.c.h.b16 %v2970
    %v3063 = vunpack.c.l.b16 %v2971
    %v3064 = vunpack.c.h.b16 %v2971
    %v3065 = vunpack.c.l.b16 %v2972
    %v3066 = vunpack.c.h.b16 %v2972
    %v3067 = vunpack.c.l.b16 %v2973
    %v3068 = vunpack.c.h.b16 %v2973
    %v3069 = vunpack.c.l.b16 %v2974
    %v3070 = vunpack.c.h.b16 %v2974
    %v3071 = vpack.c.b16 %v3011, %v3007
    %v3072 = vpack.c.b16 %v3012, %v3008
    %v3073 = vpack.c.b16 %v3013, %v3009
    %v3074 = vpack.c.b16 %v3014, %v3010
    %v3075 = vpack.c.b16 %v3019, %v3015
    %v3076 = vpack.c.b16 %v3020, %v3016
    %v3077 = vpack.c.b16 %v3021, %v3017
    %v3078 = vpack.c.b16 %v3022, %v3018
    %v3079 = vpack.c.b16 %v3027, %v3023
    %v3080 = vpack.c.b16 %v3028, %v3024
    %v3081 = vpack.c.b16 %v3029, %v3025
    %v3082 = vpack.c.b16 %v3030, %v3026
    %v3083 = vpack.c.b16 %v3035, %v3031
    %v3084 = vpack.c.b16 %v3036, %v3032
    %v3085 = vpack.c.b16 %v3037, %v3033
    %v3086 = vpack.c.b16 %v3038, %v3034
    %v3087 = vpack.c.b16 %v3043, %v3039
    %v3088 = vpack.c.b16 %v3044, %v3040
    %v3089 = vpack.c.b16 %v3045, %v3041
    %v3090 = vpack.c.b16 %v3046, %v3042
    %v3091 = vpack.c.b16 %v3051, %v3047
    %v3092 = vpack.c.b16 %v3052, %v3048
    %v3093 = vpack.c.b16 %v3053, %v3049
    %v3094 = vpack.c.b16 %v3054, %v3050
    %v3095 = vpack.c.b16 %v3059, %v3055
    %v3096 = vpack.c.b16 %v3060, %v3056
    %v3097 = vpack.c.b16 %v3061, %v3057
    %v3098 = vpack.c.b16 %v3062, %v3058
    %v3099 = vpack.c.b16 %v3067, %v3063
    %v3100 = vpack.c.b16 %v3068, %v3064
    %v3101 = vpack.c.b16 %v3069, %v3065
    %v3102 = vpack.c.b16 %v3070, %v3066
    %3135 = vmatprep.subr.bf16.mxu0 0
    %3136 = vmatpush1.bf16.msra.mxu0 %v2686
    %3137 = vmatprep.subr.bf16.mxu0 0
    %3138 = vmatpush1.bf16.msra.mxu0 %v2677
    %3139 = vmatprep.subr.bf16.mxu0 0
    %3140 = vmatpush1.bf16.msra.mxu0 %v2668
    %3141 = vmatprep.subr.bf16.mxu0 0
    %3142 = vmatpush1.bf16.msra.mxu0 %v2659
    %3143 = vmatprep.subr.bf16.mxu0 0
    %3144 = vmatpush1.bf16.msra.mxu0 %v2650
    %3145 = vmatprep.subr.bf16.mxu0 0
    %3146 = vmatpush1.bf16.msra.mxu0 %v2641
    %3147 = vmatprep.subr.bf16.mxu0 0
    %3148 = vmatpush1.bf16.msra.mxu0 %v2632
    %3149 = vmatprep.subr.bf16.mxu0 0
    %3150 = vmatpush1.bf16.msra.mxu0 %v2623
    %3151 = vmatprep.subr.bf16.mxu0 0
    %3152 = vmatpush2.bf16.msra.mxu0 %v2758
    %3153 = vmatprep.subr.bf16.mxu0 0
    %3154 = vmatpush2.bf16.msra.mxu0 %v2749
    %3155 = vmatprep.subr.bf16.mxu0 0
    %3156 = vmatpush2.bf16.msra.mxu0 %v2740
    %3157 = vmatprep.subr.bf16.mxu0 0
    %3158 = vmatpush2.bf16.msra.mxu0 %v2731
    %3159 = vmatprep.subr.bf16.mxu0 0
    %3160 = vmatpush2.bf16.msra.mxu0 %v2722
    %3161 = vmatprep.subr.bf16.mxu0 0
    %3162 = vmatpush2.bf16.msra.mxu0 %v2713
    %3163 = vmatprep.subr.bf16.mxu0 0
    %3164 = vmatpush2.bf16.msra.mxu0 %v2704
    %3165 = vmatprep.subr.bf16.mxu0 0
    %3166 = vmatpush2.bf16.msra.mxu0 %v2695
    %3167 = vmatprep.mubr.bf16.mxu0 %v3072
    %3168 = vmatmul.mubr.bf16.gmra.mxu0 %v3071
    %v3169 = vpop.f32.mrf.mxu0
    %v3170 = vadd.f32 0.0, %v3169
    %v3171 = vpop.f32.mrf.mxu0
    %v3172 = vpop.f32.mrf.mxu0
    %v3173 = vadd.f32 0.0, %v3172
    %v3174 = vpop.f32.mrf.mxu0
    %3175 = vmatprep.mubr.bf16.mxu0 %v3076
    %3176 = vmatmul.mubr.bf16.gmra.mxu0 %v3075
    %v3177 = vpop.f32.mrf.mxu0
    %v3178 = vadd.f32 0.0, %v3177
    %v3179 = vpop.f32.mrf.mxu0
    %v3180 = vpop.f32.mrf.mxu0
    %v3181 = vadd.f32 0.0, %v3180
    %v3182 = vpop.f32.mrf.mxu0
    %3183 = vmatprep.mubr.bf16.mxu0 %v3080
    %3184 = vmatmul.mubr.bf16.gmra.mxu0 %v3079
    %v3185 = vpop.f32.mrf.mxu0
    %v3186 = vadd.f32 0.0, %v3185
    %v3187 = vpop.f32.mrf.mxu0
    %v3188 = vpop.f32.mrf.mxu0
    %v3189 = vadd.f32 0.0, %v3188
    %v3190 = vpop.f32.mrf.mxu0
    %3191 = vmatprep.mubr.bf16.mxu0 %v3084
    %3192 = vmatmul.mubr.bf16.gmra.mxu0 %v3083
    %v3193 = vpop.f32.mrf.mxu0
    %v3194 = vadd.f32 0.0, %v3193
    %v3195 = vpop.f32.mrf.mxu0
    %v3196 = vpop.f32.mrf.mxu0
    %v3197 = vadd.f32 0.0, %v3196
    %v3198 = vpop.f32.mrf.mxu0
    %3199 = vmatprep.mubr.bf16.mxu0 %v3088
    %3200 = vmatmul.mubr.bf16.gmra.mxu0 %v3087
    %v3201 = vpop.f32.mrf.mxu0
    %v3202 = vadd.f32 0.0, %v3201
    %v3203 = vpop.f32.mrf.mxu0
    %v3204 = vpop.f32.mrf.mxu0
    %v3205 = vadd.f32 0.0, %v3204
    %v3206 = vpop.f32.mrf.mxu0
    %3207 = vmatprep.mubr.bf16.mxu0 %v3092
    %3208 = vmatmul.mubr.bf16.gmra.mxu0 %v3091
    %v3209 = vpop.f32.mrf.mxu0
    %v3210 = vadd.f32 0.0, %v3209
    %v3211 = vpop.f32.mrf.mxu0
    %v3212 = vpop.f32.mrf.mxu0
    %v3213 = vadd.f32 0.0, %v3212
    %v3214 = vpop.f32.mrf.mxu0
    %3215 = vmatprep.mubr.bf16.mxu0 %v3096
    %3216 = vmatmul.mubr.bf16.gmra.mxu0 %v3095
    %v3217 = vpop.f32.mrf.mxu0
    %v3218 = vadd.f32 0.0, %v3217
    %v3219 = vpop.f32.mrf.mxu0
    %v3220 = vpop.f32.mrf.mxu0
    %v3221 = vadd.f32 0.0, %v3220
    %v3222 = vpop.f32.mrf.mxu0
    %3223 = vmatprep.mubr.bf16.mxu0 %v3100
    %3224 = vmatmul.mubr.bf16.gmra.mxu0 %v3099
    %v3225 = vpop.f32.mrf.mxu0
    %v3226 = vadd.f32 0.0, %v3225
    %v3227 = vpop.f32.mrf.mxu0
    %v3228 = vpop.f32.mrf.mxu0
    %v3229 = vadd.f32 0.0, %v3228
    %v3230 = vpop.f32.mrf.mxu0
    %3231 = vdwg.mxu0
    %3232 = vmatprep.subr.bf16.mxu0 0
    %3233 = vmatpush1.bf16.msra.mxu0 %v2830
    %3234 = vmatprep.subr.bf16.mxu0 0
    %3235 = vmatpush1.bf16.msra.mxu0 %v2821
    %3236 = vmatprep.subr.bf16.mxu0 0
    %3237 = vmatpush1.bf16.msra.mxu0 %v2812
    %3238 = vmatprep.subr.bf16.mxu0 0
    %3239 = vmatpush1.bf16.msra.mxu0 %v2803
    %3240 = vmatprep.subr.bf16.mxu0 0
    %3241 = vmatpush1.bf16.msra.mxu0 %v2794
    %3242 = vmatprep.subr.bf16.mxu0 0
    %3243 = vmatpush1.bf16.msra.mxu0 %v2785
    %3244 = vmatprep.subr.bf16.mxu0 0
    %3245 = vmatpush1.bf16.msra.mxu0 %v2776
    %3246 = vmatprep.subr.bf16.mxu0 0
    %3247 = vmatpush1.bf16.msra.mxu0 %v2767
    %3248 = vmatprep.subr.bf16.mxu0 0
    %3249 = vmatpush2.bf16.msra.mxu0 %v2902
    %3250 = vmatprep.subr.bf16.mxu0 0
    %3251 = vmatpush2.bf16.msra.mxu0 %v2893
    %3252 = vmatprep.subr.bf16.mxu0 0
    %3253 = vmatpush2.bf16.msra.mxu0 %v2884
    %3254 = vmatprep.subr.bf16.mxu0 0
    %3255 = vmatpush2.bf16.msra.mxu0 %v2875
    %3256 = vmatprep.subr.bf16.mxu0 0
    %3257 = vmatpush2.bf16.msra.mxu0 %v2866
    %3258 = vmatprep.subr.bf16.mxu0 0
    %3259 = vmatpush2.bf16.msra.mxu0 %v2857
    %3260 = vmatprep.subr.bf16.mxu0 0
    %3261 = vmatpush2.bf16.msra.mxu0 %v2848
    %3262 = vmatprep.subr.bf16.mxu0 0
    %3263 = vmatpush2.bf16.msra.mxu0 %v2839
    %3264 = vmatprep.mubr.bf16.mxu0 %v3074
    %3265 = vmatmul.mubr.bf16.gmra.mxu0 %v3073
    %v3266 = vpop.f32.mrf.mxu0
    %v3267 = vadd.f32 %v3170, %v3266
    %v3268 = vpop.f32.mrf.mxu0
    %v3269 = vpop.f32.mrf.mxu0
    %v3270 = vadd.f32 %v3173, %v3269
    %v3271 = vpop.f32.mrf.mxu0
    %3272 = vmatprep.mubr.bf16.mxu0 %v3078
    %3273 = vmatmul.mubr.bf16.gmra.mxu0 %v3077
    %v3274 = vpop.f32.mrf.mxu0
    %v3275 = vadd.f32 %v3178, %v3274
    %v3276 = vpop.f32.mrf.mxu0
    %v3277 = vpop.f32.mrf.mxu0
    %v3278 = vadd.f32 %v3181, %v3277
    %v3279 = vpop.f32.mrf.mxu0
    %3280 = vmatprep.mubr.bf16.mxu0 %v3082
    %3281 = vmatmul.mubr.bf16.gmra.mxu0 %v3081
    %v3282 = vpop.f32.mrf.mxu0
    %v3283 = vadd.f32 %v3186, %v3282
    %v3284 = vpop.f32.mrf.mxu0
    %v3285 = vpop.f32.mrf.mxu0
    %v3286 = vadd.f32 %v3189, %v3285
    %v3287 = vpop.f32.mrf.mxu0
    %3288 = vmatprep.mubr.bf16.mxu0 %v3086
    %3289 = vmatmul.mubr.bf16.gmra.mxu0 %v3085
    %v3290 = vpop.f32.mrf.mxu0
    %v3291 = vadd.f32 %v3194, %v3290
    %v3292 = vpop.f32.mrf.mxu0
    %v3293 = vpop.f32.mrf.mxu0
    %v3294 = vadd.f32 %v3197, %v3293
    %v3295 = vpop.f32.mrf.mxu0
    %3296 = vmatprep.mubr.bf16.mxu0 %v3090
    %3297 = vmatmul.mubr.bf16.gmra.mxu0 %v3089
    %v3298 = vpop.f32.mrf.mxu0
    %v3299 = vadd.f32 %v3202, %v3298
    %v3300 = vpop.f32.mrf.mxu0
    %v3301 = vpop.f32.mrf.mxu0
    %v3302 = vadd.f32 %v3205, %v3301
    %v3303 = vpop.f32.mrf.mxu0
    %3304 = vmatprep.mubr.bf16.mxu0 %v3094
    %3305 = vmatmul.mubr.bf16.gmra.mxu0 %v3093
    %v3306 = vpop.f32.mrf.mxu0
    %v3307 = vadd.f32 %v3210, %v3306
    %v3308 = vpop.f32.mrf.mxu0
    %v3309 = vpop.f32.mrf.mxu0
    %v3310 = vadd.f32 %v3213, %v3309
    %v3311 = vpop.f32.mrf.mxu0
    %3312 = vmatprep.mubr.bf16.mxu0 %v3098
    %3313 = vmatmul.mubr.bf16.gmra.mxu0 %v3097
    %v3314 = vpop.f32.mrf.mxu0
    %v3315 = vadd.f32 %v3218, %v3314
    %v3316 = vpop.f32.mrf.mxu0
    %v3317 = vpop.f32.mrf.mxu0
    %v3318 = vadd.f32 %v3221, %v3317
    %v3319 = vpop.f32.mrf.mxu0
    %3320 = vmatprep.mubr.bf16.mxu0 %v3102
    %3321 = vmatmul.mubr.bf16.gmra.mxu0 %v3101
    %v3322 = vpop.f32.mrf.mxu0
    %v3323 = vadd.f32 %v3226, %v3322
    %v3324 = vpop.f32.mrf.mxu0
    %v3325 = vpop.f32.mrf.mxu0
    %v3326 = vadd.f32 %v3229, %v3325
    %v3327 = vpop.f32.mrf.mxu0
    %3328 = vdwg.mxu0
    %v3361 = vunpack.c.l.b16 %v2910
    %v3362 = vunpack.c.h.b16 %v2910
    %v3363 = vunpack.c.l.b16 %v2911
    %v3364 = vunpack.c.h.b16 %v2911
    %v3365 = vunpack.c.l.b16 %v2912
    %v3366 = vunpack.c.h.b16 %v2912
    %v3367 = vunpack.c.l.b16 %v2913
    %v3368 = vunpack.c.h.b16 %v2913
    %v3369 = vunpack.c.l.b16 %v2914
    %v3370 = vunpack.c.h.b16 %v2914
    %v3371 = vunpack.c.l.b16 %v2915
    %v3372 = vunpack.c.h.b16 %v2915
    %v3373 = vunpack.c.l.b16 %v2916
    %v3374 = vunpack.c.h.b16 %v2916
    %v3375 = vunpack.c.l.b16 %v2917
    %v3376 = vunpack.c.h.b16 %v2917
    %v3377 = vunpack.c.l.b16 %v2918
    %v3378 = vunpack.c.h.b16 %v2918
    %v3379 = vunpack.c.l.b16 %v2919
    %v3380 = vunpack.c.h.b16 %v2919
    %v3381 = vunpack.c.l.b16 %v2920
    %v3382 = vunpack.c.h.b16 %v2920
    %v3383 = vunpack.c.l.b16 %v2921
    %v3384 = vunpack.c.h.b16 %v2921
    %v3385 = vunpack.c.l.b16 %v2922
    %v3386 = vunpack.c.h.b16 %v2922
    %v3387 = vunpack.c.l.b16 %v2923
    %v3388 = vunpack.c.h.b16 %v2923
    %v3389 = vunpack.c.l.b16 %v2924
    %v3390 = vunpack.c.h.b16 %v2924
    %v3391 = vunpack.c.l.b16 %v2925
    %v3392 = vunpack.c.h.b16 %v2925
    %v3393 = vunpack.c.l.b16 %v2926
    %v3394 = vunpack.c.h.b16 %v2926
    %v3395 = vunpack.c.l.b16 %v2927
    %v3396 = vunpack.c.h.b16 %v2927
    %v3397 = vunpack.c.l.b16 %v2928
    %v3398 = vunpack.c.h.b16 %v2928
    %v3399 = vunpack.c.l.b16 %v2929
    %v3400 = vunpack.c.h.b16 %v2929
    %v3401 = vunpack.c.l.b16 %v2930
    %v3402 = vunpack.c.h.b16 %v2930
    %v3403 = vunpack.c.l.b16 %v2931
    %v3404 = vunpack.c.h.b16 %v2931
    %v3405 = vunpack.c.l.b16 %v2932
    %v3406 = vunpack.c.h.b16 %v2932
    %v3407 = vunpack.c.l.b16 %v2933
    %v3408 = vunpack.c.h.b16 %v2933
    %v3409 = vunpack.c.l.b16 %v2934
    %v3410 = vunpack.c.h.b16 %v2934
    %v3411 = vunpack.c.l.b16 %v2935
    %v3412 = vunpack.c.h.b16 %v2935
    %v3413 = vunpack.c.l.b16 %v2936
    %v3414 = vunpack.c.h.b16 %v2936
    %v3415 = vunpack.c.l.b16 %v2937
    %v3416 = vunpack.c.h.b16 %v2937
    %v3417 = vunpack.c.l.b16 %v2938
    %v3418 = vunpack.c.h.b16 %v2938
    %v3419 = vunpack.c.l.b16 %v2939
    %v3420 = vunpack.c.h.b16 %v2939
    %v3421 = vunpack.c.l.b16 %v2940
    %v3422 = vunpack.c.h.b16 %v2940
    %v3423 = vunpack.c.l.b16 %v2941
    %v3424 = vunpack.c.h.b16 %v2941
    %v3425 = vpack.c.b16 %v3365, %v3361
    %v3426 = vpack.c.b16 %v3366, %v3362
    %v3427 = vpack.c.b16 %v3367, %v3363
    %v3428 = vpack.c.b16 %v3368, %v3364
    %v3429 = vpack.c.b16 %v3373, %v3369
    %v3430 = vpack.c.b16 %v3374, %v3370
    %v3431 = vpack.c.b16 %v3375, %v3371
    %v3432 = vpack.c.b16 %v3376, %v3372
    %v3433 = vpack.c.b16 %v3381, %v3377
    %v3434 = vpack.c.b16 %v3382, %v3378
    %v3435 = vpack.c.b16 %v3383, %v3379
    %v3436 = vpack.c.b16 %v3384, %v3380
    %v3437 = vpack.c.b16 %v3389, %v3385
    %v3438 = vpack.c.b16 %v3390, %v3386
    %v3439 = vpack.c.b16 %v3391, %v3387
    %v3440 = vpack.c.b16 %v3392, %v3388
    %v3441 = vpack.c.b16 %v3397, %v3393
    %v3442 = vpack.c.b16 %v3398, %v3394
    %v3443 = vpack.c.b16 %v3399, %v3395
    %v3444 = vpack.c.b16 %v3400, %v3396
    %v3445 = vpack.c.b16 %v3405, %v3401
    %v3446 = vpack.c.b16 %v3406, %v3402
    %v3447 = vpack.c.b16 %v3407, %v3403
    %v3448 = vpack.c.b16 %v3408, %v3404
    %v3449 = vpack.c.b16 %v3413, %v3409
    %v3450 = vpack.c.b16 %v3414, %v3410
    %v3451 = vpack.c.b16 %v3415, %v3411
    %v3452 = vpack.c.b16 %v3416, %v3412
    %v3453 = vpack.c.b16 %v3421, %v3417
    %v3454 = vpack.c.b16 %v3422, %v3418
    %v3455 = vpack.c.b16 %v3423, %v3419
    %v3456 = vpack.c.b16 %v3424, %v3420
    %3489 = vmatprep.subr.bf16.mxu0 0
    %3490 = vmatpush1.bf16.msra.mxu0 %v2685
    %3491 = vmatprep.subr.bf16.mxu0 0
    %3492 = vmatpush1.bf16.msra.mxu0 %v2676
    %3493 = vmatprep.subr.bf16.mxu0 0
    %3494 = vmatpush1.bf16.msra.mxu0 %v2667
    %3495 = vmatprep.subr.bf16.mxu0 0
    %3496 = vmatpush1.bf16.msra.mxu0 %v2658
    %3497 = vmatprep.subr.bf16.mxu0 0
    %3498 = vmatpush1.bf16.msra.mxu0 %v2649
    %3499 = vmatprep.subr.bf16.mxu0 0
    %3500 = vmatpush1.bf16.msra.mxu0 %v2640
    %3501 = vmatprep.subr.bf16.mxu0 0
    %3502 = vmatpush1.bf16.msra.mxu0 %v2631
    %3503 = vmatprep.subr.bf16.mxu0 0
    %3504 = vmatpush1.bf16.msra.mxu0 %v2622
    %3505 = vmatprep.subr.bf16.mxu0 0
    %3506 = vmatpush2.bf16.msra.mxu0 %v2757
    %3507 = vmatprep.subr.bf16.mxu0 0
    %3508 = vmatpush2.bf16.msra.mxu0 %v2748
    %3509 = vmatprep.subr.bf16.mxu0 0
    %3510 = vmatpush2.bf16.msra.mxu0 %v2739
    %3511 = vmatprep.subr.bf16.mxu0 0
    %3512 = vmatpush2.bf16.msra.mxu0 %v2730
    %3513 = vmatprep.subr.bf16.mxu0 0
    %3514 = vmatpush2.bf16.msra.mxu0 %v2721
    %3515 = vmatprep.subr.bf16.mxu0 0
    %3516 = vmatpush2.bf16.msra.mxu0 %v2712
    %3517 = vmatprep.subr.bf16.mxu0 0
    %3518 = vmatpush2.bf16.msra.mxu0 %v2703
    %3519 = vmatprep.subr.bf16.mxu0 0
    %3520 = vmatpush2.bf16.msra.mxu0 %v2694
    %3521 = vmatprep.mubr.bf16.mxu0 %v3426
    %3522 = vmatmul.mubr.bf16.gmra.mxu0 %v3425
    %v3523 = vpop.f32.mrf.mxu0
    %v3524 = vadd.f32 %v3267, %v3523
    %v3525 = vpop.f32.mrf.mxu0
    %v3526 = vpop.f32.mrf.mxu0
    %v3527 = vadd.f32 %v3270, %v3526
    %v3528 = vpop.f32.mrf.mxu0
    %3529 = vmatprep.mubr.bf16.mxu0 %v3430
    %3530 = vmatmul.mubr.bf16.gmra.mxu0 %v3429
    %v3531 = vpop.f32.mrf.mxu0
    %v3532 = vadd.f32 %v3275, %v3531
    %v3533 = vpop.f32.mrf.mxu0
    %v3534 = vpop.f32.mrf.mxu0
    %v3535 = vadd.f32 %v3278, %v3534
    %v3536 = vpop.f32.mrf.mxu0
    %3537 = vmatprep.mubr.bf16.mxu0 %v3434
    %3538 = vmatmul.mubr.bf16.gmra.mxu0 %v3433
    %v3539 = vpop.f32.mrf.mxu0
    %v3540 = vadd.f32 %v3283, %v3539
    %v3541 = vpop.f32.mrf.mxu0
    %v3542 = vpop.f32.mrf.mxu0
    %v3543 = vadd.f32 %v3286, %v3542
    %v3544 = vpop.f32.mrf.mxu0
    %3545 = vmatprep.mubr.bf16.mxu0 %v3438
    %3546 = vmatmul.mubr.bf16.gmra.mxu0 %v3437
    %v3547 = vpop.f32.mrf.mxu0
    %v3548 = vadd.f32 %v3291, %v3547
    %v3549 = vpop.f32.mrf.mxu0
    %v3550 = vpop.f32.mrf.mxu0
    %v3551 = vadd.f32 %v3294, %v3550
    %v3552 = vpop.f32.mrf.mxu0
    %3553 = vmatprep.mubr.bf16.mxu0 %v3442
    %3554 = vmatmul.mubr.bf16.gmra.mxu0 %v3441
    %v3555 = vpop.f32.mrf.mxu0
    %v3556 = vadd.f32 %v3299, %v3555
    %v3557 = vpop.f32.mrf.mxu0
    %v3558 = vpop.f32.mrf.mxu0
    %v3559 = vadd.f32 %v3302, %v3558
    %v3560 = vpop.f32.mrf.mxu0
    %3561 = vmatprep.mubr.bf16.mxu0 %v3446
    %3562 = vmatmul.mubr.bf16.gmra.mxu0 %v3445
    %v3563 = vpop.f32.mrf.mxu0
    %v3564 = vadd.f32 %v3307, %v3563
    %v3565 = vpop.f32.mrf.mxu0
    %v3566 = vpop.f32.mrf.mxu0
    %v3567 = vadd.f32 %v3310, %v3566
    %v3568 = vpop.f32.mrf.mxu0
    %3569 = vmatprep.mubr.bf16.mxu0 %v3450
    %3570 = vmatmul.mubr.bf16.gmra.mxu0 %v3449
    %v3571 = vpop.f32.mrf.mxu0
    %v3572 = vadd.f32 %v3315, %v3571
    %v3573 = vpop.f32.mrf.mxu0
    %v3574 = vpop.f32.mrf.mxu0
    %v3575 = vadd.f32 %v3318, %v3574
    %v3576 = vpop.f32.mrf.mxu0
    %3577 = vmatprep.mubr.bf16.mxu0 %v3454
    %3578 = vmatmul.mubr.bf16.gmra.mxu0 %v3453
    %v3579 = vpop.f32.mrf.mxu0
    %v3580 = vadd.f32 %v3323, %v3579
    %v3581 = vpop.f32.mrf.mxu0
    %v3582 = vpop.f32.mrf.mxu0
    %v3583 = vadd.f32 %v3326, %v3582
    %v3584 = vpop.f32.mrf.mxu0
    %3585 = vdwg.mxu0
    %3586 = vmatprep.subr.bf16.mxu0 0
    %3587 = vmatpush1.bf16.msra.mxu0 %v2829
    %3588 = vmatprep.subr.bf16.mxu0 0
    %3589 = vmatpush1.bf16.msra.mxu0 %v2820
    %3590 = vmatprep.subr.bf16.mxu0 0
    %3591 = vmatpush1.bf16.msra.mxu0 %v2811
    %3592 = vmatprep.subr.bf16.mxu0 0
    %3593 = vmatpush1.bf16.msra.mxu0 %v2802
    %3594 = vmatprep.subr.bf16.mxu0 0
    %3595 = vmatpush1.bf16.msra.mxu0 %v2793
    %3596 = vmatprep.subr.bf16.mxu0 0
    %3597 = vmatpush1.bf16.msra.mxu0 %v2784
    %3598 = vmatprep.subr.bf16.mxu0 0
    %3599 = vmatpush1.bf16.msra.mxu0 %v2775
    %3600 = vmatprep.subr.bf16.mxu0 0
    %3601 = vmatpush1.bf16.msra.mxu0 %v2766
    %3602 = vmatprep.subr.bf16.mxu0 0
    %3603 = vmatpush2.bf16.msra.mxu0 %v2901
    %3604 = vmatprep.subr.bf16.mxu0 0
    %3605 = vmatpush2.bf16.msra.mxu0 %v2892
    %3606 = vmatprep.subr.bf16.mxu0 0
    %3607 = vmatpush2.bf16.msra.mxu0 %v2883
    %3608 = vmatprep.subr.bf16.mxu0 0
    %3609 = vmatpush2.bf16.msra.mxu0 %v2874
    %3610 = vmatprep.subr.bf16.mxu0 0
    %3611 = vmatpush2.bf16.msra.mxu0 %v2865
    %3612 = vmatprep.subr.bf16.mxu0 0
    %3613 = vmatpush2.bf16.msra.mxu0 %v2856
    %3614 = vmatprep.subr.bf16.mxu0 0
    %3615 = vmatpush2.bf16.msra.mxu0 %v2847
    %3616 = vmatprep.subr.bf16.mxu0 0
    %3617 = vmatpush2.bf16.msra.mxu0 %v2838
    %3618 = vmatprep.mubr.bf16.mxu0 %v3428
    %3619 = vmatmul.mubr.bf16.gmra.mxu0 %v3427
    %v3620 = vpop.f32.mrf.mxu0
    %v3621 = vadd.f32 %v3524, %v3620
    %v3622 = vpop.f32.mrf.mxu0
    %v3623 = vpop.f32.mrf.mxu0
    %v3624 = vadd.f32 %v3527, %v3623
    %v3625 = vpop.f32.mrf.mxu0
    %3626 = vmatprep.mubr.bf16.mxu0 %v3432
    %3627 = vmatmul.mubr.bf16.gmra.mxu0 %v3431
    %v3628 = vpop.f32.mrf.mxu0
    %v3629 = vadd.f32 %v3532, %v3628
    %v3630 = vpop.f32.mrf.mxu0
    %v3631 = vpop.f32.mrf.mxu0
    %v3632 = vadd.f32 %v3535, %v3631
    %v3633 = vpop.f32.mrf.mxu0
    %3634 = vmatprep.mubr.bf16.mxu0 %v3436
    %3635 = vmatmul.mubr.bf16.gmra.mxu0 %v3435
    %v3636 = vpop.f32.mrf.mxu0
    %v3637 = vadd.f32 %v3540, %v3636
    %v3638 = vpop.f32.mrf.mxu0
    %v3639 = vpop.f32.mrf.mxu0
    %v3640 = vadd.f32 %v3543, %v3639
    %v3641 = vpop.f32.mrf.mxu0
    %3642 = vmatprep.mubr.bf16.mxu0 %v3440
    %3643 = vmatmul.mubr.bf16.gmra.mxu0 %v3439
    %v3644 = vpop.f32.mrf.mxu0
    %v3645 = vadd.f32 %v3548, %v3644
    %v3646 = vpop.f32.mrf.mxu0
    %v3647 = vpop.f32.mrf.mxu0
    %v3648 = vadd.f32 %v3551, %v3647
    %v3649 = vpop.f32.mrf.mxu0
    %3650 = vmatprep.mubr.bf16.mxu0 %v3444
    %3651 = vmatmul.mubr.bf16.gmra.mxu0 %v3443
    %v3652 = vpop.f32.mrf.mxu0
    %v3653 = vadd.f32 %v3556, %v3652
    %v3654 = vpop.f32.mrf.mxu0
    %v3655 = vpop.f32.mrf.mxu0
    %v3656 = vadd.f32 %v3559, %v3655
    %v3657 = vpop.f32.mrf.mxu0
    %3658 = vmatprep.mubr.bf16.mxu0 %v3448
    %3659 = vmatmul.mubr.bf16.gmra.mxu0 %v3447
    %v3660 = vpop.f32.mrf.mxu0
    %v3661 = vadd.f32 %v3564, %v3660
    %v3662 = vpop.f32.mrf.mxu0
    %v3663 = vpop.f32.mrf.mxu0
    %v3664 = vadd.f32 %v3567, %v3663
    %v3665 = vpop.f32.mrf.mxu0
    %3666 = vmatprep.mubr.bf16.mxu0 %v3452
    %3667 = vmatmul.mubr.bf16.gmra.mxu0 %v3451
    %v3668 = vpop.f32.mrf.mxu0
    %v3669 = vadd.f32 %v3572, %v3668
    %v3670 = vpop.f32.mrf.mxu0
    %v3671 = vpop.f32.mrf.mxu0
    %v3672 = vadd.f32 %v3575, %v3671
    %v3673 = vpop.f32.mrf.mxu0
    %3674 = vmatprep.mubr.bf16.mxu0 %v3456
    %3675 = vmatmul.mubr.bf16.gmra.mxu0 %v3455
    %v3676 = vpop.f32.mrf.mxu0
    %v3677 = vadd.f32 %v3580, %v3676
    %v3678 = vpop.f32.mrf.mxu0
    %v3679 = vpop.f32.mrf.mxu0
    %v3680 = vadd.f32 %v3583, %v3679
    %v3681 = vpop.f32.mrf.mxu0
    %3682 = vdwg.mxu0
    %s3683 = scalar_lea.vmem [#allocation4], 512
    %v3684 = vld [vmem:[%s3683] sm:$0xff]
    %v3685 = vld [vmem:[%s3683 + $0x8] sm:$0xff]
    %v3686 = vld [vmem:[%s3683 + $0x10] sm:$0xff]
    %v3687 = vld [vmem:[%s3683 + $0x18] sm:$0xff]
    %v3688 = vld [vmem:[%s3683 + $0x20] sm:$0xff]
    %v3689 = vld [vmem:[%s3683 + $0x28] sm:$0xff]
    %v3690 = vld [vmem:[%s3683 + $0x30] sm:$0xff]
    %v3691 = vld [vmem:[%s3683 + $0x38] sm:$0xff]
    %v3692 = vld [vmem:[%s3683 + $0x40] sm:$0xff]
    %v3693 = vld [vmem:[%s3683 + $0x48] sm:$0xff]
    %v3694 = vld [vmem:[%s3683 + $0x50] sm:$0xff]
    %v3695 = vld [vmem:[%s3683 + $0x58] sm:$0xff]
    %v3696 = vld [vmem:[%s3683 + $0x60] sm:$0xff]
    %v3697 = vld [vmem:[%s3683 + $0x68] sm:$0xff]
    %v3698 = vld [vmem:[%s3683 + $0x70] sm:$0xff]
    %v3699 = vld [vmem:[%s3683 + $0x78] sm:$0xff]
    %v3700 = vld [vmem:[%s3683 + $0x80] sm:$0xff]
    %v3701 = vld [vmem:[%s3683 + $0x88] sm:$0xff]
    %v3702 = vld [vmem:[%s3683 + $0x90] sm:$0xff]
    %v3703 = vld [vmem:[%s3683 + $0x98] sm:$0xff]
    %v3704 = vld [vmem:[%s3683 + $0xa0] sm:$0xff]
    %v3705 = vld [vmem:[%s3683 + $0xa8] sm:$0xff]
    %v3706 = vld [vmem:[%s3683 + $0xb0] sm:$0xff]
    %v3707 = vld [vmem:[%s3683 + $0xb8] sm:$0xff]
    %v3708 = vld [vmem:[%s3683 + $0xc0] sm:$0xff]
    %v3709 = vld [vmem:[%s3683 + $0xc8] sm:$0xff]
    %v3710 = vld [vmem:[%s3683 + $0xd0] sm:$0xff]
    %v3711 = vld [vmem:[%s3683 + $0xd8] sm:$0xff]
    %v3712 = vld [vmem:[%s3683 + $0xe0] sm:$0xff]
    %v3713 = vld [vmem:[%s3683 + $0xe8] sm:$0xff]
    %v3714 = vld [vmem:[%s3683 + $0xf0] sm:$0xff]
    %v3715 = vld [vmem:[%s3683 + $0xf8] sm:$0xff]
    %v3748 = vunpack.c.l.b16 %v3684
    %v3749 = vunpack.c.h.b16 %v3684
    %v3750 = vunpack.c.l.b16 %v3685
    %v3751 = vunpack.c.h.b16 %v3685
    %v3752 = vunpack.c.l.b16 %v3686
    %v3753 = vunpack.c.h.b16 %v3686
    %v3754 = vunpack.c.l.b16 %v3687
    %v3755 = vunpack.c.h.b16 %v3687
    %v3756 = vunpack.c.l.b16 %v3688
    %v3757 = vunpack.c.h.b16 %v3688
    %v3758 = vunpack.c.l.b16 %v3689
    %v3759 = vunpack.c.h.b16 %v3689
    %v3760 = vunpack.c.l.b16 %v3690
    %v3761 = vunpack.c.h.b16 %v3690
    %v3762 = vunpack.c.l.b16 %v3691
    %v3763 = vunpack.c.h.b16 %v3691
    %v3764 = vunpack.c.l.b16 %v3692
    %v3765 = vunpack.c.h.b16 %v3692
    %v3766 = vunpack.c.l.b16 %v3693
    %v3767 = vunpack.c.h.b16 %v3693
    %v3768 = vunpack.c.l.b16 %v3694
    %v3769 = vunpack.c.h.b16 %v3694
    %v3770 = vunpack.c.l.b16 %v3695
    %v3771 = vunpack.c.h.b16 %v3695
    %v3772 = vunpack.c.l.b16 %v3696
    %v3773 = vunpack.c.h.b16 %v3696
    %v3774 = vunpack.c.l.b16 %v3697
    %v3775 = vunpack.c.h.b16 %v3697
    %v3776 = vunpack.c.l.b16 %v3698
    %v3777 = vunpack.c.h.b16 %v3698
    %v3778 = vunpack.c.l.b16 %v3699
    %v3779 = vunpack.c.h.b16 %v3699
    %v3780 = vunpack.c.l.b16 %v3700
    %v3781 = vunpack.c.h.b16 %v3700
    %v3782 = vunpack.c.l.b16 %v3701
    %v3783 = vunpack.c.h.b16 %v3701
    %v3784 = vunpack.c.l.b16 %v3702
    %v3785 = vunpack.c.h.b16 %v3702
    %v3786 = vunpack.c.l.b16 %v3703
    %v3787 = vunpack.c.h.b16 %v3703
    %v3788 = vunpack.c.l.b16 %v3704
    %v3789 = vunpack.c.h.b16 %v3704
    %v3790 = vunpack.c.l.b16 %v3705
    %v3791 = vunpack.c.h.b16 %v3705
    %v3792 = vunpack.c.l.b16 %v3706
    %v3793 = vunpack.c.h.b16 %v3706
    %v3794 = vunpack.c.l.b16 %v3707
    %v3795 = vunpack.c.h.b16 %v3707
    %v3796 = vunpack.c.l.b16 %v3708
    %v3797 = vunpack.c.h.b16 %v3708
    %v3798 = vunpack.c.l.b16 %v3709
    %v3799 = vunpack.c.h.b16 %v3709
    %v3800 = vunpack.c.l.b16 %v3710
    %v3801 = vunpack.c.h.b16 %v3710
    %v3802 = vunpack.c.l.b16 %v3711
    %v3803 = vunpack.c.h.b16 %v3711
    %v3804 = vunpack.c.l.b16 %v3712
    %v3805 = vunpack.c.h.b16 %v3712
    %v3806 = vunpack.c.l.b16 %v3713
    %v3807 = vunpack.c.h.b16 %v3713
    %v3808 = vunpack.c.l.b16 %v3714
    %v3809 = vunpack.c.h.b16 %v3714
    %v3810 = vunpack.c.l.b16 %v3715
    %v3811 = vunpack.c.h.b16 %v3715
    %v3812 = vpack.c.b16 %v3752, %v3748
    %v3813 = vpack.c.b16 %v3753, %v3749
    %v3814 = vpack.c.b16 %v3754, %v3750
    %v3815 = vpack.c.b16 %v3755, %v3751
    %v3816 = vpack.c.b16 %v3760, %v3756
    %v3817 = vpack.c.b16 %v3761, %v3757
    %v3818 = vpack.c.b16 %v3762, %v3758
    %v3819 = vpack.c.b16 %v3763, %v3759
    %v3820 = vpack.c.b16 %v3768, %v3764
    %v3821 = vpack.c.b16 %v3769, %v3765
    %v3822 = vpack.c.b16 %v3770, %v3766
    %v3823 = vpack.c.b16 %v3771, %v3767
    %v3824 = vpack.c.b16 %v3776, %v3772
    %v3825 = vpack.c.b16 %v3777, %v3773
    %v3826 = vpack.c.b16 %v3778, %v3774
    %v3827 = vpack.c.b16 %v3779, %v3775
    %v3828 = vpack.c.b16 %v3784, %v3780
    %v3829 = vpack.c.b16 %v3785, %v3781
    %v3830 = vpack.c.b16 %v3786, %v3782
    %v3831 = vpack.c.b16 %v3787, %v3783
    %v3832 = vpack.c.b16 %v3792, %v3788
    %v3833 = vpack.c.b16 %v3793, %v3789
    %v3834 = vpack.c.b16 %v3794, %v3790
    %v3835 = vpack.c.b16 %v3795, %v3791
    %v3836 = vpack.c.b16 %v3800, %v3796
    %v3837 = vpack.c.b16 %v3801, %v3797
    %v3838 = vpack.c.b16 %v3802, %v3798
    %v3839 = vpack.c.b16 %v3803, %v3799
    %v3840 = vpack.c.b16 %v3808, %v3804
    %v3841 = vpack.c.b16 %v3809, %v3805
    %v3842 = vpack.c.b16 %v3810, %v3806
    %v3843 = vpack.c.b16 %v3811, %v3807
    %3876 = vmatprep.subr.bf16.mxu0 0
    %3877 = vmatpush1.bf16.msra.mxu0 %v2687
    %3878 = vmatprep.subr.bf16.mxu0 0
    %3879 = vmatpush1.bf16.msra.mxu0 %v2678
    %3880 = vmatprep.subr.bf16.mxu0 0
    %3881 = vmatpush1.bf16.msra.mxu0 %v2669
    %3882 = vmatprep.subr.bf16.mxu0 0
    %3883 = vmatpush1.bf16.msra.mxu0 %v2660
    %3884 = vmatprep.subr.bf16.mxu0 0
    %3885 = vmatpush1.bf16.msra.mxu0 %v2651
    %3886 = vmatprep.subr.bf16.mxu0 0
    %3887 = vmatpush1.bf16.msra.mxu0 %v2642
    %3888 = vmatprep.subr.bf16.mxu0 0
    %3889 = vmatpush1.bf16.msra.mxu0 %v2633
    %3890 = vmatprep.subr.bf16.mxu0 0
    %3891 = vmatpush1.bf16.msra.mxu0 %v2624
    %3892 = vmatprep.subr.bf16.mxu0 0
    %3893 = vmatpush2.bf16.msra.mxu0 %v2759
    %3894 = vmatprep.subr.bf16.mxu0 0
    %3895 = vmatpush2.bf16.msra.mxu0 %v2750
    %3896 = vmatprep.subr.bf16.mxu0 0
    %3897 = vmatpush2.bf16.msra.mxu0 %v2741
    %3898 = vmatprep.subr.bf16.mxu0 0
    %3899 = vmatpush2.bf16.msra.mxu0 %v2732
    %3900 = vmatprep.subr.bf16.mxu0 0
    %3901 = vmatpush2.bf16.msra.mxu0 %v2723
    %3902 = vmatprep.subr.bf16.mxu0 0
    %3903 = vmatpush2.bf16.msra.mxu0 %v2714
    %3904 = vmatprep.subr.bf16.mxu0 0
    %3905 = vmatpush2.bf16.msra.mxu0 %v2705
    %3906 = vmatprep.subr.bf16.mxu0 0
    %3907 = vmatpush2.bf16.msra.mxu0 %v2696
    %3908 = vmatprep.mubr.bf16.mxu0 %v3813
    %3909 = vmatmul.mubr.bf16.gmra.mxu0 %v3812
    %v3910 = vpop.f32.mrf.mxu0
    %v3911 = vadd.f32 0.0, %v3910
    %v3912 = vpop.f32.mrf.mxu0
    %v3913 = vpop.f32.mrf.mxu0
    %v3914 = vadd.f32 0.0, %v3913
    %v3915 = vpop.f32.mrf.mxu0
    %3916 = vmatprep.mubr.bf16.mxu0 %v3817
    %3917 = vmatmul.mubr.bf16.gmra.mxu0 %v3816
    %v3918 = vpop.f32.mrf.mxu0
    %v3919 = vadd.f32 0.0, %v3918
    %v3920 = vpop.f32.mrf.mxu0
    %v3921 = vpop.f32.mrf.mxu0
    %v3922 = vadd.f32 0.0, %v3921
    %v3923 = vpop.f32.mrf.mxu0
    %3924 = vmatprep.mubr.bf16.mxu0 %v3821
    %3925 = vmatmul.mubr.bf16.gmra.mxu0 %v3820
    %v3926 = vpop.f32.mrf.mxu0
    %v3927 = vadd.f32 0.0, %v3926
    %v3928 = vpop.f32.mrf.mxu0
    %v3929 = vpop.f32.mrf.mxu0
    %v3930 = vadd.f32 0.0, %v3929
    %v3931 = vpop.f32.mrf.mxu0
    %3932 = vmatprep.mubr.bf16.mxu0 %v3825
    %3933 = vmatmul.mubr.bf16.gmra.mxu0 %v3824
    %v3934 = vpop.f32.mrf.mxu0
    %v3935 = vadd.f32 0.0, %v3934
    %v3936 = vpop.f32.mrf.mxu0
    %v3937 = vpop.f32.mrf.mxu0
    %v3938 = vadd.f32 0.0, %v3937
    %v3939 = vpop.f32.mrf.mxu0
    %3940 = vmatprep.mubr.bf16.mxu0 %v3829
    %3941 = vmatmul.mubr.bf16.gmra.mxu0 %v3828
    %v3942 = vpop.f32.mrf.mxu0
    %v3943 = vadd.f32 0.0, %v3942
    %v3944 = vpop.f32.mrf.mxu0
    %v3945 = vpop.f32.mrf.mxu0
    %v3946 = vadd.f32 0.0, %v3945
    %v3947 = vpop.f32.mrf.mxu0
    %3948 = vmatprep.mubr.bf16.mxu0 %v3833
    %3949 = vmatmul.mubr.bf16.gmra.mxu0 %v3832
    %v3950 = vpop.f32.mrf.mxu0
    %v3951 = vadd.f32 0.0, %v3950
    %v3952 = vpop.f32.mrf.mxu0
    %v3953 = vpop.f32.mrf.mxu0
    %v3954 = vadd.f32 0.0, %v3953
    %v3955 = vpop.f32.mrf.mxu0
    %3956 = vmatprep.mubr.bf16.mxu0 %v3837
    %3957 = vmatmul.mubr.bf16.gmra.mxu0 %v3836
    %v3958 = vpop.f32.mrf.mxu0
    %v3959 = vadd.f32 0.0, %v3958
    %v3960 = vpop.f32.mrf.mxu0
    %v3961 = vpop.f32.mrf.mxu0
    %v3962 = vadd.f32 0.0, %v3961
    %v3963 = vpop.f32.mrf.mxu0
    %3964 = vmatprep.mubr.bf16.mxu0 %v3841
    %3965 = vmatmul.mubr.bf16.gmra.mxu0 %v3840
    %v3966 = vpop.f32.mrf.mxu0
    %v3967 = vadd.f32 0.0, %v3966
    %v3968 = vpop.f32.mrf.mxu0
    %v3969 = vpop.f32.mrf.mxu0
    %v3970 = vadd.f32 0.0, %v3969
    %v3971 = vpop.f32.mrf.mxu0
    %3972 = vdwg.mxu0
    %3973 = vmatprep.subr.bf16.mxu0 0
    %3974 = vmatpush1.bf16.msra.mxu0 %v2831
    %3975 = vmatprep.subr.bf16.mxu0 0
    %3976 = vmatpush1.bf16.msra.mxu0 %v2822
    %3977 = vmatprep.subr.bf16.mxu0 0
    %3978 = vmatpush1.bf16.msra.mxu0 %v2813
    %3979 = vmatprep.subr.bf16.mxu0 0
    %3980 = vmatpush1.bf16.msra.mxu0 %v2804
    %3981 = vmatprep.subr.bf16.mxu0 0
    %3982 = vmatpush1.bf16.msra.mxu0 %v2795
    %3983 = vmatprep.subr.bf16.mxu0 0
    %3984 = vmatpush1.bf16.msra.mxu0 %v2786
    %3985 = vmatprep.subr.bf16.mxu0 0
    %3986 = vmatpush1.bf16.msra.mxu0 %v2777
    %3987 = vmatprep.subr.bf16.mxu0 0
    %3988 = vmatpush1.bf16.msra.mxu0 %v2768
    %3989 = vmatprep.subr.bf16.mxu0 0
    %3990 = vmatpush2.bf16.msra.mxu0 %v2903
    %3991 = vmatprep.subr.bf16.mxu0 0
    %3992 = vmatpush2.bf16.msra.mxu0 %v2894
    %3993 = vmatprep.subr.bf16.mxu0 0
    %3994 = vmatpush2.bf16.msra.mxu0 %v2885
    %3995 = vmatprep.subr.bf16.mxu0 0
    %3996 = vmatpush2.bf16.msra.mxu0 %v2876
    %3997 = vmatprep.subr.bf16.mxu0 0
    %3998 = vmatpush2.bf16.msra.mxu0 %v2867
    %3999 = vmatprep.subr.bf16.mxu0 0
    %4000 = vmatpush2.bf16.msra.mxu0 %v2858
    %4001 = vmatprep.subr.bf16.mxu0 0
    %4002 = vmatpush2.bf16.msra.mxu0 %v2849
    %4003 = vmatprep.subr.bf16.mxu0 0
    %4004 = vmatpush2.bf16.msra.mxu0 %v2840
    %4005 = vmatprep.mubr.bf16.mxu0 %v3815
    %4006 = vmatmul.mubr.bf16.gmra.mxu0 %v3814
    %v4007 = vpop.f32.mrf.mxu0
    %v4008 = vadd.f32 %v3911, %v4007
    %v4009 = vpop.f32.mrf.mxu0
    %v4010 = vpop.f32.mrf.mxu0
    %v4011 = vadd.f32 %v3914, %v4010
    %v4012 = vpop.f32.mrf.mxu0
    %4013 = vmatprep.mubr.bf16.mxu0 %v3819
    %4014 = vmatmul.mubr.bf16.gmra.mxu0 %v3818
    %v4015 = vpop.f32.mrf.mxu0
    %v4016 = vadd.f32 %v3919, %v4015
    %v4017 = vpop.f32.mrf.mxu0
    %v4018 = vpop.f32.mrf.mxu0
    %v4019 = vadd.f32 %v3922, %v4018
    %v4020 = vpop.f32.mrf.mxu0
    %4021 = vmatprep.mubr.bf16.mxu0 %v3823
    %4022 = vmatmul.mubr.bf16.gmra.mxu0 %v3822
    %v4023 = vpop.f32.mrf.mxu0
    %v4024 = vadd.f32 %v3927, %v4023
    %v4025 = vpop.f32.mrf.mxu0
    %v4026 = vpop.f32.mrf.mxu0
    %v4027 = vadd.f32 %v3930, %v4026
    %v4028 = vpop.f32.mrf.mxu0
    %4029 = vmatprep.mubr.bf16.mxu0 %v3827
    %4030 = vmatmul.mubr.bf16.gmra.mxu0 %v3826
    %v4031 = vpop.f32.mrf.mxu0
    %v4032 = vadd.f32 %v3935, %v4031
    %v4033 = vpop.f32.mrf.mxu0
    %v4034 = vpop.f32.mrf.mxu0
    %v4035 = vadd.f32 %v3938, %v4034
    %v4036 = vpop.f32.mrf.mxu0
    %4037 = vmatprep.mubr.bf16.mxu0 %v3831
    %4038 = vmatmul.mubr.bf16.gmra.mxu0 %v3830
    %v4039 = vpop.f32.mrf.mxu0
    %v4040 = vadd.f32 %v3943, %v4039
    %v4041 = vpop.f32.mrf.mxu0
    %v4042 = vpop.f32.mrf.mxu0
    %v4043 = vadd.f32 %v3946, %v4042
    %v4044 = vpop.f32.mrf.mxu0
    %4045 = vmatprep.mubr.bf16.mxu0 %v3835
    %4046 = vmatmul.mubr.bf16.gmra.mxu0 %v3834
    %v4047 = vpop.f32.mrf.mxu0
    %v4048 = vadd.f32 %v3951, %v4047
    %v4049 = vpop.f32.mrf.mxu0
    %v4050 = vpop.f32.mrf.mxu0
    %v4051 = vadd.f32 %v3954, %v4050
    %v4052 = vpop.f32.mrf.mxu0
    %4053 = vmatprep.mubr.bf16.mxu0 %v3839
    %4054 = vmatmul.mubr.bf16.gmra.mxu0 %v3838
    %v4055 = vpop.f32.mrf.mxu0
    %v4056 = vadd.f32 %v3959, %v4055
    %v4057 = vpop.f32.mrf.mxu0
    %v4058 = vpop.f32.mrf.mxu0
    %v4059 = vadd.f32 %v3962, %v4058
    %v4060 = vpop.f32.mrf.mxu0
    %4061 = vmatprep.mubr.bf16.mxu0 %v3843
    %4062 = vmatmul.mubr.bf16.gmra.mxu0 %v3842
    %v4063 = vpop.f32.mrf.mxu0
    %v4064 = vadd.f32 %v3967, %v4063
    %v4065 = vpop.f32.mrf.mxu0
    %v4066 = vpop.f32.mrf.mxu0
    %v4067 = vadd.f32 %v3970, %v4066
    %v4068 = vpop.f32.mrf.mxu0
    %4069 = vdwg.mxu0
    %v4070 = vadd.f32 %v3621, %v4008
    %v4071 = vadd.f32 %v3624, %v4011
    %v4072 = vadd.f32 %v3629, %v4016
    %v4073 = vadd.f32 %v3632, %v4019
    %v4074 = vadd.f32 %v3637, %v4024
    %v4075 = vadd.f32 %v3640, %v4027
    %v4076 = vadd.f32 %v3645, %v4032
    %v4077 = vadd.f32 %v3648, %v4035
    %v4078 = vadd.f32 %v3653, %v4040
    %v4079 = vadd.f32 %v3656, %v4043
    %v4080 = vadd.f32 %v3661, %v4048
    %v4081 = vadd.f32 %v3664, %v4051
    %v4082 = vadd.f32 %v3669, %v4056
    %v4083 = vadd.f32 %v3672, %v4059
    %v4084 = vadd.f32 %v3677, %v4064
    %v4085 = vadd.f32 %v3680, %v4067
    %s4086 = scalar_lea.vmem [#allocation4], 768
    %v4087 = vld [vmem:[%s4086] sm:$0xff]
    %v4088 = vld [vmem:[%s4086 + $0x8] sm:$0xff]
    %v4089 = vld [vmem:[%s4086 + $0x10] sm:$0xff]
    %v4090 = vld [vmem:[%s4086 + $0x18] sm:$0xff]
    %v4091 = vld [vmem:[%s4086 + $0x20] sm:$0xff]
    %v4092 = vld [vmem:[%s4086 + $0x28] sm:$0xff]
    %v4093 = vld [vmem:[%s4086 + $0x30] sm:$0xff]
    %v4094 = vld [vmem:[%s4086 + $0x38] sm:$0xff]
    %v4095 = vld [vmem:[%s4086 + $0x40] sm:$0xff]
    %v4096 = vld [vmem:[%s4086 + $0x48] sm:$0xff]
    %v4097 = vld [vmem:[%s4086 + $0x50] sm:$0xff]
    %v4098 = vld [vmem:[%s4086 + $0x58] sm:$0xff]
    %v4099 = vld [vmem:[%s4086 + $0x60] sm:$0xff]
    %v4100 = vld [vmem:[%s4086 + $0x68] sm:$0xff]
    %v4101 = vld [vmem:[%s4086 + $0x70] sm:$0xff]
    %v4102 = vld [vmem:[%s4086 + $0x78] sm:$0xff]
    %v4103 = vld [vmem:[%s4086 + $0x80] sm:$0xff]
    %v4104 = vld [vmem:[%s4086 + $0x88] sm:$0xff]
    %v4105 = vld [vmem:[%s4086 + $0x90] sm:$0xff]
    %v4106 = vld [vmem:[%s4086 + $0x98] sm:$0xff]
    %v4107 = vld [vmem:[%s4086 + $0xa0] sm:$0xff]
    %v4108 = vld [vmem:[%s4086 + $0xa8] sm:$0xff]
    %v4109 = vld [vmem:[%s4086 + $0xb0] sm:$0xff]
    %v4110 = vld [vmem:[%s4086 + $0xb8] sm:$0xff]
    %v4111 = vld [vmem:[%s4086 + $0xc0] sm:$0xff]
    %v4112 = vld [vmem:[%s4086 + $0xc8] sm:$0xff]
    %v4113 = vld [vmem:[%s4086 + $0xd0] sm:$0xff]
    %v4114 = vld [vmem:[%s4086 + $0xd8] sm:$0xff]
    %v4115 = vld [vmem:[%s4086 + $0xe0] sm:$0xff]
    %v4116 = vld [vmem:[%s4086 + $0xe8] sm:$0xff]
    %v4117 = vld [vmem:[%s4086 + $0xf0] sm:$0xff]
    %v4118 = vld [vmem:[%s4086 + $0xf8] sm:$0xff]
    %v4151 = vunpack.c.l.b16 %v4087
    %v4152 = vunpack.c.h.b16 %v4087
    %v4153 = vunpack.c.l.b16 %v4088
    %v4154 = vunpack.c.h.b16 %v4088
    %v4155 = vunpack.c.l.b16 %v4089
    %v4156 = vunpack.c.h.b16 %v4089
    %v4157 = vunpack.c.l.b16 %v4090
    %v4158 = vunpack.c.h.b16 %v4090
    %v4159 = vunpack.c.l.b16 %v4091
    %v4160 = vunpack.c.h.b16 %v4091
    %v4161 = vunpack.c.l.b16 %v4092
    %v4162 = vunpack.c.h.b16 %v4092
    %v4163 = vunpack.c.l.b16 %v4093
    %v4164 = vunpack.c.h.b16 %v4093
    %v4165 = vunpack.c.l.b16 %v4094
    %v4166 = vunpack.c.h.b16 %v4094
    %v4167 = vunpack.c.l.b16 %v4095
    %v4168 = vunpack.c.h.b16 %v4095
    %v4169 = vunpack.c.l.b16 %v4096
    %v4170 = vunpack.c.h.b16 %v4096
    %v4171 = vunpack.c.l.b16 %v4097
    %v4172 = vunpack.c.h.b16 %v4097
    %v4173 = vunpack.c.l.b16 %v4098
    %v4174 = vunpack.c.h.b16 %v4098
    %v4175 = vunpack.c.l.b16 %v4099
    %v4176 = vunpack.c.h.b16 %v4099
    %v4177 = vunpack.c.l.b16 %v4100
    %v4178 = vunpack.c.h.b16 %v4100
    %v4179 = vunpack.c.l.b16 %v4101
    %v4180 = vunpack.c.h.b16 %v4101
    %v4181 = vunpack.c.l.b16 %v4102
    %v4182 = vunpack.c.h.b16 %v4102
    %v4183 = vunpack.c.l.b16 %v4103
    %v4184 = vunpack.c.h.b16 %v4103
    %v4185 = vunpack.c.l.b16 %v4104
    %v4186 = vunpack.c.h.b16 %v4104
    %v4187 = vunpack.c.l.b16 %v4105
    %v4188 = vunpack.c.h.b16 %v4105
    %v4189 = vunpack.c.l.b16 %v4106
    %v4190 = vunpack.c.h.b16 %v4106
    %v4191 = vunpack.c.l.b16 %v4107
    %v4192 = vunpack.c.h.b16 %v4107
    %v4193 = vunpack.c.l.b16 %v4108
    %v4194 = vunpack.c.h.b16 %v4108
    %v4195 = vunpack.c.l.b16 %v4109
    %v4196 = vunpack.c.h.b16 %v4109
    %v4197 = vunpack.c.l.b16 %v4110
    %v4198 = vunpack.c.h.b16 %v4110
    %v4199 = vunpack.c.l.b16 %v4111
    %v4200 = vunpack.c.h.b16 %v4111
    %v4201 = vunpack.c.l.b16 %v4112
    %v4202 = vunpack.c.h.b16 %v4112
    %v4203 = vunpack.c.l.b16 %v4113
    %v4204 = vunpack.c.h.b16 %v4113
    %v4205 = vunpack.c.l.b16 %v4114
    %v4206 = vunpack.c.h.b16 %v4114
    %v4207 = vunpack.c.l.b16 %v4115
    %v4208 = vunpack.c.h.b16 %v4115
    %v4209 = vunpack.c.l.b16 %v4116
    %v4210 = vunpack.c.h.b16 %v4116
    %v4211 = vunpack.c.l.b16 %v4117
    %v4212 = vunpack.c.h.b16 %v4117
    %v4213 = vunpack.c.l.b16 %v4118
    %v4214 = vunpack.c.h.b16 %v4118
    %v4215 = vpack.c.b16 %v4155, %v4151
    %v4216 = vpack.c.b16 %v4156, %v4152
    %v4217 = vpack.c.b16 %v4157, %v4153
    %v4218 = vpack.c.b16 %v4158, %v4154
    %v4219 = vpack.c.b16 %v4163, %v4159
    %v4220 = vpack.c.b16 %v4164, %v4160
    %v4221 = vpack.c.b16 %v4165, %v4161
    %v4222 = vpack.c.b16 %v4166, %v4162
    %v4223 = vpack.c.b16 %v4171, %v4167
    %v4224 = vpack.c.b16 %v4172, %v4168
    %v4225 = vpack.c.b16 %v4173, %v4169
    %v4226 = vpack.c.b16 %v4174, %v4170
    %v4227 = vpack.c.b16 %v4179, %v4175
    %v4228 = vpack.c.b16 %v4180, %v4176
    %v4229 = vpack.c.b16 %v4181, %v4177
    %v4230 = vpack.c.b16 %v4182, %v4178
    %v4231 = vpack.c.b16 %v4187, %v4183
    %v4232 = vpack.c.b16 %v4188, %v4184
    %v4233 = vpack.c.b16 %v4189, %v4185
    %v4234 = vpack.c.b16 %v4190, %v4186
    %v4235 = vpack.c.b16 %v4195, %v4191
    %v4236 = vpack.c.b16 %v4196, %v4192
    %v4237 = vpack.c.b16 %v4197, %v4193
    %v4238 = vpack.c.b16 %v4198, %v4194
    %v4239 = vpack.c.b16 %v4203, %v4199
    %v4240 = vpack.c.b16 %v4204, %v4200
    %v4241 = vpack.c.b16 %v4205, %v4201
    %v4242 = vpack.c.b16 %v4206, %v4202
    %v4243 = vpack.c.b16 %v4211, %v4207
    %v4244 = vpack.c.b16 %v4212, %v4208
    %v4245 = vpack.c.b16 %v4213, %v4209
    %v4246 = vpack.c.b16 %v4214, %v4210
    %4279 = vmatprep.subr.bf16.mxu0 0
    %4280 = vmatpush1.bf16.msra.mxu0 %v2688
    %4281 = vmatprep.subr.bf16.mxu0 0
    %4282 = vmatpush1.bf16.msra.mxu0 %v2679
    %4283 = vmatprep.subr.bf16.mxu0 0
    %4284 = vmatpush1.bf16.msra.mxu0 %v2670
    %4285 = vmatprep.subr.bf16.mxu0 0
    %4286 = vmatpush1.bf16.msra.mxu0 %v2661
    %4287 = vmatprep.subr.bf16.mxu0 0
    %4288 = vmatpush1.bf16.msra.mxu0 %v2652
    %4289 = vmatprep.subr.bf16.mxu0 0
    %4290 = vmatpush1.bf16.msra.mxu0 %v2643
    %4291 = vmatprep.subr.bf16.mxu0 0
    %4292 = vmatpush1.bf16.msra.mxu0 %v2634
    %4293 = vmatprep.subr.bf16.mxu0 0
    %4294 = vmatpush1.bf16.msra.mxu0 %v2625
    %4295 = vmatprep.subr.bf16.mxu0 0
    %4296 = vmatpush2.bf16.msra.mxu0 %v2760
    %4297 = vmatprep.subr.bf16.mxu0 0
    %4298 = vmatpush2.bf16.msra.mxu0 %v2751
    %4299 = vmatprep.subr.bf16.mxu0 0
    %4300 = vmatpush2.bf16.msra.mxu0 %v2742
    %4301 = vmatprep.subr.bf16.mxu0 0
    %4302 = vmatpush2.bf16.msra.mxu0 %v2733
    %4303 = vmatprep.subr.bf16.mxu0 0
    %4304 = vmatpush2.bf16.msra.mxu0 %v2724
    %4305 = vmatprep.subr.bf16.mxu0 0
    %4306 = vmatpush2.bf16.msra.mxu0 %v2715
    %4307 = vmatprep.subr.bf16.mxu0 0
    %4308 = vmatpush2.bf16.msra.mxu0 %v2706
    %4309 = vmatprep.subr.bf16.mxu0 0
    %4310 = vmatpush2.bf16.msra.mxu0 %v2697
    %4311 = vmatprep.mubr.bf16.mxu0 %v4216
    %4312 = vmatmul.mubr.bf16.gmra.mxu0 %v4215
    %v4313 = vpop.f32.mrf.mxu0
    %v4314 = vadd.f32 0.0, %v4313
    %v4315 = vpop.f32.mrf.mxu0
    %v4316 = vpop.f32.mrf.mxu0
    %v4317 = vadd.f32 0.0, %v4316
    %v4318 = vpop.f32.mrf.mxu0
    %4319 = vmatprep.mubr.bf16.mxu0 %v4220
    %4320 = vmatmul.mubr.bf16.gmra.mxu0 %v4219
    %v4321 = vpop.f32.mrf.mxu0
    %v4322 = vadd.f32 0.0, %v4321
    %v4323 = vpop.f32.mrf.mxu0
    %v4324 = vpop.f32.mrf.mxu0
    %v4325 = vadd.f32 0.0, %v4324
    %v4326 = vpop.f32.mrf.mxu0
    %4327 = vmatprep.mubr.bf16.mxu0 %v4224
    %4328 = vmatmul.mubr.bf16.gmra.mxu0 %v4223
    %v4329 = vpop.f32.mrf.mxu0
    %v4330 = vadd.f32 0.0, %v4329
    %v4331 = vpop.f32.mrf.mxu0
    %v4332 = vpop.f32.mrf.mxu0
    %v4333 = vadd.f32 0.0, %v4332
    %v4334 = vpop.f32.mrf.mxu0
    %4335 = vmatprep.mubr.bf16.mxu0 %v4228
    %4336 = vmatmul.mubr.bf16.gmra.mxu0 %v4227
    %v4337 = vpop.f32.mrf.mxu0
    %v4338 = vadd.f32 0.0, %v4337
    %v4339 = vpop.f32.mrf.mxu0
    %v4340 = vpop.f32.mrf.mxu0
    %v4341 = vadd.f32 0.0, %v4340
    %v4342 = vpop.f32.mrf.mxu0
    %4343 = vmatprep.mubr.bf16.mxu0 %v4232
    %4344 = vmatmul.mubr.bf16.gmra.mxu0 %v4231
    %v4345 = vpop.f32.mrf.mxu0
    %v4346 = vadd.f32 0.0, %v4345
    %v4347 = vpop.f32.mrf.mxu0
    %v4348 = vpop.f32.mrf.mxu0
    %v4349 = vadd.f32 0.0, %v4348
    %v4350 = vpop.f32.mrf.mxu0
    %4351 = vmatprep.mubr.bf16.mxu0 %v4236
    %4352 = vmatmul.mubr.bf16.gmra.mxu0 %v4235
    %v4353 = vpop.f32.mrf.mxu0
    %v4354 = vadd.f32 0.0, %v4353
    %v4355 = vpop.f32.mrf.mxu0
    %v4356 = vpop.f32.mrf.mxu0
    %v4357 = vadd.f32 0.0, %v4356
    %v4358 = vpop.f32.mrf.mxu0
    %4359 = vmatprep.mubr.bf16.mxu0 %v4240
    %4360 = vmatmul.mubr.bf16.gmra.mxu0 %v4239
    %v4361 = vpop.f32.mrf.mxu0
    %v4362 = vadd.f32 0.0, %v4361
    %v4363 = vpop.f32.mrf.mxu0
    %v4364 = vpop.f32.mrf.mxu0
    %v4365 = vadd.f32 0.0, %v4364
    %v4366 = vpop.f32.mrf.mxu0
    %4367 = vmatprep.mubr.bf16.mxu0 %v4244
    %4368 = vmatmul.mubr.bf16.gmra.mxu0 %v4243
    %v4369 = vpop.f32.mrf.mxu0
    %v4370 = vadd.f32 0.0, %v4369
    %v4371 = vpop.f32.mrf.mxu0
    %v4372 = vpop.f32.mrf.mxu0
    %v4373 = vadd.f32 0.0, %v4372
    %v4374 = vpop.f32.mrf.mxu0
    %4375 = vdwg.mxu0
    %4376 = vmatprep.subr.bf16.mxu0 0
    %4377 = vmatpush1.bf16.msra.mxu0 %v2832
    %4378 = vmatprep.subr.bf16.mxu0 0
    %4379 = vmatpush1.bf16.msra.mxu0 %v2823
    %4380 = vmatprep.subr.bf16.mxu0 0
    %4381 = vmatpush1.bf16.msra.mxu0 %v2814
    %4382 = vmatprep.subr.bf16.mxu0 0
    %4383 = vmatpush1.bf16.msra.mxu0 %v2805
    %4384 = vmatprep.subr.bf16.mxu0 0
    %4385 = vmatpush1.bf16.msra.mxu0 %v2796
    %4386 = vmatprep.subr.bf16.mxu0 0
    %4387 = vmatpush1.bf16.msra.mxu0 %v2787
    %4388 = vmatprep.subr.bf16.mxu0 0
    %4389 = vmatpush1.bf16.msra.mxu0 %v2778
    %4390 = vmatprep.subr.bf16.mxu0 0
    %4391 = vmatpush1.bf16.msra.mxu0 %v2769
    %4392 = vmatprep.subr.bf16.mxu0 0
    %4393 = vmatpush2.bf16.msra.mxu0 %v2904
    %4394 = vmatprep.subr.bf16.mxu0 0
    %4395 = vmatpush2.bf16.msra.mxu0 %v2895
    %4396 = vmatprep.subr.bf16.mxu0 0
    %4397 = vmatpush2.bf16.msra.mxu0 %v2886
    %4398 = vmatprep.subr.bf16.mxu0 0
    %4399 = vmatpush2.bf16.msra.mxu0 %v2877
    %4400 = vmatprep.subr.bf16.mxu0 0
    %4401 = vmatpush2.bf16.msra.mxu0 %v2868
    %4402 = vmatprep.subr.bf16.mxu0 0
    %4403 = vmatpush2.bf16.msra.mxu0 %v2859
    %4404 = vmatprep.subr.bf16.mxu0 0
    %4405 = vmatpush2.bf16.msra.mxu0 %v2850
    %4406 = vmatprep.subr.bf16.mxu0 0
    %4407 = vmatpush2.bf16.msra.mxu0 %v2841
    %4408 = vmatprep.mubr.bf16.mxu0 %v4218
    %4409 = vmatmul.mubr.bf16.gmra.mxu0 %v4217
    %v4410 = vpop.f32.mrf.mxu0
    %v4411 = vadd.f32 %v4314, %v4410
    %v4412 = vpop.f32.mrf.mxu0
    %v4413 = vpop.f32.mrf.mxu0
    %v4414 = vadd.f32 %v4317, %v4413
    %v4415 = vpop.f32.mrf.mxu0
    %4416 = vmatprep.mubr.bf16.mxu0 %v4222
    %4417 = vmatmul.mubr.bf16.gmra.mxu0 %v4221
    %v4418 = vpop.f32.mrf.mxu0
    %v4419 = vadd.f32 %v4322, %v4418
    %v4420 = vpop.f32.mrf.mxu0
    %v4421 = vpop.f32.mrf.mxu0
    %v4422 = vadd.f32 %v4325, %v4421
    %v4423 = vpop.f32.mrf.mxu0
    %4424 = vmatprep.mubr.bf16.mxu0 %v4226
    %4425 = vmatmul.mubr.bf16.gmra.mxu0 %v4225
    %v4426 = vpop.f32.mrf.mxu0
    %v4427 = vadd.f32 %v4330, %v4426
    %v4428 = vpop.f32.mrf.mxu0
    %v4429 = vpop.f32.mrf.mxu0
    %v4430 = vadd.f32 %v4333, %v4429
    %v4431 = vpop.f32.mrf.mxu0
    %4432 = vmatprep.mubr.bf16.mxu0 %v4230
    %4433 = vmatmul.mubr.bf16.gmra.mxu0 %v4229
    %v4434 = vpop.f32.mrf.mxu0
    %v4435 = vadd.f32 %v4338, %v4434
    %v4436 = vpop.f32.mrf.mxu0
    %v4437 = vpop.f32.mrf.mxu0
    %v4438 = vadd.f32 %v4341, %v4437
    %v4439 = vpop.f32.mrf.mxu0
    %4440 = vmatprep.mubr.bf16.mxu0 %v4234
    %4441 = vmatmul.mubr.bf16.gmra.mxu0 %v4233
    %v4442 = vpop.f32.mrf.mxu0
    %v4443 = vadd.f32 %v4346, %v4442
    %v4444 = vpop.f32.mrf.mxu0
    %v4445 = vpop.f32.mrf.mxu0
    %v4446 = vadd.f32 %v4349, %v4445
    %v4447 = vpop.f32.mrf.mxu0
    %4448 = vmatprep.mubr.bf16.mxu0 %v4238
    %4449 = vmatmul.mubr.bf16.gmra.mxu0 %v4237
    %v4450 = vpop.f32.mrf.mxu0
    %v4451 = vadd.f32 %v4354, %v4450
    %v4452 = vpop.f32.mrf.mxu0
    %v4453 = vpop.f32.mrf.mxu0
    %v4454 = vadd.f32 %v4357, %v4453
    %v4455 = vpop.f32.mrf.mxu0
    %4456 = vmatprep.mubr.bf16.mxu0 %v4242
    %4457 = vmatmul.mubr.bf16.gmra.mxu0 %v4241
    %v4458 = vpop.f32.mrf.mxu0
    %v4459 = vadd.f32 %v4362, %v4458
    %v4460 = vpop.f32.mrf.mxu0
    %v4461 = vpop.f32.mrf.mxu0
    %v4462 = vadd.f32 %v4365, %v4461
    %v4463 = vpop.f32.mrf.mxu0
    %4464 = vmatprep.mubr.bf16.mxu0 %v4246
    %4465 = vmatmul.mubr.bf16.gmra.mxu0 %v4245
    %v4466 = vpop.f32.mrf.mxu0
    %v4467 = vadd.f32 %v4370, %v4466
    %v4468 = vpop.f32.mrf.mxu0
    %v4469 = vpop.f32.mrf.mxu0
    %v4470 = vadd.f32 %v4373, %v4469
    %v4471 = vpop.f32.mrf.mxu0
    %4472 = vdwg.mxu0
    %v4473 = vadd.f32 %v4070, %v4411
    %v4474 = vadd.f32 %v4071, %v4414
    %v4475 = vadd.f32 %v4072, %v4419
    %v4476 = vadd.f32 %v4073, %v4422
    %v4477 = vadd.f32 %v4074, %v4427
    %v4478 = vadd.f32 %v4075, %v4430
    %v4479 = vadd.f32 %v4076, %v4435
    %v4480 = vadd.f32 %v4077, %v4438
    %v4481 = vadd.f32 %v4078, %v4443
    %v4482 = vadd.f32 %v4079, %v4446
    %v4483 = vadd.f32 %v4080, %v4451
    %v4484 = vadd.f32 %v4081, %v4454
    %v4485 = vadd.f32 %v4082, %v4459
    %v4486 = vadd.f32 %v4083, %v4462
    %v4487 = vadd.f32 %v4084, %v4467
    %v4488 = vadd.f32 %v4085, %v4470
    %s4489 = scalar_lea.vmem [#allocation4], 1024
    %v4490 = vld [vmem:[%s4489] sm:$0xff]
    %v4491 = vld [vmem:[%s4489 + $0x8] sm:$0xff]
    %v4492 = vld [vmem:[%s4489 + $0x10] sm:$0xff]
    %v4493 = vld [vmem:[%s4489 + $0x18] sm:$0xff]
    %v4494 = vld [vmem:[%s4489 + $0x20] sm:$0xff]
    %v4495 = vld [vmem:[%s4489 + $0x28] sm:$0xff]
    %v4496 = vld [vmem:[%s4489 + $0x30] sm:$0xff]
    %v4497 = vld [vmem:[%s4489 + $0x38] sm:$0xff]
    %v4498 = vld [vmem:[%s4489 + $0x40] sm:$0xff]
    %v4499 = vld [vmem:[%s4489 + $0x48] sm:$0xff]
    %v4500 = vld [vmem:[%s4489 + $0x50] sm:$0xff]
    %v4501 = vld [vmem:[%s4489 + $0x58] sm:$0xff]
    %v4502 = vld [vmem:[%s4489 + $0x60] sm:$0xff]
    %v4503 = vld [vmem:[%s4489 + $0x68] sm:$0xff]
    %v4504 = vld [vmem:[%s4489 + $0x70] sm:$0xff]
    %v4505 = vld [vmem:[%s4489 + $0x78] sm:$0xff]
    %v4506 = vld [vmem:[%s4489 + $0x80] sm:$0xff]
    %v4507 = vld [vmem:[%s4489 + $0x88] sm:$0xff]
    %v4508 = vld [vmem:[%s4489 + $0x90] sm:$0xff]
    %v4509 = vld [vmem:[%s4489 + $0x98] sm:$0xff]
    %v4510 = vld [vmem:[%s4489 + $0xa0] sm:$0xff]
    %v4511 = vld [vmem:[%s4489 + $0xa8] sm:$0xff]
    %v4512 = vld [vmem:[%s4489 + $0xb0] sm:$0xff]
    %v4513 = vld [vmem:[%s4489 + $0xb8] sm:$0xff]
    %v4514 = vld [vmem:[%s4489 + $0xc0] sm:$0xff]
    %v4515 = vld [vmem:[%s4489 + $0xc8] sm:$0xff]
    %v4516 = vld [vmem:[%s4489 + $0xd0] sm:$0xff]
    %v4517 = vld [vmem:[%s4489 + $0xd8] sm:$0xff]
    %v4518 = vld [vmem:[%s4489 + $0xe0] sm:$0xff]
    %v4519 = vld [vmem:[%s4489 + $0xe8] sm:$0xff]
    %v4520 = vld [vmem:[%s4489 + $0xf0] sm:$0xff]
    %v4521 = vld [vmem:[%s4489 + $0xf8] sm:$0xff]
    %v4554 = vunpack.c.l.b16 %v4490
    %v4555 = vunpack.c.h.b16 %v4490
    %v4556 = vunpack.c.l.b16 %v4491
    %v4557 = vunpack.c.h.b16 %v4491
    %v4558 = vunpack.c.l.b16 %v4492
    %v4559 = vunpack.c.h.b16 %v4492
    %v4560 = vunpack.c.l.b16 %v4493
    %v4561 = vunpack.c.h.b16 %v4493
    %v4562 = vunpack.c.l.b16 %v4494
    %v4563 = vunpack.c.h.b16 %v4494
    %v4564 = vunpack.c.l.b16 %v4495
    %v4565 = vunpack.c.h.b16 %v4495
    %v4566 = vunpack.c.l.b16 %v4496
    %v4567 = vunpack.c.h.b16 %v4496
    %v4568 = vunpack.c.l.b16 %v4497
    %v4569 = vunpack.c.h.b16 %v4497
    %v4570 = vunpack.c.l.b16 %v4498
    %v4571 = vunpack.c.h.b16 %v4498
    %v4572 = vunpack.c.l.b16 %v4499
    %v4573 = vunpack.c.h.b16 %v4499
    %v4574 = vunpack.c.l.b16 %v4500
    %v4575 = vunpack.c.h.b16 %v4500
    %v4576 = vunpack.c.l.b16 %v4501
    %v4577 = vunpack.c.h.b16 %v4501
    %v4578 = vunpack.c.l.b16 %v4502
    %v4579 = vunpack.c.h.b16 %v4502
    %v4580 = vunpack.c.l.b16 %v4503
    %v4581 = vunpack.c.h.b16 %v4503
    %v4582 = vunpack.c.l.b16 %v4504
    %v4583 = vunpack.c.h.b16 %v4504
    %v4584 = vunpack.c.l.b16 %v4505
    %v4585 = vunpack.c.h.b16 %v4505
    %v4586 = vunpack.c.l.b16 %v4506
    %v4587 = vunpack.c.h.b16 %v4506
    %v4588 = vunpack.c.l.b16 %v4507
    %v4589 = vunpack.c.h.b16 %v4507
    %v4590 = vunpack.c.l.b16 %v4508
    %v4591 = vunpack.c.h.b16 %v4508
    %v4592 = vunpack.c.l.b16 %v4509
    %v4593 = vunpack.c.h.b16 %v4509
    %v4594 = vunpack.c.l.b16 %v4510
    %v4595 = vunpack.c.h.b16 %v4510
    %v4596 = vunpack.c.l.b16 %v4511
    %v4597 = vunpack.c.h.b16 %v4511
    %v4598 = vunpack.c.l.b16 %v4512
    %v4599 = vunpack.c.h.b16 %v4512
    %v4600 = vunpack.c.l.b16 %v4513
    %v4601 = vunpack.c.h.b16 %v4513
    %v4602 = vunpack.c.l.b16 %v4514
    %v4603 = vunpack.c.h.b16 %v4514
    %v4604 = vunpack.c.l.b16 %v4515
    %v4605 = vunpack.c.h.b16 %v4515
    %v4606 = vunpack.c.l.b16 %v4516
    %v4607 = vunpack.c.h.b16 %v4516
    %v4608 = vunpack.c.l.b16 %v4517
    %v4609 = vunpack.c.h.b16 %v4517
    %v4610 = vunpack.c.l.b16 %v4518
    %v4611 = vunpack.c.h.b16 %v4518
    %v4612 = vunpack.c.l.b16 %v4519
    %v4613 = vunpack.c.h.b16 %v4519
    %v4614 = vunpack.c.l.b16 %v4520
    %v4615 = vunpack.c.h.b16 %v4520
    %v4616 = vunpack.c.l.b16 %v4521
    %v4617 = vunpack.c.h.b16 %v4521
    %v4618 = vpack.c.b16 %v4558, %v4554
    %v4619 = vpack.c.b16 %v4559, %v4555
    %v4620 = vpack.c.b16 %v4560, %v4556
    %v4621 = vpack.c.b16 %v4561, %v4557
    %v4622 = vpack.c.b16 %v4566, %v4562
    %v4623 = vpack.c.b16 %v4567, %v4563
    %v4624 = vpack.c.b16 %v4568, %v4564
    %v4625 = vpack.c.b16 %v4569, %v4565
    %v4626 = vpack.c.b16 %v4574, %v4570
    %v4627 = vpack.c.b16 %v4575, %v4571
    %v4628 = vpack.c.b16 %v4576, %v4572
    %v4629 = vpack.c.b16 %v4577, %v4573
    %v4630 = vpack.c.b16 %v4582, %v4578
    %v4631 = vpack.c.b16 %v4583, %v4579
    %v4632 = vpack.c.b16 %v4584, %v4580
    %v4633 = vpack.c.b16 %v4585, %v4581
    %v4634 = vpack.c.b16 %v4590, %v4586
    %v4635 = vpack.c.b16 %v4591, %v4587
    %v4636 = vpack.c.b16 %v4592, %v4588
    %v4637 = vpack.c.b16 %v4593, %v4589
    %v4638 = vpack.c.b16 %v4598, %v4594
    %v4639 = vpack.c.b16 %v4599, %v4595
    %v4640 = vpack.c.b16 %v4600, %v4596
    %v4641 = vpack.c.b16 %v4601, %v4597
    %v4642 = vpack.c.b16 %v4606, %v4602
    %v4643 = vpack.c.b16 %v4607, %v4603
    %v4644 = vpack.c.b16 %v4608, %v4604
    %v4645 = vpack.c.b16 %v4609, %v4605
    %v4646 = vpack.c.b16 %v4614, %v4610
    %v4647 = vpack.c.b16 %v4615, %v4611
    %v4648 = vpack.c.b16 %v4616, %v4612
    %v4649 = vpack.c.b16 %v4617, %v4613
    %4682 = vmatprep.subr.bf16.mxu0 0
    %4683 = vmatpush1.bf16.msra.mxu0 %v2689
    %4684 = vmatprep.subr.bf16.mxu0 0
    %4685 = vmatpush1.bf16.msra.mxu0 %v2680
    %4686 = vmatprep.subr.bf16.mxu0 0
    %4687 = vmatpush1.bf16.msra.mxu0 %v2671
    %4688 = vmatprep.subr.bf16.mxu0 0
    %4689 = vmatpush1.bf16.msra.mxu0 %v2662
    %4690 = vmatprep.subr.bf16.mxu0 0
    %4691 = vmatpush1.bf16.msra.mxu0 %v2653
    %4692 = vmatprep.subr.bf16.mxu0 0
    %4693 = vmatpush1.bf16.msra.mxu0 %v2644
    %4694 = vmatprep.subr.bf16.mxu0 0
    %4695 = vmatpush1.bf16.msra.mxu0 %v2635
    %4696 = vmatprep.subr.bf16.mxu0 0
    %4697 = vmatpush1.bf16.msra.mxu0 %v2626
    %4698 = vmatprep.subr.bf16.mxu0 0
    %4699 = vmatpush2.bf16.msra.mxu0 %v2761
    %4700 = vmatprep.subr.bf16.mxu0 0
    %4701 = vmatpush2.bf16.msra.mxu0 %v2752
    %4702 = vmatprep.subr.bf16.mxu0 0
    %4703 = vmatpush2.bf16.msra.mxu0 %v2743
    %4704 = vmatprep.subr.bf16.mxu0 0
    %4705 = vmatpush2.bf16.msra.mxu0 %v2734
    %4706 = vmatprep.subr.bf16.mxu0 0
    %4707 = vmatpush2.bf16.msra.mxu0 %v2725
    %4708 = vmatprep.subr.bf16.mxu0 0
    %4709 = vmatpush2.bf16.msra.mxu0 %v2716
    %4710 = vmatprep.subr.bf16.mxu0 0
    %4711 = vmatpush2.bf16.msra.mxu0 %v2707
    %4712 = vmatprep.subr.bf16.mxu0 0
    %4713 = vmatpush2.bf16.msra.mxu0 %v2698
    %4714 = vmatprep.mubr.bf16.mxu0 %v4619
    %4715 = vmatmul.mubr.bf16.gmra.mxu0 %v4618
    %v4716 = vpop.f32.mrf.mxu0
    %v4717 = vadd.f32 0.0, %v4716
    %v4718 = vpop.f32.mrf.mxu0
    %v4719 = vpop.f32.mrf.mxu0
    %v4720 = vadd.f32 0.0, %v4719
    %v4721 = vpop.f32.mrf.mxu0
    %4722 = vmatprep.mubr.bf16.mxu0 %v4623
    %4723 = vmatmul.mubr.bf16.gmra.mxu0 %v4622
    %v4724 = vpop.f32.mrf.mxu0
    %v4725 = vadd.f32 0.0, %v4724
    %v4726 = vpop.f32.mrf.mxu0
    %v4727 = vpop.f32.mrf.mxu0
    %v4728 = vadd.f32 0.0, %v4727
    %v4729 = vpop.f32.mrf.mxu0
    %4730 = vmatprep.mubr.bf16.mxu0 %v4627
    %4731 = vmatmul.mubr.bf16.gmra.mxu0 %v4626
    %v4732 = vpop.f32.mrf.mxu0
    %v4733 = vadd.f32 0.0, %v4732
    %v4734 = vpop.f32.mrf.mxu0
    %v4735 = vpop.f32.mrf.mxu0
    %v4736 = vadd.f32 0.0, %v4735
    %v4737 = vpop.f32.mrf.mxu0
    %4738 = vmatprep.mubr.bf16.mxu0 %v4631
    %4739 = vmatmul.mubr.bf16.gmra.mxu0 %v4630
    %v4740 = vpop.f32.mrf.mxu0
    %v4741 = vadd.f32 0.0, %v4740
    %v4742 = vpop.f32.mrf.mxu0
    %v4743 = vpop.f32.mrf.mxu0
    %v4744 = vadd.f32 0.0, %v4743
    %v4745 = vpop.f32.mrf.mxu0
    %4746 = vmatprep.mubr.bf16.mxu0 %v4635
    %4747 = vmatmul.mubr.bf16.gmra.mxu0 %v4634
    %v4748 = vpop.f32.mrf.mxu0
    %v4749 = vadd.f32 0.0, %v4748
    %v4750 = vpop.f32.mrf.mxu0
    %v4751 = vpop.f32.mrf.mxu0
    %v4752 = vadd.f32 0.0, %v4751
    %v4753 = vpop.f32.mrf.mxu0
    %4754 = vmatprep.mubr.bf16.mxu0 %v4639
    %4755 = vmatmul.mubr.bf16.gmra.mxu0 %v4638
    %v4756 = vpop.f32.mrf.mxu0
    %v4757 = vadd.f32 0.0, %v4756
    %v4758 = vpop.f32.mrf.mxu0
    %v4759 = vpop.f32.mrf.mxu0
    %v4760 = vadd.f32 0.0, %v4759
    %v4761 = vpop.f32.mrf.mxu0
    %4762 = vmatprep.mubr.bf16.mxu0 %v4643
    %4763 = vmatmul.mubr.bf16.gmra.mxu0 %v4642
    %v4764 = vpop.f32.mrf.mxu0
    %v4765 = vadd.f32 0.0, %v4764
    %v4766 = vpop.f32.mrf.mxu0
    %v4767 = vpop.f32.mrf.mxu0
    %v4768 = vadd.f32 0.0, %v4767
    %v4769 = vpop.f32.mrf.mxu0
    %4770 = vmatprep.mubr.bf16.mxu0 %v4647
    %4771 = vmatmul.mubr.bf16.gmra.mxu0 %v4646
    %v4772 = vpop.f32.mrf.mxu0
    %v4773 = vadd.f32 0.0, %v4772
    %v4774 = vpop.f32.mrf.mxu0
    %v4775 = vpop.f32.mrf.mxu0
    %v4776 = vadd.f32 0.0, %v4775
    %v4777 = vpop.f32.mrf.mxu0
    %4778 = vdwg.mxu0
    %4779 = vmatprep.subr.bf16.mxu0 0
    %4780 = vmatpush1.bf16.msra.mxu0 %v2833
    %4781 = vmatprep.subr.bf16.mxu0 0
    %4782 = vmatpush1.bf16.msra.mxu0 %v2824
    %4783 = vmatprep.subr.bf16.mxu0 0
    %4784 = vmatpush1.bf16.msra.mxu0 %v2815
    %4785 = vmatprep.subr.bf16.mxu0 0
    %4786 = vmatpush1.bf16.msra.mxu0 %v2806
    %4787 = vmatprep.subr.bf16.mxu0 0
    %4788 = vmatpush1.bf16.msra.mxu0 %v2797
    %4789 = vmatprep.subr.bf16.mxu0 0
    %4790 = vmatpush1.bf16.msra.mxu0 %v2788
    %4791 = vmatprep.subr.bf16.mxu0 0
    %4792 = vmatpush1.bf16.msra.mxu0 %v2779
    %4793 = vmatprep.subr.bf16.mxu0 0
    %4794 = vmatpush1.bf16.msra.mxu0 %v2770
    %4795 = vmatprep.subr.bf16.mxu0 0
    %4796 = vmatpush2.bf16.msra.mxu0 %v2905
    %4797 = vmatprep.subr.bf16.mxu0 0
    %4798 = vmatpush2.bf16.msra.mxu0 %v2896
    %4799 = vmatprep.subr.bf16.mxu0 0
    %4800 = vmatpush2.bf16.msra.mxu0 %v2887
    %4801 = vmatprep.subr.bf16.mxu0 0
    %4802 = vmatpush2.bf16.msra.mxu0 %v2878
    %4803 = vmatprep.subr.bf16.mxu0 0
    %4804 = vmatpush2.bf16.msra.mxu0 %v2869
    %4805 = vmatprep.subr.bf16.mxu0 0
    %4806 = vmatpush2.bf16.msra.mxu0 %v2860
    %4807 = vmatprep.subr.bf16.mxu0 0
    %4808 = vmatpush2.bf16.msra.mxu0 %v2851
    %4809 = vmatprep.subr.bf16.mxu0 0
    %4810 = vmatpush2.bf16.msra.mxu0 %v2842
    %4811 = vmatprep.mubr.bf16.mxu0 %v4621
    %4812 = vmatmul.mubr.bf16.gmra.mxu0 %v4620
    %v4813 = vpop.f32.mrf.mxu0
    %v4814 = vadd.f32 %v4717, %v4813
    %v4815 = vpop.f32.mrf.mxu0
    %v4816 = vpop.f32.mrf.mxu0
    %v4817 = vadd.f32 %v4720, %v4816
    %v4818 = vpop.f32.mrf.mxu0
    %4819 = vmatprep.mubr.bf16.mxu0 %v4625
    %4820 = vmatmul.mubr.bf16.gmra.mxu0 %v4624
    %v4821 = vpop.f32.mrf.mxu0
    %v4822 = vadd.f32 %v4725, %v4821
    %v4823 = vpop.f32.mrf.mxu0
    %v4824 = vpop.f32.mrf.mxu0
    %v4825 = vadd.f32 %v4728, %v4824
    %v4826 = vpop.f32.mrf.mxu0
    %4827 = vmatprep.mubr.bf16.mxu0 %v4629
    %4828 = vmatmul.mubr.bf16.gmra.mxu0 %v4628
    %v4829 = vpop.f32.mrf.mxu0
    %v4830 = vadd.f32 %v4733, %v4829
    %v4831 = vpop.f32.mrf.mxu0
    %v4832 = vpop.f32.mrf.mxu0
    %v4833 = vadd.f32 %v4736, %v4832
    %v4834 = vpop.f32.mrf.mxu0
    %4835 = vmatprep.mubr.bf16.mxu0 %v4633
    %4836 = vmatmul.mubr.bf16.gmra.mxu0 %v4632
    %v4837 = vpop.f32.mrf.mxu0
    %v4838 = vadd.f32 %v4741, %v4837
    %v4839 = vpop.f32.mrf.mxu0
    %v4840 = vpop.f32.mrf.mxu0
    %v4841 = vadd.f32 %v4744, %v4840
    %v4842 = vpop.f32.mrf.mxu0
    %4843 = vmatprep.mubr.bf16.mxu0 %v4637
    %4844 = vmatmul.mubr.bf16.gmra.mxu0 %v4636
    %v4845 = vpop.f32.mrf.mxu0
    %v4846 = vadd.f32 %v4749, %v4845
    %v4847 = vpop.f32.mrf.mxu0
    %v4848 = vpop.f32.mrf.mxu0
    %v4849 = vadd.f32 %v4752, %v4848
    %v4850 = vpop.f32.mrf.mxu0
    %4851 = vmatprep.mubr.bf16.mxu0 %v4641
    %4852 = vmatmul.mubr.bf16.gmra.mxu0 %v4640
    %v4853 = vpop.f32.mrf.mxu0
    %v4854 = vadd.f32 %v4757, %v4853
    %v4855 = vpop.f32.mrf.mxu0
    %v4856 = vpop.f32.mrf.mxu0
    %v4857 = vadd.f32 %v4760, %v4856
    %v4858 = vpop.f32.mrf.mxu0
    %4859 = vmatprep.mubr.bf16.mxu0 %v4645
    %4860 = vmatmul.mubr.bf16.gmra.mxu0 %v4644
    %v4861 = vpop.f32.mrf.mxu0
    %v4862 = vadd.f32 %v4765, %v4861
    %v4863 = vpop.f32.mrf.mxu0
    %v4864 = vpop.f32.mrf.mxu0
    %v4865 = vadd.f32 %v4768, %v4864
    %v4866 = vpop.f32.mrf.mxu0
    %4867 = vmatprep.mubr.bf16.mxu0 %v4649
    %4868 = vmatmul.mubr.bf16.gmra.mxu0 %v4648
    %v4869 = vpop.f32.mrf.mxu0
    %v4870 = vadd.f32 %v4773, %v4869
    %v4871 = vpop.f32.mrf.mxu0
    %v4872 = vpop.f32.mrf.mxu0
    %v4873 = vadd.f32 %v4776, %v4872
    %v4874 = vpop.f32.mrf.mxu0
    %4875 = vdwg.mxu0
    %v4876 = vadd.f32 %v4473, %v4814
    %v4877 = vadd.f32 %v4474, %v4817
    %v4878 = vadd.f32 %v4475, %v4822
    %v4879 = vadd.f32 %v4476, %v4825
    %v4880 = vadd.f32 %v4477, %v4830
    %v4881 = vadd.f32 %v4478, %v4833
    %v4882 = vadd.f32 %v4479, %v4838
    %v4883 = vadd.f32 %v4480, %v4841
    %v4884 = vadd.f32 %v4481, %v4846
    %v4885 = vadd.f32 %v4482, %v4849
    %v4886 = vadd.f32 %v4483, %v4854
    %v4887 = vadd.f32 %v4484, %v4857
    %v4888 = vadd.f32 %v4485, %v4862
    %v4889 = vadd.f32 %v4486, %v4865
    %v4890 = vadd.f32 %v4487, %v4870
    %v4891 = vadd.f32 %v4488, %v4873
    %s4892 = scalar_lea.vmem [#allocation4], 1280
    %v4893 = vld [vmem:[%s4892] sm:$0xff]
    %v4894 = vld [vmem:[%s4892 + $0x8] sm:$0xff]
    %v4895 = vld [vmem:[%s4892 + $0x10] sm:$0xff]
    %v4896 = vld [vmem:[%s4892 + $0x18] sm:$0xff]
    %v4897 = vld [vmem:[%s4892 + $0x20] sm:$0xff]
    %v4898 = vld [vmem:[%s4892 + $0x28] sm:$0xff]
    %v4899 = vld [vmem:[%s4892 + $0x30] sm:$0xff]
    %v4900 = vld [vmem:[%s4892 + $0x38] sm:$0xff]
    %v4901 = vld [vmem:[%s4892 + $0x40] sm:$0xff]
    %v4902 = vld [vmem:[%s4892 + $0x48] sm:$0xff]
    %v4903 = vld [vmem:[%s4892 + $0x50] sm:$0xff]
    %v4904 = vld [vmem:[%s4892 + $0x58] sm:$0xff]
    %v4905 = vld [vmem:[%s4892 + $0x60] sm:$0xff]
    %v4906 = vld [vmem:[%s4892 + $0x68] sm:$0xff]
    %v4907 = vld [vmem:[%s4892 + $0x70] sm:$0xff]
    %v4908 = vld [vmem:[%s4892 + $0x78] sm:$0xff]
    %v4909 = vld [vmem:[%s4892 + $0x80] sm:$0xff]
    %v4910 = vld [vmem:[%s4892 + $0x88] sm:$0xff]
    %v4911 = vld [vmem:[%s4892 + $0x90] sm:$0xff]
    %v4912 = vld [vmem:[%s4892 + $0x98] sm:$0xff]
    %v4913 = vld [vmem:[%s4892 + $0xa0] sm:$0xff]
    %v4914 = vld [vmem:[%s4892 + $0xa8] sm:$0xff]
    %v4915 = vld [vmem:[%s4892 + $0xb0] sm:$0xff]
    %v4916 = vld [vmem:[%s4892 + $0xb8] sm:$0xff]
    %v4917 = vld [vmem:[%s4892 + $0xc0] sm:$0xff]
    %v4918 = vld [vmem:[%s4892 + $0xc8] sm:$0xff]
    %v4919 = vld [vmem:[%s4892 + $0xd0] sm:$0xff]
    %v4920 = vld [vmem:[%s4892 + $0xd8] sm:$0xff]
    %v4921 = vld [vmem:[%s4892 + $0xe0] sm:$0xff]
    %v4922 = vld [vmem:[%s4892 + $0xe8] sm:$0xff]
    %v4923 = vld [vmem:[%s4892 + $0xf0] sm:$0xff]
    %v4924 = vld [vmem:[%s4892 + $0xf8] sm:$0xff]
    %v4957 = vunpack.c.l.b16 %v4893
    %v4958 = vunpack.c.h.b16 %v4893
    %v4959 = vunpack.c.l.b16 %v4894
    %v4960 = vunpack.c.h.b16 %v4894
    %v4961 = vunpack.c.l.b16 %v4895
    %v4962 = vunpack.c.h.b16 %v4895
    %v4963 = vunpack.c.l.b16 %v4896
    %v4964 = vunpack.c.h.b16 %v4896
    %v4965 = vunpack.c.l.b16 %v4897
    %v4966 = vunpack.c.h.b16 %v4897
    %v4967 = vunpack.c.l.b16 %v4898
    %v4968 = vunpack.c.h.b16 %v4898
    %v4969 = vunpack.c.l.b16 %v4899
    %v4970 = vunpack.c.h.b16 %v4899
    %v4971 = vunpack.c.l.b16 %v4900
    %v4972 = vunpack.c.h.b16 %v4900
    %v4973 = vunpack.c.l.b16 %v4901
    %v4974 = vunpack.c.h.b16 %v4901
    %v4975 = vunpack.c.l.b16 %v4902
    %v4976 = vunpack.c.h.b16 %v4902
    %v4977 = vunpack.c.l.b16 %v4903
    %v4978 = vunpack.c.h.b16 %v4903
    %v4979 = vunpack.c.l.b16 %v4904
    %v4980 = vunpack.c.h.b16 %v4904
    %v4981 = vunpack.c.l.b16 %v4905
    %v4982 = vunpack.c.h.b16 %v4905
    %v4983 = vunpack.c.l.b16 %v4906
    %v4984 = vunpack.c.h.b16 %v4906
    %v4985 = vunpack.c.l.b16 %v4907
    %v4986 = vunpack.c.h.b16 %v4907
    %v4987 = vunpack.c.l.b16 %v4908
    %v4988 = vunpack.c.h.b16 %v4908
    %v4989 = vunpack.c.l.b16 %v4909
    %v4990 = vunpack.c.h.b16 %v4909
    %v4991 = vunpack.c.l.b16 %v4910
    %v4992 = vunpack.c.h.b16 %v4910
    %v4993 = vunpack.c.l.b16 %v4911
    %v4994 = vunpack.c.h.b16 %v4911
    %v4995 = vunpack.c.l.b16 %v4912
    %v4996 = vunpack.c.h.b16 %v4912
    %v4997 = vunpack.c.l.b16 %v4913
    %v4998 = vunpack.c.h.b16 %v4913
    %v4999 = vunpack.c.l.b16 %v4914
    %v5000 = vunpack.c.h.b16 %v4914
    %v5001 = vunpack.c.l.b16 %v4915
    %v5002 = vunpack.c.h.b16 %v4915
    %v5003 = vunpack.c.l.b16 %v4916
    %v5004 = vunpack.c.h.b16 %v4916
    %v5005 = vunpack.c.l.b16 %v4917
    %v5006 = vunpack.c.h.b16 %v4917
    %v5007 = vunpack.c.l.b16 %v4918
    %v5008 = vunpack.c.h.b16 %v4918
    %v5009 = vunpack.c.l.b16 %v4919
    %v5010 = vunpack.c.h.b16 %v4919
    %v5011 = vunpack.c.l.b16 %v4920
    %v5012 = vunpack.c.h.b16 %v4920
    %v5013 = vunpack.c.l.b16 %v4921
    %v5014 = vunpack.c.h.b16 %v4921
    %v5015 = vunpack.c.l.b16 %v4922
    %v5016 = vunpack.c.h.b16 %v4922
    %v5017 = vunpack.c.l.b16 %v4923
    %v5018 = vunpack.c.h.b16 %v4923
    %v5019 = vunpack.c.l.b16 %v4924
    %v5020 = vunpack.c.h.b16 %v4924
    %v5021 = vpack.c.b16 %v4961, %v4957
    %v5022 = vpack.c.b16 %v4962, %v4958
    %v5023 = vpack.c.b16 %v4963, %v4959
    %v5024 = vpack.c.b16 %v4964, %v4960
    %v5025 = vpack.c.b16 %v4969, %v4965
    %v5026 = vpack.c.b16 %v4970, %v4966
    %v5027 = vpack.c.b16 %v4971, %v4967
    %v5028 = vpack.c.b16 %v4972, %v4968
    %v5029 = vpack.c.b16 %v4977, %v4973
    %v5030 = vpack.c.b16 %v4978, %v4974
    %v5031 = vpack.c.b16 %v4979, %v4975
    %v5032 = vpack.c.b16 %v4980, %v4976
    %v5033 = vpack.c.b16 %v4985, %v4981
    %v5034 = vpack.c.b16 %v4986, %v4982
    %v5035 = vpack.c.b16 %v4987, %v4983
    %v5036 = vpack.c.b16 %v4988, %v4984
    %v5037 = vpack.c.b16 %v4993, %v4989
    %v5038 = vpack.c.b16 %v4994, %v4990
    %v5039 = vpack.c.b16 %v4995, %v4991
    %v5040 = vpack.c.b16 %v4996, %v4992
    %v5041 = vpack.c.b16 %v5001, %v4997
    %v5042 = vpack.c.b16 %v5002, %v4998
    %v5043 = vpack.c.b16 %v5003, %v4999
    %v5044 = vpack.c.b16 %v5004, %v5000
    %v5045 = vpack.c.b16 %v5009, %v5005
    %v5046 = vpack.c.b16 %v5010, %v5006
    %v5047 = vpack.c.b16 %v5011, %v5007
    %v5048 = vpack.c.b16 %v5012, %v5008
    %v5049 = vpack.c.b16 %v5017, %v5013
    %v5050 = vpack.c.b16 %v5018, %v5014
    %v5051 = vpack.c.b16 %v5019, %v5015
    %v5052 = vpack.c.b16 %v5020, %v5016
    %5085 = vmatprep.subr.bf16.mxu0 0
    %5086 = vmatpush1.bf16.msra.mxu0 %v2690
    %5087 = vmatprep.subr.bf16.mxu0 0
    %5088 = vmatpush1.bf16.msra.mxu0 %v2681
    %5089 = vmatprep.subr.bf16.mxu0 0
    %5090 = vmatpush1.bf16.msra.mxu0 %v2672
    %5091 = vmatprep.subr.bf16.mxu0 0
    %5092 = vmatpush1.bf16.msra.mxu0 %v2663
    %5093 = vmatprep.subr.bf16.mxu0 0
    %5094 = vmatpush1.bf16.msra.mxu0 %v2654
    %5095 = vmatprep.subr.bf16.mxu0 0
    %5096 = vmatpush1.bf16.msra.mxu0 %v2645
    %5097 = vmatprep.subr.bf16.mxu0 0
    %5098 = vmatpush1.bf16.msra.mxu0 %v2636
    %5099 = vmatprep.subr.bf16.mxu0 0
    %5100 = vmatpush1.bf16.msra.mxu0 %v2627
    %5101 = vmatprep.subr.bf16.mxu0 0
    %5102 = vmatpush2.bf16.msra.mxu0 %v2762
    %5103 = vmatprep.subr.bf16.mxu0 0
    %5104 = vmatpush2.bf16.msra.mxu0 %v2753
    %5105 = vmatprep.subr.bf16.mxu0 0
    %5106 = vmatpush2.bf16.msra.mxu0 %v2744
    %5107 = vmatprep.subr.bf16.mxu0 0
    %5108 = vmatpush2.bf16.msra.mxu0 %v2735
    %5109 = vmatprep.subr.bf16.mxu0 0
    %5110 = vmatpush2.bf16.msra.mxu0 %v2726
    %5111 = vmatprep.subr.bf16.mxu0 0
    %5112 = vmatpush2.bf16.msra.mxu0 %v2717
    %5113 = vmatprep.subr.bf16.mxu0 0
    %5114 = vmatpush2.bf16.msra.mxu0 %v2708
    %5115 = vmatprep.subr.bf16.mxu0 0
    %5116 = vmatpush2.bf16.msra.mxu0 %v2699
    %5117 = vmatprep.mubr.bf16.mxu0 %v5022
    %5118 = vmatmul.mubr.bf16.gmra.mxu0 %v5021
    %v5119 = vpop.f32.mrf.mxu0
    %v5120 = vadd.f32 0.0, %v5119
    %v5121 = vpop.f32.mrf.mxu0
    %v5122 = vpop.f32.mrf.mxu0
    %v5123 = vadd.f32 0.0, %v5122
    %v5124 = vpop.f32.mrf.mxu0
    %5125 = vmatprep.mubr.bf16.mxu0 %v5026
    %5126 = vmatmul.mubr.bf16.gmra.mxu0 %v5025
    %v5127 = vpop.f32.mrf.mxu0
    %v5128 = vadd.f32 0.0, %v5127
    %v5129 = vpop.f32.mrf.mxu0
    %v5130 = vpop.f32.mrf.mxu0
    %v5131 = vadd.f32 0.0, %v5130
    %v5132 = vpop.f32.mrf.mxu0
    %5133 = vmatprep.mubr.bf16.mxu0 %v5030
    %5134 = vmatmul.mubr.bf16.gmra.mxu0 %v5029
    %v5135 = vpop.f32.mrf.mxu0
    %v5136 = vadd.f32 0.0, %v5135
    %v5137 = vpop.f32.mrf.mxu0
    %v5138 = vpop.f32.mrf.mxu0
    %v5139 = vadd.f32 0.0, %v5138
    %v5140 = vpop.f32.mrf.mxu0
    %5141 = vmatprep.mubr.bf16.mxu0 %v5034
    %5142 = vmatmul.mubr.bf16.gmra.mxu0 %v5033
    %v5143 = vpop.f32.mrf.mxu0
    %v5144 = vadd.f32 0.0, %v5143
    %v5145 = vpop.f32.mrf.mxu0
    %v5146 = vpop.f32.mrf.mxu0
    %v5147 = vadd.f32 0.0, %v5146
    %v5148 = vpop.f32.mrf.mxu0
    %5149 = vmatprep.mubr.bf16.mxu0 %v5038
    %5150 = vmatmul.mubr.bf16.gmra.mxu0 %v5037
    %v5151 = vpop.f32.mrf.mxu0
    %v5152 = vadd.f32 0.0, %v5151
    %v5153 = vpop.f32.mrf.mxu0
    %v5154 = vpop.f32.mrf.mxu0
    %v5155 = vadd.f32 0.0, %v5154
    %v5156 = vpop.f32.mrf.mxu0
    %5157 = vmatprep.mubr.bf16.mxu0 %v5042
    %5158 = vmatmul.mubr.bf16.gmra.mxu0 %v5041
    %v5159 = vpop.f32.mrf.mxu0
    %v5160 = vadd.f32 0.0, %v5159
    %v5161 = vpop.f32.mrf.mxu0
    %v5162 = vpop.f32.mrf.mxu0
    %v5163 = vadd.f32 0.0, %v5162
    %v5164 = vpop.f32.mrf.mxu0
    %5165 = vmatprep.mubr.bf16.mxu0 %v5046
    %5166 = vmatmul.mubr.bf16.gmra.mxu0 %v5045
    %v5167 = vpop.f32.mrf.mxu0
    %v5168 = vadd.f32 0.0, %v5167
    %v5169 = vpop.f32.mrf.mxu0
    %v5170 = vpop.f32.mrf.mxu0
    %v5171 = vadd.f32 0.0, %v5170
    %v5172 = vpop.f32.mrf.mxu0
    %5173 = vmatprep.mubr.bf16.mxu0 %v5050
    %5174 = vmatmul.mubr.bf16.gmra.mxu0 %v5049
    %v5175 = vpop.f32.mrf.mxu0
    %v5176 = vadd.f32 0.0, %v5175
    %v5177 = vpop.f32.mrf.mxu0
    %v5178 = vpop.f32.mrf.mxu0
    %v5179 = vadd.f32 0.0, %v5178
    %v5180 = vpop.f32.mrf.mxu0
    %5181 = vdwg.mxu0
    %5182 = vmatprep.subr.bf16.mxu0 0
    %5183 = vmatpush1.bf16.msra.mxu0 %v2834
    %5184 = vmatprep.subr.bf16.mxu0 0
    %5185 = vmatpush1.bf16.msra.mxu0 %v2825
    %5186 = vmatprep.subr.bf16.mxu0 0
    %5187 = vmatpush1.bf16.msra.mxu0 %v2816
    %5188 = vmatprep.subr.bf16.mxu0 0
    %5189 = vmatpush1.bf16.msra.mxu0 %v2807
    %5190 = vmatprep.subr.bf16.mxu0 0
    %5191 = vmatpush1.bf16.msra.mxu0 %v2798
    %5192 = vmatprep.subr.bf16.mxu0 0
    %5193 = vmatpush1.bf16.msra.mxu0 %v2789
    %5194 = vmatprep.subr.bf16.mxu0 0
    %5195 = vmatpush1.bf16.msra.mxu0 %v2780
    %5196 = vmatprep.subr.bf16.mxu0 0
    %5197 = vmatpush1.bf16.msra.mxu0 %v2771
    %5198 = vmatprep.subr.bf16.mxu0 0
    %5199 = vmatpush2.bf16.msra.mxu0 %v2906
    %5200 = vmatprep.subr.bf16.mxu0 0
    %5201 = vmatpush2.bf16.msra.mxu0 %v2897
    %5202 = vmatprep.subr.bf16.mxu0 0
    %5203 = vmatpush2.bf16.msra.mxu0 %v2888
    %5204 = vmatprep.subr.bf16.mxu0 0
    %5205 = vmatpush2.bf16.msra.mxu0 %v2879
    %5206 = vmatprep.subr.bf16.mxu0 0
    %5207 = vmatpush2.bf16.msra.mxu0 %v2870
    %5208 = vmatprep.subr.bf16.mxu0 0
    %5209 = vmatpush2.bf16.msra.mxu0 %v2861
    %5210 = vmatprep.subr.bf16.mxu0 0
    %5211 = vmatpush2.bf16.msra.mxu0 %v2852
    %5212 = vmatprep.subr.bf16.mxu0 0
    %5213 = vmatpush2.bf16.msra.mxu0 %v2843
    %5214 = vmatprep.mubr.bf16.mxu0 %v5024
    %5215 = vmatmul.mubr.bf16.gmra.mxu0 %v5023
    %v5216 = vpop.f32.mrf.mxu0
    %v5217 = vadd.f32 %v5120, %v5216
    %v5218 = vpop.f32.mrf.mxu0
    %v5219 = vpop.f32.mrf.mxu0
    %v5220 = vadd.f32 %v5123, %v5219
    %v5221 = vpop.f32.mrf.mxu0
    %5222 = vmatprep.mubr.bf16.mxu0 %v5028
    %5223 = vmatmul.mubr.bf16.gmra.mxu0 %v5027
    %v5224 = vpop.f32.mrf.mxu0
    %v5225 = vadd.f32 %v5128, %v5224
    %v5226 = vpop.f32.mrf.mxu0
    %v5227 = vpop.f32.mrf.mxu0
    %v5228 = vadd.f32 %v5131, %v5227
    %v5229 = vpop.f32.mrf.mxu0
    %5230 = vmatprep.mubr.bf16.mxu0 %v5032
    %5231 = vmatmul.mubr.bf16.gmra.mxu0 %v5031
    %v5232 = vpop.f32.mrf.mxu0
    %v5233 = vadd.f32 %v5136, %v5232
    %v5234 = vpop.f32.mrf.mxu0
    %v5235 = vpop.f32.mrf.mxu0
    %v5236 = vadd.f32 %v5139, %v5235
    %v5237 = vpop.f32.mrf.mxu0
    %5238 = vmatprep.mubr.bf16.mxu0 %v5036
    %5239 = vmatmul.mubr.bf16.gmra.mxu0 %v5035
    %v5240 = vpop.f32.mrf.mxu0
    %v5241 = vadd.f32 %v5144, %v5240
    %v5242 = vpop.f32.mrf.mxu0
    %v5243 = vpop.f32.mrf.mxu0
    %v5244 = vadd.f32 %v5147, %v5243
    %v5245 = vpop.f32.mrf.mxu0
    %5246 = vmatprep.mubr.bf16.mxu0 %v5040
    %5247 = vmatmul.mubr.bf16.gmra.mxu0 %v5039
    %v5248 = vpop.f32.mrf.mxu0
    %v5249 = vadd.f32 %v5152, %v5248
    %v5250 = vpop.f32.mrf.mxu0
    %v5251 = vpop.f32.mrf.mxu0
    %v5252 = vadd.f32 %v5155, %v5251
    %v5253 = vpop.f32.mrf.mxu0
    %5254 = vmatprep.mubr.bf16.mxu0 %v5044
    %5255 = vmatmul.mubr.bf16.gmra.mxu0 %v5043
    %v5256 = vpop.f32.mrf.mxu0
    %v5257 = vadd.f32 %v5160, %v5256
    %v5258 = vpop.f32.mrf.mxu0
    %v5259 = vpop.f32.mrf.mxu0
    %v5260 = vadd.f32 %v5163, %v5259
    %v5261 = vpop.f32.mrf.mxu0
    %5262 = vmatprep.mubr.bf16.mxu0 %v5048
    %5263 = vmatmul.mubr.bf16.gmra.mxu0 %v5047
    %v5264 = vpop.f32.mrf.mxu0
    %v5265 = vadd.f32 %v5168, %v5264
    %v5266 = vpop.f32.mrf.mxu0
    %v5267 = vpop.f32.mrf.mxu0
    %v5268 = vadd.f32 %v5171, %v5267
    %v5269 = vpop.f32.mrf.mxu0
    %5270 = vmatprep.mubr.bf16.mxu0 %v5052
    %5271 = vmatmul.mubr.bf16.gmra.mxu0 %v5051
    %v5272 = vpop.f32.mrf.mxu0
    %v5273 = vadd.f32 %v5176, %v5272
    %v5274 = vpop.f32.mrf.mxu0
    %v5275 = vpop.f32.mrf.mxu0
    %v5276 = vadd.f32 %v5179, %v5275
    %v5277 = vpop.f32.mrf.mxu0
    %5278 = vdwg.mxu0
    %v5279 = vadd.f32 %v4876, %v5217
    %v5280 = vadd.f32 %v4877, %v5220
    %v5281 = vadd.f32 %v4878, %v5225
    %v5282 = vadd.f32 %v4879, %v5228
    %v5283 = vadd.f32 %v4880, %v5233
    %v5284 = vadd.f32 %v4881, %v5236
    %v5285 = vadd.f32 %v4882, %v5241
    %v5286 = vadd.f32 %v4883, %v5244
    %v5287 = vadd.f32 %v4884, %v5249
    %v5288 = vadd.f32 %v4885, %v5252
    %v5289 = vadd.f32 %v4886, %v5257
    %v5290 = vadd.f32 %v4887, %v5260
    %v5291 = vadd.f32 %v4888, %v5265
    %v5292 = vadd.f32 %v4889, %v5268
    %v5293 = vadd.f32 %v4890, %v5273
    %v5294 = vadd.f32 %v4891, %v5276
    %s5295 = scalar_lea.vmem [#allocation4], 1536
    %v5296 = vld [vmem:[%s5295] sm:$0xff]
    %v5297 = vld [vmem:[%s5295 + $0x8] sm:$0xff]
    %v5298 = vld [vmem:[%s5295 + $0x10] sm:$0xff]
    %v5299 = vld [vmem:[%s5295 + $0x18] sm:$0xff]
    %v5300 = vld [vmem:[%s5295 + $0x20] sm:$0xff]
    %v5301 = vld [vmem:[%s5295 + $0x28] sm:$0xff]
    %v5302 = vld [vmem:[%s5295 + $0x30] sm:$0xff]
    %v5303 = vld [vmem:[%s5295 + $0x38] sm:$0xff]
    %v5304 = vld [vmem:[%s5295 + $0x40] sm:$0xff]
    %v5305 = vld [vmem:[%s5295 + $0x48] sm:$0xff]
    %v5306 = vld [vmem:[%s5295 + $0x50] sm:$0xff]
    %v5307 = vld [vmem:[%s5295 + $0x58] sm:$0xff]
    %v5308 = vld [vmem:[%s5295 + $0x60] sm:$0xff]
    %v5309 = vld [vmem:[%s5295 + $0x68] sm:$0xff]
    %v5310 = vld [vmem:[%s5295 + $0x70] sm:$0xff]
    %v5311 = vld [vmem:[%s5295 + $0x78] sm:$0xff]
    %v5312 = vld [vmem:[%s5295 + $0x80] sm:$0xff]
    %v5313 = vld [vmem:[%s5295 + $0x88] sm:$0xff]
    %v5314 = vld [vmem:[%s5295 + $0x90] sm:$0xff]
    %v5315 = vld [vmem:[%s5295 + $0x98] sm:$0xff]
    %v5316 = vld [vmem:[%s5295 + $0xa0] sm:$0xff]
    %v5317 = vld [vmem:[%s5295 + $0xa8] sm:$0xff]
    %v5318 = vld [vmem:[%s5295 + $0xb0] sm:$0xff]
    %v5319 = vld [vmem:[%s5295 + $0xb8] sm:$0xff]
    %v5320 = vld [vmem:[%s5295 + $0xc0] sm:$0xff]
    %v5321 = vld [vmem:[%s5295 + $0xc8] sm:$0xff]
    %v5322 = vld [vmem:[%s5295 + $0xd0] sm:$0xff]
    %v5323 = vld [vmem:[%s5295 + $0xd8] sm:$0xff]
    %v5324 = vld [vmem:[%s5295 + $0xe0] sm:$0xff]
    %v5325 = vld [vmem:[%s5295 + $0xe8] sm:$0xff]
    %v5326 = vld [vmem:[%s5295 + $0xf0] sm:$0xff]
    %v5327 = vld [vmem:[%s5295 + $0xf8] sm:$0xff]
    %v5360 = vunpack.c.l.b16 %v5296
    %v5361 = vunpack.c.h.b16 %v5296
    %v5362 = vunpack.c.l.b16 %v5297
    %v5363 = vunpack.c.h.b16 %v5297
    %v5364 = vunpack.c.l.b16 %v5298
    %v5365 = vunpack.c.h.b16 %v5298
    %v5366 = vunpack.c.l.b16 %v5299
    %v5367 = vunpack.c.h.b16 %v5299
    %v5368 = vunpack.c.l.b16 %v5300
    %v5369 = vunpack.c.h.b16 %v5300
    %v5370 = vunpack.c.l.b16 %v5301
    %v5371 = vunpack.c.h.b16 %v5301
    %v5372 = vunpack.c.l.b16 %v5302
    %v5373 = vunpack.c.h.b16 %v5302
    %v5374 = vunpack.c.l.b16 %v5303
    %v5375 = vunpack.c.h.b16 %v5303
    %v5376 = vunpack.c.l.b16 %v5304
    %v5377 = vunpack.c.h.b16 %v5304
    %v5378 = vunpack.c.l.b16 %v5305
    %v5379 = vunpack.c.h.b16 %v5305
    %v5380 = vunpack.c.l.b16 %v5306
    %v5381 = vunpack.c.h.b16 %v5306
    %v5382 = vunpack.c.l.b16 %v5307
    %v5383 = vunpack.c.h.b16 %v5307
    %v5384 = vunpack.c.l.b16 %v5308
    %v5385 = vunpack.c.h.b16 %v5308
    %v5386 = vunpack.c.l.b16 %v5309
    %v5387 = vunpack.c.h.b16 %v5309
    %v5388 = vunpack.c.l.b16 %v5310
    %v5389 = vunpack.c.h.b16 %v5310
    %v5390 = vunpack.c.l.b16 %v5311
    %v5391 = vunpack.c.h.b16 %v5311
    %v5392 = vunpack.c.l.b16 %v5312
    %v5393 = vunpack.c.h.b16 %v5312
    %v5394 = vunpack.c.l.b16 %v5313
    %v5395 = vunpack.c.h.b16 %v5313
    %v5396 = vunpack.c.l.b16 %v5314
    %v5397 = vunpack.c.h.b16 %v5314
    %v5398 = vunpack.c.l.b16 %v5315
    %v5399 = vunpack.c.h.b16 %v5315
    %v5400 = vunpack.c.l.b16 %v5316
    %v5401 = vunpack.c.h.b16 %v5316
    %v5402 = vunpack.c.l.b16 %v5317
    %v5403 = vunpack.c.h.b16 %v5317
    %v5404 = vunpack.c.l.b16 %v5318
    %v5405 = vunpack.c.h.b16 %v5318
    %v5406 = vunpack.c.l.b16 %v5319
    %v5407 = vunpack.c.h.b16 %v5319
    %v5408 = vunpack.c.l.b16 %v5320
    %v5409 = vunpack.c.h.b16 %v5320
    %v5410 = vunpack.c.l.b16 %v5321
    %v5411 = vunpack.c.h.b16 %v5321
    %v5412 = vunpack.c.l.b16 %v5322
    %v5413 = vunpack.c.h.b16 %v5322
    %v5414 = vunpack.c.l.b16 %v5323
    %v5415 = vunpack.c.h.b16 %v5323
    %v5416 = vunpack.c.l.b16 %v5324
    %v5417 = vunpack.c.h.b16 %v5324
    %v5418 = vunpack.c.l.b16 %v5325
    %v5419 = vunpack.c.h.b16 %v5325
    %v5420 = vunpack.c.l.b16 %v5326
    %v5421 = vunpack.c.h.b16 %v5326
    %v5422 = vunpack.c.l.b16 %v5327
    %v5423 = vunpack.c.h.b16 %v5327
    %v5424 = vpack.c.b16 %v5364, %v5360
    %v5425 = vpack.c.b16 %v5365, %v5361
    %v5426 = vpack.c.b16 %v5366, %v5362
    %v5427 = vpack.c.b16 %v5367, %v5363
    %v5428 = vpack.c.b16 %v5372, %v5368
    %v5429 = vpack.c.b16 %v5373, %v5369
    %v5430 = vpack.c.b16 %v5374, %v5370
    %v5431 = vpack.c.b16 %v5375, %v5371
    %v5432 = vpack.c.b16 %v5380, %v5376
    %v5433 = vpack.c.b16 %v5381, %v5377
    %v5434 = vpack.c.b16 %v5382, %v5378
    %v5435 = vpack.c.b16 %v5383, %v5379
    %v5436 = vpack.c.b16 %v5388, %v5384
    %v5437 = vpack.c.b16 %v5389, %v5385
    %v5438 = vpack.c.b16 %v5390, %v5386
    %v5439 = vpack.c.b16 %v5391, %v5387
    %v5440 = vpack.c.b16 %v5396, %v5392
    %v5441 = vpack.c.b16 %v5397, %v5393
    %v5442 = vpack.c.b16 %v5398, %v5394
    %v5443 = vpack.c.b16 %v5399, %v5395
    %v5444 = vpack.c.b16 %v5404, %v5400
    %v5445 = vpack.c.b16 %v5405, %v5401
    %v5446 = vpack.c.b16 %v5406, %v5402
    %v5447 = vpack.c.b16 %v5407, %v5403
    %v5448 = vpack.c.b16 %v5412, %v5408
    %v5449 = vpack.c.b16 %v5413, %v5409
    %v5450 = vpack.c.b16 %v5414, %v5410
    %v5451 = vpack.c.b16 %v5415, %v5411
    %v5452 = vpack.c.b16 %v5420, %v5416
    %v5453 = vpack.c.b16 %v5421, %v5417
    %v5454 = vpack.c.b16 %v5422, %v5418
    %v5455 = vpack.c.b16 %v5423, %v5419
    %5488 = vmatprep.subr.bf16.mxu0 0
    %5489 = vmatpush1.bf16.msra.mxu0 %v2691
    %5490 = vmatprep.subr.bf16.mxu0 0
    %5491 = vmatpush1.bf16.msra.mxu0 %v2682
    %5492 = vmatprep.subr.bf16.mxu0 0
    %5493 = vmatpush1.bf16.msra.mxu0 %v2673
    %5494 = vmatprep.subr.bf16.mxu0 0
    %5495 = vmatpush1.bf16.msra.mxu0 %v2664
    %5496 = vmatprep.subr.bf16.mxu0 0
    %5497 = vmatpush1.bf16.msra.mxu0 %v2655
    %5498 = vmatprep.subr.bf16.mxu0 0
    %5499 = vmatpush1.bf16.msra.mxu0 %v2646
    %5500 = vmatprep.subr.bf16.mxu0 0
    %5501 = vmatpush1.bf16.msra.mxu0 %v2637
    %5502 = vmatprep.subr.bf16.mxu0 0
    %5503 = vmatpush1.bf16.msra.mxu0 %v2628
    %5504 = vmatprep.subr.bf16.mxu0 0
    %5505 = vmatpush2.bf16.msra.mxu0 %v2763
    %5506 = vmatprep.subr.bf16.mxu0 0
    %5507 = vmatpush2.bf16.msra.mxu0 %v2754
    %5508 = vmatprep.subr.bf16.mxu0 0
    %5509 = vmatpush2.bf16.msra.mxu0 %v2745
    %5510 = vmatprep.subr.bf16.mxu0 0
    %5511 = vmatpush2.bf16.msra.mxu0 %v2736
    %5512 = vmatprep.subr.bf16.mxu0 0
    %5513 = vmatpush2.bf16.msra.mxu0 %v2727
    %5514 = vmatprep.subr.bf16.mxu0 0
    %5515 = vmatpush2.bf16.msra.mxu0 %v2718
    %5516 = vmatprep.subr.bf16.mxu0 0
    %5517 = vmatpush2.bf16.msra.mxu0 %v2709
    %5518 = vmatprep.subr.bf16.mxu0 0
    %5519 = vmatpush2.bf16.msra.mxu0 %v2700
    %5520 = vmatprep.mubr.bf16.mxu0 %v5425
    %5521 = vmatmul.mubr.bf16.gmra.mxu0 %v5424
    %v5522 = vpop.f32.mrf.mxu0
    %v5523 = vadd.f32 0.0, %v5522
    %v5524 = vpop.f32.mrf.mxu0
    %v5525 = vpop.f32.mrf.mxu0
    %v5526 = vadd.f32 0.0, %v5525
    %v5527 = vpop.f32.mrf.mxu0
    %5528 = vmatprep.mubr.bf16.mxu0 %v5429
    %5529 = vmatmul.mubr.bf16.gmra.mxu0 %v5428
    %v5530 = vpop.f32.mrf.mxu0
    %v5531 = vadd.f32 0.0, %v5530
    %v5532 = vpop.f32.mrf.mxu0
    %v5533 = vpop.f32.mrf.mxu0
    %v5534 = vadd.f32 0.0, %v5533
    %v5535 = vpop.f32.mrf.mxu0
    %5536 = vmatprep.mubr.bf16.mxu0 %v5433
    %5537 = vmatmul.mubr.bf16.gmra.mxu0 %v5432
    %v5538 = vpop.f32.mrf.mxu0
    %v5539 = vadd.f32 0.0, %v5538
    %v5540 = vpop.f32.mrf.mxu0
    %v5541 = vpop.f32.mrf.mxu0
    %v5542 = vadd.f32 0.0, %v5541
    %v5543 = vpop.f32.mrf.mxu0
    %5544 = vmatprep.mubr.bf16.mxu0 %v5437
    %5545 = vmatmul.mubr.bf16.gmra.mxu0 %v5436
    %v5546 = vpop.f32.mrf.mxu0
    %v5547 = vadd.f32 0.0, %v5546
    %v5548 = vpop.f32.mrf.mxu0
    %v5549 = vpop.f32.mrf.mxu0
    %v5550 = vadd.f32 0.0, %v5549
    %v5551 = vpop.f32.mrf.mxu0
    %5552 = vmatprep.mubr.bf16.mxu0 %v5441
    %5553 = vmatmul.mubr.bf16.gmra.mxu0 %v5440
    %v5554 = vpop.f32.mrf.mxu0
    %v5555 = vadd.f32 0.0, %v5554
    %v5556 = vpop.f32.mrf.mxu0
    %v5557 = vpop.f32.mrf.mxu0
    %v5558 = vadd.f32 0.0, %v5557
    %v5559 = vpop.f32.mrf.mxu0
    %5560 = vmatprep.mubr.bf16.mxu0 %v5445
    %5561 = vmatmul.mubr.bf16.gmra.mxu0 %v5444
    %v5562 = vpop.f32.mrf.mxu0
    %v5563 = vadd.f32 0.0, %v5562
    %v5564 = vpop.f32.mrf.mxu0
    %v5565 = vpop.f32.mrf.mxu0
    %v5566 = vadd.f32 0.0, %v5565
    %v5567 = vpop.f32.mrf.mxu0
    %5568 = vmatprep.mubr.bf16.mxu0 %v5449
    %5569 = vmatmul.mubr.bf16.gmra.mxu0 %v5448
    %v5570 = vpop.f32.mrf.mxu0
    %v5571 = vadd.f32 0.0, %v5570
    %v5572 = vpop.f32.mrf.mxu0
    %v5573 = vpop.f32.mrf.mxu0
    %v5574 = vadd.f32 0.0, %v5573
    %v5575 = vpop.f32.mrf.mxu0
    %5576 = vmatprep.mubr.bf16.mxu0 %v5453
    %5577 = vmatmul.mubr.bf16.gmra.mxu0 %v5452
    %v5578 = vpop.f32.mrf.mxu0
    %v5579 = vadd.f32 0.0, %v5578
    %v5580 = vpop.f32.mrf.mxu0
    %v5581 = vpop.f32.mrf.mxu0
    %v5582 = vadd.f32 0.0, %v5581
    %v5583 = vpop.f32.mrf.mxu0
    %5584 = vdwg.mxu0
    %5585 = vmatprep.subr.bf16.mxu0 0
    %5586 = vmatpush1.bf16.msra.mxu0 %v2835
    %5587 = vmatprep.subr.bf16.mxu0 0
    %5588 = vmatpush1.bf16.msra.mxu0 %v2826
    %5589 = vmatprep.subr.bf16.mxu0 0
    %5590 = vmatpush1.bf16.msra.mxu0 %v2817
    %5591 = vmatprep.subr.bf16.mxu0 0
    %5592 = vmatpush1.bf16.msra.mxu0 %v2808
    %5593 = vmatprep.subr.bf16.mxu0 0
    %5594 = vmatpush1.bf16.msra.mxu0 %v2799
    %5595 = vmatprep.subr.bf16.mxu0 0
    %5596 = vmatpush1.bf16.msra.mxu0 %v2790
    %5597 = vmatprep.subr.bf16.mxu0 0
    %5598 = vmatpush1.bf16.msra.mxu0 %v2781
    %5599 = vmatprep.subr.bf16.mxu0 0
    %5600 = vmatpush1.bf16.msra.mxu0 %v2772
    %5601 = vmatprep.subr.bf16.mxu0 0
    %5602 = vmatpush2.bf16.msra.mxu0 %v2907
    %5603 = vmatprep.subr.bf16.mxu0 0
    %5604 = vmatpush2.bf16.msra.mxu0 %v2898
    %5605 = vmatprep.subr.bf16.mxu0 0
    %5606 = vmatpush2.bf16.msra.mxu0 %v2889
    %5607 = vmatprep.subr.bf16.mxu0 0
    %5608 = vmatpush2.bf16.msra.mxu0 %v2880
    %5609 = vmatprep.subr.bf16.mxu0 0
    %5610 = vmatpush2.bf16.msra.mxu0 %v2871
    %5611 = vmatprep.subr.bf16.mxu0 0
    %5612 = vmatpush2.bf16.msra.mxu0 %v2862
    %5613 = vmatprep.subr.bf16.mxu0 0
    %5614 = vmatpush2.bf16.msra.mxu0 %v2853
    %5615 = vmatprep.subr.bf16.mxu0 0
    %5616 = vmatpush2.bf16.msra.mxu0 %v2844
    %5617 = vmatprep.mubr.bf16.mxu0 %v5427
    %5618 = vmatmul.mubr.bf16.gmra.mxu0 %v5426
    %v5619 = vpop.f32.mrf.mxu0
    %v5620 = vadd.f32 %v5523, %v5619
    %v5621 = vpop.f32.mrf.mxu0
    %v5622 = vpop.f32.mrf.mxu0
    %v5623 = vadd.f32 %v5526, %v5622
    %v5624 = vpop.f32.mrf.mxu0
    %5625 = vmatprep.mubr.bf16.mxu0 %v5431
    %5626 = vmatmul.mubr.bf16.gmra.mxu0 %v5430
    %v5627 = vpop.f32.mrf.mxu0
    %v5628 = vadd.f32 %v5531, %v5627
    %v5629 = vpop.f32.mrf.mxu0
    %v5630 = vpop.f32.mrf.mxu0
    %v5631 = vadd.f32 %v5534, %v5630
    %v5632 = vpop.f32.mrf.mxu0
    %5633 = vmatprep.mubr.bf16.mxu0 %v5435
    %5634 = vmatmul.mubr.bf16.gmra.mxu0 %v5434
    %v5635 = vpop.f32.mrf.mxu0
    %v5636 = vadd.f32 %v5539, %v5635
    %v5637 = vpop.f32.mrf.mxu0
    %v5638 = vpop.f32.mrf.mxu0
    %v5639 = vadd.f32 %v5542, %v5638
    %v5640 = vpop.f32.mrf.mxu0
    %5641 = vmatprep.mubr.bf16.mxu0 %v5439
    %5642 = vmatmul.mubr.bf16.gmra.mxu0 %v5438
    %v5643 = vpop.f32.mrf.mxu0
    %v5644 = vadd.f32 %v5547, %v5643
    %v5645 = vpop.f32.mrf.mxu0
    %v5646 = vpop.f32.mrf.mxu0
    %v5647 = vadd.f32 %v5550, %v5646
    %v5648 = vpop.f32.mrf.mxu0
    %5649 = vmatprep.mubr.bf16.mxu0 %v5443
    %5650 = vmatmul.mubr.bf16.gmra.mxu0 %v5442
    %v5651 = vpop.f32.mrf.mxu0
    %v5652 = vadd.f32 %v5555, %v5651
    %v5653 = vpop.f32.mrf.mxu0
    %v5654 = vpop.f32.mrf.mxu0
    %v5655 = vadd.f32 %v5558, %v5654
    %v5656 = vpop.f32.mrf.mxu0
    %5657 = vmatprep.mubr.bf16.mxu0 %v5447
    %5658 = vmatmul.mubr.bf16.gmra.mxu0 %v5446
    %v5659 = vpop.f32.mrf.mxu0
    %v5660 = vadd.f32 %v5563, %v5659
    %v5661 = vpop.f32.mrf.mxu0
    %v5662 = vpop.f32.mrf.mxu0
    %v5663 = vadd.f32 %v5566, %v5662
    %v5664 = vpop.f32.mrf.mxu0
    %5665 = vmatprep.mubr.bf16.mxu0 %v5451
    %5666 = vmatmul.mubr.bf16.gmra.mxu0 %v5450
    %v5667 = vpop.f32.mrf.mxu0
    %v5668 = vadd.f32 %v5571, %v5667
    %v5669 = vpop.f32.mrf.mxu0
    %v5670 = vpop.f32.mrf.mxu0
    %v5671 = vadd.f32 %v5574, %v5670
    %v5672 = vpop.f32.mrf.mxu0
    %5673 = vmatprep.mubr.bf16.mxu0 %v5455
    %5674 = vmatmul.mubr.bf16.gmra.mxu0 %v5454
    %v5675 = vpop.f32.mrf.mxu0
    %v5676 = vadd.f32 %v5579, %v5675
    %v5677 = vpop.f32.mrf.mxu0
    %v5678 = vpop.f32.mrf.mxu0
    %v5679 = vadd.f32 %v5582, %v5678
    %v5680 = vpop.f32.mrf.mxu0
    %5681 = vdwg.mxu0
    %v5682 = vadd.f32 %v5279, %v5620
    %v5683 = vadd.f32 %v5280, %v5623
    %v5684 = vadd.f32 %v5281, %v5628
    %v5685 = vadd.f32 %v5282, %v5631
    %v5686 = vadd.f32 %v5283, %v5636
    %v5687 = vadd.f32 %v5284, %v5639
    %v5688 = vadd.f32 %v5285, %v5644
    %v5689 = vadd.f32 %v5286, %v5647
    %v5690 = vadd.f32 %v5287, %v5652
    %v5691 = vadd.f32 %v5288, %v5655
    %v5692 = vadd.f32 %v5289, %v5660
    %v5693 = vadd.f32 %v5290, %v5663
    %v5694 = vadd.f32 %v5291, %v5668
    %v5695 = vadd.f32 %v5292, %v5671
    %v5696 = vadd.f32 %v5293, %v5676
    %v5697 = vadd.f32 %v5294, %v5679
    %s5698 = scalar_lea.vmem [#allocation4], 1792
    %v5699 = vld [vmem:[%s5698] sm:$0xff]
    %v5700 = vld [vmem:[%s5698 + $0x8] sm:$0xff]
    %v5701 = vld [vmem:[%s5698 + $0x10] sm:$0xff]
    %v5702 = vld [vmem:[%s5698 + $0x18] sm:$0xff]
    %v5703 = vld [vmem:[%s5698 + $0x20] sm:$0xff]
    %v5704 = vld [vmem:[%s5698 + $0x28] sm:$0xff]
    %v5705 = vld [vmem:[%s5698 + $0x30] sm:$0xff]
    %v5706 = vld [vmem:[%s5698 + $0x38] sm:$0xff]
    %v5707 = vld [vmem:[%s5698 + $0x40] sm:$0xff]
    %v5708 = vld [vmem:[%s5698 + $0x48] sm:$0xff]
    %v5709 = vld [vmem:[%s5698 + $0x50] sm:$0xff]
    %v5710 = vld [vmem:[%s5698 + $0x58] sm:$0xff]
    %v5711 = vld [vmem:[%s5698 + $0x60] sm:$0xff]
    %v5712 = vld [vmem:[%s5698 + $0x68] sm:$0xff]
    %v5713 = vld [vmem:[%s5698 + $0x70] sm:$0xff]
    %v5714 = vld [vmem:[%s5698 + $0x78] sm:$0xff]
    %v5715 = vld [vmem:[%s5698 + $0x80] sm:$0xff]
    %v5716 = vld [vmem:[%s5698 + $0x88] sm:$0xff]
    %v5717 = vld [vmem:[%s5698 + $0x90] sm:$0xff]
    %v5718 = vld [vmem:[%s5698 + $0x98] sm:$0xff]
    %v5719 = vld [vmem:[%s5698 + $0xa0] sm:$0xff]
    %v5720 = vld [vmem:[%s5698 + $0xa8] sm:$0xff]
    %v5721 = vld [vmem:[%s5698 + $0xb0] sm:$0xff]
    %v5722 = vld [vmem:[%s5698 + $0xb8] sm:$0xff]
    %v5723 = vld [vmem:[%s5698 + $0xc0] sm:$0xff]
    %v5724 = vld [vmem:[%s5698 + $0xc8] sm:$0xff]
    %v5725 = vld [vmem:[%s5698 + $0xd0] sm:$0xff]
    %v5726 = vld [vmem:[%s5698 + $0xd8] sm:$0xff]
    %v5727 = vld [vmem:[%s5698 + $0xe0] sm:$0xff]
    %v5728 = vld [vmem:[%s5698 + $0xe8] sm:$0xff]
    %v5729 = vld [vmem:[%s5698 + $0xf0] sm:$0xff]
    %v5730 = vld [vmem:[%s5698 + $0xf8] sm:$0xff]
    %v5763 = vunpack.c.l.b16 %v5699
    %v5764 = vunpack.c.h.b16 %v5699
    %v5765 = vunpack.c.l.b16 %v5700
    %v5766 = vunpack.c.h.b16 %v5700
    %v5767 = vunpack.c.l.b16 %v5701
    %v5768 = vunpack.c.h.b16 %v5701
    %v5769 = vunpack.c.l.b16 %v5702
    %v5770 = vunpack.c.h.b16 %v5702
    %v5771 = vunpack.c.l.b16 %v5703
    %v5772 = vunpack.c.h.b16 %v5703
    %v5773 = vunpack.c.l.b16 %v5704
    %v5774 = vunpack.c.h.b16 %v5704
    %v5775 = vunpack.c.l.b16 %v5705
    %v5776 = vunpack.c.h.b16 %v5705
    %v5777 = vunpack.c.l.b16 %v5706
    %v5778 = vunpack.c.h.b16 %v5706
    %v5779 = vunpack.c.l.b16 %v5707
    %v5780 = vunpack.c.h.b16 %v5707
    %v5781 = vunpack.c.l.b16 %v5708
    %v5782 = vunpack.c.h.b16 %v5708
    %v5783 = vunpack.c.l.b16 %v5709
    %v5784 = vunpack.c.h.b16 %v5709
    %v5785 = vunpack.c.l.b16 %v5710
    %v5786 = vunpack.c.h.b16 %v5710
    %v5787 = vunpack.c.l.b16 %v5711
    %v5788 = vunpack.c.h.b16 %v5711
    %v5789 = vunpack.c.l.b16 %v5712
    %v5790 = vunpack.c.h.b16 %v5712
    %v5791 = vunpack.c.l.b16 %v5713
    %v5792 = vunpack.c.h.b16 %v5713
    %v5793 = vunpack.c.l.b16 %v5714
    %v5794 = vunpack.c.h.b16 %v5714
    %v5795 = vunpack.c.l.b16 %v5715
    %v5796 = vunpack.c.h.b16 %v5715
    %v5797 = vunpack.c.l.b16 %v5716
    %v5798 = vunpack.c.h.b16 %v5716
    %v5799 = vunpack.c.l.b16 %v5717
    %v5800 = vunpack.c.h.b16 %v5717
    %v5801 = vunpack.c.l.b16 %v5718
    %v5802 = vunpack.c.h.b16 %v5718
    %v5803 = vunpack.c.l.b16 %v5719
    %v5804 = vunpack.c.h.b16 %v5719
    %v5805 = vunpack.c.l.b16 %v5720
    %v5806 = vunpack.c.h.b16 %v5720
    %v5807 = vunpack.c.l.b16 %v5721
    %v5808 = vunpack.c.h.b16 %v5721
    %v5809 = vunpack.c.l.b16 %v5722
    %v5810 = vunpack.c.h.b16 %v5722
    %v5811 = vunpack.c.l.b16 %v5723
    %v5812 = vunpack.c.h.b16 %v5723
    %v5813 = vunpack.c.l.b16 %v5724
    %v5814 = vunpack.c.h.b16 %v5724
    %v5815 = vunpack.c.l.b16 %v5725
    %v5816 = vunpack.c.h.b16 %v5725
    %v5817 = vunpack.c.l.b16 %v5726
    %v5818 = vunpack.c.h.b16 %v5726
    %v5819 = vunpack.c.l.b16 %v5727
    %v5820 = vunpack.c.h.b16 %v5727
    %v5821 = vunpack.c.l.b16 %v5728
    %v5822 = vunpack.c.h.b16 %v5728
    %v5823 = vunpack.c.l.b16 %v5729
    %v5824 = vunpack.c.h.b16 %v5729
    %v5825 = vunpack.c.l.b16 %v5730
    %v5826 = vunpack.c.h.b16 %v5730
    %v5827 = vpack.c.b16 %v5767, %v5763
    %v5828 = vpack.c.b16 %v5768, %v5764
    %v5829 = vpack.c.b16 %v5769, %v5765
    %v5830 = vpack.c.b16 %v5770, %v5766
    %v5831 = vpack.c.b16 %v5775, %v5771
    %v5832 = vpack.c.b16 %v5776, %v5772
    %v5833 = vpack.c.b16 %v5777, %v5773
    %v5834 = vpack.c.b16 %v5778, %v5774
    %v5835 = vpack.c.b16 %v5783, %v5779
    %v5836 = vpack.c.b16 %v5784, %v5780
    %v5837 = vpack.c.b16 %v5785, %v5781
    %v5838 = vpack.c.b16 %v5786, %v5782
    %v5839 = vpack.c.b16 %v5791, %v5787
    %v5840 = vpack.c.b16 %v5792, %v5788
    %v5841 = vpack.c.b16 %v5793, %v5789
    %v5842 = vpack.c.b16 %v5794, %v5790
    %v5843 = vpack.c.b16 %v5799, %v5795
    %v5844 = vpack.c.b16 %v5800, %v5796
    %v5845 = vpack.c.b16 %v5801, %v5797
    %v5846 = vpack.c.b16 %v5802, %v5798
    %v5847 = vpack.c.b16 %v5807, %v5803
    %v5848 = vpack.c.b16 %v5808, %v5804
    %v5849 = vpack.c.b16 %v5809, %v5805
    %v5850 = vpack.c.b16 %v5810, %v5806
    %v5851 = vpack.c.b16 %v5815, %v5811
    %v5852 = vpack.c.b16 %v5816, %v5812
    %v5853 = vpack.c.b16 %v5817, %v5813
    %v5854 = vpack.c.b16 %v5818, %v5814
    %v5855 = vpack.c.b16 %v5823, %v5819
    %v5856 = vpack.c.b16 %v5824, %v5820
    %v5857 = vpack.c.b16 %v5825, %v5821
    %v5858 = vpack.c.b16 %v5826, %v5822
    %5891 = vmatprep.subr.bf16.mxu0 0
    %5892 = vmatpush1.bf16.msra.mxu0 %v2692
    %5893 = vmatprep.subr.bf16.mxu0 0
    %5894 = vmatpush1.bf16.msra.mxu0 %v2683
    %5895 = vmatprep.subr.bf16.mxu0 0
    %5896 = vmatpush1.bf16.msra.mxu0 %v2674
    %5897 = vmatprep.subr.bf16.mxu0 0
    %5898 = vmatpush1.bf16.msra.mxu0 %v2665
    %5899 = vmatprep.subr.bf16.mxu0 0
    %5900 = vmatpush1.bf16.msra.mxu0 %v2656
    %5901 = vmatprep.subr.bf16.mxu0 0
    %5902 = vmatpush1.bf16.msra.mxu0 %v2647
    %5903 = vmatprep.subr.bf16.mxu0 0
    %5904 = vmatpush1.bf16.msra.mxu0 %v2638
    %5905 = vmatprep.subr.bf16.mxu0 0
    %5906 = vmatpush1.bf16.msra.mxu0 %v2629
    %5907 = vmatprep.subr.bf16.mxu0 0
    %5908 = vmatpush2.bf16.msra.mxu0 %v2764
    %5909 = vmatprep.subr.bf16.mxu0 0
    %5910 = vmatpush2.bf16.msra.mxu0 %v2755
    %5911 = vmatprep.subr.bf16.mxu0 0
    %5912 = vmatpush2.bf16.msra.mxu0 %v2746
    %5913 = vmatprep.subr.bf16.mxu0 0
    %5914 = vmatpush2.bf16.msra.mxu0 %v2737
    %5915 = vmatprep.subr.bf16.mxu0 0
    %5916 = vmatpush2.bf16.msra.mxu0 %v2728
    %5917 = vmatprep.subr.bf16.mxu0 0
    %5918 = vmatpush2.bf16.msra.mxu0 %v2719
    %5919 = vmatprep.subr.bf16.mxu0 0
    %5920 = vmatpush2.bf16.msra.mxu0 %v2710
    %5921 = vmatprep.subr.bf16.mxu0 0
    %5922 = vmatpush2.bf16.msra.mxu0 %v2701
    %5923 = vmatprep.mubr.bf16.mxu0 %v5828
    %5924 = vmatmul.mubr.bf16.gmra.mxu0 %v5827
    %v5925 = vpop.f32.mrf.mxu0
    %v5926 = vadd.f32 0.0, %v5925
    %v5927 = vpop.f32.mrf.mxu0
    %v5928 = vpop.f32.mrf.mxu0
    %v5929 = vadd.f32 0.0, %v5928
    %v5930 = vpop.f32.mrf.mxu0
    %5931 = vmatprep.mubr.bf16.mxu0 %v5832
    %5932 = vmatmul.mubr.bf16.gmra.mxu0 %v5831
    %v5933 = vpop.f32.mrf.mxu0
    %v5934 = vadd.f32 0.0, %v5933
    %v5935 = vpop.f32.mrf.mxu0
    %v5936 = vpop.f32.mrf.mxu0
    %v5937 = vadd.f32 0.0, %v5936
    %v5938 = vpop.f32.mrf.mxu0
    %5939 = vmatprep.mubr.bf16.mxu0 %v5836
    %5940 = vmatmul.mubr.bf16.gmra.mxu0 %v5835
    %v5941 = vpop.f32.mrf.mxu0
    %v5942 = vadd.f32 0.0, %v5941
    %v5943 = vpop.f32.mrf.mxu0
    %v5944 = vpop.f32.mrf.mxu0
    %v5945 = vadd.f32 0.0, %v5944
    %v5946 = vpop.f32.mrf.mxu0
    %5947 = vmatprep.mubr.bf16.mxu0 %v5840
    %5948 = vmatmul.mubr.bf16.gmra.mxu0 %v5839
    %v5949 = vpop.f32.mrf.mxu0
    %v5950 = vadd.f32 0.0, %v5949
    %v5951 = vpop.f32.mrf.mxu0
    %v5952 = vpop.f32.mrf.mxu0
    %v5953 = vadd.f32 0.0, %v5952
    %v5954 = vpop.f32.mrf.mxu0
    %5955 = vmatprep.mubr.bf16.mxu0 %v5844
    %5956 = vmatmul.mubr.bf16.gmra.mxu0 %v5843
    %v5957 = vpop.f32.mrf.mxu0
    %v5958 = vadd.f32 0.0, %v5957
    %v5959 = vpop.f32.mrf.mxu0
    %v5960 = vpop.f32.mrf.mxu0
    %v5961 = vadd.f32 0.0, %v5960
    %v5962 = vpop.f32.mrf.mxu0
    %5963 = vmatprep.mubr.bf16.mxu0 %v5848
    %5964 = vmatmul.mubr.bf16.gmra.mxu0 %v5847
    %v5965 = vpop.f32.mrf.mxu0
    %v5966 = vadd.f32 0.0, %v5965
    %v5967 = vpop.f32.mrf.mxu0
    %v5968 = vpop.f32.mrf.mxu0
    %v5969 = vadd.f32 0.0, %v5968
    %v5970 = vpop.f32.mrf.mxu0
    %5971 = vmatprep.mubr.bf16.mxu0 %v5852
    %5972 = vmatmul.mubr.bf16.gmra.mxu0 %v5851
    %v5973 = vpop.f32.mrf.mxu0
    %v5974 = vadd.f32 0.0, %v5973
    %v5975 = vpop.f32.mrf.mxu0
    %v5976 = vpop.f32.mrf.mxu0
    %v5977 = vadd.f32 0.0, %v5976
    %v5978 = vpop.f32.mrf.mxu0
    %5979 = vmatprep.mubr.bf16.mxu0 %v5856
    %5980 = vmatmul.mubr.bf16.gmra.mxu0 %v5855
    %v5981 = vpop.f32.mrf.mxu0
    %v5982 = vadd.f32 0.0, %v5981
    %v5983 = vpop.f32.mrf.mxu0
    %v5984 = vpop.f32.mrf.mxu0
    %v5985 = vadd.f32 0.0, %v5984
    %v5986 = vpop.f32.mrf.mxu0
    %5987 = vdwg.mxu0
    %5988 = vmatprep.subr.bf16.mxu0 0
    %5989 = vmatpush1.bf16.msra.mxu0 %v2836
    %5990 = vmatprep.subr.bf16.mxu0 0
    %5991 = vmatpush1.bf16.msra.mxu0 %v2827
    %5992 = vmatprep.subr.bf16.mxu0 0
    %5993 = vmatpush1.bf16.msra.mxu0 %v2818
    %5994 = vmatprep.subr.bf16.mxu0 0
    %5995 = vmatpush1.bf16.msra.mxu0 %v2809
    %5996 = vmatprep.subr.bf16.mxu0 0
    %5997 = vmatpush1.bf16.msra.mxu0 %v2800
    %5998 = vmatprep.subr.bf16.mxu0 0
    %5999 = vmatpush1.bf16.msra.mxu0 %v2791
    %6000 = vmatprep.subr.bf16.mxu0 0
    %6001 = vmatpush1.bf16.msra.mxu0 %v2782
    %6002 = vmatprep.subr.bf16.mxu0 0
    %6003 = vmatpush1.bf16.msra.mxu0 %v2773
    %6004 = vmatprep.subr.bf16.mxu0 0
    %6005 = vmatpush2.bf16.msra.mxu0 %v2908
    %6006 = vmatprep.subr.bf16.mxu0 0
    %6007 = vmatpush2.bf16.msra.mxu0 %v2899
    %6008 = vmatprep.subr.bf16.mxu0 0
    %6009 = vmatpush2.bf16.msra.mxu0 %v2890
    %6010 = vmatprep.subr.bf16.mxu0 0
    %6011 = vmatpush2.bf16.msra.mxu0 %v2881
    %6012 = vmatprep.subr.bf16.mxu0 0
    %6013 = vmatpush2.bf16.msra.mxu0 %v2872
    %6014 = vmatprep.subr.bf16.mxu0 0
    %6015 = vmatpush2.bf16.msra.mxu0 %v2863
    %6016 = vmatprep.subr.bf16.mxu0 0
    %6017 = vmatpush2.bf16.msra.mxu0 %v2854
    %6018 = vmatprep.subr.bf16.mxu0 0
    %6019 = vmatpush2.bf16.msra.mxu0 %v2845
    %6020 = vmatprep.mubr.bf16.mxu0 %v5830
    %6021 = vmatmul.mubr.bf16.gmra.mxu0 %v5829
    %v6022 = vpop.f32.mrf.mxu0
    %v6023 = vadd.f32 %v5926, %v6022
    %v6024 = vpop.f32.mrf.mxu0
    %v6025 = vpop.f32.mrf.mxu0
    %v6026 = vadd.f32 %v5929, %v6025
    %v6027 = vpop.f32.mrf.mxu0
    %6028 = vmatprep.mubr.bf16.mxu0 %v5834
    %6029 = vmatmul.mubr.bf16.gmra.mxu0 %v5833
    %v6030 = vpop.f32.mrf.mxu0
    %v6031 = vadd.f32 %v5934, %v6030
    %v6032 = vpop.f32.mrf.mxu0
    %v6033 = vpop.f32.mrf.mxu0
    %v6034 = vadd.f32 %v5937, %v6033
    %v6035 = vpop.f32.mrf.mxu0
    %6036 = vmatprep.mubr.bf16.mxu0 %v5838
    %6037 = vmatmul.mubr.bf16.gmra.mxu0 %v5837
    %v6038 = vpop.f32.mrf.mxu0
    %v6039 = vadd.f32 %v5942, %v6038
    %v6040 = vpop.f32.mrf.mxu0
    %v6041 = vpop.f32.mrf.mxu0
    %v6042 = vadd.f32 %v5945, %v6041
    %v6043 = vpop.f32.mrf.mxu0
    %6044 = vmatprep.mubr.bf16.mxu0 %v5842
    %6045 = vmatmul.mubr.bf16.gmra.mxu0 %v5841
    %v6046 = vpop.f32.mrf.mxu0
    %v6047 = vadd.f32 %v5950, %v6046
    %v6048 = vpop.f32.mrf.mxu0
    %v6049 = vpop.f32.mrf.mxu0
    %v6050 = vadd.f32 %v5953, %v6049
    %v6051 = vpop.f32.mrf.mxu0
    %6052 = vmatprep.mubr.bf16.mxu0 %v5846
    %6053 = vmatmul.mubr.bf16.gmra.mxu0 %v5845
    %v6054 = vpop.f32.mrf.mxu0
    %v6055 = vadd.f32 %v5958, %v6054
    %v6056 = vpop.f32.mrf.mxu0
    %v6057 = vpop.f32.mrf.mxu0
    %v6058 = vadd.f32 %v5961, %v6057
    %v6059 = vpop.f32.mrf.mxu0
    %6060 = vmatprep.mubr.bf16.mxu0 %v5850
    %6061 = vmatmul.mubr.bf16.gmra.mxu0 %v5849
    %v6062 = vpop.f32.mrf.mxu0
    %v6063 = vadd.f32 %v5966, %v6062
    %v6064 = vpop.f32.mrf.mxu0
    %v6065 = vpop.f32.mrf.mxu0
    %v6066 = vadd.f32 %v5969, %v6065
    %v6067 = vpop.f32.mrf.mxu0
    %6068 = vmatprep.mubr.bf16.mxu0 %v5854
    %6069 = vmatmul.mubr.bf16.gmra.mxu0 %v5853
    %v6070 = vpop.f32.mrf.mxu0
    %v6071 = vadd.f32 %v5974, %v6070
    %v6072 = vpop.f32.mrf.mxu0
    %v6073 = vpop.f32.mrf.mxu0
    %v6074 = vadd.f32 %v5977, %v6073
    %v6075 = vpop.f32.mrf.mxu0
    %6076 = vmatprep.mubr.bf16.mxu0 %v5858
    %6077 = vmatmul.mubr.bf16.gmra.mxu0 %v5857
    %v6078 = vpop.f32.mrf.mxu0
    %v6079 = vadd.f32 %v5982, %v6078
    %v6080 = vpop.f32.mrf.mxu0
    %v6081 = vpop.f32.mrf.mxu0
    %v6082 = vadd.f32 %v5985, %v6081
    %v6083 = vpop.f32.mrf.mxu0
    %6084 = vdwg.mxu0
    %v6085 = vadd.f32 %v5682, %v6023
    %v6086 = vadd.f32 %v5683, %v6026
    %v6087 = vadd.f32 %v5684, %v6031
    %v6088 = vadd.f32 %v5685, %v6034
    %v6089 = vadd.f32 %v5686, %v6039
    %v6090 = vadd.f32 %v5687, %v6042
    %v6091 = vadd.f32 %v5688, %v6047
    %v6092 = vadd.f32 %v5689, %v6050
    %v6093 = vadd.f32 %v5690, %v6055
    %v6094 = vadd.f32 %v5691, %v6058
    %v6095 = vadd.f32 %v5692, %v6063
    %v6096 = vadd.f32 %v5693, %v6066
    %v6097 = vadd.f32 %v5694, %v6071
    %v6098 = vadd.f32 %v5695, %v6074
    %v6099 = vadd.f32 %v5696, %v6079
    %v6100 = vadd.f32 %v5697, %v6082
    %s6101 = scalar_lea.vmem [#allocation4], 2048
    %v6102 = vld [vmem:[%s6101] sm:$0xff]
    %v6103 = vld [vmem:[%s6101 + $0x8] sm:$0xff]
    %v6104 = vld [vmem:[%s6101 + $0x10] sm:$0xff]
    %v6105 = vld [vmem:[%s6101 + $0x18] sm:$0xff]
    %v6106 = vld [vmem:[%s6101 + $0x20] sm:$0xff]
    %v6107 = vld [vmem:[%s6101 + $0x28] sm:$0xff]
    %v6108 = vld [vmem:[%s6101 + $0x30] sm:$0xff]
    %v6109 = vld [vmem:[%s6101 + $0x38] sm:$0xff]
    %v6110 = vld [vmem:[%s6101 + $0x40] sm:$0xff]
    %v6111 = vld [vmem:[%s6101 + $0x48] sm:$0xff]
    %v6112 = vld [vmem:[%s6101 + $0x50] sm:$0xff]
    %v6113 = vld [vmem:[%s6101 + $0x58] sm:$0xff]
    %v6114 = vld [vmem:[%s6101 + $0x60] sm:$0xff]
    %v6115 = vld [vmem:[%s6101 + $0x68] sm:$0xff]
    %v6116 = vld [vmem:[%s6101 + $0x70] sm:$0xff]
    %v6117 = vld [vmem:[%s6101 + $0x78] sm:$0xff]
    %v6118 = vld [vmem:[%s6101 + $0x80] sm:$0xff]
    %v6119 = vld [vmem:[%s6101 + $0x88] sm:$0xff]
    %v6120 = vld [vmem:[%s6101 + $0x90] sm:$0xff]
    %v6121 = vld [vmem:[%s6101 + $0x98] sm:$0xff]
    %v6122 = vld [vmem:[%s6101 + $0xa0] sm:$0xff]
    %v6123 = vld [vmem:[%s6101 + $0xa8] sm:$0xff]
    %v6124 = vld [vmem:[%s6101 + $0xb0] sm:$0xff]
    %v6125 = vld [vmem:[%s6101 + $0xb8] sm:$0xff]
    %v6126 = vld [vmem:[%s6101 + $0xc0] sm:$0xff]
    %v6127 = vld [vmem:[%s6101 + $0xc8] sm:$0xff]
    %v6128 = vld [vmem:[%s6101 + $0xd0] sm:$0xff]
    %v6129 = vld [vmem:[%s6101 + $0xd8] sm:$0xff]
    %v6130 = vld [vmem:[%s6101 + $0xe0] sm:$0xff]
    %v6131 = vld [vmem:[%s6101 + $0xe8] sm:$0xff]
    %v6132 = vld [vmem:[%s6101 + $0xf0] sm:$0xff]
    %v6133 = vld [vmem:[%s6101 + $0xf8] sm:$0xff]
    %v6166 = vunpack.c.l.b16 %v6102
    %v6167 = vunpack.c.h.b16 %v6102
    %v6168 = vunpack.c.l.b16 %v6103
    %v6169 = vunpack.c.h.b16 %v6103
    %v6170 = vunpack.c.l.b16 %v6104
    %v6171 = vunpack.c.h.b16 %v6104
    %v6172 = vunpack.c.l.b16 %v6105
    %v6173 = vunpack.c.h.b16 %v6105
    %v6174 = vunpack.c.l.b16 %v6106
    %v6175 = vunpack.c.h.b16 %v6106
    %v6176 = vunpack.c.l.b16 %v6107
    %v6177 = vunpack.c.h.b16 %v6107
    %v6178 = vunpack.c.l.b16 %v6108
    %v6179 = vunpack.c.h.b16 %v6108
    %v6180 = vunpack.c.l.b16 %v6109
    %v6181 = vunpack.c.h.b16 %v6109
    %v6182 = vunpack.c.l.b16 %v6110
    %v6183 = vunpack.c.h.b16 %v6110
    %v6184 = vunpack.c.l.b16 %v6111
    %v6185 = vunpack.c.h.b16 %v6111
    %v6186 = vunpack.c.l.b16 %v6112
    %v6187 = vunpack.c.h.b16 %v6112
    %v6188 = vunpack.c.l.b16 %v6113
    %v6189 = vunpack.c.h.b16 %v6113
    %v6190 = vunpack.c.l.b16 %v6114
    %v6191 = vunpack.c.h.b16 %v6114
    %v6192 = vunpack.c.l.b16 %v6115
    %v6193 = vunpack.c.h.b16 %v6115
    %v6194 = vunpack.c.l.b16 %v6116
    %v6195 = vunpack.c.h.b16 %v6116
    %v6196 = vunpack.c.l.b16 %v6117
    %v6197 = vunpack.c.h.b16 %v6117
    %v6198 = vunpack.c.l.b16 %v6118
    %v6199 = vunpack.c.h.b16 %v6118
    %v6200 = vunpack.c.l.b16 %v6119
    %v6201 = vunpack.c.h.b16 %v6119
    %v6202 = vunpack.c.l.b16 %v6120
    %v6203 = vunpack.c.h.b16 %v6120
    %v6204 = vunpack.c.l.b16 %v6121
    %v6205 = vunpack.c.h.b16 %v6121
    %v6206 = vunpack.c.l.b16 %v6122
    %v6207 = vunpack.c.h.b16 %v6122
    %v6208 = vunpack.c.l.b16 %v6123
    %v6209 = vunpack.c.h.b16 %v6123
    %v6210 = vunpack.c.l.b16 %v6124
    %v6211 = vunpack.c.h.b16 %v6124
    %v6212 = vunpack.c.l.b16 %v6125
    %v6213 = vunpack.c.h.b16 %v6125
    %v6214 = vunpack.c.l.b16 %v6126
    %v6215 = vunpack.c.h.b16 %v6126
    %v6216 = vunpack.c.l.b16 %v6127
    %v6217 = vunpack.c.h.b16 %v6127
    %v6218 = vunpack.c.l.b16 %v6128
    %v6219 = vunpack.c.h.b16 %v6128
    %v6220 = vunpack.c.l.b16 %v6129
    %v6221 = vunpack.c.h.b16 %v6129
    %v6222 = vunpack.c.l.b16 %v6130
    %v6223 = vunpack.c.h.b16 %v6130
    %v6224 = vunpack.c.l.b16 %v6131
    %v6225 = vunpack.c.h.b16 %v6131
    %v6226 = vunpack.c.l.b16 %v6132
    %v6227 = vunpack.c.h.b16 %v6132
    %v6228 = vunpack.c.l.b16 %v6133
    %v6229 = vunpack.c.h.b16 %v6133
    %v6230 = vpack.c.b16 %v6170, %v6166
    %v6231 = vpack.c.b16 %v6171, %v6167
    %v6232 = vpack.c.b16 %v6172, %v6168
    %v6233 = vpack.c.b16 %v6173, %v6169
    %v6234 = vpack.c.b16 %v6178, %v6174
    %v6235 = vpack.c.b16 %v6179, %v6175
    %v6236 = vpack.c.b16 %v6180, %v6176
    %v6237 = vpack.c.b16 %v6181, %v6177
    %v6238 = vpack.c.b16 %v6186, %v6182
    %v6239 = vpack.c.b16 %v6187, %v6183
    %v6240 = vpack.c.b16 %v6188, %v6184
    %v6241 = vpack.c.b16 %v6189, %v6185
    %v6242 = vpack.c.b16 %v6194, %v6190
    %v6243 = vpack.c.b16 %v6195, %v6191
    %v6244 = vpack.c.b16 %v6196, %v6192
    %v6245 = vpack.c.b16 %v6197, %v6193
    %v6246 = vpack.c.b16 %v6202, %v6198
    %v6247 = vpack.c.b16 %v6203, %v6199
    %v6248 = vpack.c.b16 %v6204, %v6200
    %v6249 = vpack.c.b16 %v6205, %v6201
    %v6250 = vpack.c.b16 %v6210, %v6206
    %v6251 = vpack.c.b16 %v6211, %v6207
    %v6252 = vpack.c.b16 %v6212, %v6208
    %v6253 = vpack.c.b16 %v6213, %v6209
    %v6254 = vpack.c.b16 %v6218, %v6214
    %v6255 = vpack.c.b16 %v6219, %v6215
    %v6256 = vpack.c.b16 %v6220, %v6216
    %v6257 = vpack.c.b16 %v6221, %v6217
    %v6258 = vpack.c.b16 %v6226, %v6222
    %v6259 = vpack.c.b16 %v6227, %v6223
    %v6260 = vpack.c.b16 %v6228, %v6224
    %v6261 = vpack.c.b16 %v6229, %v6225
    %6294 = vmatprep.subr.bf16.mxu0 0
    %6295 = vmatpush1.bf16.msra.mxu0 %v2693
    %6296 = vmatprep.subr.bf16.mxu0 0
    %6297 = vmatpush1.bf16.msra.mxu0 %v2684
    %6298 = vmatprep.subr.bf16.mxu0 0
    %6299 = vmatpush1.bf16.msra.mxu0 %v2675
    %6300 = vmatprep.subr.bf16.mxu0 0
    %6301 = vmatpush1.bf16.msra.mxu0 %v2666
    %6302 = vmatprep.subr.bf16.mxu0 0
    %6303 = vmatpush1.bf16.msra.mxu0 %v2657
    %6304 = vmatprep.subr.bf16.mxu0 0
    %6305 = vmatpush1.bf16.msra.mxu0 %v2648
    %6306 = vmatprep.subr.bf16.mxu0 0
    %6307 = vmatpush1.bf16.msra.mxu0 %v2639
    %6308 = vmatprep.subr.bf16.mxu0 0
    %6309 = vmatpush1.bf16.msra.mxu0 %v2630
    %6310 = vmatprep.subr.bf16.mxu0 0
    %6311 = vmatpush2.bf16.msra.mxu0 %v2765
    %6312 = vmatprep.subr.bf16.mxu0 0
    %6313 = vmatpush2.bf16.msra.mxu0 %v2756
    %6314 = vmatprep.subr.bf16.mxu0 0
    %6315 = vmatpush2.bf16.msra.mxu0 %v2747
    %6316 = vmatprep.subr.bf16.mxu0 0
    %6317 = vmatpush2.bf16.msra.mxu0 %v2738
    %6318 = vmatprep.subr.bf16.mxu0 0
    %6319 = vmatpush2.bf16.msra.mxu0 %v2729
    %6320 = vmatprep.subr.bf16.mxu0 0
    %6321 = vmatpush2.bf16.msra.mxu0 %v2720
    %6322 = vmatprep.subr.bf16.mxu0 0
    %6323 = vmatpush2.bf16.msra.mxu0 %v2711
    %6324 = vmatprep.subr.bf16.mxu0 0
    %6325 = vmatpush2.bf16.msra.mxu0 %v2702
    %6326 = vmatprep.mubr.bf16.mxu0 %v6231
    %6327 = vmatmul.mubr.bf16.gmra.mxu0 %v6230
    %v6328 = vpop.f32.mrf.mxu0
    %v6329 = vadd.f32 0.0, %v6328
    %v6330 = vpop.f32.mrf.mxu0
    %v6331 = vpop.f32.mrf.mxu0
    %v6332 = vadd.f32 0.0, %v6331
    %v6333 = vpop.f32.mrf.mxu0
    %6334 = vmatprep.mubr.bf16.mxu0 %v6235
    %6335 = vmatmul.mubr.bf16.gmra.mxu0 %v6234
    %v6336 = vpop.f32.mrf.mxu0
    %v6337 = vadd.f32 0.0, %v6336
    %v6338 = vpop.f32.mrf.mxu0
    %v6339 = vpop.f32.mrf.mxu0
    %v6340 = vadd.f32 0.0, %v6339
    %v6341 = vpop.f32.mrf.mxu0
    %6342 = vmatprep.mubr.bf16.mxu0 %v6239
    %6343 = vmatmul.mubr.bf16.gmra.mxu0 %v6238
    %v6344 = vpop.f32.mrf.mxu0
    %v6345 = vadd.f32 0.0, %v6344
    %v6346 = vpop.f32.mrf.mxu0
    %v6347 = vpop.f32.mrf.mxu0
    %v6348 = vadd.f32 0.0, %v6347
    %v6349 = vpop.f32.mrf.mxu0
    %6350 = vmatprep.mubr.bf16.mxu0 %v6243
    %6351 = vmatmul.mubr.bf16.gmra.mxu0 %v6242
    %v6352 = vpop.f32.mrf.mxu0
    %v6353 = vadd.f32 0.0, %v6352
    %v6354 = vpop.f32.mrf.mxu0
    %v6355 = vpop.f32.mrf.mxu0
    %v6356 = vadd.f32 0.0, %v6355
    %v6357 = vpop.f32.mrf.mxu0
    %6358 = vmatprep.mubr.bf16.mxu0 %v6247
    %6359 = vmatmul.mubr.bf16.gmra.mxu0 %v6246
    %v6360 = vpop.f32.mrf.mxu0
    %v6361 = vadd.f32 0.0, %v6360
    %v6362 = vpop.f32.mrf.mxu0
    %v6363 = vpop.f32.mrf.mxu0
    %v6364 = vadd.f32 0.0, %v6363
    %v6365 = vpop.f32.mrf.mxu0
    %6366 = vmatprep.mubr.bf16.mxu0 %v6251
    %6367 = vmatmul.mubr.bf16.gmra.mxu0 %v6250
    %v6368 = vpop.f32.mrf.mxu0
    %v6369 = vadd.f32 0.0, %v6368
    %v6370 = vpop.f32.mrf.mxu0
    %v6371 = vpop.f32.mrf.mxu0
    %v6372 = vadd.f32 0.0, %v6371
    %v6373 = vpop.f32.mrf.mxu0
    %6374 = vmatprep.mubr.bf16.mxu0 %v6255
    %6375 = vmatmul.mubr.bf16.gmra.mxu0 %v6254
    %v6376 = vpop.f32.mrf.mxu0
    %v6377 = vadd.f32 0.0, %v6376
    %v6378 = vpop.f32.mrf.mxu0
    %v6379 = vpop.f32.mrf.mxu0
    %v6380 = vadd.f32 0.0, %v6379
    %v6381 = vpop.f32.mrf.mxu0
    %6382 = vmatprep.mubr.bf16.mxu0 %v6259
    %6383 = vmatmul.mubr.bf16.gmra.mxu0 %v6258
    %v6384 = vpop.f32.mrf.mxu0
    %v6385 = vadd.f32 0.0, %v6384
    %v6386 = vpop.f32.mrf.mxu0
    %v6387 = vpop.f32.mrf.mxu0
    %v6388 = vadd.f32 0.0, %v6387
    %v6389 = vpop.f32.mrf.mxu0
    %6390 = vdwg.mxu0
    %6391 = vmatprep.subr.bf16.mxu0 0
    %6392 = vmatpush1.bf16.msra.mxu0 %v2837
    %6393 = vmatprep.subr.bf16.mxu0 0
    %6394 = vmatpush1.bf16.msra.mxu0 %v2828
    %6395 = vmatprep.subr.bf16.mxu0 0
    %6396 = vmatpush1.bf16.msra.mxu0 %v2819
    %6397 = vmatprep.subr.bf16.mxu0 0
    %6398 = vmatpush1.bf16.msra.mxu0 %v2810
    %6399 = vmatprep.subr.bf16.mxu0 0
    %6400 = vmatpush1.bf16.msra.mxu0 %v2801
    %6401 = vmatprep.subr.bf16.mxu0 0
    %6402 = vmatpush1.bf16.msra.mxu0 %v2792
    %6403 = vmatprep.subr.bf16.mxu0 0
    %6404 = vmatpush1.bf16.msra.mxu0 %v2783
    %6405 = vmatprep.subr.bf16.mxu0 0
    %6406 = vmatpush1.bf16.msra.mxu0 %v2774
    %6407 = vmatprep.subr.bf16.mxu0 0
    %6408 = vmatpush2.bf16.msra.mxu0 %v2909
    %6409 = vmatprep.subr.bf16.mxu0 0
    %6410 = vmatpush2.bf16.msra.mxu0 %v2900
    %6411 = vmatprep.subr.bf16.mxu0 0
    %6412 = vmatpush2.bf16.msra.mxu0 %v2891
    %6413 = vmatprep.subr.bf16.mxu0 0
    %6414 = vmatpush2.bf16.msra.mxu0 %v2882
    %6415 = vmatprep.subr.bf16.mxu0 0
    %6416 = vmatpush2.bf16.msra.mxu0 %v2873
    %6417 = vmatprep.subr.bf16.mxu0 0
    %6418 = vmatpush2.bf16.msra.mxu0 %v2864
    %6419 = vmatprep.subr.bf16.mxu0 0
    %6420 = vmatpush2.bf16.msra.mxu0 %v2855
    %6421 = vmatprep.subr.bf16.mxu0 0
    %6422 = vmatpush2.bf16.msra.mxu0 %v2846
    %6423 = vmatprep.mubr.bf16.mxu0 %v6233
    %6424 = vmatmul.mubr.bf16.gmra.mxu0 %v6232
    %v6425 = vpop.f32.mrf.mxu0
    %v6426 = vadd.f32 %v6329, %v6425
    %v6427 = vpop.f32.mrf.mxu0
    %v6428 = vpop.f32.mrf.mxu0
    %v6429 = vadd.f32 %v6332, %v6428
    %v6430 = vpop.f32.mrf.mxu0
    %6431 = vmatprep.mubr.bf16.mxu0 %v6237
    %6432 = vmatmul.mubr.bf16.gmra.mxu0 %v6236
    %v6433 = vpop.f32.mrf.mxu0
    %v6434 = vadd.f32 %v6337, %v6433
    %v6435 = vpop.f32.mrf.mxu0
    %v6436 = vpop.f32.mrf.mxu0
    %v6437 = vadd.f32 %v6340, %v6436
    %v6438 = vpop.f32.mrf.mxu0
    %6439 = vmatprep.mubr.bf16.mxu0 %v6241
    %6440 = vmatmul.mubr.bf16.gmra.mxu0 %v6240
    %v6441 = vpop.f32.mrf.mxu0
    %v6442 = vadd.f32 %v6345, %v6441
    %v6443 = vpop.f32.mrf.mxu0
    %v6444 = vpop.f32.mrf.mxu0
    %v6445 = vadd.f32 %v6348, %v6444
    %v6446 = vpop.f32.mrf.mxu0
    %6447 = vmatprep.mubr.bf16.mxu0 %v6245
    %6448 = vmatmul.mubr.bf16.gmra.mxu0 %v6244
    %v6449 = vpop.f32.mrf.mxu0
    %v6450 = vadd.f32 %v6353, %v6449
    %v6451 = vpop.f32.mrf.mxu0
    %v6452 = vpop.f32.mrf.mxu0
    %v6453 = vadd.f32 %v6356, %v6452
    %v6454 = vpop.f32.mrf.mxu0
    %6455 = vmatprep.mubr.bf16.mxu0 %v6249
    %6456 = vmatmul.mubr.bf16.gmra.mxu0 %v6248
    %v6457 = vpop.f32.mrf.mxu0
    %v6458 = vadd.f32 %v6361, %v6457
    %v6459 = vpop.f32.mrf.mxu0
    %v6460 = vpop.f32.mrf.mxu0
    %v6461 = vadd.f32 %v6364, %v6460
    %v6462 = vpop.f32.mrf.mxu0
    %6463 = vmatprep.mubr.bf16.mxu0 %v6253
    %6464 = vmatmul.mubr.bf16.gmra.mxu0 %v6252
    %v6465 = vpop.f32.mrf.mxu0
    %v6466 = vadd.f32 %v6369, %v6465
    %v6467 = vpop.f32.mrf.mxu0
    %v6468 = vpop.f32.mrf.mxu0
    %v6469 = vadd.f32 %v6372, %v6468
    %v6470 = vpop.f32.mrf.mxu0
    %6471 = vmatprep.mubr.bf16.mxu0 %v6257
    %6472 = vmatmul.mubr.bf16.gmra.mxu0 %v6256
    %v6473 = vpop.f32.mrf.mxu0
    %v6474 = vadd.f32 %v6377, %v6473
    %v6475 = vpop.f32.mrf.mxu0
    %v6476 = vpop.f32.mrf.mxu0
    %v6477 = vadd.f32 %v6380, %v6476
    %v6478 = vpop.f32.mrf.mxu0
    %6479 = vmatprep.mubr.bf16.mxu0 %v6261
    %6480 = vmatmul.mubr.bf16.gmra.mxu0 %v6260
    %v6481 = vpop.f32.mrf.mxu0
    %v6482 = vadd.f32 %v6385, %v6481
    %v6483 = vpop.f32.mrf.mxu0
    %v6484 = vpop.f32.mrf.mxu0
    %v6485 = vadd.f32 %v6388, %v6484
    %v6486 = vpop.f32.mrf.mxu0
    %6487 = vdwg.mxu0
    %v6488 = vadd.f32 %v6085, %v6426
    %v6489 = vadd.f32 %v6086, %v6429
    %v6490 = vadd.f32 %v6087, %v6434
    %v6491 = vadd.f32 %v6088, %v6437
    %v6492 = vadd.f32 %v6089, %v6442
    %v6493 = vadd.f32 %v6090, %v6445
    %v6494 = vadd.f32 %v6091, %v6450
    %v6495 = vadd.f32 %v6092, %v6453
    %v6496 = vadd.f32 %v6093, %v6458
    %v6497 = vadd.f32 %v6094, %v6461
    %v6498 = vadd.f32 %v6095, %v6466
    %v6499 = vadd.f32 %v6096, %v6469
    %v6500 = vadd.f32 %v6097, %v6474
    %v6501 = vadd.f32 %v6098, %v6477
    %v6502 = vadd.f32 %v6099, %v6482
    %v6503 = vadd.f32 %v6100, %v6485
    %v6504 = vld [vmem:[#allocation6] sm:$0x1]
    %v6505 = vlaneseq
    %v6506 = vshrl.u32 %v6505, 7
    %v6507 = vsub.s32 0, %v6506
    %v6508 = vrot.slane %v6504, %v6507
    %v6509 = vadd.f32 %v6488, %v6508
    %v6510 = vadd.f32 %v6489, %v6508
    %v6511 = vadd.f32 %v6490, %v6508
    %v6512 = vadd.f32 %v6491, %v6508
    %v6513 = vadd.f32 %v6492, %v6508
    %v6514 = vadd.f32 %v6493, %v6508
    %v6515 = vadd.f32 %v6494, %v6508
    %v6516 = vadd.f32 %v6495, %v6508
    %v6517 = vadd.f32 %v6496, %v6508
    %v6518 = vadd.f32 %v6497, %v6508
    %v6519 = vadd.f32 %v6498, %v6508
    %v6520 = vadd.f32 %v6499, %v6508
    %v6521 = vadd.f32 %v6500, %v6508
    %v6522 = vadd.f32 %v6501, %v6508
    %v6523 = vadd.f32 %v6502, %v6508
    %v6524 = vadd.f32 %v6503, %v6508
    %vm6525 = vcmp.gt.f32.partialorder %v6509, 0.0
    %vm6526 = vcmp.gt.f32.partialorder %v6510, 0.0
    %vm6527 = vcmp.gt.f32.partialorder %v6511, 0.0
    %vm6528 = vcmp.gt.f32.partialorder %v6512, 0.0
    %vm6529 = vcmp.gt.f32.partialorder %v6513, 0.0
    %vm6530 = vcmp.gt.f32.partialorder %v6514, 0.0
    %vm6531 = vcmp.gt.f32.partialorder %v6515, 0.0
    %vm6532 = vcmp.gt.f32.partialorder %v6516, 0.0
    %vm6533 = vcmp.gt.f32.partialorder %v6517, 0.0
    %vm6534 = vcmp.gt.f32.partialorder %v6518, 0.0
    %vm6535 = vcmp.gt.f32.partialorder %v6519, 0.0
    %vm6536 = vcmp.gt.f32.partialorder %v6520, 0.0
    %vm6537 = vcmp.gt.f32.partialorder %v6521, 0.0
    %vm6538 = vcmp.gt.f32.partialorder %v6522, 0.0
    %vm6539 = vcmp.gt.f32.partialorder %v6523, 0.0
    %vm6540 = vcmp.gt.f32.partialorder %v6524, 0.0
    %v6541 = vmul.f32 %v6509, 0.2
    %v6542 = vmul.f32 %v6510, 0.2
    %v6543 = vmul.f32 %v6511, 0.2
    %v6544 = vmul.f32 %v6512, 0.2
    %v6545 = vmul.f32 %v6513, 0.2
    %v6546 = vmul.f32 %v6514, 0.2
    %v6547 = vmul.f32 %v6515, 0.2
    %v6548 = vmul.f32 %v6516, 0.2
    %v6549 = vmul.f32 %v6517, 0.2
    %v6550 = vmul.f32 %v6518, 0.2
    %v6551 = vmul.f32 %v6519, 0.2
    %v6552 = vmul.f32 %v6520, 0.2
    %v6553 = vmul.f32 %v6521, 0.2
    %v6554 = vmul.f32 %v6522, 0.2
    %v6555 = vmul.f32 %v6523, 0.2
    %v6556 = vmul.f32 %v6524, 0.2
    %v6557 = vsel %vm6525, %v6509, %v6541
    %v6558 = vsel %vm6526, %v6510, %v6542
    %v6559 = vsel %vm6527, %v6511, %v6543
    %v6560 = vsel %vm6528, %v6512, %v6544
    %v6561 = vsel %vm6529, %v6513, %v6545
    %v6562 = vsel %vm6530, %v6514, %v6546
    %v6563 = vsel %vm6531, %v6515, %v6547
    %v6564 = vsel %vm6532, %v6516, %v6548
    %v6565 = vsel %vm6533, %v6517, %v6549
    %v6566 = vsel %vm6534, %v6518, %v6550
    %v6567 = vsel %vm6535, %v6519, %v6551
    %v6568 = vsel %vm6536, %v6520, %v6552
    %v6569 = vsel %vm6537, %v6521, %v6553
    %v6570 = vsel %vm6538, %v6522, %v6554
    %v6571 = vsel %vm6539, %v6523, %v6555
    %v6572 = vsel %vm6540, %v6524, %v6556
    %v6573 = vld [vmem:[#allocation6 + $0x1] sm:$0x1]
    %v6574 = vlaneseq
    %v6575 = vshrl.u32 %v6574, 7
    %v6576 = vsub.s32 0, %v6575
    %v6577 = vrot.slane %v6573, %v6576
    %v6578 = vmul.f32 %v6557, %v6577
    %v6579 = vmul.f32 %v6558, %v6577
    %v6580 = vmul.f32 %v6559, %v6577
    %v6581 = vmul.f32 %v6560, %v6577
    %v6582 = vmul.f32 %v6561, %v6577
    %v6583 = vmul.f32 %v6562, %v6577
    %v6584 = vmul.f32 %v6563, %v6577
    %v6585 = vmul.f32 %v6564, %v6577
    %v6586 = vmul.f32 %v6565, %v6577
    %v6587 = vmul.f32 %v6566, %v6577
    %v6588 = vmul.f32 %v6567, %v6577
    %v6589 = vmul.f32 %v6568, %v6577
    %v6590 = vmul.f32 %v6569, %v6577
    %v6591 = vmul.f32 %v6570, %v6577
    %v6592 = vmul.f32 %v6571, %v6577
    %v6593 = vmul.f32 %v6572, %v6577
    %v6594 = vld [vmem:[#allocation6 + $0x2] sm:$0x1]
    %v6595 = vlaneseq
    %v6596 = vshrl.u32 %v6595, 7
    %v6597 = vsub.s32 0, %v6596
    %v6598 = vrot.slane %v6594, %v6597
    %v6599 = vadd.f32 %v6578, %v6598
    %v6600 = vadd.f32 %v6579, %v6598
    %v6601 = vadd.f32 %v6580, %v6598
    %v6602 = vadd.f32 %v6581, %v6598
    %v6603 = vadd.f32 %v6582, %v6598
    %v6604 = vadd.f32 %v6583, %v6598
    %v6605 = vadd.f32 %v6584, %v6598
    %v6606 = vadd.f32 %v6585, %v6598
    %v6607 = vadd.f32 %v6586, %v6598
    %v6608 = vadd.f32 %v6587, %v6598
    %v6609 = vadd.f32 %v6588, %v6598
    %v6610 = vadd.f32 %v6589, %v6598
    %v6611 = vadd.f32 %v6590, %v6598
    %v6612 = vadd.f32 %v6591, %v6598
    %v6613 = vadd.f32 %v6592, %v6598
    %v6614 = vadd.f32 %v6593, %v6598
    %v6615 = vpack.c.bf16 %v6600, %v6599
    %v6616 = vpack.c.bf16 %v6602, %v6601
    %v6617 = vpack.c.bf16 %v6604, %v6603
    %v6618 = vpack.c.bf16 %v6606, %v6605
    %v6619 = vpack.c.bf16 %v6608, %v6607
    %v6620 = vpack.c.bf16 %v6610, %v6609
    %v6621 = vpack.c.bf16 %v6612, %v6611
    %v6622 = vpack.c.bf16 %v6614, %v6613
    %v6623 = vld [vmem:[#allocation7] sm:$0xff]
    %v6624 = vld [vmem:[#allocation7 + $0x8] sm:$0xff]
    %v6625 = vld [vmem:[#allocation7 + $0x10] sm:$0xff]
    %v6626 = vld [vmem:[#allocation7 + $0x18] sm:$0xff]
    %v6627 = vld [vmem:[#allocation7 + $0x20] sm:$0xf]
    %v6628 = vld [vmem:[#allocation7 + $0x24] sm:$0xff]
    %v6629 = vld [vmem:[#allocation7 + $0x2c] sm:$0xff]
    %v6630 = vld [vmem:[#allocation7 + $0x34] sm:$0xff]
    %v6631 = vld [vmem:[#allocation7 + $0x3c] sm:$0xff]
    %v6632 = vld [vmem:[#allocation7 + $0x44] sm:$0xf]
    %v6633 = vld [vmem:[#allocation7 + $0x48] sm:$0xff]
    %v6634 = vld [vmem:[#allocation7 + $0x50] sm:$0xff]
    %v6635 = vld [vmem:[#allocation7 + $0x58] sm:$0xff]
    %v6636 = vld [vmem:[#allocation7 + $0x60] sm:$0xff]
    %v6637 = vld [vmem:[#allocation7 + $0x68] sm:$0xf]
    %v6638 = vld [vmem:[#allocation7 + $0x6c] sm:$0xff]
    %v6639 = vld [vmem:[#allocation7 + $0x74] sm:$0xff]
    %v6640 = vld [vmem:[#allocation7 + $0x7c] sm:$0xff]
    %v6641 = vld [vmem:[#allocation7 + $0x84] sm:$0xff]
    %v6642 = vld [vmem:[#allocation7 + $0x8c] sm:$0xf]
    %v6643 = vld [vmem:[#allocation7 + $0x90] sm:$0xff]
    %v6644 = vld [vmem:[#allocation7 + $0x98] sm:$0xff]
    %v6645 = vld [vmem:[#allocation7 + $0xa0] sm:$0xff]
    %v6646 = vld [vmem:[#allocation7 + $0xa8] sm:$0xff]
    %v6647 = vld [vmem:[#allocation7 + $0xb0] sm:$0xf]
    %v6648 = vld [vmem:[#allocation7 + $0xb4] sm:$0xff]
    %v6649 = vld [vmem:[#allocation7 + $0xbc] sm:$0xff]
    %v6650 = vld [vmem:[#allocation7 + $0xc4] sm:$0xff]
    %v6651 = vld [vmem:[#allocation7 + $0xcc] sm:$0xff]
    %v6652 = vld [vmem:[#allocation7 + $0xd4] sm:$0xf]
    %v6653 = vld [vmem:[#allocation7 + $0xd8] sm:$0xff]
    %v6654 = vld [vmem:[#allocation7 + $0xe0] sm:$0xff]
    %v6655 = vld [vmem:[#allocation7 + $0xe8] sm:$0xff]
    %v6656 = vld [vmem:[#allocation7 + $0xf0] sm:$0xff]
    %v6657 = vld [vmem:[#allocation7 + $0xf8] sm:$0xf]
    %v6658 = vld [vmem:[#allocation7 + $0xfc] sm:$0xff]
    %v6659 = vld [vmem:[#allocation7 + $0x104] sm:$0xff]
    %v6660 = vld [vmem:[#allocation7 + $0x10c] sm:$0xff]
    %v6661 = vld [vmem:[#allocation7 + $0x114] sm:$0xff]
    %v6662 = vld [vmem:[#allocation7 + $0x11c] sm:$0xf]
    %v6663 = vld [vmem:[#allocation7 + $0x120] sm:$0xff]
    %v6664 = vld [vmem:[#allocation7 + $0x128] sm:$0xff]
    %v6665 = vld [vmem:[#allocation7 + $0x130] sm:$0xff]
    %v6666 = vld [vmem:[#allocation7 + $0x138] sm:$0xff]
    %v6667 = vld [vmem:[#allocation7 + $0x140] sm:$0xf]
    %v6668 = vld [vmem:[#allocation7 + $0x144] sm:$0xff]
    %v6669 = vld [vmem:[#allocation7 + $0x14c] sm:$0xff]
    %v6670 = vld [vmem:[#allocation7 + $0x154] sm:$0xff]
    %v6671 = vld [vmem:[#allocation7 + $0x15c] sm:$0xff]
    %v6672 = vld [vmem:[#allocation7 + $0x164] sm:$0xf]
    %v6673 = vld [vmem:[#allocation7 + $0x168] sm:$0xff]
    %v6674 = vld [vmem:[#allocation7 + $0x170] sm:$0xff]
    %v6675 = vld [vmem:[#allocation7 + $0x178] sm:$0xff]
    %v6676 = vld [vmem:[#allocation7 + $0x180] sm:$0xff]
    %v6677 = vld [vmem:[#allocation7 + $0x188] sm:$0xf]
    %v6678 = vld [vmem:[#allocation7 + $0x18c] sm:$0xff]
    %v6679 = vld [vmem:[#allocation7 + $0x194] sm:$0xff]
    %v6680 = vld [vmem:[#allocation7 + $0x19c] sm:$0xff]
    %v6681 = vld [vmem:[#allocation7 + $0x1a4] sm:$0xff]
    %v6682 = vld [vmem:[#allocation7 + $0x1ac] sm:$0xf]
    %v6683 = vld [vmem:[#allocation7 + $0x1b0] sm:$0xff]
    %v6684 = vld [vmem:[#allocation7 + $0x1b8] sm:$0xff]
    %v6685 = vld [vmem:[#allocation7 + $0x1c0] sm:$0xff]
    %v6686 = vld [vmem:[#allocation7 + $0x1c8] sm:$0xff]
    %v6687 = vld [vmem:[#allocation7 + $0x1d0] sm:$0xf]
    %v6688 = vld [vmem:[#allocation7 + $0x1d4] sm:$0xff]
    %v6689 = vld [vmem:[#allocation7 + $0x1dc] sm:$0xff]
    %v6690 = vld [vmem:[#allocation7 + $0x1e4] sm:$0xff]
    %v6691 = vld [vmem:[#allocation7 + $0x1ec] sm:$0xff]
    %v6692 = vld [vmem:[#allocation7 + $0x1f4] sm:$0xf]
    %v6693 = vld [vmem:[#allocation7 + $0x1f8] sm:$0xff]
    %v6694 = vld [vmem:[#allocation7 + $0x200] sm:$0xff]
    %v6695 = vld [vmem:[#allocation7 + $0x208] sm:$0xff]
    %v6696 = vld [vmem:[#allocation7 + $0x210] sm:$0xff]
    %v6697 = vld [vmem:[#allocation7 + $0x218] sm:$0xf]
    %v6698 = vld [vmem:[#allocation7 + $0x21c] sm:$0xff]
    %v6699 = vld [vmem:[#allocation7 + $0x224] sm:$0xff]
    %v6700 = vld [vmem:[#allocation7 + $0x22c] sm:$0xff]
    %v6701 = vld [vmem:[#allocation7 + $0x234] sm:$0xff]
    %v6702 = vld [vmem:[#allocation7 + $0x23c] sm:$0xf]
    %v6783 = vunpack.c.l.b16 %v6623
    %v6784 = vunpack.c.h.b16 %v6623
    %v6785 = vunpack.c.l.b16 %v6624
    %v6786 = vunpack.c.h.b16 %v6624
    %v6787 = vunpack.c.l.b16 %v6625
    %v6788 = vunpack.c.h.b16 %v6625
    %v6789 = vunpack.c.l.b16 %v6626
    %v6790 = vunpack.c.h.b16 %v6626
    %v6791 = vunpack.c.l.b16 %v6627
    %v6792 = vunpack.c.l.b16 %v6628
    %v6793 = vunpack.c.h.b16 %v6628
    %v6794 = vunpack.c.l.b16 %v6629
    %v6795 = vunpack.c.h.b16 %v6629
    %v6796 = vunpack.c.l.b16 %v6630
    %v6797 = vunpack.c.h.b16 %v6630
    %v6798 = vunpack.c.l.b16 %v6631
    %v6799 = vunpack.c.h.b16 %v6631
    %v6800 = vunpack.c.l.b16 %v6632
    %v6801 = vunpack.c.l.b16 %v6633
    %v6802 = vunpack.c.h.b16 %v6633
    %v6803 = vunpack.c.l.b16 %v6634
    %v6804 = vunpack.c.h.b16 %v6634
    %v6805 = vunpack.c.l.b16 %v6635
    %v6806 = vunpack.c.h.b16 %v6635
    %v6807 = vunpack.c.l.b16 %v6636
    %v6808 = vunpack.c.h.b16 %v6636
    %v6809 = vunpack.c.l.b16 %v6637
    %v6810 = vunpack.c.l.b16 %v6638
    %v6811 = vunpack.c.h.b16 %v6638
    %v6812 = vunpack.c.l.b16 %v6639
    %v6813 = vunpack.c.h.b16 %v6639
    %v6814 = vunpack.c.l.b16 %v6640
    %v6815 = vunpack.c.h.b16 %v6640
    %v6816 = vunpack.c.l.b16 %v6641
    %v6817 = vunpack.c.h.b16 %v6641
    %v6818 = vunpack.c.l.b16 %v6642
    %v6819 = vunpack.c.l.b16 %v6643
    %v6820 = vunpack.c.h.b16 %v6643
    %v6821 = vunpack.c.l.b16 %v6644
    %v6822 = vunpack.c.h.b16 %v6644
    %v6823 = vunpack.c.l.b16 %v6645
    %v6824 = vunpack.c.h.b16 %v6645
    %v6825 = vunpack.c.l.b16 %v6646
    %v6826 = vunpack.c.h.b16 %v6646
    %v6827 = vunpack.c.l.b16 %v6647
    %v6828 = vunpack.c.l.b16 %v6648
    %v6829 = vunpack.c.h.b16 %v6648
    %v6830 = vunpack.c.l.b16 %v6649
    %v6831 = vunpack.c.h.b16 %v6649
    %v6832 = vunpack.c.l.b16 %v6650
    %v6833 = vunpack.c.h.b16 %v6650
    %v6834 = vunpack.c.l.b16 %v6651
    %v6835 = vunpack.c.h.b16 %v6651
    %v6836 = vunpack.c.l.b16 %v6652
    %v6837 = vunpack.c.l.b16 %v6653
    %v6838 = vunpack.c.h.b16 %v6653
    %v6839 = vunpack.c.l.b16 %v6654
    %v6840 = vunpack.c.h.b16 %v6654
    %v6841 = vunpack.c.l.b16 %v6655
    %v6842 = vunpack.c.h.b16 %v6655
    %v6843 = vunpack.c.l.b16 %v6656
    %v6844 = vunpack.c.h.b16 %v6656
    %v6845 = vunpack.c.l.b16 %v6657
    %v6846 = vunpack.c.l.b16 %v6658
    %v6847 = vunpack.c.h.b16 %v6658
    %v6848 = vunpack.c.l.b16 %v6659
    %v6849 = vunpack.c.h.b16 %v6659
    %v6850 = vunpack.c.l.b16 %v6660
    %v6851 = vunpack.c.h.b16 %v6660
    %v6852 = vunpack.c.l.b16 %v6661
    %v6853 = vunpack.c.h.b16 %v6661
    %v6854 = vunpack.c.l.b16 %v6662
    %v6855 = vunpack.c.l.b16 %v6663
    %v6856 = vunpack.c.h.b16 %v6663
    %v6857 = vunpack.c.l.b16 %v6664
    %v6858 = vunpack.c.h.b16 %v6664
    %v6859 = vunpack.c.l.b16 %v6665
    %v6860 = vunpack.c.h.b16 %v6665
    %v6861 = vunpack.c.l.b16 %v6666
    %v6862 = vunpack.c.h.b16 %v6666
    %v6863 = vunpack.c.l.b16 %v6667
    %v6864 = vunpack.c.l.b16 %v6668
    %v6865 = vunpack.c.h.b16 %v6668
    %v6866 = vunpack.c.l.b16 %v6669
    %v6867 = vunpack.c.h.b16 %v6669
    %v6868 = vunpack.c.l.b16 %v6670
    %v6869 = vunpack.c.h.b16 %v6670
    %v6870 = vunpack.c.l.b16 %v6671
    %v6871 = vunpack.c.h.b16 %v6671
    %v6872 = vunpack.c.l.b16 %v6672
    %v6873 = vunpack.c.l.b16 %v6673
    %v6874 = vunpack.c.h.b16 %v6673
    %v6875 = vunpack.c.l.b16 %v6674
    %v6876 = vunpack.c.h.b16 %v6674
    %v6877 = vunpack.c.l.b16 %v6675
    %v6878 = vunpack.c.h.b16 %v6675
    %v6879 = vunpack.c.l.b16 %v6676
    %v6880 = vunpack.c.h.b16 %v6676
    %v6881 = vunpack.c.l.b16 %v6677
    %v6882 = vunpack.c.l.b16 %v6678
    %v6883 = vunpack.c.h.b16 %v6678
    %v6884 = vunpack.c.l.b16 %v6679
    %v6885 = vunpack.c.h.b16 %v6679
    %v6886 = vunpack.c.l.b16 %v6680
    %v6887 = vunpack.c.h.b16 %v6680
    %v6888 = vunpack.c.l.b16 %v6681
    %v6889 = vunpack.c.h.b16 %v6681
    %v6890 = vunpack.c.l.b16 %v6682
    %v6891 = vunpack.c.l.b16 %v6683
    %v6892 = vunpack.c.h.b16 %v6683
    %v6893 = vunpack.c.l.b16 %v6684
    %v6894 = vunpack.c.h.b16 %v6684
    %v6895 = vunpack.c.l.b16 %v6685
    %v6896 = vunpack.c.h.b16 %v6685
    %v6897 = vunpack.c.l.b16 %v6686
    %v6898 = vunpack.c.h.b16 %v6686
    %v6899 = vunpack.c.l.b16 %v6687
    %v6900 = vunpack.c.l.b16 %v6688
    %v6901 = vunpack.c.h.b16 %v6688
    %v6902 = vunpack.c.l.b16 %v6689
    %v6903 = vunpack.c.h.b16 %v6689
    %v6904 = vunpack.c.l.b16 %v6690
    %v6905 = vunpack.c.h.b16 %v6690
    %v6906 = vunpack.c.l.b16 %v6691
    %v6907 = vunpack.c.h.b16 %v6691
    %v6908 = vunpack.c.l.b16 %v6692
    %v6909 = vunpack.c.l.b16 %v6693
    %v6910 = vunpack.c.h.b16 %v6693
    %v6911 = vunpack.c.l.b16 %v6694
    %v6912 = vunpack.c.h.b16 %v6694
    %v6913 = vunpack.c.l.b16 %v6695
    %v6914 = vunpack.c.h.b16 %v6695
    %v6915 = vunpack.c.l.b16 %v6696
    %v6916 = vunpack.c.h.b16 %v6696
    %v6917 = vunpack.c.l.b16 %v6697
    %v6918 = vunpack.c.l.b16 %v6698
    %v6919 = vunpack.c.h.b16 %v6698
    %v6920 = vunpack.c.l.b16 %v6699
    %v6921 = vunpack.c.h.b16 %v6699
    %v6922 = vunpack.c.l.b16 %v6700
    %v6923 = vunpack.c.h.b16 %v6700
    %v6924 = vunpack.c.l.b16 %v6701
    %v6925 = vunpack.c.h.b16 %v6701
    %v6926 = vunpack.c.l.b16 %v6702
    %v6927 = vpack.c.b16 %v6792, %v6783
    %v6928 = vpack.c.b16 %v6793, %v6784
    %v6929 = vpack.c.b16 %v6794, %v6785
    %v6930 = vpack.c.b16 %v6795, %v6786
    %v6931 = vpack.c.b16 %v6796, %v6787
    %v6932 = vpack.c.b16 %v6797, %v6788
    %v6933 = vpack.c.b16 %v6798, %v6789
    %v6934 = vpack.c.b16 %v6799, %v6790
    %v6935 = vpack.c.b16 %v6800, %v6791
    %v6936 = vpack.c.b16 %v6810, %v6801
    %v6937 = vpack.c.b16 %v6811, %v6802
    %v6938 = vpack.c.b16 %v6812, %v6803
    %v6939 = vpack.c.b16 %v6813, %v6804
    %v6940 = vpack.c.b16 %v6814, %v6805
    %v6941 = vpack.c.b16 %v6815, %v6806
    %v6942 = vpack.c.b16 %v6816, %v6807
    %v6943 = vpack.c.b16 %v6817, %v6808
    %v6944 = vpack.c.b16 %v6818, %v6809
    %v6945 = vpack.c.b16 %v6828, %v6819
    %v6946 = vpack.c.b16 %v6829, %v6820
    %v6947 = vpack.c.b16 %v6830, %v6821
    %v6948 = vpack.c.b16 %v6831, %v6822
    %v6949 = vpack.c.b16 %v6832, %v6823
    %v6950 = vpack.c.b16 %v6833, %v6824
    %v6951 = vpack.c.b16 %v6834, %v6825
    %v6952 = vpack.c.b16 %v6835, %v6826
    %v6953 = vpack.c.b16 %v6836, %v6827
    %v6954 = vpack.c.b16 %v6846, %v6837
    %v6955 = vpack.c.b16 %v6847, %v6838
    %v6956 = vpack.c.b16 %v6848, %v6839
    %v6957 = vpack.c.b16 %v6849, %v6840
    %v6958 = vpack.c.b16 %v6850, %v6841
    %v6959 = vpack.c.b16 %v6851, %v6842
    %v6960 = vpack.c.b16 %v6852, %v6843
    %v6961 = vpack.c.b16 %v6853, %v6844
    %v6962 = vpack.c.b16 %v6854, %v6845
    %v6963 = vpack.c.b16 %v6864, %v6855
    %v6964 = vpack.c.b16 %v6865, %v6856
    %v6965 = vpack.c.b16 %v6866, %v6857
    %v6966 = vpack.c.b16 %v6867, %v6858
    %v6967 = vpack.c.b16 %v6868, %v6859
    %v6968 = vpack.c.b16 %v6869, %v6860
    %v6969 = vpack.c.b16 %v6870, %v6861
    %v6970 = vpack.c.b16 %v6871, %v6862
    %v6971 = vpack.c.b16 %v6872, %v6863
    %v6972 = vpack.c.b16 %v6882, %v6873
    %v6973 = vpack.c.b16 %v6883, %v6874
    %v6974 = vpack.c.b16 %v6884, %v6875
    %v6975 = vpack.c.b16 %v6885, %v6876
    %v6976 = vpack.c.b16 %v6886, %v6877
    %v6977 = vpack.c.b16 %v6887, %v6878
    %v6978 = vpack.c.b16 %v6888, %v6879
    %v6979 = vpack.c.b16 %v6889, %v6880
    %v6980 = vpack.c.b16 %v6890, %v6881
    %v6981 = vpack.c.b16 %v6900, %v6891
    %v6982 = vpack.c.b16 %v6901, %v6892
    %v6983 = vpack.c.b16 %v6902, %v6893
    %v6984 = vpack.c.b16 %v6903, %v6894
    %v6985 = vpack.c.b16 %v6904, %v6895
    %v6986 = vpack.c.b16 %v6905, %v6896
    %v6987 = vpack.c.b16 %v6906, %v6897
    %v6988 = vpack.c.b16 %v6907, %v6898
    %v6989 = vpack.c.b16 %v6908, %v6899
    %v6990 = vpack.c.b16 %v6918, %v6909
    %v6991 = vpack.c.b16 %v6919, %v6910
    %v6992 = vpack.c.b16 %v6920, %v6911
    %v6993 = vpack.c.b16 %v6921, %v6912
    %v6994 = vpack.c.b16 %v6922, %v6913
    %v6995 = vpack.c.b16 %v6923, %v6914
    %v6996 = vpack.c.b16 %v6924, %v6915
    %v6997 = vpack.c.b16 %v6925, %v6916
    %v6998 = vpack.c.b16 %v6926, %v6917
    %7071 = vmatprep.subr.bf16.mxu0 %v6991
    %7072 = vmatpush1.bf16.msra.mxu0 %v6990
    %7073 = vmatprep.subr.bf16.mxu0 %v6982
    %7074 = vmatpush1.bf16.msra.mxu0 %v6981
    %7075 = vmatprep.subr.bf16.mxu0 %v6973
    %7076 = vmatpush1.bf16.msra.mxu0 %v6972
    %7077 = vmatprep.subr.bf16.mxu0 %v6964
    %7078 = vmatpush1.bf16.msra.mxu0 %v6963
    %7079 = vmatprep.subr.bf16.mxu0 %v6955
    %7080 = vmatpush1.bf16.msra.mxu0 %v6954
    %7081 = vmatprep.subr.bf16.mxu0 %v6946
    %7082 = vmatpush1.bf16.msra.mxu0 %v6945
    %7083 = vmatprep.subr.bf16.mxu0 %v6937
    %7084 = vmatpush1.bf16.msra.mxu0 %v6936
    %7085 = vmatprep.subr.bf16.mxu0 %v6928
    %7086 = vmatpush1.bf16.msra.mxu0 %v6927
    %7087 = vmatprep.subr.bf16.mxu0 0
    %7088 = vmatpush2.bf16.msra.mxu0 0
    %7089 = vmatprep.subr.bf16.mxu0 0
    %7090 = vmatpush2.bf16.msra.mxu0 0
    %7091 = vmatprep.subr.bf16.mxu0 0
    %7092 = vmatpush2.bf16.msra.mxu0 0
    %7093 = vmatprep.subr.bf16.mxu0 0
    %7094 = vmatpush2.bf16.msra.mxu0 0
    %7095 = vmatprep.subr.bf16.mxu0 0
    %7096 = vmatpush2.bf16.msra.mxu0 0
    %7097 = vmatprep.subr.bf16.mxu0 0
    %7098 = vmatpush2.bf16.msra.mxu0 0
    %7099 = vmatprep.subr.bf16.mxu0 0
    %7100 = vmatpush2.bf16.msra.mxu0 0
    %7101 = vmatprep.subr.bf16.mxu0 0
    %7102 = vmatpush2.bf16.msra.mxu0 0
    %7103 = vmatprep.mubr.bf16.mxu0 0
    %7104 = vmatmul.mubr.bf16.gmra.mxu0 %v6615
    %v7105 = vpop.f32.mrf.mxu0
    %v7106 = vadd.f32 0.0, %v7105
    %v7107 = vpop.f32.mrf.mxu0
    %v7108 = vadd.f32 0.0, %v7107
    %v7109 = vpop.f32.mrf.mxu0
    %v7110 = vadd.f32 0.0, %v7109
    %v7111 = vpop.f32.mrf.mxu0
    %v7112 = vadd.f32 0.0, %v7111
    %7113 = vmatprep.mubr.bf16.mxu0 0
    %7114 = vmatmul.mubr.bf16.gmra.mxu0 %v6616
    %v7115 = vpop.f32.mrf.mxu0
    %v7116 = vadd.f32 0.0, %v7115
    %v7117 = vpop.f32.mrf.mxu0
    %v7118 = vadd.f32 0.0, %v7117
    %v7119 = vpop.f32.mrf.mxu0
    %v7120 = vadd.f32 0.0, %v7119
    %v7121 = vpop.f32.mrf.mxu0
    %v7122 = vadd.f32 0.0, %v7121
    %7123 = vmatprep.mubr.bf16.mxu0 0
    %7124 = vmatmul.mubr.bf16.gmra.mxu0 %v6617
    %v7125 = vpop.f32.mrf.mxu0
    %v7126 = vadd.f32 0.0, %v7125
    %v7127 = vpop.f32.mrf.mxu0
    %v7128 = vadd.f32 0.0, %v7127
    %v7129 = vpop.f32.mrf.mxu0
    %v7130 = vadd.f32 0.0, %v7129
    %v7131 = vpop.f32.mrf.mxu0
    %v7132 = vadd.f32 0.0, %v7131
    %7133 = vmatprep.mubr.bf16.mxu0 0
    %7134 = vmatmul.mubr.bf16.gmra.mxu0 %v6618
    %v7135 = vpop.f32.mrf.mxu0
    %v7136 = vadd.f32 0.0, %v7135
    %v7137 = vpop.f32.mrf.mxu0
    %v7138 = vadd.f32 0.0, %v7137
    %v7139 = vpop.f32.mrf.mxu0
    %v7140 = vadd.f32 0.0, %v7139
    %v7141 = vpop.f32.mrf.mxu0
    %v7142 = vadd.f32 0.0, %v7141
    %7143 = vmatprep.mubr.bf16.mxu0 0
    %7144 = vmatmul.mubr.bf16.gmra.mxu0 %v6619
    %v7145 = vpop.f32.mrf.mxu0
    %v7146 = vadd.f32 0.0, %v7145
    %v7147 = vpop.f32.mrf.mxu0
    %v7148 = vadd.f32 0.0, %v7147
    %v7149 = vpop.f32.mrf.mxu0
    %v7150 = vadd.f32 0.0, %v7149
    %v7151 = vpop.f32.mrf.mxu0
    %v7152 = vadd.f32 0.0, %v7151
    %7153 = vmatprep.mubr.bf16.mxu0 0
    %7154 = vmatmul.mubr.bf16.gmra.mxu0 %v6620
    %v7155 = vpop.f32.mrf.mxu0
    %v7156 = vadd.f32 0.0, %v7155
    %v7157 = vpop.f32.mrf.mxu0
    %v7158 = vadd.f32 0.0, %v7157
    %v7159 = vpop.f32.mrf.mxu0
    %v7160 = vadd.f32 0.0, %v7159
    %v7161 = vpop.f32.mrf.mxu0
    %v7162 = vadd.f32 0.0, %v7161
    %7163 = vmatprep.mubr.bf16.mxu0 0
    %7164 = vmatmul.mubr.bf16.gmra.mxu0 %v6621
    %v7165 = vpop.f32.mrf.mxu0
    %v7166 = vadd.f32 0.0, %v7165
    %v7167 = vpop.f32.mrf.mxu0
    %v7168 = vadd.f32 0.0, %v7167
    %v7169 = vpop.f32.mrf.mxu0
    %v7170 = vadd.f32 0.0, %v7169
    %v7171 = vpop.f32.mrf.mxu0
    %v7172 = vadd.f32 0.0, %v7171
    %7173 = vmatprep.mubr.bf16.mxu0 0
    %7174 = vmatmul.mubr.bf16.gmra.mxu0 %v6622
    %v7175 = vpop.f32.mrf.mxu0
    %v7176 = vadd.f32 0.0, %v7175
    %v7177 = vpop.f32.mrf.mxu0
    %v7178 = vadd.f32 0.0, %v7177
    %v7179 = vpop.f32.mrf.mxu0
    %v7180 = vadd.f32 0.0, %v7179
    %v7181 = vpop.f32.mrf.mxu0
    %v7182 = vadd.f32 0.0, %v7181
    %7183 = vdwg.mxu0
    %7184 = vmatprep.subr.bf16.mxu0 %v6993
    %7185 = vmatpush1.bf16.msra.mxu0 %v6992
    %7186 = vmatprep.subr.bf16.mxu0 %v6984
    %7187 = vmatpush1.bf16.msra.mxu0 %v6983
    %7188 = vmatprep.subr.bf16.mxu0 %v6975
    %7189 = vmatpush1.bf16.msra.mxu0 %v6974
    %7190 = vmatprep.subr.bf16.mxu0 %v6966
    %7191 = vmatpush1.bf16.msra.mxu0 %v6965
    %7192 = vmatprep.subr.bf16.mxu0 %v6957
    %7193 = vmatpush1.bf16.msra.mxu0 %v6956
    %7194 = vmatprep.subr.bf16.mxu0 %v6948
    %7195 = vmatpush1.bf16.msra.mxu0 %v6947
    %7196 = vmatprep.subr.bf16.mxu0 %v6939
    %7197 = vmatpush1.bf16.msra.mxu0 %v6938
    %7198 = vmatprep.subr.bf16.mxu0 %v6930
    %7199 = vmatpush1.bf16.msra.mxu0 %v6929
    %7200 = vmatprep.subr.bf16.mxu0 0
    %7201 = vmatpush2.bf16.msra.mxu0 0
    %7202 = vmatprep.subr.bf16.mxu0 0
    %7203 = vmatpush2.bf16.msra.mxu0 0
    %7204 = vmatprep.subr.bf16.mxu0 0
    %7205 = vmatpush2.bf16.msra.mxu0 0
    %7206 = vmatprep.subr.bf16.mxu0 0
    %7207 = vmatpush2.bf16.msra.mxu0 0
    %7208 = vmatprep.subr.bf16.mxu0 0
    %7209 = vmatpush2.bf16.msra.mxu0 0
    %7210 = vmatprep.subr.bf16.mxu0 0
    %7211 = vmatpush2.bf16.msra.mxu0 0
    %7212 = vmatprep.subr.bf16.mxu0 0
    %7213 = vmatpush2.bf16.msra.mxu0 0
    %7214 = vmatprep.subr.bf16.mxu0 0
    %7215 = vmatpush2.bf16.msra.mxu0 0
    %7216 = vmatprep.mubr.bf16.mxu0 0
    %7217 = vmatmul.mubr.bf16.gmra.mxu0 %v6615
    %v7218 = vpop.f32.mrf.mxu0
    %v7219 = vadd.f32 0.0, %v7218
    %v7220 = vpop.f32.mrf.mxu0
    %v7221 = vadd.f32 0.0, %v7220
    %v7222 = vpop.f32.mrf.mxu0
    %v7223 = vadd.f32 0.0, %v7222
    %v7224 = vpop.f32.mrf.mxu0
    %v7225 = vadd.f32 0.0, %v7224
    %7226 = vmatprep.mubr.bf16.mxu0 0
    %7227 = vmatmul.mubr.bf16.gmra.mxu0 %v6616
    %v7228 = vpop.f32.mrf.mxu0
    %v7229 = vadd.f32 0.0, %v7228
    %v7230 = vpop.f32.mrf.mxu0
    %v7231 = vadd.f32 0.0, %v7230
    %v7232 = vpop.f32.mrf.mxu0
    %v7233 = vadd.f32 0.0, %v7232
    %v7234 = vpop.f32.mrf.mxu0
    %v7235 = vadd.f32 0.0, %v7234
    %7236 = vmatprep.mubr.bf16.mxu0 0
    %7237 = vmatmul.mubr.bf16.gmra.mxu0 %v6617
    %v7238 = vpop.f32.mrf.mxu0
    %v7239 = vadd.f32 0.0, %v7238
    %v7240 = vpop.f32.mrf.mxu0
    %v7241 = vadd.f32 0.0, %v7240
    %v7242 = vpop.f32.mrf.mxu0
    %v7243 = vadd.f32 0.0, %v7242
    %v7244 = vpop.f32.mrf.mxu0
    %v7245 = vadd.f32 0.0, %v7244
    %7246 = vmatprep.mubr.bf16.mxu0 0
    %7247 = vmatmul.mubr.bf16.gmra.mxu0 %v6618
    %v7248 = vpop.f32.mrf.mxu0
    %v7249 = vadd.f32 0.0, %v7248
    %v7250 = vpop.f32.mrf.mxu0
    %v7251 = vadd.f32 0.0, %v7250
    %v7252 = vpop.f32.mrf.mxu0
    %v7253 = vadd.f32 0.0, %v7252
    %v7254 = vpop.f32.mrf.mxu0
    %v7255 = vadd.f32 0.0, %v7254
    %7256 = vmatprep.mubr.bf16.mxu0 0
    %7257 = vmatmul.mubr.bf16.gmra.mxu0 %v6619
    %v7258 = vpop.f32.mrf.mxu0
    %v7259 = vadd.f32 0.0, %v7258
    %v7260 = vpop.f32.mrf.mxu0
    %v7261 = vadd.f32 0.0, %v7260
    %v7262 = vpop.f32.mrf.mxu0
    %v7263 = vadd.f32 0.0, %v7262
    %v7264 = vpop.f32.mrf.mxu0
    %v7265 = vadd.f32 0.0, %v7264
    %7266 = vmatprep.mubr.bf16.mxu0 0
    %7267 = vmatmul.mubr.bf16.gmra.mxu0 %v6620
    %v7268 = vpop.f32.mrf.mxu0
    %v7269 = vadd.f32 0.0, %v7268
    %v7270 = vpop.f32.mrf.mxu0
    %v7271 = vadd.f32 0.0, %v7270
    %v7272 = vpop.f32.mrf.mxu0
    %v7273 = vadd.f32 0.0, %v7272
    %v7274 = vpop.f32.mrf.mxu0
    %v7275 = vadd.f32 0.0, %v7274
    %7276 = vmatprep.mubr.bf16.mxu0 0
    %7277 = vmatmul.mubr.bf16.gmra.mxu0 %v6621
    %v7278 = vpop.f32.mrf.mxu0
    %v7279 = vadd.f32 0.0, %v7278
    %v7280 = vpop.f32.mrf.mxu0
    %v7281 = vadd.f32 0.0, %v7280
    %v7282 = vpop.f32.mrf.mxu0
    %v7283 = vadd.f32 0.0, %v7282
    %v7284 = vpop.f32.mrf.mxu0
    %v7285 = vadd.f32 0.0, %v7284
    %7286 = vmatprep.mubr.bf16.mxu0 0
    %7287 = vmatmul.mubr.bf16.gmra.mxu0 %v6622
    %v7288 = vpop.f32.mrf.mxu0
    %v7289 = vadd.f32 0.0, %v7288
    %v7290 = vpop.f32.mrf.mxu0
    %v7291 = vadd.f32 0.0, %v7290
    %v7292 = vpop.f32.mrf.mxu0
    %v7293 = vadd.f32 0.0, %v7292
    %v7294 = vpop.f32.mrf.mxu0
    %v7295 = vadd.f32 0.0, %v7294
    %7296 = vdwg.mxu0
    %7297 = vmatprep.subr.bf16.mxu0 %v6995
    %7298 = vmatpush1.bf16.msra.mxu0 %v6994
    %7299 = vmatprep.subr.bf16.mxu0 %v6986
    %7300 = vmatpush1.bf16.msra.mxu0 %v6985
    %7301 = vmatprep.subr.bf16.mxu0 %v6977
    %7302 = vmatpush1.bf16.msra.mxu0 %v6976
    %7303 = vmatprep.subr.bf16.mxu0 %v6968
    %7304 = vmatpush1.bf16.msra.mxu0 %v6967
    %7305 = vmatprep.subr.bf16.mxu0 %v6959
    %7306 = vmatpush1.bf16.msra.mxu0 %v6958
    %7307 = vmatprep.subr.bf16.mxu0 %v6950
    %7308 = vmatpush1.bf16.msra.mxu0 %v6949
    %7309 = vmatprep.subr.bf16.mxu0 %v6941
    %7310 = vmatpush1.bf16.msra.mxu0 %v6940
    %7311 = vmatprep.subr.bf16.mxu0 %v6932
    %7312 = vmatpush1.bf16.msra.mxu0 %v6931
    %7313 = vmatprep.subr.bf16.mxu0 0
    %7314 = vmatpush2.bf16.msra.mxu0 0
    %7315 = vmatprep.subr.bf16.mxu0 0
    %7316 = vmatpush2.bf16.msra.mxu0 0
    %7317 = vmatprep.subr.bf16.mxu0 0
    %7318 = vmatpush2.bf16.msra.mxu0 0
    %7319 = vmatprep.subr.bf16.mxu0 0
    %7320 = vmatpush2.bf16.msra.mxu0 0
    %7321 = vmatprep.subr.bf16.mxu0 0
    %7322 = vmatpush2.bf16.msra.mxu0 0
    %7323 = vmatprep.subr.bf16.mxu0 0
    %7324 = vmatpush2.bf16.msra.mxu0 0
    %7325 = vmatprep.subr.bf16.mxu0 0
    %7326 = vmatpush2.bf16.msra.mxu0 0
    %7327 = vmatprep.subr.bf16.mxu0 0
    %7328 = vmatpush2.bf16.msra.mxu0 0
    %7329 = vmatprep.mubr.bf16.mxu0 0
    %7330 = vmatmul.mubr.bf16.gmra.mxu0 %v6615
    %v7331 = vpop.f32.mrf.mxu0
    %v7332 = vadd.f32 0.0, %v7331
    %v7333 = vpop.f32.mrf.mxu0
    %v7334 = vadd.f32 0.0, %v7333
    %v7335 = vpop.f32.mrf.mxu0
    %v7336 = vadd.f32 0.0, %v7335
    %v7337 = vpop.f32.mrf.mxu0
    %v7338 = vadd.f32 0.0, %v7337
    %7339 = vmatprep.mubr.bf16.mxu0 0
    %7340 = vmatmul.mubr.bf16.gmra.mxu0 %v6616
    %v7341 = vpop.f32.mrf.mxu0
    %v7342 = vadd.f32 0.0, %v7341
    %v7343 = vpop.f32.mrf.mxu0
    %v7344 = vadd.f32 0.0, %v7343
    %v7345 = vpop.f32.mrf.mxu0
    %v7346 = vadd.f32 0.0, %v7345
    %v7347 = vpop.f32.mrf.mxu0
    %v7348 = vadd.f32 0.0, %v7347
    %7349 = vmatprep.mubr.bf16.mxu0 0
    %7350 = vmatmul.mubr.bf16.gmra.mxu0 %v6617
    %v7351 = vpop.f32.mrf.mxu0
    %v7352 = vadd.f32 0.0, %v7351
    %v7353 = vpop.f32.mrf.mxu0
    %v7354 = vadd.f32 0.0, %v7353
    %v7355 = vpop.f32.mrf.mxu0
    %v7356 = vadd.f32 0.0, %v7355
    %v7357 = vpop.f32.mrf.mxu0
    %v7358 = vadd.f32 0.0, %v7357
    %7359 = vmatprep.mubr.bf16.mxu0 0
    %7360 = vmatmul.mubr.bf16.gmra.mxu0 %v6618
    %v7361 = vpop.f32.mrf.mxu0
    %v7362 = vadd.f32 0.0, %v7361
    %v7363 = vpop.f32.mrf.mxu0
    %v7364 = vadd.f32 0.0, %v7363
    %v7365 = vpop.f32.mrf.mxu0
    %v7366 = vadd.f32 0.0, %v7365
    %v7367 = vpop.f32.mrf.mxu0
    %v7368 = vadd.f32 0.0, %v7367
    %7369 = vmatprep.mubr.bf16.mxu0 0
    %7370 = vmatmul.mubr.bf16.gmra.mxu0 %v6619
    %v7371 = vpop.f32.mrf.mxu0
    %v7372 = vadd.f32 0.0, %v7371
    %v7373 = vpop.f32.mrf.mxu0
    %v7374 = vadd.f32 0.0, %v7373
    %v7375 = vpop.f32.mrf.mxu0
    %v7376 = vadd.f32 0.0, %v7375
    %v7377 = vpop.f32.mrf.mxu0
    %v7378 = vadd.f32 0.0, %v7377
    %7379 = vmatprep.mubr.bf16.mxu0 0
    %7380 = vmatmul.mubr.bf16.gmra.mxu0 %v6620
    %v7381 = vpop.f32.mrf.mxu0
    %v7382 = vadd.f32 0.0, %v7381
    %v7383 = vpop.f32.mrf.mxu0
    %v7384 = vadd.f32 0.0, %v7383
    %v7385 = vpop.f32.mrf.mxu0
    %v7386 = vadd.f32 0.0, %v7385
    %v7387 = vpop.f32.mrf.mxu0
    %v7388 = vadd.f32 0.0, %v7387
    %7389 = vmatprep.mubr.bf16.mxu0 0
    %7390 = vmatmul.mubr.bf16.gmra.mxu0 %v6621
    %v7391 = vpop.f32.mrf.mxu0
    %v7392 = vadd.f32 0.0, %v7391
    %v7393 = vpop.f32.mrf.mxu0
    %v7394 = vadd.f32 0.0, %v7393
    %v7395 = vpop.f32.mrf.mxu0
    %v7396 = vadd.f32 0.0, %v7395
    %v7397 = vpop.f32.mrf.mxu0
    %v7398 = vadd.f32 0.0, %v7397
    %7399 = vmatprep.mubr.bf16.mxu0 0
    %7400 = vmatmul.mubr.bf16.gmra.mxu0 %v6622
    %v7401 = vpop.f32.mrf.mxu0
    %v7402 = vadd.f32 0.0, %v7401
    %v7403 = vpop.f32.mrf.mxu0
    %v7404 = vadd.f32 0.0, %v7403
    %v7405 = vpop.f32.mrf.mxu0
    %v7406 = vadd.f32 0.0, %v7405
    %v7407 = vpop.f32.mrf.mxu0
    %v7408 = vadd.f32 0.0, %v7407
    %7409 = vdwg.mxu0
    %7410 = vmatprep.subr.bf16.mxu0 %v6997
    %7411 = vmatpush1.bf16.msra.mxu0 %v6996
    %7412 = vmatprep.subr.bf16.mxu0 %v6988
    %7413 = vmatpush1.bf16.msra.mxu0 %v6987
    %7414 = vmatprep.subr.bf16.mxu0 %v6979
    %7415 = vmatpush1.bf16.msra.mxu0 %v6978
    %7416 = vmatprep.subr.bf16.mxu0 %v6970
    %7417 = vmatpush1.bf16.msra.mxu0 %v6969
    %7418 = vmatprep.subr.bf16.mxu0 %v6961
    %7419 = vmatpush1.bf16.msra.mxu0 %v6960
    %7420 = vmatprep.subr.bf16.mxu0 %v6952
    %7421 = vmatpush1.bf16.msra.mxu0 %v6951
    %7422 = vmatprep.subr.bf16.mxu0 %v6943
    %7423 = vmatpush1.bf16.msra.mxu0 %v6942
    %7424 = vmatprep.subr.bf16.mxu0 %v6934
    %7425 = vmatpush1.bf16.msra.mxu0 %v6933
    %7426 = vmatprep.subr.bf16.mxu0 0
    %7427 = vmatpush2.bf16.msra.mxu0 0
    %7428 = vmatprep.subr.bf16.mxu0 0
    %7429 = vmatpush2.bf16.msra.mxu0 0
    %7430 = vmatprep.subr.bf16.mxu0 0
    %7431 = vmatpush2.bf16.msra.mxu0 0
    %7432 = vmatprep.subr.bf16.mxu0 0
    %7433 = vmatpush2.bf16.msra.mxu0 0
    %7434 = vmatprep.subr.bf16.mxu0 0
    %7435 = vmatpush2.bf16.msra.mxu0 0
    %7436 = vmatprep.subr.bf16.mxu0 0
    %7437 = vmatpush2.bf16.msra.mxu0 0
    %7438 = vmatprep.subr.bf16.mxu0 0
    %7439 = vmatpush2.bf16.msra.mxu0 0
    %7440 = vmatprep.subr.bf16.mxu0 0
    %7441 = vmatpush2.bf16.msra.mxu0 0
    %7442 = vmatprep.mubr.bf16.mxu0 0
    %7443 = vmatmul.mubr.bf16.gmra.mxu0 %v6615
    %v7444 = vpop.f32.mrf.mxu0
    %v7445 = vadd.f32 0.0, %v7444
    %v7446 = vpop.f32.mrf.mxu0
    %v7447 = vadd.f32 0.0, %v7446
    %v7448 = vpop.f32.mrf.mxu0
    %v7449 = vadd.f32 0.0, %v7448
    %v7450 = vpop.f32.mrf.mxu0
    %v7451 = vadd.f32 0.0, %v7450
    %7452 = vmatprep.mubr.bf16.mxu0 0
    %7453 = vmatmul.mubr.bf16.gmra.mxu0 %v6616
    %v7454 = vpop.f32.mrf.mxu0
    %v7455 = vadd.f32 0.0, %v7454
    %v7456 = vpop.f32.mrf.mxu0
    %v7457 = vadd.f32 0.0, %v7456
    %v7458 = vpop.f32.mrf.mxu0
    %v7459 = vadd.f32 0.0, %v7458
    %v7460 = vpop.f32.mrf.mxu0
    %v7461 = vadd.f32 0.0, %v7460
    %7462 = vmatprep.mubr.bf16.mxu0 0
    %7463 = vmatmul.mubr.bf16.gmra.mxu0 %v6617
    %v7464 = vpop.f32.mrf.mxu0
    %v7465 = vadd.f32 0.0, %v7464
    %v7466 = vpop.f32.mrf.mxu0
    %v7467 = vadd.f32 0.0, %v7466
    %v7468 = vpop.f32.mrf.mxu0
    %v7469 = vadd.f32 0.0, %v7468
    %v7470 = vpop.f32.mrf.mxu0
    %v7471 = vadd.f32 0.0, %v7470
    %7472 = vmatprep.mubr.bf16.mxu0 0
    %7473 = vmatmul.mubr.bf16.gmra.mxu0 %v6618
    %v7474 = vpop.f32.mrf.mxu0
    %v7475 = vadd.f32 0.0, %v7474
    %v7476 = vpop.f32.mrf.mxu0
    %v7477 = vadd.f32 0.0, %v7476
    %v7478 = vpop.f32.mrf.mxu0
    %v7479 = vadd.f32 0.0, %v7478
    %v7480 = vpop.f32.mrf.mxu0
    %v7481 = vadd.f32 0.0, %v7480
    %7482 = vmatprep.mubr.bf16.mxu0 0
    %7483 = vmatmul.mubr.bf16.gmra.mxu0 %v6619
    %v7484 = vpop.f32.mrf.mxu0
    %v7485 = vadd.f32 0.0, %v7484
    %v7486 = vpop.f32.mrf.mxu0
    %v7487 = vadd.f32 0.0, %v7486
    %v7488 = vpop.f32.mrf.mxu0
    %v7489 = vadd.f32 0.0, %v7488
    %v7490 = vpop.f32.mrf.mxu0
    %v7491 = vadd.f32 0.0, %v7490
    %7492 = vmatprep.mubr.bf16.mxu0 0
    %7493 = vmatmul.mubr.bf16.gmra.mxu0 %v6620
    %v7494 = vpop.f32.mrf.mxu0
    %v7495 = vadd.f32 0.0, %v7494
    %v7496 = vpop.f32.mrf.mxu0
    %v7497 = vadd.f32 0.0, %v7496
    %v7498 = vpop.f32.mrf.mxu0
    %v7499 = vadd.f32 0.0, %v7498
    %v7500 = vpop.f32.mrf.mxu0
    %v7501 = vadd.f32 0.0, %v7500
    %7502 = vmatprep.mubr.bf16.mxu0 0
    %7503 = vmatmul.mubr.bf16.gmra.mxu0 %v6621
    %v7504 = vpop.f32.mrf.mxu0
    %v7505 = vadd.f32 0.0, %v7504
    %v7506 = vpop.f32.mrf.mxu0
    %v7507 = vadd.f32 0.0, %v7506
    %v7508 = vpop.f32.mrf.mxu0
    %v7509 = vadd.f32 0.0, %v7508
    %v7510 = vpop.f32.mrf.mxu0
    %v7511 = vadd.f32 0.0, %v7510
    %7512 = vmatprep.mubr.bf16.mxu0 0
    %7513 = vmatmul.mubr.bf16.gmra.mxu0 %v6622
    %v7514 = vpop.f32.mrf.mxu0
    %v7515 = vadd.f32 0.0, %v7514
    %v7516 = vpop.f32.mrf.mxu0
    %v7517 = vadd.f32 0.0, %v7516
    %v7518 = vpop.f32.mrf.mxu0
    %v7519 = vadd.f32 0.0, %v7518
    %v7520 = vpop.f32.mrf.mxu0
    %v7521 = vadd.f32 0.0, %v7520
    %7522 = vdwg.mxu0
    %7523 = vmatprep.subr.bf16.mxu0 0
    %7524 = vmatpush1.bf16.msra.mxu0 %v6998
    %7525 = vmatprep.subr.bf16.mxu0 0
    %7526 = vmatpush1.bf16.msra.mxu0 %v6989
    %7527 = vmatprep.subr.bf16.mxu0 0
    %7528 = vmatpush1.bf16.msra.mxu0 %v6980
    %7529 = vmatprep.subr.bf16.mxu0 0
    %7530 = vmatpush1.bf16.msra.mxu0 %v6971
    %7531 = vmatprep.subr.bf16.mxu0 0
    %7532 = vmatpush1.bf16.msra.mxu0 %v6962
    %7533 = vmatprep.subr.bf16.mxu0 0
    %7534 = vmatpush1.bf16.msra.mxu0 %v6953
    %7535 = vmatprep.subr.bf16.mxu0 0
    %7536 = vmatpush1.bf16.msra.mxu0 %v6944
    %7537 = vmatprep.subr.bf16.mxu0 0
    %7538 = vmatpush1.bf16.msra.mxu0 %v6935
    %7539 = vmatprep.subr.bf16.mxu0 0
    %7540 = vmatpush2.bf16.msra.mxu0 0
    %7541 = vmatprep.subr.bf16.mxu0 0
    %7542 = vmatpush2.bf16.msra.mxu0 0
    %7543 = vmatprep.subr.bf16.mxu0 0
    %7544 = vmatpush2.bf16.msra.mxu0 0
    %7545 = vmatprep.subr.bf16.mxu0 0
    %7546 = vmatpush2.bf16.msra.mxu0 0
    %7547 = vmatprep.subr.bf16.mxu0 0
    %7548 = vmatpush2.bf16.msra.mxu0 0
    %7549 = vmatprep.subr.bf16.mxu0 0
    %7550 = vmatpush2.bf16.msra.mxu0 0
    %7551 = vmatprep.subr.bf16.mxu0 0
    %7552 = vmatpush2.bf16.msra.mxu0 0
    %7553 = vmatprep.subr.bf16.mxu0 0
    %7554 = vmatpush2.bf16.msra.mxu0 0
    %7555 = vmatprep.mubr.bf16.mxu0 0
    %7556 = vmatmul.mubr.bf16.gmra.mxu0 %v6615
    %v7557 = vpop.f32.mrf.mxu0
    %v7558 = vadd.f32 0.0, %v7557
    %v7559 = vpop.f32.mrf.mxu0
    %v7560 = vpop.f32.mrf.mxu0
    %v7561 = vadd.f32 0.0, %v7560
    %v7562 = vpop.f32.mrf.mxu0
    %7563 = vmatprep.mubr.bf16.mxu0 0
    %7564 = vmatmul.mubr.bf16.gmra.mxu0 %v6616
    %v7565 = vpop.f32.mrf.mxu0
    %v7566 = vadd.f32 0.0, %v7565
    %v7567 = vpop.f32.mrf.mxu0
    %v7568 = vpop.f32.mrf.mxu0
    %v7569 = vadd.f32 0.0, %v7568
    %v7570 = vpop.f32.mrf.mxu0
    %7571 = vmatprep.mubr.bf16.mxu0 0
    %7572 = vmatmul.mubr.bf16.gmra.mxu0 %v6617
    %v7573 = vpop.f32.mrf.mxu0
    %v7574 = vadd.f32 0.0, %v7573
    %v7575 = vpop.f32.mrf.mxu0
    %v7576 = vpop.f32.mrf.mxu0
    %v7577 = vadd.f32 0.0, %v7576
    %v7578 = vpop.f32.mrf.mxu0
    %7579 = vmatprep.mubr.bf16.mxu0 0
    %7580 = vmatmul.mubr.bf16.gmra.mxu0 %v6618
    %v7581 = vpop.f32.mrf.mxu0
    %v7582 = vadd.f32 0.0, %v7581
    %v7583 = vpop.f32.mrf.mxu0
    %v7584 = vpop.f32.mrf.mxu0
    %v7585 = vadd.f32 0.0, %v7584
    %v7586 = vpop.f32.mrf.mxu0
    %7587 = vmatprep.mubr.bf16.mxu0 0
    %7588 = vmatmul.mubr.bf16.gmra.mxu0 %v6619
    %v7589 = vpop.f32.mrf.mxu0
    %v7590 = vadd.f32 0.0, %v7589
    %v7591 = vpop.f32.mrf.mxu0
    %v7592 = vpop.f32.mrf.mxu0
    %v7593 = vadd.f32 0.0, %v7592
    %v7594 = vpop.f32.mrf.mxu0
    %7595 = vmatprep.mubr.bf16.mxu0 0
    %7596 = vmatmul.mubr.bf16.gmra.mxu0 %v6620
    %v7597 = vpop.f32.mrf.mxu0
    %v7598 = vadd.f32 0.0, %v7597
    %v7599 = vpop.f32.mrf.mxu0
    %v7600 = vpop.f32.mrf.mxu0
    %v7601 = vadd.f32 0.0, %v7600
    %v7602 = vpop.f32.mrf.mxu0
    %7603 = vmatprep.mubr.bf16.mxu0 0
    %7604 = vmatmul.mubr.bf16.gmra.mxu0 %v6621
    %v7605 = vpop.f32.mrf.mxu0
    %v7606 = vadd.f32 0.0, %v7605
    %v7607 = vpop.f32.mrf.mxu0
    %v7608 = vpop.f32.mrf.mxu0
    %v7609 = vadd.f32 0.0, %v7608
    %v7610 = vpop.f32.mrf.mxu0
    %7611 = vmatprep.mubr.bf16.mxu0 0
    %7612 = vmatmul.mubr.bf16.gmra.mxu0 %v6622
    %v7613 = vpop.f32.mrf.mxu0
    %v7614 = vadd.f32 0.0, %v7613
    %v7615 = vpop.f32.mrf.mxu0
    %v7616 = vpop.f32.mrf.mxu0
    %v7617 = vadd.f32 0.0, %v7616
    %v7618 = vpop.f32.mrf.mxu0
    %7619 = vdwg.mxu0
    %v7620 = vpack.c.bf16 %v7110, %v7106
    %v7621 = vpack.c.bf16 %v7112, %v7108
    %v7622 = vpack.c.bf16 %v7223, %v7219
    %v7623 = vpack.c.bf16 %v7225, %v7221
    %v7624 = vpack.c.bf16 %v7336, %v7332
    %v7625 = vpack.c.bf16 %v7338, %v7334
    %v7626 = vpack.c.bf16 %v7449, %v7445
    %v7627 = vpack.c.bf16 %v7451, %v7447
    %v7628 = vpack.c.bf16 %v7561, %v7558
    %v7629 = vpack.c.bf16 %v7120, %v7116
    %v7630 = vpack.c.bf16 %v7122, %v7118
    %v7631 = vpack.c.bf16 %v7233, %v7229
    %v7632 = vpack.c.bf16 %v7235, %v7231
    %v7633 = vpack.c.bf16 %v7346, %v7342
    %v7634 = vpack.c.bf16 %v7348, %v7344
    %v7635 = vpack.c.bf16 %v7459, %v7455
    %v7636 = vpack.c.bf16 %v7461, %v7457
    %v7637 = vpack.c.bf16 %v7569, %v7566
    %v7638 = vpack.c.bf16 %v7130, %v7126
    %v7639 = vpack.c.bf16 %v7132, %v7128
    %v7640 = vpack.c.bf16 %v7243, %v7239
    %v7641 = vpack.c.bf16 %v7245, %v7241
    %v7642 = vpack.c.bf16 %v7356, %v7352
    %v7643 = vpack.c.bf16 %v7358, %v7354
    %v7644 = vpack.c.bf16 %v7469, %v7465
    %v7645 = vpack.c.bf16 %v7471, %v7467
    %v7646 = vpack.c.bf16 %v7577, %v7574
    %v7647 = vpack.c.bf16 %v7140, %v7136
    %v7648 = vpack.c.bf16 %v7142, %v7138
    %v7649 = vpack.c.bf16 %v7253, %v7249
    %v7650 = vpack.c.bf16 %v7255, %v7251
    %v7651 = vpack.c.bf16 %v7366, %v7362
    %v7652 = vpack.c.bf16 %v7368, %v7364
    %v7653 = vpack.c.bf16 %v7479, %v7475
    %v7654 = vpack.c.bf16 %v7481, %v7477
    %v7655 = vpack.c.bf16 %v7585, %v7582
    %v7656 = vpack.c.bf16 %v7150, %v7146
    %v7657 = vpack.c.bf16 %v7152, %v7148
    %v7658 = vpack.c.bf16 %v7263, %v7259
    %v7659 = vpack.c.bf16 %v7265, %v7261
    %v7660 = vpack.c.bf16 %v7376, %v7372
    %v7661 = vpack.c.bf16 %v7378, %v7374
    %v7662 = vpack.c.bf16 %v7489, %v7485
    %v7663 = vpack.c.bf16 %v7491, %v7487
    %v7664 = vpack.c.bf16 %v7593, %v7590
    %v7665 = vpack.c.bf16 %v7160, %v7156
    %v7666 = vpack.c.bf16 %v7162, %v7158
    %v7667 = vpack.c.bf16 %v7273, %v7269
    %v7668 = vpack.c.bf16 %v7275, %v7271
    %v7669 = vpack.c.bf16 %v7386, %v7382
    %v7670 = vpack.c.bf16 %v7388, %v7384
    %v7671 = vpack.c.bf16 %v7499, %v7495
    %v7672 = vpack.c.bf16 %v7501, %v7497
    %v7673 = vpack.c.bf16 %v7601, %v7598
    %v7674 = vpack.c.bf16 %v7170, %v7166
    %v7675 = vpack.c.bf16 %v7172, %v7168
    %v7676 = vpack.c.bf16 %v7283, %v7279
    %v7677 = vpack.c.bf16 %v7285, %v7281
    %v7678 = vpack.c.bf16 %v7396, %v7392
    %v7679 = vpack.c.bf16 %v7398, %v7394
    %v7680 = vpack.c.bf16 %v7509, %v7505
    %v7681 = vpack.c.bf16 %v7511, %v7507
    %v7682 = vpack.c.bf16 %v7609, %v7606
    %v7683 = vpack.c.bf16 %v7180, %v7176
    %v7684 = vpack.c.bf16 %v7182, %v7178
    %v7685 = vpack.c.bf16 %v7293, %v7289
    %v7686 = vpack.c.bf16 %v7295, %v7291
    %v7687 = vpack.c.bf16 %v7406, %v7402
    %v7688 = vpack.c.bf16 %v7408, %v7404
    %v7689 = vpack.c.bf16 %v7519, %v7515
    %v7690 = vpack.c.bf16 %v7521, %v7517
    %v7691 = vpack.c.bf16 %v7617, %v7614
    %v7692 = vld [vmem:[#allocation9] sm:$0xf]
    %v7693 = vld [vmem:[#allocation9 + $0x4] sm:$0xf]
    %v7694 = vld [vmem:[#allocation9 + $0x8] sm:$0xf]
    %v7695 = vld [vmem:[#allocation9 + $0xc] sm:$0xf]
    %s7696 = scalar_lea.vmem [#allocation9], 16
    %v7697 = vld [vmem:[%s7696] sm:$0xf]
    %v7698 = vld [vmem:[%s7696 + $0x4] sm:$0xf]
    %v7699 = vld [vmem:[%s7696 + $0x8] sm:$0xf]
    %v7700 = vld [vmem:[%s7696 + $0xc] sm:$0xf]
    %v7705 = vunpack.c.l.b16 %v7697
    %v7706 = vunpack.c.l.b16 %v7698
    %v7707 = vunpack.c.l.b16 %v7699
    %v7708 = vunpack.c.l.b16 %v7700
    %v7709 = vpack.c.b16 %v7706, %v7705
    %v7710 = vpack.c.b16 %v7708, %v7707
    %7713 = vmatprep.subr.bf16.mxu0 0
    %7714 = vmatpush1.bf16.msra.mxu0 %v7684
    %7715 = vmatprep.subr.bf16.mxu0 0
    %7716 = vmatpush1.bf16.msra.mxu0 %v7675
    %7717 = vmatprep.subr.bf16.mxu0 0
    %7718 = vmatpush1.bf16.msra.mxu0 %v7666
    %7719 = vmatprep.subr.bf16.mxu0 0
    %7720 = vmatpush1.bf16.msra.mxu0 %v7657
    %7721 = vmatprep.subr.bf16.mxu0 0
    %7722 = vmatpush1.bf16.msra.mxu0 %v7648
    %7723 = vmatprep.subr.bf16.mxu0 0
    %7724 = vmatpush1.bf16.msra.mxu0 %v7639
    %7725 = vmatprep.subr.bf16.mxu0 0
    %7726 = vmatpush1.bf16.msra.mxu0 %v7630
    %7727 = vmatprep.subr.bf16.mxu0 0
    %7728 = vmatpush1.bf16.msra.mxu0 %v7621
    %7729 = vmatprep.subr.bf16.mxu0 0
    %7730 = vmatpush2.bf16.msra.mxu0 0
    %7731 = vmatprep.subr.bf16.mxu0 0
    %7732 = vmatpush2.bf16.msra.mxu0 0
    %7733 = vmatprep.subr.bf16.mxu0 0
    %7734 = vmatpush2.bf16.msra.mxu0 0
    %7735 = vmatprep.subr.bf16.mxu0 0
    %7736 = vmatpush2.bf16.msra.mxu0 0
    %7737 = vmatprep.subr.bf16.mxu0 0
    %7738 = vmatpush2.bf16.msra.mxu0 0
    %7739 = vmatprep.subr.bf16.mxu0 0
    %7740 = vmatpush2.bf16.msra.mxu0 0
    %7741 = vmatprep.subr.bf16.mxu0 0
    %7742 = vmatpush2.bf16.msra.mxu0 0
    %7743 = vmatprep.subr.bf16.mxu0 0
    %7744 = vmatpush2.bf16.msra.mxu0 0
    %7745 = vmatprep.mubr.bf16.mxu0 0
    %7746 = vmatmul.mubr.bf16.gmra.mxu0 %v7709
    %v7747 = vpop.f32.mrf.mxu0
    %v7748 = vadd.f32 0.0, %v7747
    %v7749 = vpop.f32.mrf.mxu0
    %v7750 = vpop.f32.mrf.mxu0
    %v7751 = vadd.f32 0.0, %v7750
    %v7752 = vpop.f32.mrf.mxu0
    %7753 = vmatprep.mubr.bf16.mxu0 0
    %7754 = vmatmul.mubr.bf16.gmra.mxu0 %v7710
    %v7755 = vpop.f32.mrf.mxu0
    %v7756 = vadd.f32 0.0, %v7755
    %v7757 = vpop.f32.mrf.mxu0
    %v7758 = vpop.f32.mrf.mxu0
    %v7759 = vadd.f32 0.0, %v7758
    %v7760 = vpop.f32.mrf.mxu0
    %7761 = vdwg.mxu0
    %v7766 = vunpack.c.l.b16 %v7692
    %v7767 = vunpack.c.l.b16 %v7693
    %v7768 = vunpack.c.l.b16 %v7694
    %v7769 = vunpack.c.l.b16 %v7695
    %v7770 = vpack.c.b16 %v7767, %v7766
    %v7771 = vpack.c.b16 %v7769, %v7768
    %7774 = vmatprep.subr.bf16.mxu0 0
    %7775 = vmatpush1.bf16.msra.mxu0 %v7683
    %7776 = vmatprep.subr.bf16.mxu0 0
    %7777 = vmatpush1.bf16.msra.mxu0 %v7674
    %7778 = vmatprep.subr.bf16.mxu0 0
    %7779 = vmatpush1.bf16.msra.mxu0 %v7665
    %7780 = vmatprep.subr.bf16.mxu0 0
    %7781 = vmatpush1.bf16.msra.mxu0 %v7656
    %7782 = vmatprep.subr.bf16.mxu0 0
    %7783 = vmatpush1.bf16.msra.mxu0 %v7647
    %7784 = vmatprep.subr.bf16.mxu0 0
    %7785 = vmatpush1.bf16.msra.mxu0 %v7638
    %7786 = vmatprep.subr.bf16.mxu0 0
    %7787 = vmatpush1.bf16.msra.mxu0 %v7629
    %7788 = vmatprep.subr.bf16.mxu0 0
    %7789 = vmatpush1.bf16.msra.mxu0 %v7620
    %7790 = vmatprep.subr.bf16.mxu0 0
    %7791 = vmatpush2.bf16.msra.mxu0 0
    %7792 = vmatprep.subr.bf16.mxu0 0
    %7793 = vmatpush2.bf16.msra.mxu0 0
    %7794 = vmatprep.subr.bf16.mxu0 0
    %7795 = vmatpush2.bf16.msra.mxu0 0
    %7796 = vmatprep.subr.bf16.mxu0 0
    %7797 = vmatpush2.bf16.msra.mxu0 0
    %7798 = vmatprep.subr.bf16.mxu0 0
    %7799 = vmatpush2.bf16.msra.mxu0 0
    %7800 = vmatprep.subr.bf16.mxu0 0
    %7801 = vmatpush2.bf16.msra.mxu0 0
    %7802 = vmatprep.subr.bf16.mxu0 0
    %7803 = vmatpush2.bf16.msra.mxu0 0
    %7804 = vmatprep.subr.bf16.mxu0 0
    %7805 = vmatpush2.bf16.msra.mxu0 0
    %7806 = vmatprep.mubr.bf16.mxu0 0
    %7807 = vmatmul.mubr.bf16.gmra.mxu0 %v7770
    %v7808 = vpop.f32.mrf.mxu0
    %v7809 = vadd.f32 %v7748, %v7808
    %v7810 = vpop.f32.mrf.mxu0
    %v7811 = vpop.f32.mrf.mxu0
    %v7812 = vadd.f32 %v7751, %v7811
    %v7813 = vpop.f32.mrf.mxu0
    %7814 = vmatprep.mubr.bf16.mxu0 0
    %7815 = vmatmul.mubr.bf16.gmra.mxu0 %v7771
    %v7816 = vpop.f32.mrf.mxu0
    %v7817 = vadd.f32 %v7756, %v7816
    %v7818 = vpop.f32.mrf.mxu0
    %v7819 = vpop.f32.mrf.mxu0
    %v7820 = vadd.f32 %v7759, %v7819
    %v7821 = vpop.f32.mrf.mxu0
    %7822 = vdwg.mxu0
    %s7823 = scalar_lea.vmem [#allocation9], 32
    %v7824 = vld [vmem:[%s7823] sm:$0xf]
    %v7825 = vld [vmem:[%s7823 + $0x4] sm:$0xf]
    %v7826 = vld [vmem:[%s7823 + $0x8] sm:$0xf]
    %v7827 = vld [vmem:[%s7823 + $0xc] sm:$0xf]
    %v7832 = vunpack.c.l.b16 %v7824
    %v7833 = vunpack.c.l.b16 %v7825
    %v7834 = vunpack.c.l.b16 %v7826
    %v7835 = vunpack.c.l.b16 %v7827
    %v7836 = vpack.c.b16 %v7833, %v7832
    %v7837 = vpack.c.b16 %v7835, %v7834
    %7840 = vmatprep.subr.bf16.mxu0 0
    %7841 = vmatpush1.bf16.msra.mxu0 %v7685
    %7842 = vmatprep.subr.bf16.mxu0 0
    %7843 = vmatpush1.bf16.msra.mxu0 %v7676
    %7844 = vmatprep.subr.bf16.mxu0 0
    %7845 = vmatpush1.bf16.msra.mxu0 %v7667
    %7846 = vmatprep.subr.bf16.mxu0 0
    %7847 = vmatpush1.bf16.msra.mxu0 %v7658
    %7848 = vmatprep.subr.bf16.mxu0 0
    %7849 = vmatpush1.bf16.msra.mxu0 %v7649
    %7850 = vmatprep.subr.bf16.mxu0 0
    %7851 = vmatpush1.bf16.msra.mxu0 %v7640
    %7852 = vmatprep.subr.bf16.mxu0 0
    %7853 = vmatpush1.bf16.msra.mxu0 %v7631
    %7854 = vmatprep.subr.bf16.mxu0 0
    %7855 = vmatpush1.bf16.msra.mxu0 %v7622
    %7856 = vmatprep.subr.bf16.mxu0 0
    %7857 = vmatpush2.bf16.msra.mxu0 0
    %7858 = vmatprep.subr.bf16.mxu0 0
    %7859 = vmatpush2.bf16.msra.mxu0 0
    %7860 = vmatprep.subr.bf16.mxu0 0
    %7861 = vmatpush2.bf16.msra.mxu0 0
    %7862 = vmatprep.subr.bf16.mxu0 0
    %7863 = vmatpush2.bf16.msra.mxu0 0
    %7864 = vmatprep.subr.bf16.mxu0 0
    %7865 = vmatpush2.bf16.msra.mxu0 0
    %7866 = vmatprep.subr.bf16.mxu0 0
    %7867 = vmatpush2.bf16.msra.mxu0 0
    %7868 = vmatprep.subr.bf16.mxu0 0
    %7869 = vmatpush2.bf16.msra.mxu0 0
    %7870 = vmatprep.subr.bf16.mxu0 0
    %7871 = vmatpush2.bf16.msra.mxu0 0
    %7872 = vmatprep.mubr.bf16.mxu0 0
    %7873 = vmatmul.mubr.bf16.gmra.mxu0 %v7836
    %v7874 = vpop.f32.mrf.mxu0
    %v7875 = vadd.f32 0.0, %v7874
    %v7876 = vpop.f32.mrf.mxu0
    %v7877 = vpop.f32.mrf.mxu0
    %v7878 = vadd.f32 0.0, %v7877
    %v7879 = vpop.f32.mrf.mxu0
    %7880 = vmatprep.mubr.bf16.mxu0 0
    %7881 = vmatmul.mubr.bf16.gmra.mxu0 %v7837
    %v7882 = vpop.f32.mrf.mxu0
    %v7883 = vadd.f32 0.0, %v7882
    %v7884 = vpop.f32.mrf.mxu0
    %v7885 = vpop.f32.mrf.mxu0
    %v7886 = vadd.f32 0.0, %v7885
    %v7887 = vpop.f32.mrf.mxu0
    %7888 = vdwg.mxu0
    %v7889 = vadd.f32 %v7809, %v7875
    %v7890 = vadd.f32 %v7812, %v7878
    %v7891 = vadd.f32 %v7817, %v7883
    %v7892 = vadd.f32 %v7820, %v7886
    %s7893 = scalar_lea.vmem [#allocation9], 48
    %v7894 = vld [vmem:[%s7893] sm:$0xf]
    %v7895 = vld [vmem:[%s7893 + $0x4] sm:$0xf]
    %v7896 = vld [vmem:[%s7893 + $0x8] sm:$0xf]
    %v7897 = vld [vmem:[%s7893 + $0xc] sm:$0xf]
    %v7902 = vunpack.c.l.b16 %v7894
    %v7903 = vunpack.c.l.b16 %v7895
    %v7904 = vunpack.c.l.b16 %v7896
    %v7905 = vunpack.c.l.b16 %v7897
    %v7906 = vpack.c.b16 %v7903, %v7902
    %v7907 = vpack.c.b16 %v7905, %v7904
    %7910 = vmatprep.subr.bf16.mxu0 0
    %7911 = vmatpush1.bf16.msra.mxu0 %v7686
    %7912 = vmatprep.subr.bf16.mxu0 0
    %7913 = vmatpush1.bf16.msra.mxu0 %v7677
    %7914 = vmatprep.subr.bf16.mxu0 0
    %7915 = vmatpush1.bf16.msra.mxu0 %v7668
    %7916 = vmatprep.subr.bf16.mxu0 0
    %7917 = vmatpush1.bf16.msra.mxu0 %v7659
    %7918 = vmatprep.subr.bf16.mxu0 0
    %7919 = vmatpush1.bf16.msra.mxu0 %v7650
    %7920 = vmatprep.subr.bf16.mxu0 0
    %7921 = vmatpush1.bf16.msra.mxu0 %v7641
    %7922 = vmatprep.subr.bf16.mxu0 0
    %7923 = vmatpush1.bf16.msra.mxu0 %v7632
    %7924 = vmatprep.subr.bf16.mxu0 0
    %7925 = vmatpush1.bf16.msra.mxu0 %v7623
    %7926 = vmatprep.subr.bf16.mxu0 0
    %7927 = vmatpush2.bf16.msra.mxu0 0
    %7928 = vmatprep.subr.bf16.mxu0 0
    %7929 = vmatpush2.bf16.msra.mxu0 0
    %7930 = vmatprep.subr.bf16.mxu0 0
    %7931 = vmatpush2.bf16.msra.mxu0 0
    %7932 = vmatprep.subr.bf16.mxu0 0
    %7933 = vmatpush2.bf16.msra.mxu0 0
    %7934 = vmatprep.subr.bf16.mxu0 0
    %7935 = vmatpush2.bf16.msra.mxu0 0
    %7936 = vmatprep.subr.bf16.mxu0 0
    %7937 = vmatpush2.bf16.msra.mxu0 0
    %7938 = vmatprep.subr.bf16.mxu0 0
    %7939 = vmatpush2.bf16.msra.mxu0 0
    %7940 = vmatprep.subr.bf16.mxu0 0
    %7941 = vmatpush2.bf16.msra.mxu0 0
    %7942 = vmatprep.mubr.bf16.mxu0 0
    %7943 = vmatmul.mubr.bf16.gmra.mxu0 %v7906
    %v7944 = vpop.f32.mrf.mxu0
    %v7945 = vadd.f32 0.0, %v7944
    %v7946 = vpop.f32.mrf.mxu0
    %v7947 = vpop.f32.mrf.mxu0
    %v7948 = vadd.f32 0.0, %v7947
    %v7949 = vpop.f32.mrf.mxu0
    %7950 = vmatprep.mubr.bf16.mxu0 0
    %7951 = vmatmul.mubr.bf16.gmra.mxu0 %v7907
    %v7952 = vpop.f32.mrf.mxu0
    %v7953 = vadd.f32 0.0, %v7952
    %v7954 = vpop.f32.mrf.mxu0
    %v7955 = vpop.f32.mrf.mxu0
    %v7956 = vadd.f32 0.0, %v7955
    %v7957 = vpop.f32.mrf.mxu0
    %7958 = vdwg.mxu0
    %v7959 = vadd.f32 %v7889, %v7945
    %v7960 = vadd.f32 %v7890, %v7948
    %v7961 = vadd.f32 %v7891, %v7953
    %v7962 = vadd.f32 %v7892, %v7956
    %s7963 = scalar_lea.vmem [#allocation9], 64
    %v7964 = vld [vmem:[%s7963] sm:$0xf]
    %v7965 = vld [vmem:[%s7963 + $0x4] sm:$0xf]
    %v7966 = vld [vmem:[%s7963 + $0x8] sm:$0xf]
    %v7967 = vld [vmem:[%s7963 + $0xc] sm:$0xf]
    %v7972 = vunpack.c.l.b16 %v7964
    %v7973 = vunpack.c.l.b16 %v7965
    %v7974 = vunpack.c.l.b16 %v7966
    %v7975 = vunpack.c.l.b16 %v7967
    %v7976 = vpack.c.b16 %v7973, %v7972
    %v7977 = vpack.c.b16 %v7975, %v7974
    %7980 = vmatprep.subr.bf16.mxu0 0
    %7981 = vmatpush1.bf16.msra.mxu0 %v7687
    %7982 = vmatprep.subr.bf16.mxu0 0
    %7983 = vmatpush1.bf16.msra.mxu0 %v7678
    %7984 = vmatprep.subr.bf16.mxu0 0
    %7985 = vmatpush1.bf16.msra.mxu0 %v7669
    %7986 = vmatprep.subr.bf16.mxu0 0
    %7987 = vmatpush1.bf16.msra.mxu0 %v7660
    %7988 = vmatprep.subr.bf16.mxu0 0
    %7989 = vmatpush1.bf16.msra.mxu0 %v7651
    %7990 = vmatprep.subr.bf16.mxu0 0
    %7991 = vmatpush1.bf16.msra.mxu0 %v7642
    %7992 = vmatprep.subr.bf16.mxu0 0
    %7993 = vmatpush1.bf16.msra.mxu0 %v7633
    %7994 = vmatprep.subr.bf16.mxu0 0
    %7995 = vmatpush1.bf16.msra.mxu0 %v7624
    %7996 = vmatprep.subr.bf16.mxu0 0
    %7997 = vmatpush2.bf16.msra.mxu0 0
    %7998 = vmatprep.subr.bf16.mxu0 0
    %7999 = vmatpush2.bf16.msra.mxu0 0
    %8000 = vmatprep.subr.bf16.mxu0 0
    %8001 = vmatpush2.bf16.msra.mxu0 0
    %8002 = vmatprep.subr.bf16.mxu0 0
    %8003 = vmatpush2.bf16.msra.mxu0 0
    %8004 = vmatprep.subr.bf16.mxu0 0
    %8005 = vmatpush2.bf16.msra.mxu0 0
    %8006 = vmatprep.subr.bf16.mxu0 0
    %8007 = vmatpush2.bf16.msra.mxu0 0
    %8008 = vmatprep.subr.bf16.mxu0 0
    %8009 = vmatpush2.bf16.msra.mxu0 0
    %8010 = vmatprep.subr.bf16.mxu0 0
    %8011 = vmatpush2.bf16.msra.mxu0 0
    %8012 = vmatprep.mubr.bf16.mxu0 0
    %8013 = vmatmul.mubr.bf16.gmra.mxu0 %v7976
    %v8014 = vpop.f32.mrf.mxu0
    %v8015 = vadd.f32 0.0, %v8014
    %v8016 = vpop.f32.mrf.mxu0
    %v8017 = vpop.f32.mrf.mxu0
    %v8018 = vadd.f32 0.0, %v8017
    %v8019 = vpop.f32.mrf.mxu0
    %8020 = vmatprep.mubr.bf16.mxu0 0
    %8021 = vmatmul.mubr.bf16.gmra.mxu0 %v7977
    %v8022 = vpop.f32.mrf.mxu0
    %v8023 = vadd.f32 0.0, %v8022
    %v8024 = vpop.f32.mrf.mxu0
    %v8025 = vpop.f32.mrf.mxu0
    %v8026 = vadd.f32 0.0, %v8025
    %v8027 = vpop.f32.mrf.mxu0
    %8028 = vdwg.mxu0
    %v8029 = vadd.f32 %v7959, %v8015
    %v8030 = vadd.f32 %v7960, %v8018
    %v8031 = vadd.f32 %v7961, %v8023
    %v8032 = vadd.f32 %v7962, %v8026
    %s8033 = scalar_lea.vmem [#allocation9], 80
    %v8034 = vld [vmem:[%s8033] sm:$0xf]
    %v8035 = vld [vmem:[%s8033 + $0x4] sm:$0xf]
    %v8036 = vld [vmem:[%s8033 + $0x8] sm:$0xf]
    %v8037 = vld [vmem:[%s8033 + $0xc] sm:$0xf]
    %v8042 = vunpack.c.l.b16 %v8034
    %v8043 = vunpack.c.l.b16 %v8035
    %v8044 = vunpack.c.l.b16 %v8036
    %v8045 = vunpack.c.l.b16 %v8037
    %v8046 = vpack.c.b16 %v8043, %v8042
    %v8047 = vpack.c.b16 %v8045, %v8044
    %8050 = vmatprep.subr.bf16.mxu0 0
    %8051 = vmatpush1.bf16.msra.mxu0 %v7688
    %8052 = vmatprep.subr.bf16.mxu0 0
    %8053 = vmatpush1.bf16.msra.mxu0 %v7679
    %8054 = vmatprep.subr.bf16.mxu0 0
    %8055 = vmatpush1.bf16.msra.mxu0 %v7670
    %8056 = vmatprep.subr.bf16.mxu0 0
    %8057 = vmatpush1.bf16.msra.mxu0 %v7661
    %8058 = vmatprep.subr.bf16.mxu0 0
    %8059 = vmatpush1.bf16.msra.mxu0 %v7652
    %8060 = vmatprep.subr.bf16.mxu0 0
    %8061 = vmatpush1.bf16.msra.mxu0 %v7643
    %8062 = vmatprep.subr.bf16.mxu0 0
    %8063 = vmatpush1.bf16.msra.mxu0 %v7634
    %8064 = vmatprep.subr.bf16.mxu0 0
    %8065 = vmatpush1.bf16.msra.mxu0 %v7625
    %8066 = vmatprep.subr.bf16.mxu0 0
    %8067 = vmatpush2.bf16.msra.mxu0 0
    %8068 = vmatprep.subr.bf16.mxu0 0
    %8069 = vmatpush2.bf16.msra.mxu0 0
    %8070 = vmatprep.subr.bf16.mxu0 0
    %8071 = vmatpush2.bf16.msra.mxu0 0
    %8072 = vmatprep.subr.bf16.mxu0 0
    %8073 = vmatpush2.bf16.msra.mxu0 0
    %8074 = vmatprep.subr.bf16.mxu0 0
    %8075 = vmatpush2.bf16.msra.mxu0 0
    %8076 = vmatprep.subr.bf16.mxu0 0
    %8077 = vmatpush2.bf16.msra.mxu0 0
    %8078 = vmatprep.subr.bf16.mxu0 0
    %8079 = vmatpush2.bf16.msra.mxu0 0
    %8080 = vmatprep.subr.bf16.mxu0 0
    %8081 = vmatpush2.bf16.msra.mxu0 0
    %8082 = vmatprep.mubr.bf16.mxu0 0
    %8083 = vmatmul.mubr.bf16.gmra.mxu0 %v8046
    %v8084 = vpop.f32.mrf.mxu0
    %v8085 = vadd.f32 0.0, %v8084
    %v8086 = vpop.f32.mrf.mxu0
    %v8087 = vpop.f32.mrf.mxu0
    %v8088 = vadd.f32 0.0, %v8087
    %v8089 = vpop.f32.mrf.mxu0
    %8090 = vmatprep.mubr.bf16.mxu0 0
    %8091 = vmatmul.mubr.bf16.gmra.mxu0 %v8047
    %v8092 = vpop.f32.mrf.mxu0
    %v8093 = vadd.f32 0.0, %v8092
    %v8094 = vpop.f32.mrf.mxu0
    %v8095 = vpop.f32.mrf.mxu0
    %v8096 = vadd.f32 0.0, %v8095
    %v8097 = vpop.f32.mrf.mxu0
    %8098 = vdwg.mxu0
    %v8099 = vadd.f32 %v8029, %v8085
    %v8100 = vadd.f32 %v8030, %v8088
    %v8101 = vadd.f32 %v8031, %v8093
    %v8102 = vadd.f32 %v8032, %v8096
    %s8103 = scalar_lea.vmem [#allocation9], 96
    %v8104 = vld [vmem:[%s8103] sm:$0xf]
    %v8105 = vld [vmem:[%s8103 + $0x4] sm:$0xf]
    %v8106 = vld [vmem:[%s8103 + $0x8] sm:$0xf]
    %v8107 = vld [vmem:[%s8103 + $0xc] sm:$0xf]
    %v8112 = vunpack.c.l.b16 %v8104
    %v8113 = vunpack.c.l.b16 %v8105
    %v8114 = vunpack.c.l.b16 %v8106
    %v8115 = vunpack.c.l.b16 %v8107
    %v8116 = vpack.c.b16 %v8113, %v8112
    %v8117 = vpack.c.b16 %v8115, %v8114
    %8120 = vmatprep.subr.bf16.mxu0 0
    %8121 = vmatpush1.bf16.msra.mxu0 %v7689
    %8122 = vmatprep.subr.bf16.mxu0 0
    %8123 = vmatpush1.bf16.msra.mxu0 %v7680
    %8124 = vmatprep.subr.bf16.mxu0 0
    %8125 = vmatpush1.bf16.msra.mxu0 %v7671
    %8126 = vmatprep.subr.bf16.mxu0 0
    %8127 = vmatpush1.bf16.msra.mxu0 %v7662
    %8128 = vmatprep.subr.bf16.mxu0 0
    %8129 = vmatpush1.bf16.msra.mxu0 %v7653
    %8130 = vmatprep.subr.bf16.mxu0 0
    %8131 = vmatpush1.bf16.msra.mxu0 %v7644
    %8132 = vmatprep.subr.bf16.mxu0 0
    %8133 = vmatpush1.bf16.msra.mxu0 %v7635
    %8134 = vmatprep.subr.bf16.mxu0 0
    %8135 = vmatpush1.bf16.msra.mxu0 %v7626
    %8136 = vmatprep.subr.bf16.mxu0 0
    %8137 = vmatpush2.bf16.msra.mxu0 0
    %8138 = vmatprep.subr.bf16.mxu0 0
    %8139 = vmatpush2.bf16.msra.mxu0 0
    %8140 = vmatprep.subr.bf16.mxu0 0
    %8141 = vmatpush2.bf16.msra.mxu0 0
    %8142 = vmatprep.subr.bf16.mxu0 0
    %8143 = vmatpush2.bf16.msra.mxu0 0
    %8144 = vmatprep.subr.bf16.mxu0 0
    %8145 = vmatpush2.bf16.msra.mxu0 0
    %8146 = vmatprep.subr.bf16.mxu0 0
    %8147 = vmatpush2.bf16.msra.mxu0 0
    %8148 = vmatprep.subr.bf16.mxu0 0
    %8149 = vmatpush2.bf16.msra.mxu0 0
    %8150 = vmatprep.subr.bf16.mxu0 0
    %8151 = vmatpush2.bf16.msra.mxu0 0
    %8152 = vmatprep.mubr.bf16.mxu0 0
    %8153 = vmatmul.mubr.bf16.gmra.mxu0 %v8116
    %v8154 = vpop.f32.mrf.mxu0
    %v8155 = vadd.f32 0.0, %v8154
    %v8156 = vpop.f32.mrf.mxu0
    %v8157 = vpop.f32.mrf.mxu0
    %v8158 = vadd.f32 0.0, %v8157
    %v8159 = vpop.f32.mrf.mxu0
    %8160 = vmatprep.mubr.bf16.mxu0 0
    %8161 = vmatmul.mubr.bf16.gmra.mxu0 %v8117
    %v8162 = vpop.f32.mrf.mxu0
    %v8163 = vadd.f32 0.0, %v8162
    %v8164 = vpop.f32.mrf.mxu0
    %v8165 = vpop.f32.mrf.mxu0
    %v8166 = vadd.f32 0.0, %v8165
    %v8167 = vpop.f32.mrf.mxu0
    %8168 = vdwg.mxu0
    %v8169 = vadd.f32 %v8099, %v8155
    %v8170 = vadd.f32 %v8100, %v8158
    %v8171 = vadd.f32 %v8101, %v8163
    %v8172 = vadd.f32 %v8102, %v8166
    %s8173 = scalar_lea.vmem [#allocation9], 112
    %v8174 = vld [vmem:[%s8173] sm:$0xf]
    %v8175 = vld [vmem:[%s8173 + $0x4] sm:$0xf]
    %v8176 = vld [vmem:[%s8173 + $0x8] sm:$0xf]
    %v8177 = vld [vmem:[%s8173 + $0xc] sm:$0xf]
    %v8182 = vunpack.c.l.b16 %v8174
    %v8183 = vunpack.c.l.b16 %v8175
    %v8184 = vunpack.c.l.b16 %v8176
    %v8185 = vunpack.c.l.b16 %v8177
    %v8186 = vpack.c.b16 %v8183, %v8182
    %v8187 = vpack.c.b16 %v8185, %v8184
    %8190 = vmatprep.subr.bf16.mxu0 0
    %8191 = vmatpush1.bf16.msra.mxu0 %v7690
    %8192 = vmatprep.subr.bf16.mxu0 0
    %8193 = vmatpush1.bf16.msra.mxu0 %v7681
    %8194 = vmatprep.subr.bf16.mxu0 0
    %8195 = vmatpush1.bf16.msra.mxu0 %v7672
    %8196 = vmatprep.subr.bf16.mxu0 0
    %8197 = vmatpush1.bf16.msra.mxu0 %v7663
    %8198 = vmatprep.subr.bf16.mxu0 0
    %8199 = vmatpush1.bf16.msra.mxu0 %v7654
    %8200 = vmatprep.subr.bf16.mxu0 0
    %8201 = vmatpush1.bf16.msra.mxu0 %v7645
    %8202 = vmatprep.subr.bf16.mxu0 0
    %8203 = vmatpush1.bf16.msra.mxu0 %v7636
    %8204 = vmatprep.subr.bf16.mxu0 0
    %8205 = vmatpush1.bf16.msra.mxu0 %v7627
    %8206 = vmatprep.subr.bf16.mxu0 0
    %8207 = vmatpush2.bf16.msra.mxu0 0
    %8208 = vmatprep.subr.bf16.mxu0 0
    %8209 = vmatpush2.bf16.msra.mxu0 0
    %8210 = vmatprep.subr.bf16.mxu0 0
    %8211 = vmatpush2.bf16.msra.mxu0 0
    %8212 = vmatprep.subr.bf16.mxu0 0
    %8213 = vmatpush2.bf16.msra.mxu0 0
    %8214 = vmatprep.subr.bf16.mxu0 0
    %8215 = vmatpush2.bf16.msra.mxu0 0
    %8216 = vmatprep.subr.bf16.mxu0 0
    %8217 = vmatpush2.bf16.msra.mxu0 0
    %8218 = vmatprep.subr.bf16.mxu0 0
    %8219 = vmatpush2.bf16.msra.mxu0 0
    %8220 = vmatprep.subr.bf16.mxu0 0
    %8221 = vmatpush2.bf16.msra.mxu0 0
    %8222 = vmatprep.mubr.bf16.mxu0 0
    %8223 = vmatmul.mubr.bf16.gmra.mxu0 %v8186
    %v8224 = vpop.f32.mrf.mxu0
    %v8225 = vadd.f32 0.0, %v8224
    %v8226 = vpop.f32.mrf.mxu0
    %v8227 = vpop.f32.mrf.mxu0
    %v8228 = vadd.f32 0.0, %v8227
    %v8229 = vpop.f32.mrf.mxu0
    %8230 = vmatprep.mubr.bf16.mxu0 0
    %8231 = vmatmul.mubr.bf16.gmra.mxu0 %v8187
    %v8232 = vpop.f32.mrf.mxu0
    %v8233 = vadd.f32 0.0, %v8232
    %v8234 = vpop.f32.mrf.mxu0
    %v8235 = vpop.f32.mrf.mxu0
    %v8236 = vadd.f32 0.0, %v8235
    %v8237 = vpop.f32.mrf.mxu0
    %8238 = vdwg.mxu0
    %v8239 = vadd.f32 %v8169, %v8225
    %v8240 = vadd.f32 %v8170, %v8228
    %v8241 = vadd.f32 %v8171, %v8233
    %v8242 = vadd.f32 %v8172, %v8236
    %s8243 = scalar_lea.vmem [#allocation9], 128
    %v8244 = vld [vmem:[%s8243] sm:$0xf]
    %v8245 = vld [vmem:[%s8243 + $0x4] sm:$0xf]
    %v8246 = vld [vmem:[%s8243 + $0x8] sm:$0xf]
    %v8247 = vld [vmem:[%s8243 + $0xc] sm:$0xf]
    %v8252 = vunpack.c.l.b16 %v8244
    %v8253 = vunpack.c.l.b16 %v8245
    %v8254 = vunpack.c.l.b16 %v8246
    %v8255 = vunpack.c.l.b16 %v8247
    %v8256 = vpack.c.b16 %v8253, %v8252
    %v8257 = vpack.c.b16 %v8255, %v8254
    %8260 = vmatprep.subr.bf16.mxu0 0
    %8261 = vmatpush1.bf16.msra.mxu0 %v7691
    %8262 = vmatprep.subr.bf16.mxu0 0
    %8263 = vmatpush1.bf16.msra.mxu0 %v7682
    %8264 = vmatprep.subr.bf16.mxu0 0
    %8265 = vmatpush1.bf16.msra.mxu0 %v7673
    %8266 = vmatprep.subr.bf16.mxu0 0
    %8267 = vmatpush1.bf16.msra.mxu0 %v7664
    %8268 = vmatprep.subr.bf16.mxu0 0
    %8269 = vmatpush1.bf16.msra.mxu0 %v7655
    %8270 = vmatprep.subr.bf16.mxu0 0
    %8271 = vmatpush1.bf16.msra.mxu0 %v7646
    %8272 = vmatprep.subr.bf16.mxu0 0
    %8273 = vmatpush1.bf16.msra.mxu0 %v7637
    %8274 = vmatprep.subr.bf16.mxu0 0
    %8275 = vmatpush1.bf16.msra.mxu0 %v7628
    %8276 = vmatprep.subr.bf16.mxu0 0
    %8277 = vmatpush2.bf16.msra.mxu0 0
    %8278 = vmatprep.subr.bf16.mxu0 0
    %8279 = vmatpush2.bf16.msra.mxu0 0
    %8280 = vmatprep.subr.bf16.mxu0 0
    %8281 = vmatpush2.bf16.msra.mxu0 0
    %8282 = vmatprep.subr.bf16.mxu0 0
    %8283 = vmatpush2.bf16.msra.mxu0 0
    %8284 = vmatprep.subr.bf16.mxu0 0
    %8285 = vmatpush2.bf16.msra.mxu0 0
    %8286 = vmatprep.subr.bf16.mxu0 0
    %8287 = vmatpush2.bf16.msra.mxu0 0
    %8288 = vmatprep.subr.bf16.mxu0 0
    %8289 = vmatpush2.bf16.msra.mxu0 0
    %8290 = vmatprep.subr.bf16.mxu0 0
    %8291 = vmatpush2.bf16.msra.mxu0 0
    %8292 = vmatprep.mubr.bf16.mxu0 0
    %8293 = vmatmul.mubr.bf16.gmra.mxu0 %v8256
    %v8294 = vpop.f32.mrf.mxu0
    %v8295 = vadd.f32 0.0, %v8294
    %v8296 = vpop.f32.mrf.mxu0
    %v8297 = vpop.f32.mrf.mxu0
    %v8298 = vadd.f32 0.0, %v8297
    %v8299 = vpop.f32.mrf.mxu0
    %8300 = vmatprep.mubr.bf16.mxu0 0
    %8301 = vmatmul.mubr.bf16.gmra.mxu0 %v8257
    %v8302 = vpop.f32.mrf.mxu0
    %v8303 = vadd.f32 0.0, %v8302
    %v8304 = vpop.f32.mrf.mxu0
    %v8305 = vpop.f32.mrf.mxu0
    %v8306 = vadd.f32 0.0, %v8305
    %v8307 = vpop.f32.mrf.mxu0
    %8308 = vdwg.mxu0
    %v8309 = vadd.f32 %v8239, %v8295
    %v8310 = vadd.f32 %v8240, %v8298
    %v8311 = vadd.f32 %v8241, %v8303
    %v8312 = vadd.f32 %v8242, %v8306
    %v8313 = vld [vmem:[#allocation10] sm:$0x1]
    %v8314 = vlaneseq
    %v8315 = vshrl.u32 %v8314, 7
    %v8316 = vsub.s32 0, %v8315
    %v8317 = vrot.slane %v8313, %v8316
    %v8318 = vadd.f32 %v8309, %v8317
    %v8319 = vadd.f32 %v8310, %v8317
    %v8320 = vadd.f32 %v8311, %v8317
    %v8321 = vadd.f32 %v8312, %v8317
    %vm8322 = vcmp.gt.f32.partialorder %v8318, 0.0
    %vm8323 = vcmp.gt.f32.partialorder %v8319, 0.0
    %vm8324 = vcmp.gt.f32.partialorder %v8320, 0.0
    %vm8325 = vcmp.gt.f32.partialorder %v8321, 0.0
    %v8326 = vmul.f32 %v8318, 0.2
    %v8327 = vmul.f32 %v8319, 0.2
    %v8328 = vmul.f32 %v8320, 0.2
    %v8329 = vmul.f32 %v8321, 0.2
    %v8330 = vsel %vm8322, %v8318, %v8326
    %v8331 = vsel %vm8323, %v8319, %v8327
    %v8332 = vsel %vm8324, %v8320, %v8328
    %v8333 = vsel %vm8325, %v8321, %v8329
    %v8334 = vld [vmem:[#allocation10 + $0x1] sm:$0x1]
    %v8335 = vlaneseq
    %v8336 = vshrl.u32 %v8335, 7
    %v8337 = vsub.s32 0, %v8336
    %v8338 = vrot.slane %v8334, %v8337
    %v8339 = vmul.f32 %v8330, %v8338
    %v8340 = vmul.f32 %v8331, %v8338
    %v8341 = vmul.f32 %v8332, %v8338
    %v8342 = vmul.f32 %v8333, %v8338
    %v8343 = vld [vmem:[#allocation10 + $0x2] sm:$0x1]
    %v8344 = vlaneseq
    %v8345 = vshrl.u32 %v8344, 7
    %v8346 = vsub.s32 0, %v8345
    %v8347 = vrot.slane %v8343, %v8346
    %v8348 = vadd.f32 %v8339, %v8347
    %v8349 = vadd.f32 %v8340, %v8347
    %v8350 = vadd.f32 %v8341, %v8347
    %v8351 = vadd.f32 %v8342, %v8347
    %v8352 = vpack.c.bf16 %v8349, %v8348
    %v8353 = vpack.c.bf16 %v8351, %v8350
    %v8354 = vld [vmem:[#allocation12] sm:$0xff]
    %v8355 = vld [vmem:[#allocation12 + $0x8] sm:$0xff]
    %v8356 = vld [vmem:[#allocation12 + $0x10] sm:$0xff]
    %v8357 = vld [vmem:[#allocation12 + $0x18] sm:$0xff]
    %v8358 = vld [vmem:[#allocation12 + $0x20] sm:$0xf]
    %v8359 = vld [vmem:[#allocation12 + $0x24] sm:$0xff]
    %v8360 = vld [vmem:[#allocation12 + $0x2c] sm:$0xff]
    %v8361 = vld [vmem:[#allocation12 + $0x34] sm:$0xff]
    %v8362 = vld [vmem:[#allocation12 + $0x3c] sm:$0xff]
    %v8363 = vld [vmem:[#allocation12 + $0x44] sm:$0xf]
    %v8364 = vld [vmem:[#allocation12 + $0x48] sm:$0xff]
    %v8365 = vld [vmem:[#allocation12 + $0x50] sm:$0xff]
    %v8366 = vld [vmem:[#allocation12 + $0x58] sm:$0xff]
    %v8367 = vld [vmem:[#allocation12 + $0x60] sm:$0xff]
    %v8368 = vld [vmem:[#allocation12 + $0x68] sm:$0xf]
    %v8369 = vld [vmem:[#allocation12 + $0x6c] sm:$0xff]
    %v8370 = vld [vmem:[#allocation12 + $0x74] sm:$0xff]
    %v8371 = vld [vmem:[#allocation12 + $0x7c] sm:$0xff]
    %v8372 = vld [vmem:[#allocation12 + $0x84] sm:$0xff]
    %v8373 = vld [vmem:[#allocation12 + $0x8c] sm:$0xf]
    %v8374 = vld [vmem:[#allocation12 + $0x90] sm:$0xff]
    %v8375 = vld [vmem:[#allocation12 + $0x98] sm:$0xff]
    %v8376 = vld [vmem:[#allocation12 + $0xa0] sm:$0xff]
    %v8377 = vld [vmem:[#allocation12 + $0xa8] sm:$0xff]
    %v8378 = vld [vmem:[#allocation12 + $0xb0] sm:$0xf]
    %v8379 = vld [vmem:[#allocation12 + $0xb4] sm:$0xff]
    %v8380 = vld [vmem:[#allocation12 + $0xbc] sm:$0xff]
    %v8381 = vld [vmem:[#allocation12 + $0xc4] sm:$0xff]
    %v8382 = vld [vmem:[#allocation12 + $0xcc] sm:$0xff]
    %v8383 = vld [vmem:[#allocation12 + $0xd4] sm:$0xf]
    %v8384 = vld [vmem:[#allocation12 + $0xd8] sm:$0xff]
    %v8385 = vld [vmem:[#allocation12 + $0xe0] sm:$0xff]
    %v8386 = vld [vmem:[#allocation12 + $0xe8] sm:$0xff]
    %v8387 = vld [vmem:[#allocation12 + $0xf0] sm:$0xff]
    %v8388 = vld [vmem:[#allocation12 + $0xf8] sm:$0xf]
    %v8389 = vld [vmem:[#allocation12 + $0xfc] sm:$0xff]
    %v8390 = vld [vmem:[#allocation12 + $0x104] sm:$0xff]
    %v8391 = vld [vmem:[#allocation12 + $0x10c] sm:$0xff]
    %v8392 = vld [vmem:[#allocation12 + $0x114] sm:$0xff]
    %v8393 = vld [vmem:[#allocation12 + $0x11c] sm:$0xf]
    %v8394 = vld [vmem:[#allocation12 + $0x120] sm:$0xff]
    %v8395 = vld [vmem:[#allocation12 + $0x128] sm:$0xff]
    %v8396 = vld [vmem:[#allocation12 + $0x130] sm:$0xff]
    %v8397 = vld [vmem:[#allocation12 + $0x138] sm:$0xff]
    %v8398 = vld [vmem:[#allocation12 + $0x140] sm:$0xf]
    %v8399 = vld [vmem:[#allocation12 + $0x144] sm:$0xff]
    %v8400 = vld [vmem:[#allocation12 + $0x14c] sm:$0xff]
    %v8401 = vld [vmem:[#allocation12 + $0x154] sm:$0xff]
    %v8402 = vld [vmem:[#allocation12 + $0x15c] sm:$0xff]
    %v8403 = vld [vmem:[#allocation12 + $0x164] sm:$0xf]
    %v8404 = vld [vmem:[#allocation12 + $0x168] sm:$0xff]
    %v8405 = vld [vmem:[#allocation12 + $0x170] sm:$0xff]
    %v8406 = vld [vmem:[#allocation12 + $0x178] sm:$0xff]
    %v8407 = vld [vmem:[#allocation12 + $0x180] sm:$0xff]
    %v8408 = vld [vmem:[#allocation12 + $0x188] sm:$0xf]
    %v8409 = vld [vmem:[#allocation12 + $0x18c] sm:$0xff]
    %v8410 = vld [vmem:[#allocation12 + $0x194] sm:$0xff]
    %v8411 = vld [vmem:[#allocation12 + $0x19c] sm:$0xff]
    %v8412 = vld [vmem:[#allocation12 + $0x1a4] sm:$0xff]
    %v8413 = vld [vmem:[#allocation12 + $0x1ac] sm:$0xf]
    %v8414 = vld [vmem:[#allocation12 + $0x1b0] sm:$0xff]
    %v8415 = vld [vmem:[#allocation12 + $0x1b8] sm:$0xff]
    %v8416 = vld [vmem:[#allocation12 + $0x1c0] sm:$0xff]
    %v8417 = vld [vmem:[#allocation12 + $0x1c8] sm:$0xff]
    %v8418 = vld [vmem:[#allocation12 + $0x1d0] sm:$0xf]
    %v8419 = vld [vmem:[#allocation12 + $0x1d4] sm:$0xff]
    %v8420 = vld [vmem:[#allocation12 + $0x1dc] sm:$0xff]
    %v8421 = vld [vmem:[#allocation12 + $0x1e4] sm:$0xff]
    %v8422 = vld [vmem:[#allocation12 + $0x1ec] sm:$0xff]
    %v8423 = vld [vmem:[#allocation12 + $0x1f4] sm:$0xf]
    %v8424 = vld [vmem:[#allocation12 + $0x1f8] sm:$0xff]
    %v8425 = vld [vmem:[#allocation12 + $0x200] sm:$0xff]
    %v8426 = vld [vmem:[#allocation12 + $0x208] sm:$0xff]
    %v8427 = vld [vmem:[#allocation12 + $0x210] sm:$0xff]
    %v8428 = vld [vmem:[#allocation12 + $0x218] sm:$0xf]
    %v8429 = vld [vmem:[#allocation12 + $0x21c] sm:$0xff]
    %v8430 = vld [vmem:[#allocation12 + $0x224] sm:$0xff]
    %v8431 = vld [vmem:[#allocation12 + $0x22c] sm:$0xff]
    %v8432 = vld [vmem:[#allocation12 + $0x234] sm:$0xff]
    %v8433 = vld [vmem:[#allocation12 + $0x23c] sm:$0xf]
    %v8514 = vunpack.c.l.b16 %v8354
    %v8515 = vunpack.c.h.b16 %v8354
    %v8516 = vunpack.c.l.b16 %v8355
    %v8517 = vunpack.c.h.b16 %v8355
    %v8518 = vunpack.c.l.b16 %v8356
    %v8519 = vunpack.c.h.b16 %v8356
    %v8520 = vunpack.c.l.b16 %v8357
    %v8521 = vunpack.c.h.b16 %v8357
    %v8522 = vunpack.c.l.b16 %v8358
    %v8523 = vunpack.c.l.b16 %v8359
    %v8524 = vunpack.c.h.b16 %v8359
    %v8525 = vunpack.c.l.b16 %v8360
    %v8526 = vunpack.c.h.b16 %v8360
    %v8527 = vunpack.c.l.b16 %v8361
    %v8528 = vunpack.c.h.b16 %v8361
    %v8529 = vunpack.c.l.b16 %v8362
    %v8530 = vunpack.c.h.b16 %v8362
    %v8531 = vunpack.c.l.b16 %v8363
    %v8532 = vunpack.c.l.b16 %v8364
    %v8533 = vunpack.c.h.b16 %v8364
    %v8534 = vunpack.c.l.b16 %v8365
    %v8535 = vunpack.c.h.b16 %v8365
    %v8536 = vunpack.c.l.b16 %v8366
    %v8537 = vunpack.c.h.b16 %v8366
    %v8538 = vunpack.c.l.b16 %v8367
    %v8539 = vunpack.c.h.b16 %v8367
    %v8540 = vunpack.c.l.b16 %v8368
    %v8541 = vunpack.c.l.b16 %v8369
    %v8542 = vunpack.c.h.b16 %v8369
    %v8543 = vunpack.c.l.b16 %v8370
    %v8544 = vunpack.c.h.b16 %v8370
    %v8545 = vunpack.c.l.b16 %v8371
    %v8546 = vunpack.c.h.b16 %v8371
    %v8547 = vunpack.c.l.b16 %v8372
    %v8548 = vunpack.c.h.b16 %v8372
    %v8549 = vunpack.c.l.b16 %v8373
    %v8550 = vunpack.c.l.b16 %v8374
    %v8551 = vunpack.c.h.b16 %v8374
    %v8552 = vunpack.c.l.b16 %v8375
    %v8553 = vunpack.c.h.b16 %v8375
    %v8554 = vunpack.c.l.b16 %v8376
    %v8555 = vunpack.c.h.b16 %v8376
    %v8556 = vunpack.c.l.b16 %v8377
    %v8557 = vunpack.c.h.b16 %v8377
    %v8558 = vunpack.c.l.b16 %v8378
    %v8559 = vunpack.c.l.b16 %v8379
    %v8560 = vunpack.c.h.b16 %v8379
    %v8561 = vunpack.c.l.b16 %v8380
    %v8562 = vunpack.c.h.b16 %v8380
    %v8563 = vunpack.c.l.b16 %v8381
    %v8564 = vunpack.c.h.b16 %v8381
    %v8565 = vunpack.c.l.b16 %v8382
    %v8566 = vunpack.c.h.b16 %v8382
    %v8567 = vunpack.c.l.b16 %v8383
    %v8568 = vunpack.c.l.b16 %v8384
    %v8569 = vunpack.c.h.b16 %v8384
    %v8570 = vunpack.c.l.b16 %v8385
    %v8571 = vunpack.c.h.b16 %v8385
    %v8572 = vunpack.c.l.b16 %v8386
    %v8573 = vunpack.c.h.b16 %v8386
    %v8574 = vunpack.c.l.b16 %v8387
    %v8575 = vunpack.c.h.b16 %v8387
    %v8576 = vunpack.c.l.b16 %v8388
    %v8577 = vunpack.c.l.b16 %v8389
    %v8578 = vunpack.c.h.b16 %v8389
    %v8579 = vunpack.c.l.b16 %v8390
    %v8580 = vunpack.c.h.b16 %v8390
    %v8581 = vunpack.c.l.b16 %v8391
    %v8582 = vunpack.c.h.b16 %v8391
    %v8583 = vunpack.c.l.b16 %v8392
    %v8584 = vunpack.c.h.b16 %v8392
    %v8585 = vunpack.c.l.b16 %v8393
    %v8586 = vunpack.c.l.b16 %v8394
    %v8587 = vunpack.c.h.b16 %v8394
    %v8588 = vunpack.c.l.b16 %v8395
    %v8589 = vunpack.c.h.b16 %v8395
    %v8590 = vunpack.c.l.b16 %v8396
    %v8591 = vunpack.c.h.b16 %v8396
    %v8592 = vunpack.c.l.b16 %v8397
    %v8593 = vunpack.c.h.b16 %v8397
    %v8594 = vunpack.c.l.b16 %v8398
    %v8595 = vunpack.c.l.b16 %v8399
    %v8596 = vunpack.c.h.b16 %v8399
    %v8597 = vunpack.c.l.b16 %v8400
    %v8598 = vunpack.c.h.b16 %v8400
    %v8599 = vunpack.c.l.b16 %v8401
    %v8600 = vunpack.c.h.b16 %v8401
    %v8601 = vunpack.c.l.b16 %v8402
    %v8602 = vunpack.c.h.b16 %v8402
    %v8603 = vunpack.c.l.b16 %v8403
    %v8604 = vunpack.c.l.b16 %v8404
    %v8605 = vunpack.c.h.b16 %v8404
    %v8606 = vunpack.c.l.b16 %v8405
    %v8607 = vunpack.c.h.b16 %v8405
    %v8608 = vunpack.c.l.b16 %v8406
    %v8609 = vunpack.c.h.b16 %v8406
    %v8610 = vunpack.c.l.b16 %v8407
    %v8611 = vunpack.c.h.b16 %v8407
    %v8612 = vunpack.c.l.b16 %v8408
    %v8613 = vunpack.c.l.b16 %v8409
    %v8614 = vunpack.c.h.b16 %v8409
    %v8615 = vunpack.c.l.b16 %v8410
    %v8616 = vunpack.c.h.b16 %v8410
    %v8617 = vunpack.c.l.b16 %v8411
    %v8618 = vunpack.c.h.b16 %v8411
    %v8619 = vunpack.c.l.b16 %v8412
    %v8620 = vunpack.c.h.b16 %v8412
    %v8621 = vunpack.c.l.b16 %v8413
    %v8622 = vunpack.c.l.b16 %v8414
    %v8623 = vunpack.c.h.b16 %v8414
    %v8624 = vunpack.c.l.b16 %v8415
    %v8625 = vunpack.c.h.b16 %v8415
    %v8626 = vunpack.c.l.b16 %v8416
    %v8627 = vunpack.c.h.b16 %v8416
    %v8628 = vunpack.c.l.b16 %v8417
    %v8629 = vunpack.c.h.b16 %v8417
    %v8630 = vunpack.c.l.b16 %v8418
    %v8631 = vunpack.c.l.b16 %v8419
    %v8632 = vunpack.c.h.b16 %v8419
    %v8633 = vunpack.c.l.b16 %v8420
    %v8634 = vunpack.c.h.b16 %v8420
    %v8635 = vunpack.c.l.b16 %v8421
    %v8636 = vunpack.c.h.b16 %v8421
    %v8637 = vunpack.c.l.b16 %v8422
    %v8638 = vunpack.c.h.b16 %v8422
    %v8639 = vunpack.c.l.b16 %v8423
    %v8640 = vunpack.c.l.b16 %v8424
    %v8641 = vunpack.c.h.b16 %v8424
    %v8642 = vunpack.c.l.b16 %v8425
    %v8643 = vunpack.c.h.b16 %v8425
    %v8644 = vunpack.c.l.b16 %v8426
    %v8645 = vunpack.c.h.b16 %v8426
    %v8646 = vunpack.c.l.b16 %v8427
    %v8647 = vunpack.c.h.b16 %v8427
    %v8648 = vunpack.c.l.b16 %v8428
    %v8649 = vunpack.c.l.b16 %v8429
    %v8650 = vunpack.c.h.b16 %v8429
    %v8651 = vunpack.c.l.b16 %v8430
    %v8652 = vunpack.c.h.b16 %v8430
    %v8653 = vunpack.c.l.b16 %v8431
    %v8654 = vunpack.c.h.b16 %v8431
    %v8655 = vunpack.c.l.b16 %v8432
    %v8656 = vunpack.c.h.b16 %v8432
    %v8657 = vunpack.c.l.b16 %v8433
    %v8658 = vpack.c.b16 %v8523, %v8514
    %v8659 = vpack.c.b16 %v8524, %v8515
    %v8660 = vpack.c.b16 %v8525, %v8516
    %v8661 = vpack.c.b16 %v8526, %v8517
    %v8662 = vpack.c.b16 %v8527, %v8518
    %v8663 = vpack.c.b16 %v8528, %v8519
    %v8664 = vpack.c.b16 %v8529, %v8520
    %v8665 = vpack.c.b16 %v8530, %v8521
    %v8666 = vpack.c.b16 %v8531, %v8522
    %v8667 = vpack.c.b16 %v8541, %v8532
    %v8668 = vpack.c.b16 %v8542, %v8533
    %v8669 = vpack.c.b16 %v8543, %v8534
    %v8670 = vpack.c.b16 %v8544, %v8535
    %v8671 = vpack.c.b16 %v8545, %v8536
    %v8672 = vpack.c.b16 %v8546, %v8537
    %v8673 = vpack.c.b16 %v8547, %v8538
    %v8674 = vpack.c.b16 %v8548, %v8539
    %v8675 = vpack.c.b16 %v8549, %v8540
    %v8676 = vpack.c.b16 %v8559, %v8550
    %v8677 = vpack.c.b16 %v8560, %v8551
    %v8678 = vpack.c.b16 %v8561, %v8552
    %v8679 = vpack.c.b16 %v8562, %v8553
    %v8680 = vpack.c.b16 %v8563, %v8554
    %v8681 = vpack.c.b16 %v8564, %v8555
    %v8682 = vpack.c.b16 %v8565, %v8556
    %v8683 = vpack.c.b16 %v8566, %v8557
    %v8684 = vpack.c.b16 %v8567, %v8558
    %v8685 = vpack.c.b16 %v8577, %v8568
    %v8686 = vpack.c.b16 %v8578, %v8569
    %v8687 = vpack.c.b16 %v8579, %v8570
    %v8688 = vpack.c.b16 %v8580, %v8571
    %v8689 = vpack.c.b16 %v8581, %v8572
    %v8690 = vpack.c.b16 %v8582, %v8573
    %v8691 = vpack.c.b16 %v8583, %v8574
    %v8692 = vpack.c.b16 %v8584, %v8575
    %v8693 = vpack.c.b16 %v8585, %v8576
    %v8694 = vpack.c.b16 %v8595, %v8586
    %v8695 = vpack.c.b16 %v8596, %v8587
    %v8696 = vpack.c.b16 %v8597, %v8588
    %v8697 = vpack.c.b16 %v8598, %v8589
    %v8698 = vpack.c.b16 %v8599, %v8590
    %v8699 = vpack.c.b16 %v8600, %v8591
    %v8700 = vpack.c.b16 %v8601, %v8592
    %v8701 = vpack.c.b16 %v8602, %v8593
    %v8702 = vpack.c.b16 %v8603, %v8594
    %v8703 = vpack.c.b16 %v8613, %v8604
    %v8704 = vpack.c.b16 %v8614, %v8605
    %v8705 = vpack.c.b16 %v8615, %v8606
    %v8706 = vpack.c.b16 %v8616, %v8607
    %v8707 = vpack.c.b16 %v8617, %v8608
    %v8708 = vpack.c.b16 %v8618, %v8609
    %v8709 = vpack.c.b16 %v8619, %v8610
    %v8710 = vpack.c.b16 %v8620, %v8611
    %v8711 = vpack.c.b16 %v8621, %v8612
    %v8712 = vpack.c.b16 %v8631, %v8622
    %v8713 = vpack.c.b16 %v8632, %v8623
    %v8714 = vpack.c.b16 %v8633, %v8624
    %v8715 = vpack.c.b16 %v8634, %v8625
    %v8716 = vpack.c.b16 %v8635, %v8626
    %v8717 = vpack.c.b16 %v8636, %v8627
    %v8718 = vpack.c.b16 %v8637, %v8628
    %v8719 = vpack.c.b16 %v8638, %v8629
    %v8720 = vpack.c.b16 %v8639, %v8630
    %v8721 = vpack.c.b16 %v8649, %v8640
    %v8722 = vpack.c.b16 %v8650, %v8641
    %v8723 = vpack.c.b16 %v8651, %v8642
    %v8724 = vpack.c.b16 %v8652, %v8643
    %v8725 = vpack.c.b16 %v8653, %v8644
    %v8726 = vpack.c.b16 %v8654, %v8645
    %v8727 = vpack.c.b16 %v8655, %v8646
    %v8728 = vpack.c.b16 %v8656, %v8647
    %v8729 = vpack.c.b16 %v8657, %v8648
    %8802 = vmatprep.subr.bf16.mxu0 %v8722
    %8803 = vmatpush1.bf16.msra.mxu0 %v8721
    %8804 = vmatprep.subr.bf16.mxu0 %v8713
    %8805 = vmatpush1.bf16.msra.mxu0 %v8712
    %8806 = vmatprep.subr.bf16.mxu0 %v8704
    %8807 = vmatpush1.bf16.msra.mxu0 %v8703
    %8808 = vmatprep.subr.bf16.mxu0 %v8695
    %8809 = vmatpush1.bf16.msra.mxu0 %v8694
    %8810 = vmatprep.subr.bf16.mxu0 %v8686
    %8811 = vmatpush1.bf16.msra.mxu0 %v8685
    %8812 = vmatprep.subr.bf16.mxu0 %v8677
    %8813 = vmatpush1.bf16.msra.mxu0 %v8676
    %8814 = vmatprep.subr.bf16.mxu0 %v8668
    %8815 = vmatpush1.bf16.msra.mxu0 %v8667
    %8816 = vmatprep.subr.bf16.mxu0 %v8659
    %8817 = vmatpush1.bf16.msra.mxu0 %v8658
    %8818 = vmatprep.subr.bf16.mxu0 0
    %8819 = vmatpush2.bf16.msra.mxu0 0
    %8820 = vmatprep.subr.bf16.mxu0 0
    %8821 = vmatpush2.bf16.msra.mxu0 0
    %8822 = vmatprep.subr.bf16.mxu0 0
    %8823 = vmatpush2.bf16.msra.mxu0 0
    %8824 = vmatprep.subr.bf16.mxu0 0
    %8825 = vmatpush2.bf16.msra.mxu0 0
    %8826 = vmatprep.subr.bf16.mxu0 0
    %8827 = vmatpush2.bf16.msra.mxu0 0
    %8828 = vmatprep.subr.bf16.mxu0 0
    %8829 = vmatpush2.bf16.msra.mxu0 0
    %8830 = vmatprep.subr.bf16.mxu0 0
    %8831 = vmatpush2.bf16.msra.mxu0 0
    %8832 = vmatprep.subr.bf16.mxu0 0
    %8833 = vmatpush2.bf16.msra.mxu0 0
    %8834 = vmatprep.mubr.bf16.mxu0 0
    %8835 = vmatmul.mubr.bf16.gmra.mxu0 %v8352
    %v8836 = vpop.f32.mrf.mxu0
    %v8837 = vadd.f32 0.0, %v8836
    %v8838 = vpop.f32.mrf.mxu0
    %v8839 = vadd.f32 0.0, %v8838
    %v8840 = vpop.f32.mrf.mxu0
    %v8841 = vadd.f32 0.0, %v8840
    %v8842 = vpop.f32.mrf.mxu0
    %v8843 = vadd.f32 0.0, %v8842
    %8844 = vmatprep.mubr.bf16.mxu0 0
    %8845 = vmatmul.mubr.bf16.gmra.mxu0 %v8353
    %v8846 = vpop.f32.mrf.mxu0
    %v8847 = vadd.f32 0.0, %v8846
    %v8848 = vpop.f32.mrf.mxu0
    %v8849 = vadd.f32 0.0, %v8848
    %v8850 = vpop.f32.mrf.mxu0
    %v8851 = vadd.f32 0.0, %v8850
    %v8852 = vpop.f32.mrf.mxu0
    %v8853 = vadd.f32 0.0, %v8852
    %8854 = vdwg.mxu0
    %8855 = vmatprep.subr.bf16.mxu0 %v8724
    %8856 = vmatpush1.bf16.msra.mxu0 %v8723
    %8857 = vmatprep.subr.bf16.mxu0 %v8715
    %8858 = vmatpush1.bf16.msra.mxu0 %v8714
    %8859 = vmatprep.subr.bf16.mxu0 %v8706
    %8860 = vmatpush1.bf16.msra.mxu0 %v8705
    %8861 = vmatprep.subr.bf16.mxu0 %v8697
    %8862 = vmatpush1.bf16.msra.mxu0 %v8696
    %8863 = vmatprep.subr.bf16.mxu0 %v8688
    %8864 = vmatpush1.bf16.msra.mxu0 %v8687
    %8865 = vmatprep.subr.bf16.mxu0 %v8679
    %8866 = vmatpush1.bf16.msra.mxu0 %v8678
    %8867 = vmatprep.subr.bf16.mxu0 %v8670
    %8868 = vmatpush1.bf16.msra.mxu0 %v8669
    %8869 = vmatprep.subr.bf16.mxu0 %v8661
    %8870 = vmatpush1.bf16.msra.mxu0 %v8660
    %8871 = vmatprep.subr.bf16.mxu0 0
    %8872 = vmatpush2.bf16.msra.mxu0 0
    %8873 = vmatprep.subr.bf16.mxu0 0
    %8874 = vmatpush2.bf16.msra.mxu0 0
    %8875 = vmatprep.subr.bf16.mxu0 0
    %8876 = vmatpush2.bf16.msra.mxu0 0
    %8877 = vmatprep.subr.bf16.mxu0 0
    %8878 = vmatpush2.bf16.msra.mxu0 0
    %8879 = vmatprep.subr.bf16.mxu0 0
    %8880 = vmatpush2.bf16.msra.mxu0 0
    %8881 = vmatprep.subr.bf16.mxu0 0
    %8882 = vmatpush2.bf16.msra.mxu0 0
    %8883 = vmatprep.subr.bf16.mxu0 0
    %8884 = vmatpush2.bf16.msra.mxu0 0
    %8885 = vmatprep.subr.bf16.mxu0 0
    %8886 = vmatpush2.bf16.msra.mxu0 0
    %8887 = vmatprep.mubr.bf16.mxu0 0
    %8888 = vmatmul.mubr.bf16.gmra.mxu0 %v8352
    %v8889 = vpop.f32.mrf.mxu0
    %v8890 = vadd.f32 0.0, %v8889
    %v8891 = vpop.f32.mrf.mxu0
    %v8892 = vadd.f32 0.0, %v8891
    %v8893 = vpop.f32.mrf.mxu0
    %v8894 = vadd.f32 0.0, %v8893
    %v8895 = vpop.f32.mrf.mxu0
    %v8896 = vadd.f32 0.0, %v8895
    %8897 = vmatprep.mubr.bf16.mxu0 0
    %8898 = vmatmul.mubr.bf16.gmra.mxu0 %v8353
    %v8899 = vpop.f32.mrf.mxu0
    %v8900 = vadd.f32 0.0, %v8899
    %v8901 = vpop.f32.mrf.mxu0
    %v8902 = vadd.f32 0.0, %v8901
    %v8903 = vpop.f32.mrf.mxu0
    %v8904 = vadd.f32 0.0, %v8903
    %v8905 = vpop.f32.mrf.mxu0
    %v8906 = vadd.f32 0.0, %v8905
    %8907 = vdwg.mxu0
    %8908 = vmatprep.subr.bf16.mxu0 %v8726
    %8909 = vmatpush1.bf16.msra.mxu0 %v8725
    %8910 = vmatprep.subr.bf16.mxu0 %v8717
    %8911 = vmatpush1.bf16.msra.mxu0 %v8716
    %8912 = vmatprep.subr.bf16.mxu0 %v8708
    %8913 = vmatpush1.bf16.msra.mxu0 %v8707
    %8914 = vmatprep.subr.bf16.mxu0 %v8699
    %8915 = vmatpush1.bf16.msra.mxu0 %v8698
    %8916 = vmatprep.subr.bf16.mxu0 %v8690
    %8917 = vmatpush1.bf16.msra.mxu0 %v8689
    %8918 = vmatprep.subr.bf16.mxu0 %v8681
    %8919 = vmatpush1.bf16.msra.mxu0 %v8680
    %8920 = vmatprep.subr.bf16.mxu0 %v8672
    %8921 = vmatpush1.bf16.msra.mxu0 %v8671
    %8922 = vmatprep.subr.bf16.mxu0 %v8663
    %8923 = vmatpush1.bf16.msra.mxu0 %v8662
    %8924 = vmatprep.subr.bf16.mxu0 0
    %8925 = vmatpush2.bf16.msra.mxu0 0
    %8926 = vmatprep.subr.bf16.mxu0 0
    %8927 = vmatpush2.bf16.msra.mxu0 0
    %8928 = vmatprep.subr.bf16.mxu0 0
    %8929 = vmatpush2.bf16.msra.mxu0 0
    %8930 = vmatprep.subr.bf16.mxu0 0
    %8931 = vmatpush2.bf16.msra.mxu0 0
    %8932 = vmatprep.subr.bf16.mxu0 0
    %8933 = vmatpush2.bf16.msra.mxu0 0
    %8934 = vmatprep.subr.bf16.mxu0 0
    %8935 = vmatpush2.bf16.msra.mxu0 0
    %8936 = vmatprep.subr.bf16.mxu0 0
    %8937 = vmatpush2.bf16.msra.mxu0 0
    %8938 = vmatprep.subr.bf16.mxu0 0
    %8939 = vmatpush2.bf16.msra.mxu0 0
    %8940 = vmatprep.mubr.bf16.mxu0 0
    %8941 = vmatmul.mubr.bf16.gmra.mxu0 %v8352
    %v8942 = vpop.f32.mrf.mxu0
    %v8943 = vadd.f32 0.0, %v8942
    %v8944 = vpop.f32.mrf.mxu0
    %v8945 = vadd.f32 0.0, %v8944
    %v8946 = vpop.f32.mrf.mxu0
    %v8947 = vadd.f32 0.0, %v8946
    %v8948 = vpop.f32.mrf.mxu0
    %v8949 = vadd.f32 0.0, %v8948
    %8950 = vmatprep.mubr.bf16.mxu0 0
    %8951 = vmatmul.mubr.bf16.gmra.mxu0 %v8353
    %v8952 = vpop.f32.mrf.mxu0
    %v8953 = vadd.f32 0.0, %v8952
    %v8954 = vpop.f32.mrf.mxu0
    %v8955 = vadd.f32 0.0, %v8954
    %v8956 = vpop.f32.mrf.mxu0
    %v8957 = vadd.f32 0.0, %v8956
    %v8958 = vpop.f32.mrf.mxu0
    %v8959 = vadd.f32 0.0, %v8958
    %8960 = vdwg.mxu0
    %8961 = vmatprep.subr.bf16.mxu0 %v8728
    %8962 = vmatpush1.bf16.msra.mxu0 %v8727
    %8963 = vmatprep.subr.bf16.mxu0 %v8719
    %8964 = vmatpush1.bf16.msra.mxu0 %v8718
    %8965 = vmatprep.subr.bf16.mxu0 %v8710
    %8966 = vmatpush1.bf16.msra.mxu0 %v8709
    %8967 = vmatprep.subr.bf16.mxu0 %v8701
    %8968 = vmatpush1.bf16.msra.mxu0 %v8700
    %8969 = vmatprep.subr.bf16.mxu0 %v8692
    %8970 = vmatpush1.bf16.msra.mxu0 %v8691
    %8971 = vmatprep.subr.bf16.mxu0 %v8683
    %8972 = vmatpush1.bf16.msra.mxu0 %v8682
    %8973 = vmatprep.subr.bf16.mxu0 %v8674
    %8974 = vmatpush1.bf16.msra.mxu0 %v8673
    %8975 = vmatprep.subr.bf16.mxu0 %v8665
    %8976 = vmatpush1.bf16.msra.mxu0 %v8664
    %8977 = vmatprep.subr.bf16.mxu0 0
    %8978 = vmatpush2.bf16.msra.mxu0 0
    %8979 = vmatprep.subr.bf16.mxu0 0
    %8980 = vmatpush2.bf16.msra.mxu0 0
    %8981 = vmatprep.subr.bf16.mxu0 0
    %8982 = vmatpush2.bf16.msra.mxu0 0
    %8983 = vmatprep.subr.bf16.mxu0 0
    %8984 = vmatpush2.bf16.msra.mxu0 0
    %8985 = vmatprep.subr.bf16.mxu0 0
    %8986 = vmatpush2.bf16.msra.mxu0 0
    %8987 = vmatprep.subr.bf16.mxu0 0
    %8988 = vmatpush2.bf16.msra.mxu0 0
    %8989 = vmatprep.subr.bf16.mxu0 0
    %8990 = vmatpush2.bf16.msra.mxu0 0
    %8991 = vmatprep.subr.bf16.mxu0 0
    %8992 = vmatpush2.bf16.msra.mxu0 0
    %8993 = vmatprep.mubr.bf16.mxu0 0
    %8994 = vmatmul.mubr.bf16.gmra.mxu0 %v8352
    %v8995 = vpop.f32.mrf.mxu0
    %v8996 = vadd.f32 0.0, %v8995
    %v8997 = vpop.f32.mrf.mxu0
    %v8998 = vadd.f32 0.0, %v8997
    %v8999 = vpop.f32.mrf.mxu0
    %v9000 = vadd.f32 0.0, %v8999
    %v9001 = vpop.f32.mrf.mxu0
    %v9002 = vadd.f32 0.0, %v9001
    %9003 = vmatprep.mubr.bf16.mxu0 0
    %9004 = vmatmul.mubr.bf16.gmra.mxu0 %v8353
    %v9005 = vpop.f32.mrf.mxu0
    %v9006 = vadd.f32 0.0, %v9005
    %v9007 = vpop.f32.mrf.mxu0
    %v9008 = vadd.f32 0.0, %v9007
    %v9009 = vpop.f32.mrf.mxu0
    %v9010 = vadd.f32 0.0, %v9009
    %v9011 = vpop.f32.mrf.mxu0
    %v9012 = vadd.f32 0.0, %v9011
    %9013 = vdwg.mxu0
    %9014 = vmatprep.subr.bf16.mxu0 0
    %9015 = vmatpush1.bf16.msra.mxu0 %v8729
    %9016 = vmatprep.subr.bf16.mxu0 0
    %9017 = vmatpush1.bf16.msra.mxu0 %v8720
    %9018 = vmatprep.subr.bf16.mxu0 0
    %9019 = vmatpush1.bf16.msra.mxu0 %v8711
    %9020 = vmatprep.subr.bf16.mxu0 0
    %9021 = vmatpush1.bf16.msra.mxu0 %v8702
    %9022 = vmatprep.subr.bf16.mxu0 0
    %9023 = vmatpush1.bf16.msra.mxu0 %v8693
    %9024 = vmatprep.subr.bf16.mxu0 0
    %9025 = vmatpush1.bf16.msra.mxu0 %v8684
    %9026 = vmatprep.subr.bf16.mxu0 0
    %9027 = vmatpush1.bf16.msra.mxu0 %v8675
    %9028 = vmatprep.subr.bf16.mxu0 0
    %9029 = vmatpush1.bf16.msra.mxu0 %v8666
    %9030 = vmatprep.subr.bf16.mxu0 0
    %9031 = vmatpush2.bf16.msra.mxu0 0
    %9032 = vmatprep.subr.bf16.mxu0 0
    %9033 = vmatpush2.bf16.msra.mxu0 0
    %9034 = vmatprep.subr.bf16.mxu0 0
    %9035 = vmatpush2.bf16.msra.mxu0 0
    %9036 = vmatprep.subr.bf16.mxu0 0
    %9037 = vmatpush2.bf16.msra.mxu0 0
    %9038 = vmatprep.subr.bf16.mxu0 0
    %9039 = vmatpush2.bf16.msra.mxu0 0
    %9040 = vmatprep.subr.bf16.mxu0 0
    %9041 = vmatpush2.bf16.msra.mxu0 0
    %9042 = vmatprep.subr.bf16.mxu0 0
    %9043 = vmatpush2.bf16.msra.mxu0 0
    %9044 = vmatprep.subr.bf16.mxu0 0
    %9045 = vmatpush2.bf16.msra.mxu0 0
    %9046 = vmatprep.mubr.bf16.mxu0 0
    %9047 = vmatmul.mubr.bf16.gmra.mxu0 %v8352
    %v9048 = vpop.f32.mrf.mxu0
    %v9049 = vadd.f32 0.0, %v9048
    %v9050 = vpop.f32.mrf.mxu0
    %v9051 = vpop.f32.mrf.mxu0
    %v9052 = vadd.f32 0.0, %v9051
    %v9053 = vpop.f32.mrf.mxu0
    %9054 = vmatprep.mubr.bf16.mxu0 0
    %9055 = vmatmul.mubr.bf16.gmra.mxu0 %v8353
    %v9056 = vpop.f32.mrf.mxu0
    %v9057 = vadd.f32 0.0, %v9056
    %v9058 = vpop.f32.mrf.mxu0
    %v9059 = vpop.f32.mrf.mxu0
    %v9060 = vadd.f32 0.0, %v9059
    %v9061 = vpop.f32.mrf.mxu0
    %9062 = vdwg.mxu0
    %v9063 = vpack.c.bf16 %v8841, %v8837
    %v9064 = vpack.c.bf16 %v8843, %v8839
    %v9065 = vpack.c.bf16 %v8894, %v8890
    %v9066 = vpack.c.bf16 %v8896, %v8892
    %v9067 = vpack.c.bf16 %v8947, %v8943
    %v9068 = vpack.c.bf16 %v8949, %v8945
    %v9069 = vpack.c.bf16 %v9000, %v8996
    %v9070 = vpack.c.bf16 %v9002, %v8998
    %v9071 = vpack.c.bf16 %v9052, %v9049
    %v9072 = vpack.c.bf16 %v8851, %v8847
    %v9073 = vpack.c.bf16 %v8853, %v8849
    %v9074 = vpack.c.bf16 %v8904, %v8900
    %v9075 = vpack.c.bf16 %v8906, %v8902
    %v9076 = vpack.c.bf16 %v8957, %v8953
    %v9077 = vpack.c.bf16 %v8959, %v8955
    %v9078 = vpack.c.bf16 %v9010, %v9006
    %v9079 = vpack.c.bf16 %v9012, %v9008
    %v9080 = vpack.c.bf16 %v9060, %v9057
    %v9081 = vld [vmem:[#allocation13] sm:$0xf]
    %s9082 = scalar_lea.vmem [#allocation13], 4
    %v9083 = vld [vmem:[%s9082] sm:$0xf]
    %vm9084 = vcmask 261120
    %v9086 = vsel %vm9084, %v9083, 0
    %9088 = vmatprep.subr.bf16.mxu0 0
    %9089 = vmatpush1.bf16.msra.mxu0 0
    %9090 = vmatprep.subr.bf16.mxu0 0
    %9091 = vmatpush1.bf16.msra.mxu0 0
    %9092 = vmatprep.subr.bf16.mxu0 0
    %9093 = vmatpush1.bf16.msra.mxu0 0
    %9094 = vmatprep.subr.bf16.mxu0 0
    %9095 = vmatpush1.bf16.msra.mxu0 0
    %9096 = vmatprep.subr.bf16.mxu0 0
    %9097 = vmatpush1.bf16.msra.mxu0 0
    %9098 = vmatprep.subr.bf16.mxu0 0
    %9099 = vmatpush1.bf16.msra.mxu0 0
    %9100 = vmatprep.subr.bf16.mxu0 0
    %9101 = vmatpush1.bf16.msra.mxu0 %v9073
    %9102 = vmatprep.subr.bf16.mxu0 0
    %9103 = vmatpush1.bf16.msra.mxu0 %v9064
    %9104 = vmatprep.subr.bf16.mxu0 0
    %9105 = vmatpush2.bf16.msra.mxu0 0
    %9106 = vmatprep.subr.bf16.mxu0 0
    %9107 = vmatpush2.bf16.msra.mxu0 0
    %9108 = vmatprep.subr.bf16.mxu0 0
    %9109 = vmatpush2.bf16.msra.mxu0 0
    %9110 = vmatprep.subr.bf16.mxu0 0
    %9111 = vmatpush2.bf16.msra.mxu0 0
    %9112 = vmatprep.subr.bf16.mxu0 0
    %9113 = vmatpush2.bf16.msra.mxu0 0
    %9114 = vmatprep.subr.bf16.mxu0 0
    %9115 = vmatpush2.bf16.msra.mxu0 0
    %9116 = vmatprep.subr.bf16.mxu0 0
    %9117 = vmatpush2.bf16.msra.mxu0 0
    %9118 = vmatprep.subr.bf16.mxu0 0
    %9119 = vmatpush2.bf16.msra.mxu0 0
    %9120 = vmatprep.mubr.bf16.mxu0 0
    %9121 = vmatmul.mubr.bf16.gmra.mxu0 %v9086
    %v9122 = vpop.f32.mrf.mxu0
    %v9123 = vadd.f32 0.0, %v9122
    %v9124 = vpop.f32.mrf.mxu0
    %v9125 = vpop.f32.mrf.mxu0
    %v9126 = vpop.f32.mrf.mxu0
    %9127 = vdwg.mxu0
    %v9129 = vsel %vm9084, %v9081, 0
    %9131 = vmatprep.subr.bf16.mxu0 0
    %9132 = vmatpush1.bf16.msra.mxu0 0
    %9133 = vmatprep.subr.bf16.mxu0 0
    %9134 = vmatpush1.bf16.msra.mxu0 0
    %9135 = vmatprep.subr.bf16.mxu0 0
    %9136 = vmatpush1.bf16.msra.mxu0 0
    %9137 = vmatprep.subr.bf16.mxu0 0
    %9138 = vmatpush1.bf16.msra.mxu0 0
    %9139 = vmatprep.subr.bf16.mxu0 0
    %9140 = vmatpush1.bf16.msra.mxu0 0
    %9141 = vmatprep.subr.bf16.mxu0 0
    %9142 = vmatpush1.bf16.msra.mxu0 0
    %9143 = vmatprep.subr.bf16.mxu0 0
    %9144 = vmatpush1.bf16.msra.mxu0 %v9072
    %9145 = vmatprep.subr.bf16.mxu0 0
    %9146 = vmatpush1.bf16.msra.mxu0 %v9063
    %9147 = vmatprep.subr.bf16.mxu0 0
    %9148 = vmatpush2.bf16.msra.mxu0 0
    %9149 = vmatprep.subr.bf16.mxu0 0
    %9150 = vmatpush2.bf16.msra.mxu0 0
    %9151 = vmatprep.subr.bf16.mxu0 0
    %9152 = vmatpush2.bf16.msra.mxu0 0
    %9153 = vmatprep.subr.bf16.mxu0 0
    %9154 = vmatpush2.bf16.msra.mxu0 0
    %9155 = vmatprep.subr.bf16.mxu0 0
    %9156 = vmatpush2.bf16.msra.mxu0 0
    %9157 = vmatprep.subr.bf16.mxu0 0
    %9158 = vmatpush2.bf16.msra.mxu0 0
    %9159 = vmatprep.subr.bf16.mxu0 0
    %9160 = vmatpush2.bf16.msra.mxu0 0
    %9161 = vmatprep.subr.bf16.mxu0 0
    %9162 = vmatpush2.bf16.msra.mxu0 0
    %9163 = vmatprep.mubr.bf16.mxu0 0
    %9164 = vmatmul.mubr.bf16.gmra.mxu0 %v9129
    %v9165 = vpop.f32.mrf.mxu0
    %v9166 = vadd.f32 %v9123, %v9165
    %v9167 = vpop.f32.mrf.mxu0
    %v9168 = vpop.f32.mrf.mxu0
    %v9169 = vpop.f32.mrf.mxu0
    %9170 = vdwg.mxu0
    %s9171 = scalar_lea.vmem [#allocation13], 8
    %v9172 = vld [vmem:[%s9171] sm:$0xf]
    %v9174 = vsel %vm9084, %v9172, 0
    %9176 = vmatprep.subr.bf16.mxu0 0
    %9177 = vmatpush1.bf16.msra.mxu0 0
    %9178 = vmatprep.subr.bf16.mxu0 0
    %9179 = vmatpush1.bf16.msra.mxu0 0
    %9180 = vmatprep.subr.bf16.mxu0 0
    %9181 = vmatpush1.bf16.msra.mxu0 0
    %9182 = vmatprep.subr.bf16.mxu0 0
    %9183 = vmatpush1.bf16.msra.mxu0 0
    %9184 = vmatprep.subr.bf16.mxu0 0
    %9185 = vmatpush1.bf16.msra.mxu0 0
    %9186 = vmatprep.subr.bf16.mxu0 0
    %9187 = vmatpush1.bf16.msra.mxu0 0
    %9188 = vmatprep.subr.bf16.mxu0 0
    %9189 = vmatpush1.bf16.msra.mxu0 %v9074
    %9190 = vmatprep.subr.bf16.mxu0 0
    %9191 = vmatpush1.bf16.msra.mxu0 %v9065
    %9192 = vmatprep.subr.bf16.mxu0 0
    %9193 = vmatpush2.bf16.msra.mxu0 0
    %9194 = vmatprep.subr.bf16.mxu0 0
    %9195 = vmatpush2.bf16.msra.mxu0 0
    %9196 = vmatprep.subr.bf16.mxu0 0
    %9197 = vmatpush2.bf16.msra.mxu0 0
    %9198 = vmatprep.subr.bf16.mxu0 0
    %9199 = vmatpush2.bf16.msra.mxu0 0
    %9200 = vmatprep.subr.bf16.mxu0 0
    %9201 = vmatpush2.bf16.msra.mxu0 0
    %9202 = vmatprep.subr.bf16.mxu0 0
    %9203 = vmatpush2.bf16.msra.mxu0 0
    %9204 = vmatprep.subr.bf16.mxu0 0
    %9205 = vmatpush2.bf16.msra.mxu0 0
    %9206 = vmatprep.subr.bf16.mxu0 0
    %9207 = vmatpush2.bf16.msra.mxu0 0
    %9208 = vmatprep.mubr.bf16.mxu0 0
    %9209 = vmatmul.mubr.bf16.gmra.mxu0 %v9174
    %v9210 = vpop.f32.mrf.mxu0
    %v9211 = vadd.f32 0.0, %v9210
    %v9212 = vpop.f32.mrf.mxu0
    %v9213 = vpop.f32.mrf.mxu0
    %v9214 = vpop.f32.mrf.mxu0
    %9215 = vdwg.mxu0
    %v9216 = vadd.f32 %v9166, %v9211
    %s9217 = scalar_lea.vmem [#allocation13], 12
    %v9218 = vld [vmem:[%s9217] sm:$0xf]
    %v9220 = vsel %vm9084, %v9218, 0
    %9222 = vmatprep.subr.bf16.mxu0 0
    %9223 = vmatpush1.bf16.msra.mxu0 0
    %9224 = vmatprep.subr.bf16.mxu0 0
    %9225 = vmatpush1.bf16.msra.mxu0 0
    %9226 = vmatprep.subr.bf16.mxu0 0
    %9227 = vmatpush1.bf16.msra.mxu0 0
    %9228 = vmatprep.subr.bf16.mxu0 0
    %9229 = vmatpush1.bf16.msra.mxu0 0
    %9230 = vmatprep.subr.bf16.mxu0 0
    %9231 = vmatpush1.bf16.msra.mxu0 0
    %9232 = vmatprep.subr.bf16.mxu0 0
    %9233 = vmatpush1.bf16.msra.mxu0 0
    %9234 = vmatprep.subr.bf16.mxu0 0
    %9235 = vmatpush1.bf16.msra.mxu0 %v9075
    %9236 = vmatprep.subr.bf16.mxu0 0
    %9237 = vmatpush1.bf16.msra.mxu0 %v9066
    %9238 = vmatprep.subr.bf16.mxu0 0
    %9239 = vmatpush2.bf16.msra.mxu0 0
    %9240 = vmatprep.subr.bf16.mxu0 0
    %9241 = vmatpush2.bf16.msra.mxu0 0
    %9242 = vmatprep.subr.bf16.mxu0 0
    %9243 = vmatpush2.bf16.msra.mxu0 0
    %9244 = vmatprep.subr.bf16.mxu0 0
    %9245 = vmatpush2.bf16.msra.mxu0 0
    %9246 = vmatprep.subr.bf16.mxu0 0
    %9247 = vmatpush2.bf16.msra.mxu0 0
    %9248 = vmatprep.subr.bf16.mxu0 0
    %9249 = vmatpush2.bf16.msra.mxu0 0
    %9250 = vmatprep.subr.bf16.mxu0 0
    %9251 = vmatpush2.bf16.msra.mxu0 0
    %9252 = vmatprep.subr.bf16.mxu0 0
    %9253 = vmatpush2.bf16.msra.mxu0 0
    %9254 = vmatprep.mubr.bf16.mxu0 0
    %9255 = vmatmul.mubr.bf16.gmra.mxu0 %v9220
    %v9256 = vpop.f32.mrf.mxu0
    %v9257 = vadd.f32 0.0, %v9256
    %v9258 = vpop.f32.mrf.mxu0
    %v9259 = vpop.f32.mrf.mxu0
    %v9260 = vpop.f32.mrf.mxu0
    %9261 = vdwg.mxu0
    %v9262 = vadd.f32 %v9216, %v9257
    %s9263 = scalar_lea.vmem [#allocation13], 16
    %v9264 = vld [vmem:[%s9263] sm:$0xf]
    %v9266 = vsel %vm9084, %v9264, 0
    %9268 = vmatprep.subr.bf16.mxu0 0
    %9269 = vmatpush1.bf16.msra.mxu0 0
    %9270 = vmatprep.subr.bf16.mxu0 0
    %9271 = vmatpush1.bf16.msra.mxu0 0
    %9272 = vmatprep.subr.bf16.mxu0 0
    %9273 = vmatpush1.bf16.msra.mxu0 0
    %9274 = vmatprep.subr.bf16.mxu0 0
    %9275 = vmatpush1.bf16.msra.mxu0 0
    %9276 = vmatprep.subr.bf16.mxu0 0
    %9277 = vmatpush1.bf16.msra.mxu0 0
    %9278 = vmatprep.subr.bf16.mxu0 0
    %9279 = vmatpush1.bf16.msra.mxu0 0
    %9280 = vmatprep.subr.bf16.mxu0 0
    %9281 = vmatpush1.bf16.msra.mxu0 %v9076
    %9282 = vmatprep.subr.bf16.mxu0 0
    %9283 = vmatpush1.bf16.msra.mxu0 %v9067
    %9284 = vmatprep.subr.bf16.mxu0 0
    %9285 = vmatpush2.bf16.msra.mxu0 0
    %9286 = vmatprep.subr.bf16.mxu0 0
    %9287 = vmatpush2.bf16.msra.mxu0 0
    %9288 = vmatprep.subr.bf16.mxu0 0
    %9289 = vmatpush2.bf16.msra.mxu0 0
    %9290 = vmatprep.subr.bf16.mxu0 0
    %9291 = vmatpush2.bf16.msra.mxu0 0
    %9292 = vmatprep.subr.bf16.mxu0 0
    %9293 = vmatpush2.bf16.msra.mxu0 0
    %9294 = vmatprep.subr.bf16.mxu0 0
    %9295 = vmatpush2.bf16.msra.mxu0 0
    %9296 = vmatprep.subr.bf16.mxu0 0
    %9297 = vmatpush2.bf16.msra.mxu0 0
    %9298 = vmatprep.subr.bf16.mxu0 0
    %9299 = vmatpush2.bf16.msra.mxu0 0
    %9300 = vmatprep.mubr.bf16.mxu0 0
    %9301 = vmatmul.mubr.bf16.gmra.mxu0 %v9266
    %v9302 = vpop.f32.mrf.mxu0
    %v9303 = vadd.f32 0.0, %v9302
    %v9304 = vpop.f32.mrf.mxu0
    %v9305 = vpop.f32.mrf.mxu0
    %v9306 = vpop.f32.mrf.mxu0
    %9307 = vdwg.mxu0
    %v9308 = vadd.f32 %v9262, %v9303
    %s9309 = scalar_lea.vmem [#allocation13], 20
    %v9310 = vld [vmem:[%s9309] sm:$0xf]
    %v9312 = vsel %vm9084, %v9310, 0
    %9314 = vmatprep.subr.bf16.mxu0 0
    %9315 = vmatpush1.bf16.msra.mxu0 0
    %9316 = vmatprep.subr.bf16.mxu0 0
    %9317 = vmatpush1.bf16.msra.mxu0 0
    %9318 = vmatprep.subr.bf16.mxu0 0
    %9319 = vmatpush1.bf16.msra.mxu0 0
    %9320 = vmatprep.subr.bf16.mxu0 0
    %9321 = vmatpush1.bf16.msra.mxu0 0
    %9322 = vmatprep.subr.bf16.mxu0 0
    %9323 = vmatpush1.bf16.msra.mxu0 0
    %9324 = vmatprep.subr.bf16.mxu0 0
    %9325 = vmatpush1.bf16.msra.mxu0 0
    %9326 = vmatprep.subr.bf16.mxu0 0
    %9327 = vmatpush1.bf16.msra.mxu0 %v9077
    %9328 = vmatprep.subr.bf16.mxu0 0
    %9329 = vmatpush1.bf16.msra.mxu0 %v9068
    %9330 = vmatprep.subr.bf16.mxu0 0
    %9331 = vmatpush2.bf16.msra.mxu0 0
    %9332 = vmatprep.subr.bf16.mxu0 0
    %9333 = vmatpush2.bf16.msra.mxu0 0
    %9334 = vmatprep.subr.bf16.mxu0 0
    %9335 = vmatpush2.bf16.msra.mxu0 0
    %9336 = vmatprep.subr.bf16.mxu0 0
    %9337 = vmatpush2.bf16.msra.mxu0 0
    %9338 = vmatprep.subr.bf16.mxu0 0
    %9339 = vmatpush2.bf16.msra.mxu0 0
    %9340 = vmatprep.subr.bf16.mxu0 0
    %9341 = vmatpush2.bf16.msra.mxu0 0
    %9342 = vmatprep.subr.bf16.mxu0 0
    %9343 = vmatpush2.bf16.msra.mxu0 0
    %9344 = vmatprep.subr.bf16.mxu0 0
    %9345 = vmatpush2.bf16.msra.mxu0 0
    %9346 = vmatprep.mubr.bf16.mxu0 0
    %9347 = vmatmul.mubr.bf16.gmra.mxu0 %v9312
    %v9348 = vpop.f32.mrf.mxu0
    %v9349 = vadd.f32 0.0, %v9348
    %v9350 = vpop.f32.mrf.mxu0
    %v9351 = vpop.f32.mrf.mxu0
    %v9352 = vpop.f32.mrf.mxu0
    %9353 = vdwg.mxu0
    %v9354 = vadd.f32 %v9308, %v9349
    %s9355 = scalar_lea.vmem [#allocation13], 24
    %v9356 = vld [vmem:[%s9355] sm:$0xf]
    %v9358 = vsel %vm9084, %v9356, 0
    %9360 = vmatprep.subr.bf16.mxu0 0
    %9361 = vmatpush1.bf16.msra.mxu0 0
    %9362 = vmatprep.subr.bf16.mxu0 0
    %9363 = vmatpush1.bf16.msra.mxu0 0
    %9364 = vmatprep.subr.bf16.mxu0 0
    %9365 = vmatpush1.bf16.msra.mxu0 0
    %9366 = vmatprep.subr.bf16.mxu0 0
    %9367 = vmatpush1.bf16.msra.mxu0 0
    %9368 = vmatprep.subr.bf16.mxu0 0
    %9369 = vmatpush1.bf16.msra.mxu0 0
    %9370 = vmatprep.subr.bf16.mxu0 0
    %9371 = vmatpush1.bf16.msra.mxu0 0
    %9372 = vmatprep.subr.bf16.mxu0 0
    %9373 = vmatpush1.bf16.msra.mxu0 %v9078
    %9374 = vmatprep.subr.bf16.mxu0 0
    %9375 = vmatpush1.bf16.msra.mxu0 %v9069
    %9376 = vmatprep.subr.bf16.mxu0 0
    %9377 = vmatpush2.bf16.msra.mxu0 0
    %9378 = vmatprep.subr.bf16.mxu0 0
    %9379 = vmatpush2.bf16.msra.mxu0 0
    %9380 = vmatprep.subr.bf16.mxu0 0
    %9381 = vmatpush2.bf16.msra.mxu0 0
    %9382 = vmatprep.subr.bf16.mxu0 0
    %9383 = vmatpush2.bf16.msra.mxu0 0
    %9384 = vmatprep.subr.bf16.mxu0 0
    %9385 = vmatpush2.bf16.msra.mxu0 0
    %9386 = vmatprep.subr.bf16.mxu0 0
    %9387 = vmatpush2.bf16.msra.mxu0 0
    %9388 = vmatprep.subr.bf16.mxu0 0
    %9389 = vmatpush2.bf16.msra.mxu0 0
    %9390 = vmatprep.subr.bf16.mxu0 0
    %9391 = vmatpush2.bf16.msra.mxu0 0
    %9392 = vmatprep.mubr.bf16.mxu0 0
    %9393 = vmatmul.mubr.bf16.gmra.mxu0 %v9358
    %v9394 = vpop.f32.mrf.mxu0
    %v9395 = vadd.f32 0.0, %v9394
    %v9396 = vpop.f32.mrf.mxu0
    %v9397 = vpop.f32.mrf.mxu0
    %v9398 = vpop.f32.mrf.mxu0
    %9399 = vdwg.mxu0
    %v9400 = vadd.f32 %v9354, %v9395
    %s9401 = scalar_lea.vmem [#allocation13], 28
    %v9402 = vld [vmem:[%s9401] sm:$0xf]
    %v9404 = vsel %vm9084, %v9402, 0
    %9406 = vmatprep.subr.bf16.mxu0 0
    %9407 = vmatpush1.bf16.msra.mxu0 0
    %9408 = vmatprep.subr.bf16.mxu0 0
    %9409 = vmatpush1.bf16.msra.mxu0 0
    %9410 = vmatprep.subr.bf16.mxu0 0
    %9411 = vmatpush1.bf16.msra.mxu0 0
    %9412 = vmatprep.subr.bf16.mxu0 0
    %9413 = vmatpush1.bf16.msra.mxu0 0
    %9414 = vmatprep.subr.bf16.mxu0 0
    %9415 = vmatpush1.bf16.msra.mxu0 0
    %9416 = vmatprep.subr.bf16.mxu0 0
    %9417 = vmatpush1.bf16.msra.mxu0 0
    %9418 = vmatprep.subr.bf16.mxu0 0
    %9419 = vmatpush1.bf16.msra.mxu0 %v9079
    %9420 = vmatprep.subr.bf16.mxu0 0
    %9421 = vmatpush1.bf16.msra.mxu0 %v9070
    %9422 = vmatprep.subr.bf16.mxu0 0
    %9423 = vmatpush2.bf16.msra.mxu0 0
    %9424 = vmatprep.subr.bf16.mxu0 0
    %9425 = vmatpush2.bf16.msra.mxu0 0
    %9426 = vmatprep.subr.bf16.mxu0 0
    %9427 = vmatpush2.bf16.msra.mxu0 0
    %9428 = vmatprep.subr.bf16.mxu0 0
    %9429 = vmatpush2.bf16.msra.mxu0 0
    %9430 = vmatprep.subr.bf16.mxu0 0
    %9431 = vmatpush2.bf16.msra.mxu0 0
    %9432 = vmatprep.subr.bf16.mxu0 0
    %9433 = vmatpush2.bf16.msra.mxu0 0
    %9434 = vmatprep.subr.bf16.mxu0 0
    %9435 = vmatpush2.bf16.msra.mxu0 0
    %9436 = vmatprep.subr.bf16.mxu0 0
    %9437 = vmatpush2.bf16.msra.mxu0 0
    %9438 = vmatprep.mubr.bf16.mxu0 0
    %9439 = vmatmul.mubr.bf16.gmra.mxu0 %v9404
    %v9440 = vpop.f32.mrf.mxu0
    %v9441 = vadd.f32 0.0, %v9440
    %v9442 = vpop.f32.mrf.mxu0
    %v9443 = vpop.f32.mrf.mxu0
    %v9444 = vpop.f32.mrf.mxu0
    %9445 = vdwg.mxu0
    %v9446 = vadd.f32 %v9400, %v9441
    %s9447 = scalar_lea.vmem [#allocation13], 32
    %v9448 = vld [vmem:[%s9447] sm:$0xf]
    %v9450 = vsel %vm9084, %v9448, 0
    %9452 = vmatprep.subr.bf16.mxu0 0
    %9453 = vmatpush1.bf16.msra.mxu0 0
    %9454 = vmatprep.subr.bf16.mxu0 0
    %9455 = vmatpush1.bf16.msra.mxu0 0
    %9456 = vmatprep.subr.bf16.mxu0 0
    %9457 = vmatpush1.bf16.msra.mxu0 0
    %9458 = vmatprep.subr.bf16.mxu0 0
    %9459 = vmatpush1.bf16.msra.mxu0 0
    %9460 = vmatprep.subr.bf16.mxu0 0
    %9461 = vmatpush1.bf16.msra.mxu0 0
    %9462 = vmatprep.subr.bf16.mxu0 0
    %9463 = vmatpush1.bf16.msra.mxu0 0
    %9464 = vmatprep.subr.bf16.mxu0 0
    %9465 = vmatpush1.bf16.msra.mxu0 %v9080
    %9466 = vmatprep.subr.bf16.mxu0 0
    %9467 = vmatpush1.bf16.msra.mxu0 %v9071
    %9468 = vmatprep.subr.bf16.mxu0 0
    %9469 = vmatpush2.bf16.msra.mxu0 0
    %9470 = vmatprep.subr.bf16.mxu0 0
    %9471 = vmatpush2.bf16.msra.mxu0 0
    %9472 = vmatprep.subr.bf16.mxu0 0
    %9473 = vmatpush2.bf16.msra.mxu0 0
    %9474 = vmatprep.subr.bf16.mxu0 0
    %9475 = vmatpush2.bf16.msra.mxu0 0
    %9476 = vmatprep.subr.bf16.mxu0 0
    %9477 = vmatpush2.bf16.msra.mxu0 0
    %9478 = vmatprep.subr.bf16.mxu0 0
    %9479 = vmatpush2.bf16.msra.mxu0 0
    %9480 = vmatprep.subr.bf16.mxu0 0
    %9481 = vmatpush2.bf16.msra.mxu0 0
    %9482 = vmatprep.subr.bf16.mxu0 0
    %9483 = vmatpush2.bf16.msra.mxu0 0
    %9484 = vmatprep.mubr.bf16.mxu0 0
    %9485 = vmatmul.mubr.bf16.gmra.mxu0 %v9450
    %v9486 = vpop.f32.mrf.mxu0
    %v9487 = vadd.f32 0.0, %v9486
    %v9488 = vpop.f32.mrf.mxu0
    %v9489 = vpop.f32.mrf.mxu0
    %v9490 = vpop.f32.mrf.mxu0
    %9491 = vdwg.mxu0
    %v9492 = vadd.f32 %v9446, %v9487
    %v9493 = vld [vmem:[#allocation15] sm:$0x1]
    %v9494 = vlaneseq
    %v9495 = vshrl.u32 %v9494, 7
    %v9496 = vsub.s32 0, %v9495
    %v9497 = vrot.slane %v9493, %v9496
    %v9498 = vadd.f32 %v9492, %v9497
    %vm9499 = vcmp.gt.f32.partialorder %v9498, 0.0
    %v9500 = vmul.f32 %v9498, 0.2
    %v9501 = vsel %vm9499, %v9498, %v9500
    %v9502 = vld [vmem:[#allocation15 + $0x1] sm:$0x1]
    %v9503 = vlaneseq
    %v9504 = vshrl.u32 %v9503, 7
    %v9505 = vsub.s32 0, %v9504
    %v9506 = vrot.slane %v9502, %v9505
    %v9507 = vmul.f32 %v9501, %v9506
    %v9508 = vld [vmem:[#allocation15 + $0x2] sm:$0x1]
    %v9509 = vlaneseq
    %v9510 = vshrl.u32 %v9509, 7
    %v9511 = vsub.s32 0, %v9510
    %v9512 = vrot.slane %v9508, %v9511
    %v9513 = vadd.f32 %v9507, %v9512
    %v9514 = vpack.c.bf16 %v9513, %v9513
    %v9515 = vld [vmem:[#allocation16] sm:$0xff]
    %v9516 = vld [vmem:[#allocation16 + $0x8] sm:$0xff]
    %v9517 = vld [vmem:[#allocation16 + $0x10] sm:$0xff]
    %v9518 = vld [vmem:[#allocation16 + $0x18] sm:$0xff]
    %v9519 = vld [vmem:[#allocation16 + $0x20] sm:$0xf]
    %v9520 = vld [vmem:[#allocation16 + $0x24] sm:$0xff]
    %v9521 = vld [vmem:[#allocation16 + $0x2c] sm:$0xff]
    %v9522 = vld [vmem:[#allocation16 + $0x34] sm:$0xff]
    %v9523 = vld [vmem:[#allocation16 + $0x3c] sm:$0xff]
    %v9524 = vld [vmem:[#allocation16 + $0x44] sm:$0xf]
    %v9525 = vld [vmem:[#allocation16 + $0x48] sm:$0xff]
    %v9526 = vld [vmem:[#allocation16 + $0x50] sm:$0xff]
    %v9527 = vld [vmem:[#allocation16 + $0x58] sm:$0xff]
    %v9528 = vld [vmem:[#allocation16 + $0x60] sm:$0xff]
    %v9529 = vld [vmem:[#allocation16 + $0x68] sm:$0xf]
    %v9530 = vld [vmem:[#allocation16 + $0x6c] sm:$0xff]
    %v9531 = vld [vmem:[#allocation16 + $0x74] sm:$0xff]
    %v9532 = vld [vmem:[#allocation16 + $0x7c] sm:$0xff]
    %v9533 = vld [vmem:[#allocation16 + $0x84] sm:$0xff]
    %v9534 = vld [vmem:[#allocation16 + $0x8c] sm:$0xf]
    %v9535 = vld [vmem:[#allocation16 + $0x90] sm:$0xff]
    %v9536 = vld [vmem:[#allocation16 + $0x98] sm:$0xff]
    %v9537 = vld [vmem:[#allocation16 + $0xa0] sm:$0xff]
    %v9538 = vld [vmem:[#allocation16 + $0xa8] sm:$0xff]
    %v9539 = vld [vmem:[#allocation16 + $0xb0] sm:$0xf]
    %v9540 = vld [vmem:[#allocation16 + $0xb4] sm:$0xff]
    %v9541 = vld [vmem:[#allocation16 + $0xbc] sm:$0xff]
    %v9542 = vld [vmem:[#allocation16 + $0xc4] sm:$0xff]
    %v9543 = vld [vmem:[#allocation16 + $0xcc] sm:$0xff]
    %v9544 = vld [vmem:[#allocation16 + $0xd4] sm:$0xf]
    %v9545 = vld [vmem:[#allocation16 + $0xd8] sm:$0xff]
    %v9546 = vld [vmem:[#allocation16 + $0xe0] sm:$0xff]
    %v9547 = vld [vmem:[#allocation16 + $0xe8] sm:$0xff]
    %v9548 = vld [vmem:[#allocation16 + $0xf0] sm:$0xff]
    %v9549 = vld [vmem:[#allocation16 + $0xf8] sm:$0xf]
    %v9550 = vld [vmem:[#allocation16 + $0xfc] sm:$0xff]
    %v9551 = vld [vmem:[#allocation16 + $0x104] sm:$0xff]
    %v9552 = vld [vmem:[#allocation16 + $0x10c] sm:$0xff]
    %v9553 = vld [vmem:[#allocation16 + $0x114] sm:$0xff]
    %v9554 = vld [vmem:[#allocation16 + $0x11c] sm:$0xf]
    %v9555 = vld [vmem:[#allocation16 + $0x120] sm:$0xff]
    %v9556 = vld [vmem:[#allocation16 + $0x128] sm:$0xff]
    %v9557 = vld [vmem:[#allocation16 + $0x130] sm:$0xff]
    %v9558 = vld [vmem:[#allocation16 + $0x138] sm:$0xff]
    %v9559 = vld [vmem:[#allocation16 + $0x140] sm:$0xf]
    %v9560 = vld [vmem:[#allocation16 + $0x144] sm:$0xff]
    %v9561 = vld [vmem:[#allocation16 + $0x14c] sm:$0xff]
    %v9562 = vld [vmem:[#allocation16 + $0x154] sm:$0xff]
    %v9563 = vld [vmem:[#allocation16 + $0x15c] sm:$0xff]
    %v9564 = vld [vmem:[#allocation16 + $0x164] sm:$0xf]
    %v9565 = vld [vmem:[#allocation16 + $0x168] sm:$0xff]
    %v9566 = vld [vmem:[#allocation16 + $0x170] sm:$0xff]
    %v9567 = vld [vmem:[#allocation16 + $0x178] sm:$0xff]
    %v9568 = vld [vmem:[#allocation16 + $0x180] sm:$0xff]
    %v9569 = vld [vmem:[#allocation16 + $0x188] sm:$0xf]
    %v9570 = vld [vmem:[#allocation16 + $0x18c] sm:$0xff]
    %v9571 = vld [vmem:[#allocation16 + $0x194] sm:$0xff]
    %v9572 = vld [vmem:[#allocation16 + $0x19c] sm:$0xff]
    %v9573 = vld [vmem:[#allocation16 + $0x1a4] sm:$0xff]
    %v9574 = vld [vmem:[#allocation16 + $0x1ac] sm:$0xf]
    %v9575 = vld [vmem:[#allocation16 + $0x1b0] sm:$0xff]
    %v9576 = vld [vmem:[#allocation16 + $0x1b8] sm:$0xff]
    %v9577 = vld [vmem:[#allocation16 + $0x1c0] sm:$0xff]
    %v9578 = vld [vmem:[#allocation16 + $0x1c8] sm:$0xff]
    %v9579 = vld [vmem:[#allocation16 + $0x1d0] sm:$0xf]
    %v9580 = vld [vmem:[#allocation16 + $0x1d4] sm:$0xff]
    %v9581 = vld [vmem:[#allocation16 + $0x1dc] sm:$0xff]
    %v9582 = vld [vmem:[#allocation16 + $0x1e4] sm:$0xff]
    %v9583 = vld [vmem:[#allocation16 + $0x1ec] sm:$0xff]
    %v9584 = vld [vmem:[#allocation16 + $0x1f4] sm:$0xf]
    %v9585 = vld [vmem:[#allocation16 + $0x1f8] sm:$0xff]
    %v9586 = vld [vmem:[#allocation16 + $0x200] sm:$0xff]
    %v9587 = vld [vmem:[#allocation16 + $0x208] sm:$0xff]
    %v9588 = vld [vmem:[#allocation16 + $0x210] sm:$0xff]
    %v9589 = vld [vmem:[#allocation16 + $0x218] sm:$0xf]
    %v9590 = vld [vmem:[#allocation16 + $0x21c] sm:$0xff]
    %v9591 = vld [vmem:[#allocation16 + $0x224] sm:$0xff]
    %v9592 = vld [vmem:[#allocation16 + $0x22c] sm:$0xff]
    %v9593 = vld [vmem:[#allocation16 + $0x234] sm:$0xff]
    %v9594 = vld [vmem:[#allocation16 + $0x23c] sm:$0xf]
    %v9675 = vunpack.c.l.b16 %v9515
    %v9676 = vunpack.c.h.b16 %v9515
    %v9677 = vunpack.c.l.b16 %v9516
    %v9678 = vunpack.c.h.b16 %v9516
    %v9679 = vunpack.c.l.b16 %v9517
    %v9680 = vunpack.c.h.b16 %v9517
    %v9681 = vunpack.c.l.b16 %v9518
    %v9682 = vunpack.c.h.b16 %v9518
    %v9683 = vunpack.c.l.b16 %v9519
    %v9684 = vunpack.c.l.b16 %v9520
    %v9685 = vunpack.c.h.b16 %v9520
    %v9686 = vunpack.c.l.b16 %v9521
    %v9687 = vunpack.c.h.b16 %v9521
    %v9688 = vunpack.c.l.b16 %v9522
    %v9689 = vunpack.c.h.b16 %v9522
    %v9690 = vunpack.c.l.b16 %v9523
    %v9691 = vunpack.c.h.b16 %v9523
    %v9692 = vunpack.c.l.b16 %v9524
    %v9693 = vunpack.c.l.b16 %v9525
    %v9694 = vunpack.c.h.b16 %v9525
    %v9695 = vunpack.c.l.b16 %v9526
    %v9696 = vunpack.c.h.b16 %v9526
    %v9697 = vunpack.c.l.b16 %v9527
    %v9698 = vunpack.c.h.b16 %v9527
    %v9699 = vunpack.c.l.b16 %v9528
    %v9700 = vunpack.c.h.b16 %v9528
    %v9701 = vunpack.c.l.b16 %v9529
    %v9702 = vunpack.c.l.b16 %v9530
    %v9703 = vunpack.c.h.b16 %v9530
    %v9704 = vunpack.c.l.b16 %v9531
    %v9705 = vunpack.c.h.b16 %v9531
    %v9706 = vunpack.c.l.b16 %v9532
    %v9707 = vunpack.c.h.b16 %v9532
    %v9708 = vunpack.c.l.b16 %v9533
    %v9709 = vunpack.c.h.b16 %v9533
    %v9710 = vunpack.c.l.b16 %v9534
    %v9711 = vunpack.c.l.b16 %v9535
    %v9712 = vunpack.c.h.b16 %v9535
    %v9713 = vunpack.c.l.b16 %v9536
    %v9714 = vunpack.c.h.b16 %v9536
    %v9715 = vunpack.c.l.b16 %v9537
    %v9716 = vunpack.c.h.b16 %v9537
    %v9717 = vunpack.c.l.b16 %v9538
    %v9718 = vunpack.c.h.b16 %v9538
    %v9719 = vunpack.c.l.b16 %v9539
    %v9720 = vunpack.c.l.b16 %v9540
    %v9721 = vunpack.c.h.b16 %v9540
    %v9722 = vunpack.c.l.b16 %v9541
    %v9723 = vunpack.c.h.b16 %v9541
    %v9724 = vunpack.c.l.b16 %v9542
    %v9725 = vunpack.c.h.b16 %v9542
    %v9726 = vunpack.c.l.b16 %v9543
    %v9727 = vunpack.c.h.b16 %v9543
    %v9728 = vunpack.c.l.b16 %v9544
    %v9729 = vunpack.c.l.b16 %v9545
    %v9730 = vunpack.c.h.b16 %v9545
    %v9731 = vunpack.c.l.b16 %v9546
    %v9732 = vunpack.c.h.b16 %v9546
    %v9733 = vunpack.c.l.b16 %v9547
    %v9734 = vunpack.c.h.b16 %v9547
    %v9735 = vunpack.c.l.b16 %v9548
    %v9736 = vunpack.c.h.b16 %v9548
    %v9737 = vunpack.c.l.b16 %v9549
    %v9738 = vunpack.c.l.b16 %v9550
    %v9739 = vunpack.c.h.b16 %v9550
    %v9740 = vunpack.c.l.b16 %v9551
    %v9741 = vunpack.c.h.b16 %v9551
    %v9742 = vunpack.c.l.b16 %v9552
    %v9743 = vunpack.c.h.b16 %v9552
    %v9744 = vunpack.c.l.b16 %v9553
    %v9745 = vunpack.c.h.b16 %v9553
    %v9746 = vunpack.c.l.b16 %v9554
    %v9747 = vunpack.c.l.b16 %v9555
    %v9748 = vunpack.c.h.b16 %v9555
    %v9749 = vunpack.c.l.b16 %v9556
    %v9750 = vunpack.c.h.b16 %v9556
    %v9751 = vunpack.c.l.b16 %v9557
    %v9752 = vunpack.c.h.b16 %v9557
    %v9753 = vunpack.c.l.b16 %v9558
    %v9754 = vunpack.c.h.b16 %v9558
    %v9755 = vunpack.c.l.b16 %v9559
    %v9756 = vunpack.c.l.b16 %v9560
    %v9757 = vunpack.c.h.b16 %v9560
    %v9758 = vunpack.c.l.b16 %v9561
    %v9759 = vunpack.c.h.b16 %v9561
    %v9760 = vunpack.c.l.b16 %v9562
    %v9761 = vunpack.c.h.b16 %v9562
    %v9762 = vunpack.c.l.b16 %v9563
    %v9763 = vunpack.c.h.b16 %v9563
    %v9764 = vunpack.c.l.b16 %v9564
    %v9765 = vunpack.c.l.b16 %v9565
    %v9766 = vunpack.c.h.b16 %v9565
    %v9767 = vunpack.c.l.b16 %v9566
    %v9768 = vunpack.c.h.b16 %v9566
    %v9769 = vunpack.c.l.b16 %v9567
    %v9770 = vunpack.c.h.b16 %v9567
    %v9771 = vunpack.c.l.b16 %v9568
    %v9772 = vunpack.c.h.b16 %v9568
    %v9773 = vunpack.c.l.b16 %v9569
    %v9774 = vunpack.c.l.b16 %v9570
    %v9775 = vunpack.c.h.b16 %v9570
    %v9776 = vunpack.c.l.b16 %v9571
    %v9777 = vunpack.c.h.b16 %v9571
    %v9778 = vunpack.c.l.b16 %v9572
    %v9779 = vunpack.c.h.b16 %v9572
    %v9780 = vunpack.c.l.b16 %v9573
    %v9781 = vunpack.c.h.b16 %v9573
    %v9782 = vunpack.c.l.b16 %v9574
    %v9783 = vunpack.c.l.b16 %v9575
    %v9784 = vunpack.c.h.b16 %v9575
    %v9785 = vunpack.c.l.b16 %v9576
    %v9786 = vunpack.c.h.b16 %v9576
    %v9787 = vunpack.c.l.b16 %v9577
    %v9788 = vunpack.c.h.b16 %v9577
    %v9789 = vunpack.c.l.b16 %v9578
    %v9790 = vunpack.c.h.b16 %v9578
    %v9791 = vunpack.c.l.b16 %v9579
    %v9792 = vunpack.c.l.b16 %v9580
    %v9793 = vunpack.c.h.b16 %v9580
    %v9794 = vunpack.c.l.b16 %v9581
    %v9795 = vunpack.c.h.b16 %v9581
    %v9796 = vunpack.c.l.b16 %v9582
    %v9797 = vunpack.c.h.b16 %v9582
    %v9798 = vunpack.c.l.b16 %v9583
    %v9799 = vunpack.c.h.b16 %v9583
    %v9800 = vunpack.c.l.b16 %v9584
    %v9801 = vunpack.c.l.b16 %v9585
    %v9802 = vunpack.c.h.b16 %v9585
    %v9803 = vunpack.c.l.b16 %v9586
    %v9804 = vunpack.c.h.b16 %v9586
    %v9805 = vunpack.c.l.b16 %v9587
    %v9806 = vunpack.c.h.b16 %v9587
    %v9807 = vunpack.c.l.b16 %v9588
    %v9808 = vunpack.c.h.b16 %v9588
    %v9809 = vunpack.c.l.b16 %v9589
    %v9810 = vunpack.c.l.b16 %v9590
    %v9811 = vunpack.c.h.b16 %v9590
    %v9812 = vunpack.c.l.b16 %v9591
    %v9813 = vunpack.c.h.b16 %v9591
    %v9814 = vunpack.c.l.b16 %v9592
    %v9815 = vunpack.c.h.b16 %v9592
    %v9816 = vunpack.c.l.b16 %v9593
    %v9817 = vunpack.c.h.b16 %v9593
    %v9818 = vunpack.c.l.b16 %v9594
    %v9819 = vpack.c.b16 %v9684, %v9675
    %v9820 = vpack.c.b16 %v9685, %v9676
    %v9821 = vpack.c.b16 %v9686, %v9677
    %v9822 = vpack.c.b16 %v9687, %v9678
    %v9823 = vpack.c.b16 %v9688, %v9679
    %v9824 = vpack.c.b16 %v9689, %v9680
    %v9825 = vpack.c.b16 %v9690, %v9681
    %v9826 = vpack.c.b16 %v9691, %v9682
    %v9827 = vpack.c.b16 %v9692, %v9683
    %v9828 = vpack.c.b16 %v9702, %v9693
    %v9829 = vpack.c.b16 %v9703, %v9694
    %v9830 = vpack.c.b16 %v9704, %v9695
    %v9831 = vpack.c.b16 %v9705, %v9696
    %v9832 = vpack.c.b16 %v9706, %v9697
    %v9833 = vpack.c.b16 %v9707, %v9698
    %v9834 = vpack.c.b16 %v9708, %v9699
    %v9835 = vpack.c.b16 %v9709, %v9700
    %v9836 = vpack.c.b16 %v9710, %v9701
    %v9837 = vpack.c.b16 %v9720, %v9711
    %v9838 = vpack.c.b16 %v9721, %v9712
    %v9839 = vpack.c.b16 %v9722, %v9713
    %v9840 = vpack.c.b16 %v9723, %v9714
    %v9841 = vpack.c.b16 %v9724, %v9715
    %v9842 = vpack.c.b16 %v9725, %v9716
    %v9843 = vpack.c.b16 %v9726, %v9717
    %v9844 = vpack.c.b16 %v9727, %v9718
    %v9845 = vpack.c.b16 %v9728, %v9719
    %v9846 = vpack.c.b16 %v9738, %v9729
    %v9847 = vpack.c.b16 %v9739, %v9730
    %v9848 = vpack.c.b16 %v9740, %v9731
    %v9849 = vpack.c.b16 %v9741, %v9732
    %v9850 = vpack.c.b16 %v9742, %v9733
    %v9851 = vpack.c.b16 %v9743, %v9734
    %v9852 = vpack.c.b16 %v9744, %v9735
    %v9853 = vpack.c.b16 %v9745, %v9736
    %v9854 = vpack.c.b16 %v9746, %v9737
    %v9855 = vpack.c.b16 %v9756, %v9747
    %v9856 = vpack.c.b16 %v9757, %v9748
    %v9857 = vpack.c.b16 %v9758, %v9749
    %v9858 = vpack.c.b16 %v9759, %v9750
    %v9859 = vpack.c.b16 %v9760, %v9751
    %v9860 = vpack.c.b16 %v9761, %v9752
    %v9861 = vpack.c.b16 %v9762, %v9753
    %v9862 = vpack.c.b16 %v9763, %v9754
    %v9863 = vpack.c.b16 %v9764, %v9755
    %v9864 = vpack.c.b16 %v9774, %v9765
    %v9865 = vpack.c.b16 %v9775, %v9766
    %v9866 = vpack.c.b16 %v9776, %v9767
    %v9867 = vpack.c.b16 %v9777, %v9768
    %v9868 = vpack.c.b16 %v9778, %v9769
    %v9869 = vpack.c.b16 %v9779, %v9770
    %v9870 = vpack.c.b16 %v9780, %v9771
    %v9871 = vpack.c.b16 %v9781, %v9772
    %v9872 = vpack.c.b16 %v9782, %v9773
    %v9873 = vpack.c.b16 %v9792, %v9783
    %v9874 = vpack.c.b16 %v9793, %v9784
    %v9875 = vpack.c.b16 %v9794, %v9785
    %v9876 = vpack.c.b16 %v9795, %v9786
    %v9877 = vpack.c.b16 %v9796, %v9787
    %v9878 = vpack.c.b16 %v9797, %v9788
    %v9879 = vpack.c.b16 %v9798, %v9789
    %v9880 = vpack.c.b16 %v9799, %v9790
    %v9881 = vpack.c.b16 %v9800, %v9791
    %v9882 = vpack.c.b16 %v9810, %v9801
    %v9883 = vpack.c.b16 %v9811, %v9802
    %v9884 = vpack.c.b16 %v9812, %v9803
    %v9885 = vpack.c.b16 %v9813, %v9804
    %v9886 = vpack.c.b16 %v9814, %v9805
    %v9887 = vpack.c.b16 %v9815, %v9806
    %v9888 = vpack.c.b16 %v9816, %v9807
    %v9889 = vpack.c.b16 %v9817, %v9808
    %v9890 = vpack.c.b16 %v9818, %v9809
    %9963 = vmatprep.subr.bf16.mxu0 %v9883
    %9964 = vmatpush1.bf16.msra.mxu0 %v9882
    %9965 = vmatprep.subr.bf16.mxu0 %v9874
    %9966 = vmatpush1.bf16.msra.mxu0 %v9873
    %9967 = vmatprep.subr.bf16.mxu0 %v9865
    %9968 = vmatpush1.bf16.msra.mxu0 %v9864
    %9969 = vmatprep.subr.bf16.mxu0 %v9856
    %9970 = vmatpush1.bf16.msra.mxu0 %v9855
    %9971 = vmatprep.subr.bf16.mxu0 %v9847
    %9972 = vmatpush1.bf16.msra.mxu0 %v9846
    %9973 = vmatprep.subr.bf16.mxu0 %v9838
    %9974 = vmatpush1.bf16.msra.mxu0 %v9837
    %9975 = vmatprep.subr.bf16.mxu0 %v9829
    %9976 = vmatpush1.bf16.msra.mxu0 %v9828
    %9977 = vmatprep.subr.bf16.mxu0 %v9820
    %9978 = vmatpush1.bf16.msra.mxu0 %v9819
    %9979 = vmatprep.subr.bf16.mxu0 0
    %9980 = vmatpush2.bf16.msra.mxu0 0
    %9981 = vmatprep.subr.bf16.mxu0 0
    %9982 = vmatpush2.bf16.msra.mxu0 0
    %9983 = vmatprep.subr.bf16.mxu0 0
    %9984 = vmatpush2.bf16.msra.mxu0 0
    %9985 = vmatprep.subr.bf16.mxu0 0
    %9986 = vmatpush2.bf16.msra.mxu0 0
    %9987 = vmatprep.subr.bf16.mxu0 0
    %9988 = vmatpush2.bf16.msra.mxu0 0
    %9989 = vmatprep.subr.bf16.mxu0 0
    %9990 = vmatpush2.bf16.msra.mxu0 0
    %9991 = vmatprep.subr.bf16.mxu0 0
    %9992 = vmatpush2.bf16.msra.mxu0 0
    %9993 = vmatprep.subr.bf16.mxu0 0
    %9994 = vmatpush2.bf16.msra.mxu0 0
    %9995 = vmatprep.mubr.bf16.mxu0 0
    %9996 = vmatmul.mubr.bf16.gmra.mxu0 %v9514
    %v9997 = vpop.f32.mrf.mxu0
    %v9998 = vadd.f32 0.0, %v9997
    %v9999 = vpop.f32.mrf.mxu0
    %v10000 = vadd.f32 0.0, %v9999
    %v10001 = vpop.f32.mrf.mxu0
    %v10002 = vpop.f32.mrf.mxu0
    %10003 = vdwg.mxu0
    %10004 = vmatprep.subr.bf16.mxu0 %v9885
    %10005 = vmatpush1.bf16.msra.mxu0 %v9884
    %10006 = vmatprep.subr.bf16.mxu0 %v9876
    %10007 = vmatpush1.bf16.msra.mxu0 %v9875
    %10008 = vmatprep.subr.bf16.mxu0 %v9867
    %10009 = vmatpush1.bf16.msra.mxu0 %v9866
    %10010 = vmatprep.subr.bf16.mxu0 %v9858
    %10011 = vmatpush1.bf16.msra.mxu0 %v9857
    %10012 = vmatprep.subr.bf16.mxu0 %v9849
    %10013 = vmatpush1.bf16.msra.mxu0 %v9848
    %10014 = vmatprep.subr.bf16.mxu0 %v9840
    %10015 = vmatpush1.bf16.msra.mxu0 %v9839
    %10016 = vmatprep.subr.bf16.mxu0 %v9831
    %10017 = vmatpush1.bf16.msra.mxu0 %v9830
    %10018 = vmatprep.subr.bf16.mxu0 %v9822
    %10019 = vmatpush1.bf16.msra.mxu0 %v9821
    %10020 = vmatprep.subr.bf16.mxu0 0
    %10021 = vmatpush2.bf16.msra.mxu0 0
    %10022 = vmatprep.subr.bf16.mxu0 0
    %10023 = vmatpush2.bf16.msra.mxu0 0
    %10024 = vmatprep.subr.bf16.mxu0 0
    %10025 = vmatpush2.bf16.msra.mxu0 0
    %10026 = vmatprep.subr.bf16.mxu0 0
    %10027 = vmatpush2.bf16.msra.mxu0 0
    %10028 = vmatprep.subr.bf16.mxu0 0
    %10029 = vmatpush2.bf16.msra.mxu0 0
    %10030 = vmatprep.subr.bf16.mxu0 0
    %10031 = vmatpush2.bf16.msra.mxu0 0
    %10032 = vmatprep.subr.bf16.mxu0 0
    %10033 = vmatpush2.bf16.msra.mxu0 0
    %10034 = vmatprep.subr.bf16.mxu0 0
    %10035 = vmatpush2.bf16.msra.mxu0 0
    %10036 = vmatprep.mubr.bf16.mxu0 0
    %10037 = vmatmul.mubr.bf16.gmra.mxu0 %v9514
    %v10038 = vpop.f32.mrf.mxu0
    %v10039 = vadd.f32 0.0, %v10038
    %v10040 = vpop.f32.mrf.mxu0
    %v10041 = vadd.f32 0.0, %v10040
    %v10042 = vpop.f32.mrf.mxu0
    %v10043 = vpop.f32.mrf.mxu0
    %10044 = vdwg.mxu0
    %10045 = vmatprep.subr.bf16.mxu0 %v9887
    %10046 = vmatpush1.bf16.msra.mxu0 %v9886
    %10047 = vmatprep.subr.bf16.mxu0 %v9878
    %10048 = vmatpush1.bf16.msra.mxu0 %v9877
    %10049 = vmatprep.subr.bf16.mxu0 %v9869
    %10050 = vmatpush1.bf16.msra.mxu0 %v9868
    %10051 = vmatprep.subr.bf16.mxu0 %v9860
    %10052 = vmatpush1.bf16.msra.mxu0 %v9859
    %10053 = vmatprep.subr.bf16.mxu0 %v9851
    %10054 = vmatpush1.bf16.msra.mxu0 %v9850
    %10055 = vmatprep.subr.bf16.mxu0 %v9842
    %10056 = vmatpush1.bf16.msra.mxu0 %v9841
    %10057 = vmatprep.subr.bf16.mxu0 %v9833
    %10058 = vmatpush1.bf16.msra.mxu0 %v9832
    %10059 = vmatprep.subr.bf16.mxu0 %v9824
    %10060 = vmatpush1.bf16.msra.mxu0 %v9823
    %10061 = vmatprep.subr.bf16.mxu0 0
    %10062 = vmatpush2.bf16.msra.mxu0 0
    %10063 = vmatprep.subr.bf16.mxu0 0
    %10064 = vmatpush2.bf16.msra.mxu0 0
    %10065 = vmatprep.subr.bf16.mxu0 0
    %10066 = vmatpush2.bf16.msra.mxu0 0
    %10067 = vmatprep.subr.bf16.mxu0 0
    %10068 = vmatpush2.bf16.msra.mxu0 0
    %10069 = vmatprep.subr.bf16.mxu0 0
    %10070 = vmatpush2.bf16.msra.mxu0 0
    %10071 = vmatprep.subr.bf16.mxu0 0
    %10072 = vmatpush2.bf16.msra.mxu0 0
    %10073 = vmatprep.subr.bf16.mxu0 0
    %10074 = vmatpush2.bf16.msra.mxu0 0
    %10075 = vmatprep.subr.bf16.mxu0 0
    %10076 = vmatpush2.bf16.msra.mxu0 0
    %10077 = vmatprep.mubr.bf16.mxu0 0
    %10078 = vmatmul.mubr.bf16.gmra.mxu0 %v9514
    %v10079 = vpop.f32.mrf.mxu0
    %v10080 = vadd.f32 0.0, %v10079
    %v10081 = vpop.f32.mrf.mxu0
    %v10082 = vadd.f32 0.0, %v10081
    %v10083 = vpop.f32.mrf.mxu0
    %v10084 = vpop.f32.mrf.mxu0
    %10085 = vdwg.mxu0
    %10086 = vmatprep.subr.bf16.mxu0 %v9889
    %10087 = vmatpush1.bf16.msra.mxu0 %v9888
    %10088 = vmatprep.subr.bf16.mxu0 %v9880
    %10089 = vmatpush1.bf16.msra.mxu0 %v9879
    %10090 = vmatprep.subr.bf16.mxu0 %v9871
    %10091 = vmatpush1.bf16.msra.mxu0 %v9870
    %10092 = vmatprep.subr.bf16.mxu0 %v9862
    %10093 = vmatpush1.bf16.msra.mxu0 %v9861
    %10094 = vmatprep.subr.bf16.mxu0 %v9853
    %10095 = vmatpush1.bf16.msra.mxu0 %v9852
    %10096 = vmatprep.subr.bf16.mxu0 %v9844
    %10097 = vmatpush1.bf16.msra.mxu0 %v9843
    %10098 = vmatprep.subr.bf16.mxu0 %v9835
    %10099 = vmatpush1.bf16.msra.mxu0 %v9834
    %10100 = vmatprep.subr.bf16.mxu0 %v9826
    %10101 = vmatpush1.bf16.msra.mxu0 %v9825
    %10102 = vmatprep.subr.bf16.mxu0 0
    %10103 = vmatpush2.bf16.msra.mxu0 0
    %10104 = vmatprep.subr.bf16.mxu0 0
    %10105 = vmatpush2.bf16.msra.mxu0 0
    %10106 = vmatprep.subr.bf16.mxu0 0
    %10107 = vmatpush2.bf16.msra.mxu0 0
    %10108 = vmatprep.subr.bf16.mxu0 0
    %10109 = vmatpush2.bf16.msra.mxu0 0
    %10110 = vmatprep.subr.bf16.mxu0 0
    %10111 = vmatpush2.bf16.msra.mxu0 0
    %10112 = vmatprep.subr.bf16.mxu0 0
    %10113 = vmatpush2.bf16.msra.mxu0 0
    %10114 = vmatprep.subr.bf16.mxu0 0
    %10115 = vmatpush2.bf16.msra.mxu0 0
    %10116 = vmatprep.subr.bf16.mxu0 0
    %10117 = vmatpush2.bf16.msra.mxu0 0
    %10118 = vmatprep.mubr.bf16.mxu0 0
    %10119 = vmatmul.mubr.bf16.gmra.mxu0 %v9514
    %v10120 = vpop.f32.mrf.mxu0
    %v10121 = vadd.f32 0.0, %v10120
    %v10122 = vpop.f32.mrf.mxu0
    %v10123 = vadd.f32 0.0, %v10122
    %v10124 = vpop.f32.mrf.mxu0
    %v10125 = vpop.f32.mrf.mxu0
    %10126 = vdwg.mxu0
    %10127 = vmatprep.subr.bf16.mxu0 0
    %10128 = vmatpush1.bf16.msra.mxu0 %v9890
    %10129 = vmatprep.subr.bf16.mxu0 0
    %10130 = vmatpush1.bf16.msra.mxu0 %v9881
    %10131 = vmatprep.subr.bf16.mxu0 0
    %10132 = vmatpush1.bf16.msra.mxu0 %v9872
    %10133 = vmatprep.subr.bf16.mxu0 0
    %10134 = vmatpush1.bf16.msra.mxu0 %v9863
    %10135 = vmatprep.subr.bf16.mxu0 0
    %10136 = vmatpush1.bf16.msra.mxu0 %v9854
    %10137 = vmatprep.subr.bf16.mxu0 0
    %10138 = vmatpush1.bf16.msra.mxu0 %v9845
    %10139 = vmatprep.subr.bf16.mxu0 0
    %10140 = vmatpush1.bf16.msra.mxu0 %v9836
    %10141 = vmatprep.subr.bf16.mxu0 0
    %10142 = vmatpush1.bf16.msra.mxu0 %v9827
    %10143 = vmatprep.subr.bf16.mxu0 0
    %10144 = vmatpush2.bf16.msra.mxu0 0
    %10145 = vmatprep.subr.bf16.mxu0 0
    %10146 = vmatpush2.bf16.msra.mxu0 0
    %10147 = vmatprep.subr.bf16.mxu0 0
    %10148 = vmatpush2.bf16.msra.mxu0 0
    %10149 = vmatprep.subr.bf16.mxu0 0
    %10150 = vmatpush2.bf16.msra.mxu0 0
    %10151 = vmatprep.subr.bf16.mxu0 0
    %10152 = vmatpush2.bf16.msra.mxu0 0
    %10153 = vmatprep.subr.bf16.mxu0 0
    %10154 = vmatpush2.bf16.msra.mxu0 0
    %10155 = vmatprep.subr.bf16.mxu0 0
    %10156 = vmatpush2.bf16.msra.mxu0 0
    %10157 = vmatprep.subr.bf16.mxu0 0
    %10158 = vmatpush2.bf16.msra.mxu0 0
    %10159 = vmatprep.mubr.bf16.mxu0 0
    %10160 = vmatmul.mubr.bf16.gmra.mxu0 %v9514
    %v10161 = vpop.f32.mrf.mxu0
    %v10162 = vadd.f32 0.0, %v10161
    %v10163 = vpop.f32.mrf.mxu0
    %v10164 = vpop.f32.mrf.mxu0
    %v10165 = vpop.f32.mrf.mxu0
    %10166 = vdwg.mxu0
    %v10167 = vpack.c.bf16 %v9998, %v9998
    %v10168 = vpack.c.bf16 %v10000, %v10000
    %v10169 = vpack.c.bf16 %v10039, %v10039
    %v10170 = vpack.c.bf16 %v10041, %v10041
    %v10171 = vpack.c.bf16 %v10080, %v10080
    %v10172 = vpack.c.bf16 %v10082, %v10082
    %v10173 = vpack.c.bf16 %v10121, %v10121
    %v10174 = vpack.c.bf16 %v10123, %v10123
    %v10175 = vpack.c.bf16 %v10162, %v10162
    %v10176 = vld [vmem:[%s11] sm:$0xf]
    %s10177 = scalar_lea.vmem %s11, 4
    %v10178 = vld [vmem:[%s10177] sm:$0xf]
    %vm10179 = vcmask 64512
    %v10181 = vsel %vm10179, %v10178, 0
    %vm10183 = vcmask 1043456
    %v10185 = vsel %vm10183, %v10168, 0
    %10187 = vmatprep.subr.bf16.mxu0 0
    %10188 = vmatpush1.bf16.msra.mxu0 0
    %10189 = vmatprep.subr.bf16.mxu0 0
    %10190 = vmatpush1.bf16.msra.mxu0 0
    %10191 = vmatprep.subr.bf16.mxu0 0
    %10192 = vmatpush1.bf16.msra.mxu0 0
    %10193 = vmatprep.subr.bf16.mxu0 0
    %10194 = vmatpush1.bf16.msra.mxu0 0
    %10195 = vmatprep.subr.bf16.mxu0 0
    %10196 = vmatpush1.bf16.msra.mxu0 0
    %10197 = vmatprep.subr.bf16.mxu0 0
    %10198 = vmatpush1.bf16.msra.mxu0 0
    %10199 = vmatprep.subr.bf16.mxu0 0
    %10200 = vmatpush1.bf16.msra.mxu0 0
    %10201 = vmatprep.subr.bf16.mxu0 0
    %10202 = vmatpush1.bf16.msra.mxu0 %v10185
    %10203 = vmatprep.subr.bf16.mxu0 0
    %10204 = vmatpush2.bf16.msra.mxu0 0
    %10205 = vmatprep.subr.bf16.mxu0 0
    %10206 = vmatpush2.bf16.msra.mxu0 0
    %10207 = vmatprep.subr.bf16.mxu0 0
    %10208 = vmatpush2.bf16.msra.mxu0 0
    %10209 = vmatprep.subr.bf16.mxu0 0
    %10210 = vmatpush2.bf16.msra.mxu0 0
    %10211 = vmatprep.subr.bf16.mxu0 0
    %10212 = vmatpush2.bf16.msra.mxu0 0
    %10213 = vmatprep.subr.bf16.mxu0 0
    %10214 = vmatpush2.bf16.msra.mxu0 0
    %10215 = vmatprep.subr.bf16.mxu0 0
    %10216 = vmatpush2.bf16.msra.mxu0 0
    %10217 = vmatprep.subr.bf16.mxu0 0
    %10218 = vmatpush2.bf16.msra.mxu0 0
    %10219 = vmatprep.mubr.bf16.mxu0 0
    %10220 = vmatmul.mubr.bf16.gmra.mxu0 %v10181
    %v10221 = vpop.f32.mrf.mxu0
    %v10222 = vadd.f32 0.0, %v10221
    %v10223 = vpop.f32.mrf.mxu0
    %v10224 = vpop.f32.mrf.mxu0
    %v10225 = vpop.f32.mrf.mxu0
    %10226 = vdwg.mxu0
    %v10228 = vsel %vm10179, %v10176, 0
    %v10231 = vsel %vm10183, %v10167, 0
    %10233 = vmatprep.subr.bf16.mxu0 0
    %10234 = vmatpush1.bf16.msra.mxu0 0
    %10235 = vmatprep.subr.bf16.mxu0 0
    %10236 = vmatpush1.bf16.msra.mxu0 0
    %10237 = vmatprep.subr.bf16.mxu0 0
    %10238 = vmatpush1.bf16.msra.mxu0 0
    %10239 = vmatprep.subr.bf16.mxu0 0
    %10240 = vmatpush1.bf16.msra.mxu0 0
    %10241 = vmatprep.subr.bf16.mxu0 0
    %10242 = vmatpush1.bf16.msra.mxu0 0
    %10243 = vmatprep.subr.bf16.mxu0 0
    %10244 = vmatpush1.bf16.msra.mxu0 0
    %10245 = vmatprep.subr.bf16.mxu0 0
    %10246 = vmatpush1.bf16.msra.mxu0 0
    %10247 = vmatprep.subr.bf16.mxu0 0
    %10248 = vmatpush1.bf16.msra.mxu0 %v10231
    %10249 = vmatprep.subr.bf16.mxu0 0
    %10250 = vmatpush2.bf16.msra.mxu0 0
    %10251 = vmatprep.subr.bf16.mxu0 0
    %10252 = vmatpush2.bf16.msra.mxu0 0
    %10253 = vmatprep.subr.bf16.mxu0 0
    %10254 = vmatpush2.bf16.msra.mxu0 0
    %10255 = vmatprep.subr.bf16.mxu0 0
    %10256 = vmatpush2.bf16.msra.mxu0 0
    %10257 = vmatprep.subr.bf16.mxu0 0
    %10258 = vmatpush2.bf16.msra.mxu0 0
    %10259 = vmatprep.subr.bf16.mxu0 0
    %10260 = vmatpush2.bf16.msra.mxu0 0
    %10261 = vmatprep.subr.bf16.mxu0 0
    %10262 = vmatpush2.bf16.msra.mxu0 0
    %10263 = vmatprep.subr.bf16.mxu0 0
    %10264 = vmatpush2.bf16.msra.mxu0 0
    %10265 = vmatprep.mubr.bf16.mxu0 0
    %10266 = vmatmul.mubr.bf16.gmra.mxu0 %v10228
    %v10267 = vpop.f32.mrf.mxu0
    %v10268 = vadd.f32 %v10222, %v10267
    %v10269 = vpop.f32.mrf.mxu0
    %v10270 = vpop.f32.mrf.mxu0
    %v10271 = vpop.f32.mrf.mxu0
    %10272 = vdwg.mxu0
    %s10273 = scalar_lea.vmem %s11, 8
    %v10274 = vld [vmem:[%s10273] sm:$0xf]
    %v10276 = vsel %vm10179, %v10274, 0
    %v10279 = vsel %vm10183, %v10169, 0
    %10281 = vmatprep.subr.bf16.mxu0 0
    %10282 = vmatpush1.bf16.msra.mxu0 0
    %10283 = vmatprep.subr.bf16.mxu0 0
    %10284 = vmatpush1.bf16.msra.mxu0 0
    %10285 = vmatprep.subr.bf16.mxu0 0
    %10286 = vmatpush1.bf16.msra.mxu0 0
    %10287 = vmatprep.subr.bf16.mxu0 0
    %10288 = vmatpush1.bf16.msra.mxu0 0
    %10289 = vmatprep.subr.bf16.mxu0 0
    %10290 = vmatpush1.bf16.msra.mxu0 0
    %10291 = vmatprep.subr.bf16.mxu0 0
    %10292 = vmatpush1.bf16.msra.mxu0 0
    %10293 = vmatprep.subr.bf16.mxu0 0
    %10294 = vmatpush1.bf16.msra.mxu0 0
    %10295 = vmatprep.subr.bf16.mxu0 0
    %10296 = vmatpush1.bf16.msra.mxu0 %v10279
    %10297 = vmatprep.subr.bf16.mxu0 0
    %10298 = vmatpush2.bf16.msra.mxu0 0
    %10299 = vmatprep.subr.bf16.mxu0 0
    %10300 = vmatpush2.bf16.msra.mxu0 0
    %10301 = vmatprep.subr.bf16.mxu0 0
    %10302 = vmatpush2.bf16.msra.mxu0 0
    %10303 = vmatprep.subr.bf16.mxu0 0
    %10304 = vmatpush2.bf16.msra.mxu0 0
    %10305 = vmatprep.subr.bf16.mxu0 0
    %10306 = vmatpush2.bf16.msra.mxu0 0
    %10307 = vmatprep.subr.bf16.mxu0 0
    %10308 = vmatpush2.bf16.msra.mxu0 0
    %10309 = vmatprep.subr.bf16.mxu0 0
    %10310 = vmatpush2.bf16.msra.mxu0 0
    %10311 = vmatprep.subr.bf16.mxu0 0
    %10312 = vmatpush2.bf16.msra.mxu0 0
    %10313 = vmatprep.mubr.bf16.mxu0 0
    %10314 = vmatmul.mubr.bf16.gmra.mxu0 %v10276
    %v10315 = vpop.f32.mrf.mxu0
    %v10316 = vadd.f32 0.0, %v10315
    %v10317 = vpop.f32.mrf.mxu0
    %v10318 = vpop.f32.mrf.mxu0
    %v10319 = vpop.f32.mrf.mxu0
    %10320 = vdwg.mxu0
    %v10321 = vadd.f32 %v10268, %v10316
    %s10322 = scalar_lea.vmem %s11, 12
    %v10323 = vld [vmem:[%s10322] sm:$0xf]
    %v10325 = vsel %vm10179, %v10323, 0
    %v10328 = vsel %vm10183, %v10170, 0
    %10330 = vmatprep.subr.bf16.mxu0 0
    %10331 = vmatpush1.bf16.msra.mxu0 0
    %10332 = vmatprep.subr.bf16.mxu0 0
    %10333 = vmatpush1.bf16.msra.mxu0 0
    %10334 = vmatprep.subr.bf16.mxu0 0
    %10335 = vmatpush1.bf16.msra.mxu0 0
    %10336 = vmatprep.subr.bf16.mxu0 0
    %10337 = vmatpush1.bf16.msra.mxu0 0
    %10338 = vmatprep.subr.bf16.mxu0 0
    %10339 = vmatpush1.bf16.msra.mxu0 0
    %10340 = vmatprep.subr.bf16.mxu0 0
    %10341 = vmatpush1.bf16.msra.mxu0 0
    %10342 = vmatprep.subr.bf16.mxu0 0
    %10343 = vmatpush1.bf16.msra.mxu0 0
    %10344 = vmatprep.subr.bf16.mxu0 0
    %10345 = vmatpush1.bf16.msra.mxu0 %v10328
    %10346 = vmatprep.subr.bf16.mxu0 0
    %10347 = vmatpush2.bf16.msra.mxu0 0
    %10348 = vmatprep.subr.bf16.mxu0 0
    %10349 = vmatpush2.bf16.msra.mxu0 0
    %10350 = vmatprep.subr.bf16.mxu0 0
    %10351 = vmatpush2.bf16.msra.mxu0 0
    %10352 = vmatprep.subr.bf16.mxu0 0
    %10353 = vmatpush2.bf16.msra.mxu0 0
    %10354 = vmatprep.subr.bf16.mxu0 0
    %10355 = vmatpush2.bf16.msra.mxu0 0
    %10356 = vmatprep.subr.bf16.mxu0 0
    %10357 = vmatpush2.bf16.msra.mxu0 0
    %10358 = vmatprep.subr.bf16.mxu0 0
    %10359 = vmatpush2.bf16.msra.mxu0 0
    %10360 = vmatprep.subr.bf16.mxu0 0
    %10361 = vmatpush2.bf16.msra.mxu0 0
    %10362 = vmatprep.mubr.bf16.mxu0 0
    %10363 = vmatmul.mubr.bf16.gmra.mxu0 %v10325
    %v10364 = vpop.f32.mrf.mxu0
    %v10365 = vadd.f32 0.0, %v10364
    %v10366 = vpop.f32.mrf.mxu0
    %v10367 = vpop.f32.mrf.mxu0
    %v10368 = vpop.f32.mrf.mxu0
    %10369 = vdwg.mxu0
    %v10370 = vadd.f32 %v10321, %v10365
    %s10371 = scalar_lea.vmem %s11, 16
    %v10372 = vld [vmem:[%s10371] sm:$0xf]
    %v10374 = vsel %vm10179, %v10372, 0
    %v10377 = vsel %vm10183, %v10171, 0
    %10379 = vmatprep.subr.bf16.mxu0 0
    %10380 = vmatpush1.bf16.msra.mxu0 0
    %10381 = vmatprep.subr.bf16.mxu0 0
    %10382 = vmatpush1.bf16.msra.mxu0 0
    %10383 = vmatprep.subr.bf16.mxu0 0
    %10384 = vmatpush1.bf16.msra.mxu0 0
    %10385 = vmatprep.subr.bf16.mxu0 0
    %10386 = vmatpush1.bf16.msra.mxu0 0
    %10387 = vmatprep.subr.bf16.mxu0 0
    %10388 = vmatpush1.bf16.msra.mxu0 0
    %10389 = vmatprep.subr.bf16.mxu0 0
    %10390 = vmatpush1.bf16.msra.mxu0 0
    %10391 = vmatprep.subr.bf16.mxu0 0
    %10392 = vmatpush1.bf16.msra.mxu0 0
    %10393 = vmatprep.subr.bf16.mxu0 0
    %10394 = vmatpush1.bf16.msra.mxu0 %v10377
    %10395 = vmatprep.subr.bf16.mxu0 0
    %10396 = vmatpush2.bf16.msra.mxu0 0
    %10397 = vmatprep.subr.bf16.mxu0 0
    %10398 = vmatpush2.bf16.msra.mxu0 0
    %10399 = vmatprep.subr.bf16.mxu0 0
    %10400 = vmatpush2.bf16.msra.mxu0 0
    %10401 = vmatprep.subr.bf16.mxu0 0
    %10402 = vmatpush2.bf16.msra.mxu0 0
    %10403 = vmatprep.subr.bf16.mxu0 0
    %10404 = vmatpush2.bf16.msra.mxu0 0
    %10405 = vmatprep.subr.bf16.mxu0 0
    %10406 = vmatpush2.bf16.msra.mxu0 0
    %10407 = vmatprep.subr.bf16.mxu0 0
    %10408 = vmatpush2.bf16.msra.mxu0 0
    %10409 = vmatprep.subr.bf16.mxu0 0
    %10410 = vmatpush2.bf16.msra.mxu0 0
    %10411 = vmatprep.mubr.bf16.mxu0 0
    %10412 = vmatmul.mubr.bf16.gmra.mxu0 %v10374
    %v10413 = vpop.f32.mrf.mxu0
    %v10414 = vadd.f32 0.0, %v10413
    %v10415 = vpop.f32.mrf.mxu0
    %v10416 = vpop.f32.mrf.mxu0
    %v10417 = vpop.f32.mrf.mxu0
    %10418 = vdwg.mxu0
    %v10419 = vadd.f32 %v10370, %v10414
    %s10420 = scalar_lea.vmem %s11, 20
    %v10421 = vld [vmem:[%s10420] sm:$0xf]
    %v10423 = vsel %vm10179, %v10421, 0
    %v10426 = vsel %vm10183, %v10172, 0
    %10428 = vmatprep.subr.bf16.mxu0 0
    %10429 = vmatpush1.bf16.msra.mxu0 0
    %10430 = vmatprep.subr.bf16.mxu0 0
    %10431 = vmatpush1.bf16.msra.mxu0 0
    %10432 = vmatprep.subr.bf16.mxu0 0
    %10433 = vmatpush1.bf16.msra.mxu0 0
    %10434 = vmatprep.subr.bf16.mxu0 0
    %10435 = vmatpush1.bf16.msra.mxu0 0
    %10436 = vmatprep.subr.bf16.mxu0 0
    %10437 = vmatpush1.bf16.msra.mxu0 0
    %10438 = vmatprep.subr.bf16.mxu0 0
    %10439 = vmatpush1.bf16.msra.mxu0 0
    %10440 = vmatprep.subr.bf16.mxu0 0
    %10441 = vmatpush1.bf16.msra.mxu0 0
    %10442 = vmatprep.subr.bf16.mxu0 0
    %10443 = vmatpush1.bf16.msra.mxu0 %v10426
    %10444 = vmatprep.subr.bf16.mxu0 0
    %10445 = vmatpush2.bf16.msra.mxu0 0
    %10446 = vmatprep.subr.bf16.mxu0 0
    %10447 = vmatpush2.bf16.msra.mxu0 0
    %10448 = vmatprep.subr.bf16.mxu0 0
    %10449 = vmatpush2.bf16.msra.mxu0 0
    %10450 = vmatprep.subr.bf16.mxu0 0
    %10451 = vmatpush2.bf16.msra.mxu0 0
    %10452 = vmatprep.subr.bf16.mxu0 0
    %10453 = vmatpush2.bf16.msra.mxu0 0
    %10454 = vmatprep.subr.bf16.mxu0 0
    %10455 = vmatpush2.bf16.msra.mxu0 0
    %10456 = vmatprep.subr.bf16.mxu0 0
    %10457 = vmatpush2.bf16.msra.mxu0 0
    %10458 = vmatprep.subr.bf16.mxu0 0
    %10459 = vmatpush2.bf16.msra.mxu0 0
    %10460 = vmatprep.mubr.bf16.mxu0 0
    %10461 = vmatmul.mubr.bf16.gmra.mxu0 %v10423
    %v10462 = vpop.f32.mrf.mxu0
    %v10463 = vadd.f32 0.0, %v10462
    %v10464 = vpop.f32.mrf.mxu0
    %v10465 = vpop.f32.mrf.mxu0
    %v10466 = vpop.f32.mrf.mxu0
    %10467 = vdwg.mxu0
    %v10468 = vadd.f32 %v10419, %v10463
    %s10469 = scalar_lea.vmem %s11, 24
    %v10470 = vld [vmem:[%s10469] sm:$0xf]
    %v10472 = vsel %vm10179, %v10470, 0
    %v10475 = vsel %vm10183, %v10173, 0
    %10477 = vmatprep.subr.bf16.mxu0 0
    %10478 = vmatpush1.bf16.msra.mxu0 0
    %10479 = vmatprep.subr.bf16.mxu0 0
    %10480 = vmatpush1.bf16.msra.mxu0 0
    %10481 = vmatprep.subr.bf16.mxu0 0
    %10482 = vmatpush1.bf16.msra.mxu0 0
    %10483 = vmatprep.subr.bf16.mxu0 0
    %10484 = vmatpush1.bf16.msra.mxu0 0
    %10485 = vmatprep.subr.bf16.mxu0 0
    %10486 = vmatpush1.bf16.msra.mxu0 0
    %10487 = vmatprep.subr.bf16.mxu0 0
    %10488 = vmatpush1.bf16.msra.mxu0 0
    %10489 = vmatprep.subr.bf16.mxu0 0
    %10490 = vmatpush1.bf16.msra.mxu0 0
    %10491 = vmatprep.subr.bf16.mxu0 0
    %10492 = vmatpush1.bf16.msra.mxu0 %v10475
    %10493 = vmatprep.subr.bf16.mxu0 0
    %10494 = vmatpush2.bf16.msra.mxu0 0
    %10495 = vmatprep.subr.bf16.mxu0 0
    %10496 = vmatpush2.bf16.msra.mxu0 0
    %10497 = vmatprep.subr.bf16.mxu0 0
    %10498 = vmatpush2.bf16.msra.mxu0 0
    %10499 = vmatprep.subr.bf16.mxu0 0
    %10500 = vmatpush2.bf16.msra.mxu0 0
    %10501 = vmatprep.subr.bf16.mxu0 0
    %10502 = vmatpush2.bf16.msra.mxu0 0
    %10503 = vmatprep.subr.bf16.mxu0 0
    %10504 = vmatpush2.bf16.msra.mxu0 0
    %10505 = vmatprep.subr.bf16.mxu0 0
    %10506 = vmatpush2.bf16.msra.mxu0 0
    %10507 = vmatprep.subr.bf16.mxu0 0
    %10508 = vmatpush2.bf16.msra.mxu0 0
    %10509 = vmatprep.mubr.bf16.mxu0 0
    %10510 = vmatmul.mubr.bf16.gmra.mxu0 %v10472
    %v10511 = vpop.f32.mrf.mxu0
    %v10512 = vadd.f32 0.0, %v10511
    %v10513 = vpop.f32.mrf.mxu0
    %v10514 = vpop.f32.mrf.mxu0
    %v10515 = vpop.f32.mrf.mxu0
    %10516 = vdwg.mxu0
    %v10517 = vadd.f32 %v10468, %v10512
    %s10518 = scalar_lea.vmem %s11, 28
    %v10519 = vld [vmem:[%s10518] sm:$0xf]
    %v10521 = vsel %vm10179, %v10519, 0
    %v10524 = vsel %vm10183, %v10174, 0
    %10526 = vmatprep.subr.bf16.mxu0 0
    %10527 = vmatpush1.bf16.msra.mxu0 0
    %10528 = vmatprep.subr.bf16.mxu0 0
    %10529 = vmatpush1.bf16.msra.mxu0 0
    %10530 = vmatprep.subr.bf16.mxu0 0
    %10531 = vmatpush1.bf16.msra.mxu0 0
    %10532 = vmatprep.subr.bf16.mxu0 0
    %10533 = vmatpush1.bf16.msra.mxu0 0
    %10534 = vmatprep.subr.bf16.mxu0 0
    %10535 = vmatpush1.bf16.msra.mxu0 0
    %10536 = vmatprep.subr.bf16.mxu0 0
    %10537 = vmatpush1.bf16.msra.mxu0 0
    %10538 = vmatprep.subr.bf16.mxu0 0
    %10539 = vmatpush1.bf16.msra.mxu0 0
    %10540 = vmatprep.subr.bf16.mxu0 0
    %10541 = vmatpush1.bf16.msra.mxu0 %v10524
    %10542 = vmatprep.subr.bf16.mxu0 0
    %10543 = vmatpush2.bf16.msra.mxu0 0
    %10544 = vmatprep.subr.bf16.mxu0 0
    %10545 = vmatpush2.bf16.msra.mxu0 0
    %10546 = vmatprep.subr.bf16.mxu0 0
    %10547 = vmatpush2.bf16.msra.mxu0 0
    %10548 = vmatprep.subr.bf16.mxu0 0
    %10549 = vmatpush2.bf16.msra.mxu0 0
    %10550 = vmatprep.subr.bf16.mxu0 0
    %10551 = vmatpush2.bf16.msra.mxu0 0
    %10552 = vmatprep.subr.bf16.mxu0 0
    %10553 = vmatpush2.bf16.msra.mxu0 0
    %10554 = vmatprep.subr.bf16.mxu0 0
    %10555 = vmatpush2.bf16.msra.mxu0 0
    %10556 = vmatprep.subr.bf16.mxu0 0
    %10557 = vmatpush2.bf16.msra.mxu0 0
    %10558 = vmatprep.mubr.bf16.mxu0 0
    %10559 = vmatmul.mubr.bf16.gmra.mxu0 %v10521
    %v10560 = vpop.f32.mrf.mxu0
    %v10561 = vadd.f32 0.0, %v10560
    %v10562 = vpop.f32.mrf.mxu0
    %v10563 = vpop.f32.mrf.mxu0
    %v10564 = vpop.f32.mrf.mxu0
    %10565 = vdwg.mxu0
    %v10566 = vadd.f32 %v10517, %v10561
    %s10567 = scalar_lea.vmem %s11, 32
    %v10568 = vld [vmem:[%s10567] sm:$0xf]
    %v10570 = vsel %vm10179, %v10568, 0
    %v10573 = vsel %vm10183, %v10175, 0
    %10575 = vmatprep.subr.bf16.mxu0 0
    %10576 = vmatpush1.bf16.msra.mxu0 0
    %10577 = vmatprep.subr.bf16.mxu0 0
    %10578 = vmatpush1.bf16.msra.mxu0 0
    %10579 = vmatprep.subr.bf16.mxu0 0
    %10580 = vmatpush1.bf16.msra.mxu0 0
    %10581 = vmatprep.subr.bf16.mxu0 0
    %10582 = vmatpush1.bf16.msra.mxu0 0
    %10583 = vmatprep.subr.bf16.mxu0 0
    %10584 = vmatpush1.bf16.msra.mxu0 0
    %10585 = vmatprep.subr.bf16.mxu0 0
    %10586 = vmatpush1.bf16.msra.mxu0 0
    %10587 = vmatprep.subr.bf16.mxu0 0
    %10588 = vmatpush1.bf16.msra.mxu0 0
    %10589 = vmatprep.subr.bf16.mxu0 0
    %10590 = vmatpush1.bf16.msra.mxu0 %v10573
    %10591 = vmatprep.subr.bf16.mxu0 0
    %10592 = vmatpush2.bf16.msra.mxu0 0
    %10593 = vmatprep.subr.bf16.mxu0 0
    %10594 = vmatpush2.bf16.msra.mxu0 0
    %10595 = vmatprep.subr.bf16.mxu0 0
    %10596 = vmatpush2.bf16.msra.mxu0 0
    %10597 = vmatprep.subr.bf16.mxu0 0
    %10598 = vmatpush2.bf16.msra.mxu0 0
    %10599 = vmatprep.subr.bf16.mxu0 0
    %10600 = vmatpush2.bf16.msra.mxu0 0
    %10601 = vmatprep.subr.bf16.mxu0 0
    %10602 = vmatpush2.bf16.msra.mxu0 0
    %10603 = vmatprep.subr.bf16.mxu0 0
    %10604 = vmatpush2.bf16.msra.mxu0 0
    %10605 = vmatprep.subr.bf16.mxu0 0
    %10606 = vmatpush2.bf16.msra.mxu0 0
    %10607 = vmatprep.mubr.bf16.mxu0 0
    %10608 = vmatmul.mubr.bf16.gmra.mxu0 %v10570
    %v10609 = vpop.f32.mrf.mxu0
    %v10610 = vadd.f32 0.0, %v10609
    %v10611 = vpop.f32.mrf.mxu0
    %v10612 = vpop.f32.mrf.mxu0
    %v10613 = vpop.f32.mrf.mxu0
    %10614 = vdwg.mxu0
    %v10615 = vadd.f32 %v10566, %v10610
    %v10616 = vld [vmem:[#allocation18] sm:$0x1]
    %v10617 = vlaneseq
    %v10618 = vshrl.u32 %v10617, 7
    %v10619 = vsub.s32 0, %v10618
    %v10620 = vrot.slane %v10616, %v10619
    %v10621 = vadd.f32 %v10615, %v10620
    %vm10622 = vcmp.gt.f32.partialorder %v10621, 0.0
    %v10623 = vmul.f32 %v10621, 0.2
    %v10624 = vsel %vm10622, %v10621, %v10623
    %v10625 = vld [vmem:[#allocation18 + $0x1] sm:$0x1]
    %v10626 = vlaneseq
    %v10627 = vshrl.u32 %v10626, 7
    %v10628 = vsub.s32 0, %v10627
    %v10629 = vrot.slane %v10625, %v10628
    %v10630 = vmul.f32 %v10624, %v10629
    %v10631 = vld [vmem:[#allocation18 + $0x2] sm:$0x1]
    %v10632 = vlaneseq
    %v10633 = vshrl.u32 %v10632, 7
    %v10634 = vsub.s32 0, %v10633
    %v10635 = vrot.slane %v10631, %v10634
    %v10636 = vadd.f32 %v10630, %v10635
    %v10637 = vpack.c.bf16 %v10636, %v10636
    %v10638 = vld [vmem:[#allocation19] sm:$0xf]
    %v10639 = vld [vmem:[#allocation19 + $0x4] sm:$0xf]
    %v10640 = vld [vmem:[#allocation19 + $0x8] sm:$0xf]
    %v10641 = vld [vmem:[#allocation19 + $0xc] sm:$0xf]
    %v10642 = vld [vmem:[#allocation19 + $0x10] sm:$0xf]
    %v10643 = vld [vmem:[#allocation19 + $0x14] sm:$0xf]
    %v10644 = vld [vmem:[#allocation19 + $0x18] sm:$0xf]
    %v10645 = vld [vmem:[#allocation19 + $0x1c] sm:$0xf]
    %v10646 = vld [vmem:[#allocation19 + $0x20] sm:$0xf]
    %v10647 = vld [vmem:[#allocation19 + $0x24] sm:$0xf]
    %v10648 = vld [vmem:[#allocation19 + $0x28] sm:$0xf]
    %v10649 = vld [vmem:[#allocation19 + $0x2c] sm:$0xf]
    %v10650 = vld [vmem:[#allocation19 + $0x30] sm:$0xf]
    %v10651 = vld [vmem:[#allocation19 + $0x34] sm:$0xf]
    %v10652 = vld [vmem:[#allocation19 + $0x38] sm:$0xf]
    %v10653 = vld [vmem:[#allocation19 + $0x3c] sm:$0xf]
    %v10654 = vld [vmem:[#allocation21] sm:$0x1]
    %v10656 = vlaneseq
    %v10657 = vshrl.u32 %v10656, 7
    %v10658 = vsub.s32 0, %v10657
    %v10659 = vrot.slane %v10654, %v10658
    %v10677 = vunpack.c.l.b16 %v10638
    %v10678 = vunpack.c.l.b16 %v10639
    %v10679 = vunpack.c.l.b16 %v10640
    %v10680 = vunpack.c.l.b16 %v10641
    %v10681 = vunpack.c.l.b16 %v10642
    %v10682 = vunpack.c.l.b16 %v10643
    %v10683 = vunpack.c.l.b16 %v10644
    %v10684 = vunpack.c.l.b16 %v10645
    %v10685 = vunpack.c.l.b16 %v10646
    %v10686 = vunpack.c.l.b16 %v10647
    %v10687 = vunpack.c.l.b16 %v10648
    %v10688 = vunpack.c.l.b16 %v10649
    %v10689 = vunpack.c.l.b16 %v10650
    %v10690 = vunpack.c.l.b16 %v10651
    %v10691 = vunpack.c.l.b16 %v10652
    %v10692 = vunpack.c.l.b16 %v10653
    %v10693 = vpack.c.b16 %v10678, %v10677
    %v10694 = vpack.c.b16 %v10680, %v10679
    %v10695 = vpack.c.b16 %v10682, %v10681
    %v10696 = vpack.c.b16 %v10684, %v10683
    %v10697 = vpack.c.b16 %v10686, %v10685
    %v10698 = vpack.c.b16 %v10688, %v10687
    %v10699 = vpack.c.b16 %v10690, %v10689
    %v10700 = vpack.c.b16 %v10692, %v10691
    %10709 = vmatprep.subr.bf16.mxu0 0
    %10710 = vmatpush1.bf16.msra.mxu0 %v10700
    %10711 = vmatprep.subr.bf16.mxu0 0
    %10712 = vmatpush1.bf16.msra.mxu0 %v10699
    %10713 = vmatprep.subr.bf16.mxu0 0
    %10714 = vmatpush1.bf16.msra.mxu0 %v10698
    %10715 = vmatprep.subr.bf16.mxu0 0
    %10716 = vmatpush1.bf16.msra.mxu0 %v10697
    %10717 = vmatprep.subr.bf16.mxu0 0
    %10718 = vmatpush1.bf16.msra.mxu0 %v10696
    %10719 = vmatprep.subr.bf16.mxu0 0
    %10720 = vmatpush1.bf16.msra.mxu0 %v10695
    %10721 = vmatprep.subr.bf16.mxu0 0
    %10722 = vmatpush1.bf16.msra.mxu0 %v10694
    %10723 = vmatprep.subr.bf16.mxu0 0
    %10724 = vmatpush1.bf16.msra.mxu0 %v10693
    %10725 = vmatprep.subr.bf16.mxu0 0
    %10726 = vmatpush2.bf16.msra.mxu0 0
    %10727 = vmatprep.subr.bf16.mxu0 0
    %10728 = vmatpush2.bf16.msra.mxu0 0
    %10729 = vmatprep.subr.bf16.mxu0 0
    %10730 = vmatpush2.bf16.msra.mxu0 0
    %10731 = vmatprep.subr.bf16.mxu0 0
    %10732 = vmatpush2.bf16.msra.mxu0 0
    %10733 = vmatprep.subr.bf16.mxu0 0
    %10734 = vmatpush2.bf16.msra.mxu0 0
    %10735 = vmatprep.subr.bf16.mxu0 0
    %10736 = vmatpush2.bf16.msra.mxu0 0
    %10737 = vmatprep.subr.bf16.mxu0 0
    %10738 = vmatpush2.bf16.msra.mxu0 0
    %10739 = vmatprep.subr.bf16.mxu0 0
    %10740 = vmatpush2.bf16.msra.mxu0 0
    %10741 = vmatprep.mubr.bf16.mxu0 0
    %10742 = vmatmul.mubr.bf16.gmra.mxu0 %v10637
    %v10743 = vpop.f32.mrf.mxu0
    %v10744 = vadd.f32 %v10659, %v10743
    %v10745 = vpop.f32.mrf.mxu0
    %v10746 = vpop.f32.mrf.mxu0
    %v10747 = vpop.f32.mrf.mxu0
    %10748 = vdwg.mxu0
    %v10749 = vsub.f32 0.0, %v10744
    %v10750 = vmul.f32 %v10749, 1.442695
    %v10751 = vpow.pop %v10750
    %v10752 = vadd.f32 %v10751, 1.0
    %v10753 = vrcp.pop %v10752
    %v10754 = vmul.f32 1.0, %v10753
    %10755 = vst [vmem:[%s15] sm:$0xff] %v10754
    // Predicated region
    $region114: #{discriminator_forward.1} parent=1 // pred_check
      _
    $region115: #{discriminator_forward.1} parent=1 // pred_check_branch
      %10757 = sbr.rel (0) target = $region117
    $region116: #{discriminator_forward.1} parent=1 // pred_region
      _
    $region117: #{discriminator_forward.1} parent=1 // pred_fallthru
      _
    // Predicated region
    $region118: #{discriminator_forward.1} parent=1 // pred_check
      _
    $region119: #{discriminator_forward.1} parent=1 // pred_check_branch
      %10759 = sbr.rel (0) target = $region121
    $region120: #{discriminator_forward.1} parent=1 // pred_region
      _
    $region121: #{discriminator_forward.1} parent=1 // pred_fallthru
      _
    %10760 = vsyncpa [#allocation3], 1
    %10761 = vsyncpa [#allocation5], 1
    %10762 = vsyncpa [#allocation8], 1
    %10763 = vsyncpa [#allocation11], 1
    %10764 = vsyncpa [#allocation14], 1
    %10765 = vsyncpa [#allocation17], 1
    %10766 = vsyncpa [#allocation20], 1

</llo_original>
